<compile_context>
chip_gen: v5e
topology: v5e:2x2
jax: 0.10.0
libtpu: 0.0.40
codegen_flags: <defaults>
</compile_context>

<pallas_src>
import jax
import jax.numpy as jnp
from jax.experimental import pallas as pl
from jax.experimental.pallas import tpu as pltpu

NUM_JOINTS = 9                        # 9 lower-body joints
ROT6D_DIM = NUM_JOINTS * 6            # 54
CONTACT_OFFSET = NUM_JOINTS * 6 + 3   # 57
CONTACT_DIM = 4
CONTACT_THRESH = 0.95
FOOT_JOINT_IDX = (7, 8, 10, 11)
_EPS_SQ = 1e-24                       # (F.normalize eps)^2 = (1e-12)^2
_COS_CLAMP = 1e-6                     # GeodesicLoss clamp margin


def _acos(x):
    """arccos via A&S 4.4.46 polynomial (|err| <= 2e-8), reflected for x < 0.

    sqrt lands on the EUP; the polynomial is cheap VPU filler.
    """
    t = jnp.abs(x)
    p = jnp.float32(-0.0012624911)
    p = p * t + jnp.float32(0.0066700901)
    p = p * t + jnp.float32(-0.0170881256)
    p = p * t + jnp.float32(0.0308918810)
    p = p * t + jnp.float32(-0.0501743046)
    p = p * t + jnp.float32(0.0889789874)
    p = p * t + jnp.float32(-0.2145988016)
    p = p * t + jnp.float32(1.5707963050)
    r = jnp.sqrt(jnp.maximum(1.0 - t, 0.0)) * p
    return jnp.where(x < 0.0, jnp.float32(jnp.pi) - r, r)


def _rot6d_components(a1x, a1y, a1z, a2x, a2y, a2z):
    """6D rotation -> 9 flattened rotation-matrix components (rows b1,b2,b3).

    Matches pytorch3d.rotation_6d_to_matrix; all inputs/outputs are (bt, n)."""
    inv_n1 = jax.lax.rsqrt(jnp.maximum(a1x * a1x + a1y * a1y + a1z * a1z, _EPS_SQ))
    b1x, b1y, b1z = a1x * inv_n1, a1y * inv_n1, a1z * inv_n1
    d = b1x * a2x + b1y * a2y + b1z * a2z
    u2x, u2y, u2z = a2x - d * b1x, a2y - d * b1y, a2z - d * b1z
    inv_n2 = jax.lax.rsqrt(jnp.maximum(u2x * u2x + u2y * u2y + u2z * u2z, _EPS_SQ))
    b2x, b2y, b2z = u2x * inv_n2, u2y * inv_n2, u2z * inv_n2
    b3x = b1y * b2z - b1z * b2y
    b3y = b1z * b2x - b1x * b2z
    b3z = b1x * b2y - b1y * b2x
    return (b1x, b1y, b1z, b2x, b2y, b2z, b3x, b3y, b3z)


def _lower_loss_kernel(rec_ref, tar_ref, jrec_ref, jtar_ref, out_ref):
    # rec_ref/tar_ref: (feat_dim, bt, n); jrec_ref/jtar_ref: (jdim, bt, n)
    # out_ref: (1, 8, 128) per-tile partial sums.
    f32 = jnp.float32
    bt = rec_ref.shape[1]
    n = rec_ref.shape[2]

    theta_acc = jnp.zeros((bt, n), f32)
    vel_acc = jnp.zeros((bt, n - 1), f32)
    acc_acc = jnp.zeros((bt, n - 2), f32)

    for jj in range(NUM_JOINTS):
        base = 6 * jj
        rr = _rot6d_components(*(rec_ref[base + c].astype(f32) for c in range(6)))
        rt = _rot6d_components(*(tar_ref[base + c].astype(f32) for c in range(6)))

        # trace(Rr @ Rt^T) == elementwise sum(Rr * Rt) -> pure VPU work.
        tr = rr[0] * rt[0]
        for c in range(1, 9):
            tr = tr + rr[c] * rt[c]
        cosv = jnp.clip(0.5 * (tr - 1.0), -1.0 + _COS_CLAMP, 1.0 - _COS_CLAMP)
        theta_acc = theta_acc + _acos(cosv)

        # diff(rec) - diff(tar) == diff(rec - tar): compute e once per component.
        for c in range(9):
            e = rr[c] - rt[c]
            d = e[:, 1:] - e[:, :-1]                     # first time difference
            vel_acc = vel_acc + jnp.abs(d)
            acc_acc = acc_acc + jnp.abs(d[:, 1:] - d[:, :-1])   # second difference

    # ---- contact MSE + static masks for the foot-sliding loss ----
    contact_acc = jnp.zeros((bt, n), f32)
    static_masks = []
    for fi in range(CONTACT_DIM):
        rc = rec_ref[CONTACT_OFFSET + fi].astype(f32)
        tc = tar_ref[CONTACT_OFFSET + fi].astype(f32)
        dc = rc - tc
        contact_acc = contact_acc + dc * dc
        static_masks.append((rc[:, :-1] > CONTACT_THRESH).astype(f32))

    # ---- joints MSE: reduce the leading (joint-dim) axis with VPU adds ----
    jr = jrec_ref[...].astype(f32)
    jt = jtar_ref[...].astype(f32)
    dj = jr - jt
    vert_partial = jnp.sum(dj * dj, axis=0)              # (bt, n)

    # ---- foot-sliding: per-foot velocity kept only where rec contact > 0.95 ----
    foot_acc = jnp.zeros((bt, n - 1), f32)
    for fi, q in enumerate(FOOT_JOINT_IDX):
        m = static_masks[fi]
        for c in range(3):
            fj = jrec_ref[3 * q + c].astype(f32)
            v = fj[:, 1:] - fj[:, :-1]                    # last frame contributes 0
            foot_acc = foot_acc + jnp.abs(v) * m

    # ---- single final reduction per loss term ----
    geo_sum = jnp.sum(theta_acc, keepdims=True)           # (1, 1)
    contact_sum = jnp.sum(contact_acc, keepdims=True)
    vel_sum = jnp.sum(vel_acc, keepdims=True)
    acc_sum = jnp.sum(acc_acc, keepdims=True)
    vert_sum = jnp.sum(vert_partial, keepdims=True)
    foot_sum = jnp.sum(foot_acc, keepdims=True)

    # Pack the six partial sums into one full (8,128) unmasked store:
    # row k of the block holds sum k (broadcast along lanes).
    row = jax.lax.broadcasted_iota(jnp.int32, (8, 128), 0)
    zero = jnp.float32(0.0)
    block = (jnp.where(row == 0, geo_sum, zero)
             + jnp.where(row == 1, contact_sum, zero)
             + jnp.where(row == 2, vel_sum, zero)
             + jnp.where(row == 3, acc_sum, zero)
             + jnp.where(row == 4, vert_sum, zero)
             + jnp.where(row == 5, foot_sum, zero))
    out_ref[0] = block


def _pick_batch_tile(bs, n, feat_dim, jdim, itemsize):
    """Largest batch tile that keeps double-buffered inputs + f32 temporaries
    comfortably inside the scoped-VMEM budget (conservative for v7x's 64 MiB)."""
    budget = 12 * 1024 * 1024
    per_b = 2 * 2 * (feat_dim + jdim) * n * itemsize + 64 * n * 4
    max_bt = max(1, int(budget // max(per_b, 1)))
    if bs <= max_bt:
        return bs
    best = None
    for d in range(8, min(bs, max_bt) + 1, 8):   # multiple-of-8 divisor of bs
        if bs % d == 0:
            best = d
    return best if best is not None else bs


def lower_loss(rec_lower, tar_lower, tar_betas, tar_trans, Loss_6D,
               vertices_rec, vertices_tar):
    """Pallas port of LowerLoss.forward (Loss_6D=False path)."""
    del tar_betas, tar_trans  # accepted for signature parity; unused by forward
    # TODO(synk): Loss_6D=True branch (geodesic/vel/acc on raw 6D features and
    # rotation_6d_to_axis_angle) is not implemented; only Loss_6D=False is.
    assert not Loss_6D, "only the Loss_6D=False path is implemented"

    bs = tar_lower.shape[0]
    n = min(tar_lower.shape[1], rec_lower.shape[1])
    assert n >= 3, "need at least 3 frames for the acceleration term"

    rec = rec_lower[:, :n]
    tar = tar_lower[:, :n]
    feat_dim = rec.shape[-1]
    assert tar.shape[-1] == feat_dim
    assert feat_dim >= CONTACT_OFFSET + CONTACT_DIM

    jrec = vertices_rec["joints"]
    jtar = vertices_tar["joints"]
    assert jrec.shape[0] == bs and jrec.shape[1] == n, "vertices must have n frames"
    assert jtar.shape == jrec.shape
    jrec = jnp.reshape(jrec, (bs, n, -1))
    jtar = jnp.reshape(jtar, (bs, n, -1))
    jdim = jrec.shape[-1]
    assert jdim >= 3 * (max(FOOT_JOINT_IDX) + 1)

    # Time-on-lanes layout: (feature, batch, time). Cheap layout plumbing that
    # makes every in-kernel per-component access a static leading-dim index.
    rec_t = jnp.transpose(rec, (2, 0, 1))
    tar_t = jnp.transpose(tar, (2, 0, 1))
    jrec_t = jnp.transpose(jrec, (2, 0, 1))
    jtar_t = jnp.transpose(jtar, (2, 0, 1))

    itemsize = max(jnp.dtype(rec_t.dtype).itemsize, jnp.dtype(jrec_t.dtype).itemsize)
    bt = _pick_batch_tile(bs, n, feat_dim, jdim, itemsize)
    num_tiles = bs // bt

    partials = pl.pallas_call(
        _lower_loss_kernel,
        out_shape=jax.ShapeDtypeStruct((num_tiles, 8, 128), jnp.float32),
        grid=(num_tiles,),
        in_specs=[
            pl.BlockSpec((feat_dim, bt, n), lambda b: (0, b, 0)),
            pl.BlockSpec((feat_dim, bt, n), lambda b: (0, b, 0)),
            pl.BlockSpec((jdim, bt, n), lambda b: (0, b, 0)),
            pl.BlockSpec((jdim, bt, n), lambda b: (0, b, 0)),
        ],
        out_specs=pl.BlockSpec((1, 8, 128), lambda b: (b, 0, 0)),
        compiler_params=pltpu.CompilerParams(
            # Per-tile partial sums -> no carried state -> batch axis can be
            # sharded across TensorCores (2x on v7x, no-op on v5e/v6e).
            dimension_semantics=("parallel",),
            vmem_limit_bytes=32 * 1024 * 1024,
        ),
    )(rec_t, tar_t, jrec_t, jtar_t)

    sums = jnp.sum(partials[:, :, 0], axis=0)            # (8,)
    geo_sum, contact_sum = sums[0], sums[1]
    vel_sum, acc_sum = sums[2], sums[3]
    vert_sum, foot_sum = sums[4], sums[5]

    nj = NUM_JOINTS
    loss_rec_lower = geo_sum / float(bs * n * nj)
    loss_contact = contact_sum / float(bs * n * CONTACT_DIM)
    velocity_loss = vel_sum / float(bs * (n - 1) * nj * 9)
    acceleration_loss = acc_sum / float(bs * (n - 2) * nj * 9)
    vectices_loss = vert_sum / float(bs * n * jdim)
    foot_loss = foot_sum / float(bs * n * len(FOOT_JOINT_IDX) * 3)

    # TODO(synk): the matrix_to_axis_angle block in the PyTorch forward is dead
    # code (its result never feeds the loss) and is skipped.
    return (loss_rec_lower + velocity_loss + acceleration_loss + loss_contact
            + vectices_loss + foot_loss * 20.0)


# ----------------------------- pure-JAX reference -----------------------------

def _rotation_6d_to_matrix_ref(d6):
    a1, a2 = d6[..., :3], d6[..., 3:]
    b1 = a1 / jnp.maximum(jnp.linalg.norm(a1, axis=-1, keepdims=True), 1e-12)
    b2 = a2 - jnp.sum(b1 * a2, axis=-1, keepdims=True) * b1
    b2 = b2 / jnp.maximum(jnp.linalg.norm(b2, axis=-1, keepdims=True), 1e-12)
    b3 = jnp.cross(b1, b2)
    return jnp.stack((b1, b2, b3), axis=-2)


def _reference(rec_lower, tar_lower, tar_betas, tar_trans, Loss_6D,
               vertices_rec, vertices_tar):
    del tar_betas, tar_trans
    assert not Loss_6D
    bs = tar_lower.shape[0]
    n = min(tar_lower.shape[1], rec_lower.shape[1])
    j = NUM_JOINTS
    tar_contact = tar_lower[:, :n, j * 6 + 3:j * 6 + 7]
    rec_contact = rec_lower[:, :n, j * 6 + 3:j * 6 + 7]

    r_rec = _rotation_6d_to_matrix_ref(rec_lower[:, :n, :54].reshape(bs, n, j, 6))
    r_tar = _rotation_6d_to_matrix_ref(tar_lower[:, :n, :54].reshape(bs, n, j, 6))

    m1 = r_rec.reshape(-1, 3, 3)
    m2 = r_tar.reshape(-1, 3, 3)
    m = jnp.einsum("bij,bkj->bik", m1, m2)
    cos = (m[:, 0, 0] + m[:, 1, 1] + m[:, 2, 2] - 1.0) * 0.5
    cos = jnp.clip(cos, -1.0 + _COS_CLAMP, 1.0 - _COS_CLAMP)
    loss_rec_lower = jnp.mean(jnp.arccos(cos))

    loss_contact = jnp.mean((rec_contact - tar_contact) ** 2)
    velocity_loss = jnp.mean(jnp.abs((r_rec[:, 1:] - r_rec[:, :-1])
                                     - (r_tar[:, 1:] - r_tar[:, :-1])))
    acceleration_loss = jnp.mean(jnp.abs(
        (r_rec[:, 2:] + r_rec[:, :-2] - 2.0 * r_rec[:, 1:-1])
        - (r_tar[:, 2:] + r_tar[:, :-2] - 2.0 * r_tar[:, 1:-1])))

    joints_rec = vertices_rec["joints"].reshape(bs, n, -1, 3)
    vectices_loss = jnp.mean((vertices_rec["joints"] - vertices_tar["joints"]) ** 2)

    static_idx = rec_contact > CONTACT_THRESH
    model_feet = joints_rec[:, :, list(FOOT_JOINT_IDX)]
    model_foot_v = jnp.zeros_like(model_feet)
    model_foot_v = model_foot_v.at[:, :-1].set(model_feet[:, 1:] - model_feet[:, :-1])
    model_foot_v = jnp.where(static_idx[..., None], model_foot_v, 0.0)
    foot_loss = jnp.mean(jnp.abs(model_foot_v))

    return (loss_rec_lower + velocity_loss + acceleration_loss + loss_contact
            + vectices_loss + foot_loss * 20.0)


if __name__ == "__main__":
    key = jax.random.PRNGKey(0)
    k1, k2, k3, k4 = jax.random.split(key, 4)

    bs, n, feat_dim, num_body_joints = 2, 16, 61, 12   # 54 rot6d + 3 trans + 4 contact

    rec_lower = jax.random.normal(k1, (bs, n, feat_dim), dtype=jnp.float32)
    tar_lower = jax.random.normal(k2, (bs, n, feat_dim), dtype=jnp.float32)
    tar_betas = jnp.zeros((bs, 300), dtype=jnp.float32)     # unused by forward
    tar_trans = jnp.zeros((bs, n, 3), dtype=jnp.float32)    # unused by forward
    vertices_rec = {"joints": jax.random.normal(k3, (bs, n, num_body_joints, 3),
                                                dtype=jnp.float32)}
    vertices_tar = {"joints": jax.random.normal(k4, (bs, n, num_body_joints, 3),
                                                dtype=jnp.float32)}

    loss = lower_loss(rec_lower, tar_lower, tar_betas, tar_trans, False,
                      vertices_rec, vertices_tar)
    loss = jax.block_until_ready(loss)

    ref = _reference(rec_lower, tar_lower, tar_betas, tar_trans, False,
                     vertices_rec, vertices_tar)
    ref = jax.block_until_ready(ref)

    assert jnp.allclose(loss, ref, rtol=1e-3, atol=1e-5), (loss, ref)
    print("KERNEL_OK")
</pallas_src>

<mosaic_0001>
module attributes {stable_mosaic.version = 11 : i64} {
  func.func @_lower_loss_kernel(%arg0: i32, %arg1: memref<61x2x16xf32, #tpu.memory_space<vmem>>, %arg2: memref<61x2x16xf32, #tpu.memory_space<vmem>>, %arg3: memref<36x2x16xf32, #tpu.memory_space<vmem>>, %arg4: memref<36x2x16xf32, #tpu.memory_space<vmem>>, %arg5: memref<1x8x128xf32, #tpu.memory_space<vmem>>) attributes {dimension_semantics = [#tpu.dimension_semantics<parallel>], iteration_bounds = array<i64: 1>, scalar_prefetch = 0 : i64, scratch_operands = 0 : i64, tpu.core_type = #tpu.core_type<tc>, window_params = [{transform_indices = @transform_0, window_bounds = array<i64: 61, 2, 16>}, {transform_indices = @transform_1, window_bounds = array<i64: 61, 2, 16>}, {transform_indices = @transform_2, window_bounds = array<i64: 36, 2, 16>}, {transform_indices = @transform_3, window_bounds = array<i64: 36, 2, 16>}, {transform_indices = @transform_4, window_bounds = array<i64: 1, 8, 128>}]} {
    %cst = arith.constant 0.000000e+00 : f32
    %0 = vector.broadcast %cst : f32 to vector<2x16xf32>
    %cst_0 = arith.constant 0.000000e+00 : f32
    %1 = vector.broadcast %cst_0 : f32 to vector<2x15xf32>
    %cst_1 = arith.constant 0.000000e+00 : f32
    %2 = vector.broadcast %cst_1 : f32 to vector<2x14xf32>
    %c0 = arith.constant 0 : index
    %c0_2 = arith.constant 0 : index
    %c0_3 = arith.constant 0 : index
    %3 = vector.load %arg1[%c0, %c0_2, %c0_3] : memref<61x2x16xf32, #tpu.memory_space<vmem>>, vector<1x2x16xf32>
    %4 = vector.shape_cast %3 : vector<1x2x16xf32> to vector<2x16xf32>
    %c1 = arith.constant 1 : index
    %c0_4 = arith.constant 0 : index
    %c0_5 = arith.constant 0 : index
    %5 = vector.load %arg1[%c1, %c0_4, %c0_5] : memref<61x2x16xf32, #tpu.memory_space<vmem>>, vector<1x2x16xf32>
    %6 = vector.shape_cast %5 : vector<1x2x16xf32> to vector<2x16xf32>
    %c2 = arith.constant 2 : index
    %c0_6 = arith.constant 0 : index
    %c0_7 = arith.constant 0 : index
    %7 = vector.load %arg1[%c2, %c0_6, %c0_7] : memref<61x2x16xf32, #tpu.memory_space<vmem>>, vector<1x2x16xf32>
    %8 = vector.shape_cast %7 : vector<1x2x16xf32> to vector<2x16xf32>
    %c3 = arith.constant 3 : index
    %c0_8 = arith.constant 0 : index
    %c0_9 = arith.constant 0 : index
    %9 = vector.load %arg1[%c3, %c0_8, %c0_9] : memref<61x2x16xf32, #tpu.memory_space<vmem>>, vector<1x2x16xf32>
    %10 = vector.shape_cast %9 : vector<1x2x16xf32> to vector<2x16xf32>
    %c4 = arith.constant 4 : index
    %c0_10 = arith.constant 0 : index
    %c0_11 = arith.constant 0 : index
    %11 = vector.load %arg1[%c4, %c0_10, %c0_11] : memref<61x2x16xf32, #tpu.memory_space<vmem>>, vector<1x2x16xf32>
    %12 = vector.shape_cast %11 : vector<1x2x16xf32> to vector<2x16xf32>
    %c5 = arith.constant 5 : index
    %c0_12 = arith.constant 0 : index
    %c0_13 = arith.constant 0 : index
    %13 = vector.load %arg1[%c5, %c0_12, %c0_13] : memref<61x2x16xf32, #tpu.memory_space<vmem>>, vector<1x2x16xf32>
    %14 = vector.shape_cast %13 : vector<1x2x16xf32> to vector<2x16xf32>
    %15 = arith.mulf %4, %4 : vector<2x16xf32>
    %16 = arith.mulf %6, %6 : vector<2x16xf32>
    %17 = arith.addf %15, %16 : vector<2x16xf32>
    %18 = arith.mulf %8, %8 : vector<2x16xf32>
    %19 = arith.addf %17, %18 : vector<2x16xf32>
    %cst_14 = arith.constant 1.000000e-24 : f32
    %20 = vector.broadcast %cst_14 : f32 to vector<2x16xf32>
    %21 = arith.maximumf %19, %20 : vector<2x16xf32>
    %22 = math.rsqrt %21 : vector<2x16xf32>
    %23 = arith.mulf %4, %22 : vector<2x16xf32>
    %24 = arith.mulf %6, %22 : vector<2x16xf32>
    %25 = arith.mulf %8, %22 : vector<2x16xf32>
    %26 = arith.mulf %23, %10 : vector<2x16xf32>
    %27 = arith.mulf %24, %12 : vector<2x16xf32>
    %28 = arith.addf %26, %27 : vector<2x16xf32>
    %29 = arith.mulf %25, %14 : vector<2x16xf32>
    %30 = arith.addf %28, %29 : vector<2x16xf32>
    %31 = arith.mulf %30, %23 : vector<2x16xf32>
    %32 = arith.subf %10, %31 : vector<2x16xf32>
    %33 = arith.mulf %30, %24 : vector<2x16xf32>
    %34 = arith.subf %12, %33 : vector<2x16xf32>
    %35 = arith.mulf %30, %25 : vector<2x16xf32>
    %36 = arith.subf %14, %35 : vector<2x16xf32>
    %37 = arith.mulf %32, %32 : vector<2x16xf32>
    %38 = arith.mulf %34, %34 : vector<2x16xf32>
    %39 = arith.addf %37, %38 : vector<2x16xf32>
    %40 = arith.mulf %36, %36 : vector<2x16xf32>
    %41 = arith.addf %39, %40 : vector<2x16xf32>
    %cst_15 = arith.constant 1.000000e-24 : f32
    %42 = vector.broadcast %cst_15 : f32 to vector<2x16xf32>
    %43 = arith.maximumf %41, %42 : vector<2x16xf32>
    %44 = math.rsqrt %43 : vector<2x16xf32>
    %45 = arith.mulf %32, %44 : vector<2x16xf32>
    %46 = arith.mulf %34, %44 : vector<2x16xf32>
    %47 = arith.mulf %36, %44 : vector<2x16xf32>
    %48 = arith.mulf %24, %47 : vector<2x16xf32>
    %49 = arith.mulf %25, %46 : vector<2x16xf32>
    %50 = arith.subf %48, %49 : vector<2x16xf32>
    %51 = arith.mulf %25, %45 : vector<2x16xf32>
    %52 = arith.mulf %23, %47 : vector<2x16xf32>
    %53 = arith.subf %51, %52 : vector<2x16xf32>
    %54 = arith.mulf %23, %46 : vector<2x16xf32>
    %55 = arith.mulf %24, %45 : vector<2x16xf32>
    %56 = arith.subf %54, %55 : vector<2x16xf32>
    %c0_16 = arith.constant 0 : index
    %c0_17 = arith.constant 0 : index
    %c0_18 = arith.constant 0 : index
    %57 = vector.load %arg2[%c0_16, %c0_17, %c0_18] : memref<61x2x16xf32, #tpu.memory_space<vmem>>, vector<1x2x16xf32>
    %58 = vector.shape_cast %57 : vector<1x2x16xf32> to vector<2x16xf32>
    %c1_19 = arith.constant 1 : index
    %c0_20 = arith.constant 0 : index
    %c0_21 = arith.constant 0 : index
    %59 = vector.load %arg2[%c1_19, %c0_20, %c0_21] : memref<61x2x16xf32, #tpu.memory_space<vmem>>, vector<1x2x16xf32>
    %60 = vector.shape_cast %59 : vector<1x2x16xf32> to vector<2x16xf32>
    %c2_22 = arith.constant 2 : index
    %c0_23 = arith.constant 0 : index
    %c0_24 = arith.constant 0 : index
    %61 = vector.load %arg2[%c2_22, %c0_23, %c0_24] : memref<61x2x16xf32, #tpu.memory_space<vmem>>, vector<1x2x16xf32>
    %62 = vector.shape_cast %61 : vector<1x2x16xf32> to vector<2x16xf32>
    %c3_25 = arith.constant 3 : index
    %c0_26 = arith.constant 0 : index
    %c0_27 = arith.constant 0 : index
    %63 = vector.load %arg2[%c3_25, %c0_26, %c0_27] : memref<61x2x16xf32, #tpu.memory_space<vmem>>, vector<1x2x16xf32>
    %64 = vector.shape_cast %63 : vector<1x2x16xf32> to vector<2x16xf32>
    %c4_28 = arith.constant 4 : index
    %c0_29 = arith.constant 0 : index
    %c0_30 = arith.constant 0 : index
    %65 = vector.load %arg2[%c4_28, %c0_29, %c0_30] : memref<61x2x16xf32, #tpu.memory_space<vmem>>, vector<1x2x16xf32>
    %66 = vector.shape_cast %65 : vector<1x2x16xf32> to vector<2x16xf32>
    %c5_31 = arith.constant 5 : index
    %c0_32 = arith.constant 0 : index
    %c0_33 = arith.constant 0 : index
    %67 = vector.load %arg2[%c5_31, %c0_32, %c0_33] : memref<61x2x16xf32, #tpu.memory_space<vmem>>, vector<1x2x16xf32>
    %68 = vector.shape_cast %67 : vector<1x2x16xf32> to vector<2x16xf32>
    %69 = arith.mulf %58, %58 : vector<2x16xf32>
    %70 = arith.mulf %60, %60 : vector<2x16xf32>
    %71 = arith.addf %69, %70 : vector<2x16xf32>
    %72 = arith.mulf %62, %62 : vector<2x16xf32>
    %73 = arith.addf %71, %72 : vector<2x16xf32>
    %cst_34 = arith.constant 1.000000e-24 : f32
    %74 = vector.broadcast %cst_34 : f32 to vector<2x16xf32>
    %75 = arith.maximumf %73, %74 : vector<2x16xf32>
    %76 = math.rsqrt %75 : vector<2x16xf32>
    %77 = arith.mulf %58, %76 : vector<2x16xf32>
    %78 = arith.mulf %60, %76 : vector<2x16xf32>
    %79 = arith.mulf %62, %76 : vector<2x16xf32>
    %80 = arith.mulf %77, %64 : vector<2x16xf32>
    %81 = arith.mulf %78, %66 : vector<2x16xf32>
    %82 = arith.addf %80, %81 : vector<2x16xf32>
    %83 = arith.mulf %79, %68 : vector<2x16xf32>
    %84 = arith.addf %82, %83 : vector<2x16xf32>
    %85 = arith.mulf %84, %77 : vector<2x16xf32>
    %86 = arith.subf %64, %85 : vector<2x16xf32>
    %87 = arith.mulf %84, %78 : vector<2x16xf32>
    %88 = arith.subf %66, %87 : vector<2x16xf32>
    %89 = arith.mulf %84, %79 : vector<2x16xf32>
    %90 = arith.subf %68, %89 : vector<2x16xf32>
    %91 = arith.mulf %86, %86 : vector<2x16xf32>
    %92 = arith.mulf %88, %88 : vector<2x16xf32>
    %93 = arith.addf %91, %92 : vector<2x16xf32>
    %94 = arith.mulf %90, %90 : vector<2x16xf32>
    %95 = arith.addf %93, %94 : vector<2x16xf32>
    %cst_35 = arith.constant 1.000000e-24 : f32
    %96 = vector.broadcast %cst_35 : f32 to vector<2x16xf32>
    %97 = arith.maximumf %95, %96 : vector<2x16xf32>
    %98 = math.rsqrt %97 : vector<2x16xf32>
    %99 = arith.mulf %86, %98 : vector<2x16xf32>
    %100 = arith.mulf %88, %98 : vector<2x16xf32>
    %101 = arith.mulf %90, %98 : vector<2x16xf32>
    %102 = arith.mulf %78, %101 : vector<2x16xf32>
    %103 = arith.mulf %79, %100 : vector<2x16xf32>
    %104 = arith.subf %102, %103 : vector<2x16xf32>
    %105 = arith.mulf %79, %99 : vector<2x16xf32>
    %106 = arith.mulf %77, %101 : vector<2x16xf32>
    %107 = arith.subf %105, %106 : vector<2x16xf32>
    %108 = arith.mulf %77, %100 : vector<2x16xf32>
    %109 = arith.mulf %78, %99 : vector<2x16xf32>
    %110 = arith.subf %108, %109 : vector<2x16xf32>
    %111 = arith.mulf %23, %77 : vector<2x16xf32>
    %112 = arith.mulf %24, %78 : vector<2x16xf32>
    %113 = arith.addf %111, %112 : vector<2x16xf32>
    %114 = arith.mulf %25, %79 : vector<2x16xf32>
    %115 = arith.addf %113, %114 : vector<2x16xf32>
    %116 = arith.mulf %45, %99 : vector<2x16xf32>
    %117 = arith.addf %115, %116 : vector<2x16xf32>
    %118 = arith.mulf %46, %100 : vector<2x16xf32>
    %119 = arith.addf %117, %118 : vector<2x16xf32>
    %120 = arith.mulf %47, %101 : vector<2x16xf32>
    %121 = arith.addf %119, %120 : vector<2x16xf32>
    %122 = arith.mulf %50, %104 : vector<2x16xf32>
    %123 = arith.addf %121, %122 : vector<2x16xf32>
    %124 = arith.mulf %53, %107 : vector<2x16xf32>
    %125 = arith.addf %123, %124 : vector<2x16xf32>
    %126 = arith.mulf %56, %110 : vector<2x16xf32>
    %127 = arith.addf %125, %126 : vector<2x16xf32>
    %cst_36 = arith.constant 1.000000e+00 : f32
    %128 = vector.broadcast %cst_36 : f32 to vector<2x16xf32>
    %129 = arith.subf %127, %128 : vector<2x16xf32>
    %cst_37 = arith.constant 5.000000e-01 : f32
    %130 = vector.broadcast %cst_37 : f32 to vector<2x16xf32>
    %131 = arith.mulf %130, %129 : vector<2x16xf32>
    %cst_38 = arith.constant -0.999998986 : f32
    %cst_39 = arith.constant 0.999998986 : f32
    %132 = vector.broadcast %cst_38 : f32 to vector<2x16xf32>
    %133 = arith.maximumf %132, %131 : vector<2x16xf32>
    %134 = vector.broadcast %cst_39 : f32 to vector<2x16xf32>
    %135 = arith.minimumf %134, %133 : vector<2x16xf32>
    %136 = math.absf %135 : vector<2x16xf32>
    %cst_40 = arith.constant -0.0012624911 : f32
    %137 = vector.broadcast %cst_40 : f32 to vector<2x16xf32>
    %138 = arith.mulf %137, %136 : vector<2x16xf32>
    %cst_41 = arith.constant 6.670090e-03 : f32
    %139 = vector.broadcast %cst_41 : f32 to vector<2x16xf32>
    %140 = arith.addf %138, %139 : vector<2x16xf32>
    %141 = arith.mulf %140, %136 : vector<2x16xf32>
    %cst_42 = arith.constant -0.0170881264 : f32
    %142 = vector.broadcast %cst_42 : f32 to vector<2x16xf32>
    %143 = arith.addf %141, %142 : vector<2x16xf32>
    %144 = arith.mulf %143, %136 : vector<2x16xf32>
    %cst_43 = arith.constant 0.0308918804 : f32
    %145 = vector.broadcast %cst_43 : f32 to vector<2x16xf32>
    %146 = arith.addf %144, %145 : vector<2x16xf32>
    %147 = arith.mulf %146, %136 : vector<2x16xf32>
    %cst_44 = arith.constant -0.0501743034 : f32
    %148 = vector.broadcast %cst_44 : f32 to vector<2x16xf32>
    %149 = arith.addf %147, %148 : vector<2x16xf32>
    %150 = arith.mulf %149, %136 : vector<2x16xf32>
    %cst_45 = arith.constant 0.0889789909 : f32
    %151 = vector.broadcast %cst_45 : f32 to vector<2x16xf32>
    %152 = arith.addf %150, %151 : vector<2x16xf32>
    %153 = arith.mulf %152, %136 : vector<2x16xf32>
    %cst_46 = arith.constant -0.214598805 : f32
    %154 = vector.broadcast %cst_46 : f32 to vector<2x16xf32>
    %155 = arith.addf %153, %154 : vector<2x16xf32>
    %156 = arith.mulf %155, %136 : vector<2x16xf32>
    %cst_47 = arith.constant 1.57079625 : f32
    %157 = vector.broadcast %cst_47 : f32 to vector<2x16xf32>
    %158 = arith.addf %156, %157 : vector<2x16xf32>
    %cst_48 = arith.constant 1.000000e+00 : f32
    %159 = vector.broadcast %cst_48 : f32 to vector<2x16xf32>
    %160 = arith.subf %159, %136 : vector<2x16xf32>
    %cst_49 = arith.constant 0.000000e+00 : f32
    %161 = vector.broadcast %cst_49 : f32 to vector<2x16xf32>
    %162 = arith.maximumf %160, %161 : vector<2x16xf32>
    %163 = math.sqrt %162 : vector<2x16xf32>
    %164 = arith.mulf %163, %158 : vector<2x16xf32>
    %cst_50 = arith.constant 0.000000e+00 : f32
    %165 = vector.broadcast %cst_50 : f32 to vector<2x16xf32>
    %166 = arith.cmpf olt, %135, %165 : vector<2x16xf32>
    %cst_51 = arith.constant 3.14159274 : f32
    %167 = vector.broadcast %cst_51 : f32 to vector<2x16xf32>
    %168 = arith.subf %167, %164 : vector<2x16xf32>
    %169 = arith.select %166, %168, %164 : vector<2x16xi1>, vector<2x16xf32>
    %170 = arith.addf %0, %169 : vector<2x16xf32>
    %171 = arith.subf %23, %77 : vector<2x16xf32>
    %172 = vector.extract_strided_slice %171 {offsets = [0, 1], sizes = [2, 15], strides = [1, 1]} : vector<2x16xf32> to vector<2x15xf32>
    %173 = vector.extract_strided_slice %171 {offsets = [0, 0], sizes = [2, 15], strides = [1, 1]} : vector<2x16xf32> to vector<2x15xf32>
    %174 = arith.subf %172, %173 : vector<2x15xf32>
    %175 = math.absf %174 : vector<2x15xf32>
    %176 = arith.addf %1, %175 : vector<2x15xf32>
    %177 = vector.extract_strided_slice %174 {offsets = [0, 1], sizes = [2, 14], strides = [1, 1]} : vector<2x15xf32> to vector<2x14xf32>
    %178 = vector.extract_strided_slice %174 {offsets = [0, 0], sizes = [2, 14], strides = [1, 1]} : vector<2x15xf32> to vector<2x14xf32>
    %179 = arith.subf %177, %178 : vector<2x14xf32>
    %180 = math.absf %179 : vector<2x14xf32>
    %181 = arith.addf %2, %180 : vector<2x14xf32>
    %182 = arith.subf %24, %78 : vector<2x16xf32>
    %183 = vector.extract_strided_slice %182 {offsets = [0, 1], sizes = [2, 15], strides = [1, 1]} : vector<2x16xf32> to vector<2x15xf32>
    %184 = vector.extract_strided_slice %182 {offsets = [0, 0], sizes = [2, 15], strides = [1, 1]} : vector<2x16xf32> to vector<2x15xf32>
    %185 = arith.subf %183, %184 : vector<2x15xf32>
    %186 = math.absf %185 : vector<2x15xf32>
    %187 = arith.addf %176, %186 : vector<2x15xf32>
    %188 = vector.extract_strided_slice %185 {offsets = [0, 1], sizes = [2, 14], strides = [1, 1]} : vector<2x15xf32> to vector<2x14xf32>
    %189 = vector.extract_strided_slice %185 {offsets = [0, 0], sizes = [2, 14], strides = [1, 1]} : vector<2x15xf32> to vector<2x14xf32>
    %190 = arith.subf %188, %189 : vector<2x14xf32>
    %191 = math.absf %190 : vector<2x14xf32>
    %192 = arith.addf %181, %191 : vector<2x14xf32>
    %193 = arith.subf %25, %79 : vector<2x16xf32>
    %194 = vector.extract_strided_slice %193 {offsets = [0, 1], sizes = [2, 15], strides = [1, 1]} : vector<2x16xf32> to vector<2x15xf32>
    %195 = vector.extract_strided_slice %193 {offsets = [0, 0], sizes = [2, 15], strides = [1, 1]} : vector<2x16xf32> to vector<2x15xf32>
    %196 = arith.subf %194, %195 : vector<2x15xf32>
    %197 = math.absf %196 : vector<2x15xf32>
    %198 = arith.addf %187, %197 : vector<2x15xf32>
    %199 = vector.extract_strided_slice %196 {offsets = [0, 1], sizes = [2, 14], strides = [1, 1]} : vector<2x15xf32> to vector<2x14xf32>
    %200 = vector.extract_strided_slice %196 {offsets = [0, 0], sizes = [2, 14], strides = [1, 1]} : vector<2x15xf32> to vector<2x14xf32>
    %201 = arith.subf %199, %200 : vector<2x14xf32>
    %202 = math.absf %201 : vector<2x14xf32>
    %203 = arith.addf %192, %202 : vector<2x14xf32>
    %204 = arith.subf %45, %99 : vector<2x16xf32>
    %205 = vector.extract_strided_slice %204 {offsets = [0, 1], sizes = [2, 15], strides = [1, 1]} : vector<2x16xf32> to vector<2x15xf32>
    %206 = vector.extract_strided_slice %204 {offsets = [0, 0], sizes = [2, 15], strides = [1, 1]} : vector<2x16xf32> to vector<2x15xf32>
    %207 = arith.subf %205, %206 : vector<2x15xf32>
    %208 = math.absf %207 : vector<2x15xf32>
    %209 = arith.addf %198, %208 : vector<2x15xf32>
    %210 = vector.extract_strided_slice %207 {offsets = [0, 1], sizes = [2, 14], strides = [1, 1]} : vector<2x15xf32> to vector<2x14xf32>
    %211 = vector.extract_strided_slice %207 {offsets = [0, 0], sizes = [2, 14], strides = [1, 1]} : vector<2x15xf32> to vector<2x14xf32>
    %212 = arith.subf %210, %211 : vector<2x14xf32>
    %213 = math.absf %212 : vector<2x14xf32>
    %214 = arith.addf %203, %213 : vector<2x14xf32>
    %215 = arith.subf %46, %100 : vector<2x16xf32>
    %216 = vector.extract_strided_slice %215 {offsets = [0, 1], sizes = [2, 15], strides = [1, 1]} : vector<2x16xf32> to vector<2x15xf32>
    %217 = vector.extract_strided_slice %215 {offsets = [0, 0], sizes = [2, 15], strides = [1, 1]} : vector<2x16xf32> to vector<2x15xf32>
    %218 = arith.subf %216, %217 : vector<2x15xf32>
    %219 = math.absf %218 : vector<2x15xf32>
    %220 = arith.addf %209, %219 : vector<2x15xf32>
    %221 = vector.extract_strided_slice %218 {offsets = [0, 1], sizes = [2, 14], strides = [1, 1]} : vector<2x15xf32> to vector<2x14xf32>
    %222 = vector.extract_strided_slice %218 {offsets = [0, 0], sizes = [2, 14], strides = [1, 1]} : vector<2x15xf32> to vector<2x14xf32>
    %223 = arith.subf %221, %222 : vector<2x14xf32>
    %224 = math.absf %223 : vector<2x14xf32>
    %225 = arith.addf %214, %224 : vector<2x14xf32>
    %226 = arith.subf %47, %101 : vector<2x16xf32>
    %227 = vector.extract_strided_slice %226 {offsets = [0, 1], sizes = [2, 15], strides = [1, 1]} : vector<2x16xf32> to vector<2x15xf32>
    %228 = vector.extract_strided_slice %226 {offsets = [0, 0], sizes = [2, 15], strides = [1, 1]} : vector<2x16xf32> to vector<2x15xf32>
    %229 = arith.subf %227, %228 : vector<2x15xf32>
    %230 = math.absf %229 : vector<2x15xf32>
    %231 = arith.addf %220, %230 : vector<2x15xf32>
    %232 = vector.extract_strided_slice %229 {offsets = [0, 1], sizes = [2, 14], strides = [1, 1]} : vector<2x15xf32> to vector<2x14xf32>
    %233 = vector.extract_strided_slice %229 {offsets = [0, 0], sizes = [2, 14], strides = [1, 1]} : vector<2x15xf32> to vector<2x14xf32>
    %234 = arith.subf %232, %233 : vector<2x14xf32>
    %235 = math.absf %234 : vector<2x14xf32>
    %236 = arith.addf %225, %235 : vector<2x14xf32>
    %237 = arith.subf %50, %104 : vector<2x16xf32>
    %238 = vector.extract_strided_slice %237 {offsets = [0, 1], sizes = [2, 15], strides = [1, 1]} : vector<2x16xf32> to vector<2x15xf32>
    %239 = vector.extract_strided_slice %237 {offsets = [0, 0], sizes = [2, 15], strides = [1, 1]} : vector<2x16xf32> to vector<2x15xf32>
    %240 = arith.subf %238, %239 : vector<2x15xf32>
    %241 = math.absf %240 : vector<2x15xf32>
    %242 = arith.addf %231, %241 : vector<2x15xf32>
    %243 = vector.extract_strided_slice %240 {offsets = [0, 1], sizes = [2, 14], strides = [1, 1]} : vector<2x15xf32> to vector<2x14xf32>
    %244 = vector.extract_strided_slice %240 {offsets = [0, 0], sizes = [2, 14], strides = [1, 1]} : vector<2x15xf32> to vector<2x14xf32>
    %245 = arith.subf %243, %244 : vector<2x14xf32>
    %246 = math.absf %245 : vector<2x14xf32>
    %247 = arith.addf %236, %246 : vector<2x14xf32>
    %248 = arith.subf %53, %107 : vector<2x16xf32>
    %249 = vector.extract_strided_slice %248 {offsets = [0, 1], sizes = [2, 15], strides = [1, 1]} : vector<2x16xf32> to vector<2x15xf32>
    %250 = vector.extract_strided_slice %248 {offsets = [0, 0], sizes = [2, 15], strides = [1, 1]} : vector<2x16xf32> to vector<2x15xf32>
    %251 = arith.subf %249, %250 : vector<2x15xf32>
    %252 = math.absf %251 : vector<2x15xf32>
    %253 = arith.addf %242, %252 : vector<2x15xf32>
    %254 = vector.extract_strided_slice %251 {offsets = [0, 1], sizes = [2, 14], strides = [1, 1]} : vector<2x15xf32> to vector<2x14xf32>
    %255 = vector.extract_strided_slice %251 {offsets = [0, 0], sizes = [2, 14], strides = [1, 1]} : vector<2x15xf32> to vector<2x14xf32>
    %256 = arith.subf %254, %255 : vector<2x14xf32>
    %257 = math.absf %256 : vector<2x14xf32>
    %258 = arith.addf %247, %257 : vector<2x14xf32>
    %259 = arith.subf %56, %110 : vector<2x16xf32>
    %260 = vector.extract_strided_slice %259 {offsets = [0, 1], sizes = [2, 15], strides = [1, 1]} : vector<2x16xf32> to vector<2x15xf32>
    %261 = vector.extract_strided_slice %259 {offsets = [0, 0], sizes = [2, 15], strides = [1, 1]} : vector<2x16xf32> to vector<2x15xf32>
    %262 = arith.subf %260, %261 : vector<2x15xf32>
    %263 = math.absf %262 : vector<2x15xf32>
    %264 = arith.addf %253, %263 : vector<2x15xf32>
    %265 = vector.extract_strided_slice %262 {offsets = [0, 1], sizes = [2, 14], strides = [1, 1]} : vector<2x15xf32> to vector<2x14xf32>
    %266 = vector.extract_strided_slice %262 {offsets = [0, 0], sizes = [2, 14], strides = [1, 1]} : vector<2x15xf32> to vector<2x14xf32>
    %267 = arith.subf %265, %266 : vector<2x14xf32>
    %268 = math.absf %267 : vector<2x14xf32>
    %269 = arith.addf %258, %268 : vector<2x14xf32>
    %c6 = arith.constant 6 : index
    %c0_52 = arith.constant 0 : index
    %c0_53 = arith.constant 0 : index
    %270 = vector.load %arg1[%c6, %c0_52, %c0_53] : memref<61x2x16xf32, #tpu.memory_space<vmem>>, vector<1x2x16xf32>
    %271 = vector.shape_cast %270 : vector<1x2x16xf32> to vector<2x16xf32>
    %c7 = arith.constant 7 : index
    %c0_54 = arith.constant 0 : index
    %c0_55 = arith.constant 0 : index
    %272 = vector.load %arg1[%c7, %c0_54, %c0_55] : memref<61x2x16xf32, #tpu.memory_space<vmem>>, vector<1x2x16xf32>
    %273 = vector.shape_cast %272 : vector<1x2x16xf32> to vector<2x16xf32>
    %c8 = arith.constant 8 : index
    %c0_56 = arith.constant 0 : index
    %c0_57 = arith.constant 0 : index
    %274 = vector.load %arg1[%c8, %c0_56, %c0_57] : memref<61x2x16xf32, #tpu.memory_space<vmem>>, vector<1x2x16xf32>
    %275 = vector.shape_cast %274 : vector<1x2x16xf32> to vector<2x16xf32>
    %c9 = arith.constant 9 : index
    %c0_58 = arith.constant 0 : index
    %c0_59 = arith.constant 0 : index
    %276 = vector.load %arg1[%c9, %c0_58, %c0_59] : memref<61x2x16xf32, #tpu.memory_space<vmem>>, vector<1x2x16xf32>
    %277 = vector.shape_cast %276 : vector<1x2x16xf32> to vector<2x16xf32>
    %c10 = arith.constant 10 : index
    %c0_60 = arith.constant 0 : index
    %c0_61 = arith.constant 0 : index
    %278 = vector.load %arg1[%c10, %c0_60, %c0_61] : memref<61x2x16xf32, #tpu.memory_space<vmem>>, vector<1x2x16xf32>
    %279 = vector.shape_cast %278 : vector<1x2x16xf32> to vector<2x16xf32>
    %c11 = arith.constant 11 : index
    %c0_62 = arith.constant 0 : index
    %c0_63 = arith.constant 0 : index
    %280 = vector.load %arg1[%c11, %c0_62, %c0_63] : memref<61x2x16xf32, #tpu.memory_space<vmem>>, vector<1x2x16xf32>
    %281 = vector.shape_cast %280 : vector<1x2x16xf32> to vector<2x16xf32>
    %282 = arith.mulf %271, %271 : vector<2x16xf32>
    %283 = arith.mulf %273, %273 : vector<2x16xf32>
    %284 = arith.addf %282, %283 : vector<2x16xf32>
    %285 = arith.mulf %275, %275 : vector<2x16xf32>
    %286 = arith.addf %284, %285 : vector<2x16xf32>
    %cst_64 = arith.constant 1.000000e-24 : f32
    %287 = vector.broadcast %cst_64 : f32 to vector<2x16xf32>
    %288 = arith.maximumf %286, %287 : vector<2x16xf32>
    %289 = math.rsqrt %288 : vector<2x16xf32>
    %290 = arith.mulf %271, %289 : vector<2x16xf32>
    %291 = arith.mulf %273, %289 : vector<2x16xf32>
    %292 = arith.mulf %275, %289 : vector<2x16xf32>
    %293 = arith.mulf %290, %277 : vector<2x16xf32>
    %294 = arith.mulf %291, %279 : vector<2x16xf32>
    %295 = arith.addf %293, %294 : vector<2x16xf32>
    %296 = arith.mulf %292, %281 : vector<2x16xf32>
    %297 = arith.addf %295, %296 : vector<2x16xf32>
    %298 = arith.mulf %297, %290 : vector<2x16xf32>
    %299 = arith.subf %277, %298 : vector<2x16xf32>
    %300 = arith.mulf %297, %291 : vector<2x16xf32>
    %301 = arith.subf %279, %300 : vector<2x16xf32>
    %302 = arith.mulf %297, %292 : vector<2x16xf32>
    %303 = arith.subf %281, %302 : vector<2x16xf32>
    %304 = arith.mulf %299, %299 : vector<2x16xf32>
    %305 = arith.mulf %301, %301 : vector<2x16xf32>
    %306 = arith.addf %304, %305 : vector<2x16xf32>
    %307 = arith.mulf %303, %303 : vector<2x16xf32>
    %308 = arith.addf %306, %307 : vector<2x16xf32>
    %cst_65 = arith.constant 1.000000e-24 : f32
    %309 = vector.broadcast %cst_65 : f32 to vector<2x16xf32>
    %310 = arith.maximumf %308, %309 : vector<2x16xf32>
    %311 = math.rsqrt %310 : vector<2x16xf32>
    %312 = arith.mulf %299, %311 : vector<2x16xf32>
    %313 = arith.mulf %301, %311 : vector<2x16xf32>
    %314 = arith.mulf %303, %311 : vector<2x16xf32>
    %315 = arith.mulf %291, %314 : vector<2x16xf32>
    %316 = arith.mulf %292, %313 : vector<2x16xf32>
    %317 = arith.subf %315, %316 : vector<2x16xf32>
    %318 = arith.mulf %292, %312 : vector<2x16xf32>
    %319 = arith.mulf %290, %314 : vector<2x16xf32>
    %320 = arith.subf %318, %319 : vector<2x16xf32>
    %321 = arith.mulf %290, %313 : vector<2x16xf32>
    %322 = arith.mulf %291, %312 : vector<2x16xf32>
    %323 = arith.subf %321, %322 : vector<2x16xf32>
    %c6_66 = arith.constant 6 : index
    %c0_67 = arith.constant 0 : index
    %c0_68 = arith.constant 0 : index
    %324 = vector.load %arg2[%c6_66, %c0_67, %c0_68] : memref<61x2x16xf32, #tpu.memory_space<vmem>>, vector<1x2x16xf32>
    %325 = vector.shape_cast %324 : vector<1x2x16xf32> to vector<2x16xf32>
    %c7_69 = arith.constant 7 : index
    %c0_70 = arith.constant 0 : index
    %c0_71 = arith.constant 0 : index
    %326 = vector.load %arg2[%c7_69, %c0_70, %c0_71] : memref<61x2x16xf32, #tpu.memory_space<vmem>>, vector<1x2x16xf32>
    %327 = vector.shape_cast %326 : vector<1x2x16xf32> to vector<2x16xf32>
    %c8_72 = arith.constant 8 : index
    %c0_73 = arith.constant 0 : index
    %c0_74 = arith.constant 0 : index
    %328 = vector.load %arg2[%c8_72, %c0_73, %c0_74] : memref<61x2x16xf32, #tpu.memory_space<vmem>>, vector<1x2x16xf32>
    %329 = vector.shape_cast %328 : vector<1x2x16xf32> to vector<2x16xf32>
    %c9_75 = arith.constant 9 : index
    %c0_76 = arith.constant 0 : index
    %c0_77 = arith.constant 0 : index
    %330 = vector.load %arg2[%c9_75, %c0_76, %c0_77] : memref<61x2x16xf32, #tpu.memory_space<vmem>>, vector<1x2x16xf32>
    %331 = vector.shape_cast %330 : vector<1x2x16xf32> to vector<2x16xf32>
    %c10_78 = arith.constant 10 : index
    %c0_79 = arith.constant 0 : index
    %c0_80 = arith.constant 0 : index
    %332 = vector.load %arg2[%c10_78, %c0_79, %c0_80] : memref<61x2x16xf32, #tpu.memory_space<vmem>>, vector<1x2x16xf32>
    %333 = vector.shape_cast %332 : vector<1x2x16xf32> to vector<2x16xf32>
    %c11_81 = arith.constant 11 : index
    %c0_82 = arith.constant 0 : index
    %c0_83 = arith.constant 0 : index
    %334 = vector.load %arg2[%c11_81, %c0_82, %c0_83] : memref<61x2x16xf32, #tpu.memory_space<vmem>>, vector<1x2x16xf32>
    %335 = vector.shape_cast %334 : vector<1x2x16xf32> to vector<2x16xf32>
    %336 = arith.mulf %325, %325 : vector<2x16xf32>
    %337 = arith.mulf %327, %327 : vector<2x16xf32>
    %338 = arith.addf %336, %337 : vector<2x16xf32>
    %339 = arith.mulf %329, %329 : vector<2x16xf32>
    %340 = arith.addf %338, %339 : vector<2x16xf32>
    %cst_84 = arith.constant 1.000000e-24 : f32
    %341 = vector.broadcast %cst_84 : f32 to vector<2x16xf32>
    %342 = arith.maximumf %340, %341 : vector<2x16xf32>
    %343 = math.rsqrt %342 : vector<2x16xf32>
    %344 = arith.mulf %325, %343 : vector<2x16xf32>
    %345 = arith.mulf %327, %343 : vector<2x16xf32>
    %346 = arith.mulf %329, %343 : vector<2x16xf32>
    %347 = arith.mulf %344, %331 : vector<2x16xf32>
    %348 = arith.mulf %345, %333 : vector<2x16xf32>
    %349 = arith.addf %347, %348 : vector<2x16xf32>
    %350 = arith.mulf %346, %335 : vector<2x16xf32>
    %351 = arith.addf %349, %350 : vector<2x16xf32>
    %352 = arith.mulf %351, %344 : vector<2x16xf32>
    %353 = arith.subf %331, %352 : vector<2x16xf32>
    %354 = arith.mulf %351, %345 : vector<2x16xf32>
    %355 = arith.subf %333, %354 : vector<2x16xf32>
    %356 = arith.mulf %351, %346 : vector<2x16xf32>
    %357 = arith.subf %335, %356 : vector<2x16xf32>
    %358 = arith.mulf %353, %353 : vector<2x16xf32>
    %359 = arith.mulf %355, %355 : vector<2x16xf32>
    %360 = arith.addf %358, %359 : vector<2x16xf32>
    %361 = arith.mulf %357, %357 : vector<2x16xf32>
    %362 = arith.addf %360, %361 : vector<2x16xf32>
    %cst_85 = arith.constant 1.000000e-24 : f32
    %363 = vector.broadcast %cst_85 : f32 to vector<2x16xf32>
    %364 = arith.maximumf %362, %363 : vector<2x16xf32>
    %365 = math.rsqrt %364 : vector<2x16xf32>
    %366 = arith.mulf %353, %365 : vector<2x16xf32>
    %367 = arith.mulf %355, %365 : vector<2x16xf32>
    %368 = arith.mulf %357, %365 : vector<2x16xf32>
    %369 = arith.mulf %345, %368 : vector<2x16xf32>
    %370 = arith.mulf %346, %367 : vector<2x16xf32>
    %371 = arith.subf %369, %370 : vector<2x16xf32>
    %372 = arith.mulf %346, %366 : vector<2x16xf32>
    %373 = arith.mulf %344, %368 : vector<2x16xf32>
    %374 = arith.subf %372, %373 : vector<2x16xf32>
    %375 = arith.mulf %344, %367 : vector<2x16xf32>
    %376 = arith.mulf %345, %366 : vector<2x16xf32>
    %377 = arith.subf %375, %376 : vector<2x16xf32>
    %378 = arith.mulf %290, %344 : vector<2x16xf32>
    %379 = arith.mulf %291, %345 : vector<2x16xf32>
    %380 = arith.addf %378, %379 : vector<2x16xf32>
    %381 = arith.mulf %292, %346 : vector<2x16xf32>
    %382 = arith.addf %380, %381 : vector<2x16xf32>
    %383 = arith.mulf %312, %366 : vector<2x16xf32>
    %384 = arith.addf %382, %383 : vector<2x16xf32>
    %385 = arith.mulf %313, %367 : vector<2x16xf32>
    %386 = arith.addf %384, %385 : vector<2x16xf32>
    %387 = arith.mulf %314, %368 : vector<2x16xf32>
    %388 = arith.addf %386, %387 : vector<2x16xf32>
    %389 = arith.mulf %317, %371 : vector<2x16xf32>
    %390 = arith.addf %388, %389 : vector<2x16xf32>
    %391 = arith.mulf %320, %374 : vector<2x16xf32>
    %392 = arith.addf %390, %391 : vector<2x16xf32>
    %393 = arith.mulf %323, %377 : vector<2x16xf32>
    %394 = arith.addf %392, %393 : vector<2x16xf32>
    %cst_86 = arith.constant 1.000000e+00 : f32
    %395 = vector.broadcast %cst_86 : f32 to vector<2x16xf32>
    %396 = arith.subf %394, %395 : vector<2x16xf32>
    %cst_87 = arith.constant 5.000000e-01 : f32
    %397 = vector.broadcast %cst_87 : f32 to vector<2x16xf32>
    %398 = arith.mulf %397, %396 : vector<2x16xf32>
    %cst_88 = arith.constant -0.999998986 : f32
    %cst_89 = arith.constant 0.999998986 : f32
    %399 = vector.broadcast %cst_88 : f32 to vector<2x16xf32>
    %400 = arith.maximumf %399, %398 : vector<2x16xf32>
    %401 = vector.broadcast %cst_89 : f32 to vector<2x16xf32>
    %402 = arith.minimumf %401, %400 : vector<2x16xf32>
    %403 = math.absf %402 : vector<2x16xf32>
    %cst_90 = arith.constant -0.0012624911 : f32
    %404 = vector.broadcast %cst_90 : f32 to vector<2x16xf32>
    %405 = arith.mulf %404, %403 : vector<2x16xf32>
    %cst_91 = arith.constant 6.670090e-03 : f32
    %406 = vector.broadcast %cst_91 : f32 to vector<2x16xf32>
    %407 = arith.addf %405, %406 : vector<2x16xf32>
    %408 = arith.mulf %407, %403 : vector<2x16xf32>
    %cst_92 = arith.constant -0.0170881264 : f32
    %409 = vector.broadcast %cst_92 : f32 to vector<2x16xf32>
    %410 = arith.addf %408, %409 : vector<2x16xf32>
    %411 = arith.mulf %410, %403 : vector<2x16xf32>
    %cst_93 = arith.constant 0.0308918804 : f32
    %412 = vector.broadcast %cst_93 : f32 to vector<2x16xf32>
    %413 = arith.addf %411, %412 : vector<2x16xf32>
    %414 = arith.mulf %413, %403 : vector<2x16xf32>
    %cst_94 = arith.constant -0.0501743034 : f32
    %415 = vector.broadcast %cst_94 : f32 to vector<2x16xf32>
    %416 = arith.addf %414, %415 : vector<2x16xf32>
    %417 = arith.mulf %416, %403 : vector<2x16xf32>
    %cst_95 = arith.constant 0.0889789909 : f32
    %418 = vector.broadcast %cst_95 : f32 to vector<2x16xf32>
    %419 = arith.addf %417, %418 : vector<2x16xf32>
    %420 = arith.mulf %419, %403 : vector<2x16xf32>
    %cst_96 = arith.constant -0.214598805 : f32
    %421 = vector.broadcast %cst_96 : f32 to vector<2x16xf32>
    %422 = arith.addf %420, %421 : vector<2x16xf32>
    %423 = arith.mulf %422, %403 : vector<2x16xf32>
    %cst_97 = arith.constant 1.57079625 : f32
    %424 = vector.broadcast %cst_97 : f32 to vector<2x16xf32>
    %425 = arith.addf %423, %424 : vector<2x16xf32>
    %cst_98 = arith.constant 1.000000e+00 : f32
    %426 = vector.broadcast %cst_98 : f32 to vector<2x16xf32>
    %427 = arith.subf %426, %403 : vector<2x16xf32>
    %cst_99 = arith.constant 0.000000e+00 : f32
    %428 = vector.broadcast %cst_99 : f32 to vector<2x16xf32>
    %429 = arith.maximumf %427, %428 : vector<2x16xf32>
    %430 = math.sqrt %429 : vector<2x16xf32>
    %431 = arith.mulf %430, %425 : vector<2x16xf32>
    %cst_100 = arith.constant 0.000000e+00 : f32
    %432 = vector.broadcast %cst_100 : f32 to vector<2x16xf32>
    %433 = arith.cmpf olt, %402, %432 : vector<2x16xf32>
    %cst_101 = arith.constant 3.14159274 : f32
    %434 = vector.broadcast %cst_101 : f32 to vector<2x16xf32>
    %435 = arith.subf %434, %431 : vector<2x16xf32>
    %436 = arith.select %433, %435, %431 : vector<2x16xi1>, vector<2x16xf32>
    %437 = arith.addf %170, %436 : vector<2x16xf32>
    %438 = arith.subf %290, %344 : vector<2x16xf32>
    %439 = vector.extract_strided_slice %438 {offsets = [0, 1], sizes = [2, 15], strides = [1, 1]} : vector<2x16xf32> to vector<2x15xf32>
    %440 = vector.extract_strided_slice %438 {offsets = [0, 0], sizes = [2, 15], strides = [1, 1]} : vector<2x16xf32> to vector<2x15xf32>
    %441 = arith.subf %439, %440 : vector<2x15xf32>
    %442 = math.absf %441 : vector<2x15xf32>
    %443 = arith.addf %264, %442 : vector<2x15xf32>
    %444 = vector.extract_strided_slice %441 {offsets = [0, 1], sizes = [2, 14], strides = [1, 1]} : vector<2x15xf32> to vector<2x14xf32>
    %445 = vector.extract_strided_slice %441 {offsets = [0, 0], sizes = [2, 14], strides = [1, 1]} : vector<2x15xf32> to vector<2x14xf32>
    %446 = arith.subf %444, %445 : vector<2x14xf32>
    %447 = math.absf %446 : vector<2x14xf32>
    %448 = arith.addf %269, %447 : vector<2x14xf32>
    %449 = arith.subf %291, %345 : vector<2x16xf32>
    %450 = vector.extract_strided_slice %449 {offsets = [0, 1], sizes = [2, 15], strides = [1, 1]} : vector<2x16xf32> to vector<2x15xf32>
    %451 = vector.extract_strided_slice %449 {offsets = [0, 0], sizes = [2, 15], strides = [1, 1]} : vector<2x16xf32> to vector<2x15xf32>
    %452 = arith.subf %450, %451 : vector<2x15xf32>
    %453 = math.absf %452 : vector<2x15xf32>
    %454 = arith.addf %443, %453 : vector<2x15xf32>
    %455 = vector.extract_strided_slice %452 {offsets = [0, 1], sizes = [2, 14], strides = [1, 1]} : vector<2x15xf32> to vector<2x14xf32>
    %456 = vector.extract_strided_slice %452 {offsets = [0, 0], sizes = [2, 14], strides = [1, 1]} : vector<2x15xf32> to vector<2x14xf32>
    %457 = arith.subf %455, %456 : vector<2x14xf32>
    %458 = math.absf %457 : vector<2x14xf32>
    %459 = arith.addf %448, %458 : vector<2x14xf32>
    %460 = arith.subf %292, %346 : vector<2x16xf32>
    %461 = vector.extract_strided_slice %460 {offsets = [0, 1], sizes = [2, 15], strides = [1, 1]} : vector<2x16xf32> to vector<2x15xf32>
    %462 = vector.extract_strided_slice %460 {offsets = [0, 0], sizes = [2, 15], strides = [1, 1]} : vector<2x16xf32> to vector<2x15xf32>
    %463 = arith.subf %461, %462 : vector<2x15xf32>
    %464 = math.absf %463 : vector<2x15xf32>
    %465 = arith.addf %454, %464 : vector<2x15xf32>
    %466 = vector.extract_strided_slice %463 {offsets = [0, 1], sizes = [2, 14], strides = [1, 1]} : vector<2x15xf32> to vector<2x14xf32>
    %467 = vector.extract_strided_slice %463 {offsets = [0, 0], sizes = [2, 14], strides = [1, 1]} : vector<2x15xf32> to vector<2x14xf32>
    %468 = arith.subf %466, %467 : vector<2x14xf32>
    %469 = math.absf %468 : vector<2x14xf32>
    %470 = arith.addf %459, %469 : vector<2x14xf32>
    %471 = arith.subf %312, %366 : vector<2x16xf32>
    %472 = vector.extract_strided_slice %471 {offsets = [0, 1], sizes = [2, 15], strides = [1, 1]} : vector<2x16xf32> to vector<2x15xf32>
    %473 = vector.extract_strided_slice %471 {offsets = [0, 0], sizes = [2, 15], strides = [1, 1]} : vector<2x16xf32> to vector<2x15xf32>
    %474 = arith.subf %472, %473 : vector<2x15xf32>
    %475 = math.absf %474 : vector<2x15xf32>
    %476 = arith.addf %465, %475 : vector<2x15xf32>
    %477 = vector.extract_strided_slice %474 {offsets = [0, 1], sizes = [2, 14], strides = [1, 1]} : vector<2x15xf32> to vector<2x14xf32>
    %478 = vector.extract_strided_slice %474 {offsets = [0, 0], sizes = [2, 14], strides = [1, 1]} : vector<2x15xf32> to vector<2x14xf32>
    %479 = arith.subf %477, %478 : vector<2x14xf32>
    %480 = math.absf %479 : vector<2x14xf32>
    %481 = arith.addf %470, %480 : vector<2x14xf32>
    %482 = arith.subf %313, %367 : vector<2x16xf32>
    %483 = vector.extract_strided_slice %482 {offsets = [0, 1], sizes = [2, 15], strides = [1, 1]} : vector<2x16xf32> to vector<2x15xf32>
    %484 = vector.extract_strided_slice %482 {offsets = [0, 0], sizes = [2, 15], strides = [1, 1]} : vector<2x16xf32> to vector<2x15xf32>
    %485 = arith.subf %483, %484 : vector<2x15xf32>
    %486 = math.absf %485 : vector<2x15xf32>
    %487 = arith.addf %476, %486 : vector<2x15xf32>
    %488 = vector.extract_strided_slice %485 {offsets = [0, 1], sizes = [2, 14], strides = [1, 1]} : vector<2x15xf32> to vector<2x14xf32>
    %489 = vector.extract_strided_slice %485 {offsets = [0, 0], sizes = [2, 14], strides = [1, 1]} : vector<2x15xf32> to vector<2x14xf32>
    %490 = arith.subf %488, %489 : vector<2x14xf32>
    %491 = math.absf %490 : vector<2x14xf32>
    %492 = arith.addf %481, %491 : vector<2x14xf32>
    %493 = arith.subf %314, %368 : vector<2x16xf32>
    %494 = vector.extract_strided_slice %493 {offsets = [0, 1], sizes = [2, 15], strides = [1, 1]} : vector<2x16xf32> to vector<2x15xf32>
    %495 = vector.extract_strided_slice %493 {offsets = [0, 0], sizes = [2, 15], strides = [1, 1]} : vector<2x16xf32> to vector<2x15xf32>
    %496 = arith.subf %494, %495 : vector<2x15xf32>
    %497 = math.absf %496 : vector<2x15xf32>
    %498 = arith.addf %487, %497 : vector<2x15xf32>
    %499 = vector.extract_strided_slice %496 {offsets = [0, 1], sizes = [2, 14], strides = [1, 1]} : vector<2x15xf32> to vector<2x14xf32>
    %500 = vector.extract_strided_slice %496 {offsets = [0, 0], sizes = [2, 14], strides = [1, 1]} : vector<2x15xf32> to vector<2x14xf32>
    %501 = arith.subf %499, %500 : vector<2x14xf32>
    %502 = math.absf %501 : vector<2x14xf32>
    %503 = arith.addf %492, %502 : vector<2x14xf32>
    %504 = arith.subf %317, %371 : vector<2x16xf32>
    %505 = vector.extract_strided_slice %504 {offsets = [0, 1], sizes = [2, 15], strides = [1, 1]} : vector<2x16xf32> to vector<2x15xf32>
    %506 = vector.extract_strided_slice %504 {offsets = [0, 0], sizes = [2, 15], strides = [1, 1]} : vector<2x16xf32> to vector<2x15xf32>
    %507 = arith.subf %505, %506 : vector<2x15xf32>
    %508 = math.absf %507 : vector<2x15xf32>
    %509 = arith.addf %498, %508 : vector<2x15xf32>
    %510 = vector.extract_strided_slice %507 {offsets = [0, 1], sizes = [2, 14], strides = [1, 1]} : vector<2x15xf32> to vector<2x14xf32>
    %511 = vector.extract_strided_slice %507 {offsets = [0, 0], sizes = [2, 14], strides = [1, 1]} : vector<2x15xf32> to vector<2x14xf32>
    %512 = arith.subf %510, %511 : vector<2x14xf32>
    %513 = math.absf %512 : vector<2x14xf32>
    %514 = arith.addf %503, %513 : vector<2x14xf32>
    %515 = arith.subf %320, %374 : vector<2x16xf32>
    %516 = vector.extract_strided_slice %515 {offsets = [0, 1], sizes = [2, 15], strides = [1, 1]} : vector<2x16xf32> to vector<2x15xf32>
    %517 = vector.extract_strided_slice %515 {offsets = [0, 0], sizes = [2, 15], strides = [1, 1]} : vector<2x16xf32> to vector<2x15xf32>
    %518 = arith.subf %516, %517 : vector<2x15xf32>
    %519 = math.absf %518 : vector<2x15xf32>
    %520 = arith.addf %509, %519 : vector<2x15xf32>
    %521 = vector.extract_strided_slice %518 {offsets = [0, 1], sizes = [2, 14], strides = [1, 1]} : vector<2x15xf32> to vector<2x14xf32>
    %522 = vector.extract_strided_slice %518 {offsets = [0, 0], sizes = [2, 14], strides = [1, 1]} : vector<2x15xf32> to vector<2x14xf32>
    %523 = arith.subf %521, %522 : vector<2x14xf32>
    %524 = math.absf %523 : vector<2x14xf32>
    %525 = arith.addf %514, %524 : vector<2x14xf32>
    %526 = arith.subf %323, %377 : vector<2x16xf32>
    %527 = vector.extract_strided_slice %526 {offsets = [0, 1], sizes = [2, 15], strides = [1, 1]} : vector<2x16xf32> to vector<2x15xf32>
    %528 = vector.extract_strided_slice %526 {offsets = [0, 0], sizes = [2, 15], strides = [1, 1]} : vector<2x16xf32> to vector<2x15xf32>
    %529 = arith.subf %527, %528 : vector<2x15xf32>
    %530 = math.absf %529 : vector<2x15xf32>
    %531 = arith.addf %520, %530 : vector<2x15xf32>
    %532 = vector.extract_strided_slice %529 {offsets = [0, 1], sizes = [2, 14], strides = [1, 1]} : vector<2x15xf32> to vector<2x14xf32>
    %533 = vector.extract_strided_slice %529 {offsets = [0, 0], sizes = [2, 14], strides = [1, 1]} : vector<2x15xf32> to vector<2x14xf32>
    %534 = arith.subf %532, %533 : vector<2x14xf32>
    %535 = math.absf %534 : vector<2x14xf32>
    %536 = arith.addf %525, %535 : vector<2x14xf32>
    %c12 = arith.constant 12 : index
    %c0_102 = arith.constant 0 : index
    %c0_103 = arith.constant 0 : index
    %537 = vector.load %arg1[%c12, %c0_102, %c0_103] : memref<61x2x16xf32, #tpu.memory_space<vmem>>, vector<1x2x16xf32>
    %538 = vector.shape_cast %537 : vector<1x2x16xf32> to vector<2x16xf32>
    %c13 = arith.constant 13 : index
    %c0_104 = arith.constant 0 : index
    %c0_105 = arith.constant 0 : index
    %539 = vector.load %arg1[%c13, %c0_104, %c0_105] : memref<61x2x16xf32, #tpu.memory_space<vmem>>, vector<1x2x16xf32>
    %540 = vector.shape_cast %539 : vector<1x2x16xf32> to vector<2x16xf32>
    %c14 = arith.constant 14 : index
    %c0_106 = arith.constant 0 : index
    %c0_107 = arith.constant 0 : index
    %541 = vector.load %arg1[%c14, %c0_106, %c0_107] : memref<61x2x16xf32, #tpu.memory_space<vmem>>, vector<1x2x16xf32>
    %542 = vector.shape_cast %541 : vector<1x2x16xf32> to vector<2x16xf32>
    %c15 = arith.constant 15 : index
    %c0_108 = arith.constant 0 : index
    %c0_109 = arith.constant 0 : index
    %543 = vector.load %arg1[%c15, %c0_108, %c0_109] : memref<61x2x16xf32, #tpu.memory_space<vmem>>, vector<1x2x16xf32>
    %544 = vector.shape_cast %543 : vector<1x2x16xf32> to vector<2x16xf32>
    %c16 = arith.constant 16 : index
    %c0_110 = arith.constant 0 : index
    %c0_111 = arith.constant 0 : index
    %545 = vector.load %arg1[%c16, %c0_110, %c0_111] : memref<61x2x16xf32, #tpu.memory_space<vmem>>, vector<1x2x16xf32>
    %546 = vector.shape_cast %545 : vector<1x2x16xf32> to vector<2x16xf32>
    %c17 = arith.constant 17 : index
    %c0_112 = arith.constant 0 : index
    %c0_113 = arith.constant 0 : index
    %547 = vector.load %arg1[%c17, %c0_112, %c0_113] : memref<61x2x16xf32, #tpu.memory_space<vmem>>, vector<1x2x16xf32>
    %548 = vector.shape_cast %547 : vector<1x2x16xf32> to vector<2x16xf32>
    %549 = arith.mulf %538, %538 : vector<2x16xf32>
    %550 = arith.mulf %540, %540 : vector<2x16xf32>
    %551 = arith.addf %549, %550 : vector<2x16xf32>
    %552 = arith.mulf %542, %542 : vector<2x16xf32>
    %553 = arith.addf %551, %552 : vector<2x16xf32>
    %cst_114 = arith.constant 1.000000e-24 : f32
    %554 = vector.broadcast %cst_114 : f32 to vector<2x16xf32>
    %555 = arith.maximumf %553, %554 : vector<2x16xf32>
    %556 = math.rsqrt %555 : vector<2x16xf32>
    %557 = arith.mulf %538, %556 : vector<2x16xf32>
    %558 = arith.mulf %540, %556 : vector<2x16xf32>
    %559 = arith.mulf %542, %556 : vector<2x16xf32>
    %560 = arith.mulf %557, %544 : vector<2x16xf32>
    %561 = arith.mulf %558, %546 : vector<2x16xf32>
    %562 = arith.addf %560, %561 : vector<2x16xf32>
    %563 = arith.mulf %559, %548 : vector<2x16xf32>
    %564 = arith.addf %562, %563 : vector<2x16xf32>
    %565 = arith.mulf %564, %557 : vector<2x16xf32>
    %566 = arith.subf %544, %565 : vector<2x16xf32>
    %567 = arith.mulf %564, %558 : vector<2x16xf32>
    %568 = arith.subf %546, %567 : vector<2x16xf32>
    %569 = arith.mulf %564, %559 : vector<2x16xf32>
    %570 = arith.subf %548, %569 : vector<2x16xf32>
    %571 = arith.mulf %566, %566 : vector<2x16xf32>
    %572 = arith.mulf %568, %568 : vector<2x16xf32>
    %573 = arith.addf %571, %572 : vector<2x16xf32>
    %574 = arith.mulf %570, %570 : vector<2x16xf32>
    %575 = arith.addf %573, %574 : vector<2x16xf32>
    %cst_115 = arith.constant 1.000000e-24 : f32
    %576 = vector.broadcast %cst_115 : f32 to vector<2x16xf32>
    %577 = arith.maximumf %575, %576 : vector<2x16xf32>
    %578 = math.rsqrt %577 : vector<2x16xf32>
    %579 = arith.mulf %566, %578 : vector<2x16xf32>
    %580 = arith.mulf %568, %578 : vector<2x16xf32>
    %581 = arith.mulf %570, %578 : vector<2x16xf32>
    %582 = arith.mulf %558, %581 : vector<2x16xf32>
    %583 = arith.mulf %559, %580 : vector<2x16xf32>
    %584 = arith.subf %582, %583 : vector<2x16xf32>
    %585 = arith.mulf %559, %579 : vector<2x16xf32>
    %586 = arith.mulf %557, %581 : vector<2x16xf32>
    %587 = arith.subf %585, %586 : vector<2x16xf32>
    %588 = arith.mulf %557, %580 : vector<2x16xf32>
    %589 = arith.mulf %558, %579 : vector<2x16xf32>
    %590 = arith.subf %588, %589 : vector<2x16xf32>
    %c12_116 = arith.constant 12 : index
    %c0_117 = arith.constant 0 : index
    %c0_118 = arith.constant 0 : index
    %591 = vector.load %arg2[%c12_116, %c0_117, %c0_118] : memref<61x2x16xf32, #tpu.memory_space<vmem>>, vector<1x2x16xf32>
    %592 = vector.shape_cast %591 : vector<1x2x16xf32> to vector<2x16xf32>
    %c13_119 = arith.constant 13 : index
    %c0_120 = arith.constant 0 : index
    %c0_121 = arith.constant 0 : index
    %593 = vector.load %arg2[%c13_119, %c0_120, %c0_121] : memref<61x2x16xf32, #tpu.memory_space<vmem>>, vector<1x2x16xf32>
    %594 = vector.shape_cast %593 : vector<1x2x16xf32> to vector<2x16xf32>
    %c14_122 = arith.constant 14 : index
    %c0_123 = arith.constant 0 : index
    %c0_124 = arith.constant 0 : index
    %595 = vector.load %arg2[%c14_122, %c0_123, %c0_124] : memref<61x2x16xf32, #tpu.memory_space<vmem>>, vector<1x2x16xf32>
    %596 = vector.shape_cast %595 : vector<1x2x16xf32> to vector<2x16xf32>
    %c15_125 = arith.constant 15 : index
    %c0_126 = arith.constant 0 : index
    %c0_127 = arith.constant 0 : index
    %597 = vector.load %arg2[%c15_125, %c0_126, %c0_127] : memref<61x2x16xf32, #tpu.memory_space<vmem>>, vector<1x2x16xf32>
    %598 = vector.shape_cast %597 : vector<1x2x16xf32> to vector<2x16xf32>
    %c16_128 = arith.constant 16 : index
    %c0_129 = arith.constant 0 : index
    %c0_130 = arith.constant 0 : index
    %599 = vector.load %arg2[%c16_128, %c0_129, %c0_130] : memref<61x2x16xf32, #tpu.memory_space<vmem>>, vector<1x2x16xf32>
    %600 = vector.shape_cast %599 : vector<1x2x16xf32> to vector<2x16xf32>
    %c17_131 = arith.constant 17 : index
    %c0_132 = arith.constant 0 : index
    %c0_133 = arith.constant 0 : index
    %601 = vector.load %arg2[%c17_131, %c0_132, %c0_133] : memref<61x2x16xf32, #tpu.memory_space<vmem>>, vector<1x2x16xf32>
    %602 = vector.shape_cast %601 : vector<1x2x16xf32> to vector<2x16xf32>
    %603 = arith.mulf %592, %592 : vector<2x16xf32>
    %604 = arith.mulf %594, %594 : vector<2x16xf32>
    %605 = arith.addf %603, %604 : vector<2x16xf32>
    %606 = arith.mulf %596, %596 : vector<2x16xf32>
    %607 = arith.addf %605, %606 : vector<2x16xf32>
    %cst_134 = arith.constant 1.000000e-24 : f32
    %608 = vector.broadcast %cst_134 : f32 to vector<2x16xf32>
    %609 = arith.maximumf %607, %608 : vector<2x16xf32>
    %610 = math.rsqrt %609 : vector<2x16xf32>
    %611 = arith.mulf %592, %610 : vector<2x16xf32>
    %612 = arith.mulf %594, %610 : vector<2x16xf32>
    %613 = arith.mulf %596, %610 : vector<2x16xf32>
    %614 = arith.mulf %611, %598 : vector<2x16xf32>
    %615 = arith.mulf %612, %600 : vector<2x16xf32>
    %616 = arith.addf %614, %615 : vector<2x16xf32>
    %617 = arith.mulf %613, %602 : vector<2x16xf32>
    %618 = arith.addf %616, %617 : vector<2x16xf32>
    %619 = arith.mulf %618, %611 : vector<2x16xf32>
    %620 = arith.subf %598, %619 : vector<2x16xf32>
    %621 = arith.mulf %618, %612 : vector<2x16xf32>
    %622 = arith.subf %600, %621 : vector<2x16xf32>
    %623 = arith.mulf %618, %613 : vector<2x16xf32>
    %624 = arith.subf %602, %623 : vector<2x16xf32>
    %625 = arith.mulf %620, %620 : vector<2x16xf32>
    %626 = arith.mulf %622, %622 : vector<2x16xf32>
    %627 = arith.addf %625, %626 : vector<2x16xf32>
    %628 = arith.mulf %624, %624 : vector<2x16xf32>
    %629 = arith.addf %627, %628 : vector<2x16xf32>
    %cst_135 = arith.constant 1.000000e-24 : f32
    %630 = vector.broadcast %cst_135 : f32 to vector<2x16xf32>
    %631 = arith.maximumf %629, %630 : vector<2x16xf32>
    %632 = math.rsqrt %631 : vector<2x16xf32>
    %633 = arith.mulf %620, %632 : vector<2x16xf32>
    %634 = arith.mulf %622, %632 : vector<2x16xf32>
    %635 = arith.mulf %624, %632 : vector<2x16xf32>
    %636 = arith.mulf %612, %635 : vector<2x16xf32>
    %637 = arith.mulf %613, %634 : vector<2x16xf32>
    %638 = arith.subf %636, %637 : vector<2x16xf32>
    %639 = arith.mulf %613, %633 : vector<2x16xf32>
    %640 = arith.mulf %611, %635 : vector<2x16xf32>
    %641 = arith.subf %639, %640 : vector<2x16xf32>
    %642 = arith.mulf %611, %634 : vector<2x16xf32>
    %643 = arith.mulf %612, %633 : vector<2x16xf32>
    %644 = arith.subf %642, %643 : vector<2x16xf32>
    %645 = arith.mulf %557, %611 : vector<2x16xf32>
    %646 = arith.mulf %558, %612 : vector<2x16xf32>
    %647 = arith.addf %645, %646 : vector<2x16xf32>
    %648 = arith.mulf %559, %613 : vector<2x16xf32>
    %649 = arith.addf %647, %648 : vector<2x16xf32>
    %650 = arith.mulf %579, %633 : vector<2x16xf32>
    %651 = arith.addf %649, %650 : vector<2x16xf32>
    %652 = arith.mulf %580, %634 : vector<2x16xf32>
    %653 = arith.addf %651, %652 : vector<2x16xf32>
    %654 = arith.mulf %581, %635 : vector<2x16xf32>
    %655 = arith.addf %653, %654 : vector<2x16xf32>
    %656 = arith.mulf %584, %638 : vector<2x16xf32>
    %657 = arith.addf %655, %656 : vector<2x16xf32>
    %658 = arith.mulf %587, %641 : vector<2x16xf32>
    %659 = arith.addf %657, %658 : vector<2x16xf32>
    %660 = arith.mulf %590, %644 : vector<2x16xf32>
    %661 = arith.addf %659, %660 : vector<2x16xf32>
    %cst_136 = arith.constant 1.000000e+00 : f32
    %662 = vector.broadcast %cst_136 : f32 to vector<2x16xf32>
    %663 = arith.subf %661, %662 : vector<2x16xf32>
    %cst_137 = arith.constant 5.000000e-01 : f32
    %664 = vector.broadcast %cst_137 : f32 to vector<2x16xf32>
    %665 = arith.mulf %664, %663 : vector<2x16xf32>
    %cst_138 = arith.constant -0.999998986 : f32
    %cst_139 = arith.constant 0.999998986 : f32
    %666 = vector.broadcast %cst_138 : f32 to vector<2x16xf32>
    %667 = arith.maximumf %666, %665 : vector<2x16xf32>
    %668 = vector.broadcast %cst_139 : f32 to vector<2x16xf32>
    %669 = arith.minimumf %668, %667 : vector<2x16xf32>
    %670 = math.absf %669 : vector<2x16xf32>
    %cst_140 = arith.constant -0.0012624911 : f32
    %671 = vector.broadcast %cst_140 : f32 to vector<2x16xf32>
    %672 = arith.mulf %671, %670 : vector<2x16xf32>
    %cst_141 = arith.constant 6.670090e-03 : f32
    %673 = vector.broadcast %cst_141 : f32 to vector<2x16xf32>
    %674 = arith.addf %672, %673 : vector<2x16xf32>
    %675 = arith.mulf %674, %670 : vector<2x16xf32>
    %cst_142 = arith.constant -0.0170881264 : f32
    %676 = vector.broadcast %cst_142 : f32 to vector<2x16xf32>
    %677 = arith.addf %675, %676 : vector<2x16xf32>
    %678 = arith.mulf %677, %670 : vector<2x16xf32>
    %cst_143 = arith.constant 0.0308918804 : f32
    %679 = vector.broadcast %cst_143 : f32 to vector<2x16xf32>
    %680 = arith.addf %678, %679 : vector<2x16xf32>
    %681 = arith.mulf %680, %670 : vector<2x16xf32>
    %cst_144 = arith.constant -0.0501743034 : f32
    %682 = vector.broadcast %cst_144 : f32 to vector<2x16xf32>
    %683 = arith.addf %681, %682 : vector<2x16xf32>
    %684 = arith.mulf %683, %670 : vector<2x16xf32>
    %cst_145 = arith.constant 0.0889789909 : f32
    %685 = vector.broadcast %cst_145 : f32 to vector<2x16xf32>
    %686 = arith.addf %684, %685 : vector<2x16xf32>
    %687 = arith.mulf %686, %670 : vector<2x16xf32>
    %cst_146 = arith.constant -0.214598805 : f32
    %688 = vector.broadcast %cst_146 : f32 to vector<2x16xf32>
    %689 = arith.addf %687, %688 : vector<2x16xf32>
    %690 = arith.mulf %689, %670 : vector<2x16xf32>
    %cst_147 = arith.constant 1.57079625 : f32
    %691 = vector.broadcast %cst_147 : f32 to vector<2x16xf32>
    %692 = arith.addf %690, %691 : vector<2x16xf32>
    %cst_148 = arith.constant 1.000000e+00 : f32
    %693 = vector.broadcast %cst_148 : f32 to vector<2x16xf32>
    %694 = arith.subf %693, %670 : vector<2x16xf32>
    %cst_149 = arith.constant 0.000000e+00 : f32
    %695 = vector.broadcast %cst_149 : f32 to vector<2x16xf32>
    %696 = arith.maximumf %694, %695 : vector<2x16xf32>
    %697 = math.sqrt %696 : vector<2x16xf32>
    %698 = arith.mulf %697, %692 : vector<2x16xf32>
    %cst_150 = arith.constant 0.000000e+00 : f32
    %699 = vector.broadcast %cst_150 : f32 to vector<2x16xf32>
    %700 = arith.cmpf olt, %669, %699 : vector<2x16xf32>
    %cst_151 = arith.constant 3.14159274 : f32
    %701 = vector.broadcast %cst_151 : f32 to vector<2x16xf32>
    %702 = arith.subf %701, %698 : vector<2x16xf32>
    %703 = arith.select %700, %702, %698 : vector<2x16xi1>, vector<2x16xf32>
    %704 = arith.addf %437, %703 : vector<2x16xf32>
    %705 = arith.subf %557, %611 : vector<2x16xf32>
    %706 = vector.extract_strided_slice %705 {offsets = [0, 1], sizes = [2, 15], strides = [1, 1]} : vector<2x16xf32> to vector<2x15xf32>
    %707 = vector.extract_strided_slice %705 {offsets = [0, 0], sizes = [2, 15], strides = [1, 1]} : vector<2x16xf32> to vector<2x15xf32>
    %708 = arith.subf %706, %707 : vector<2x15xf32>
    %709 = math.absf %708 : vector<2x15xf32>
    %710 = arith.addf %531, %709 : vector<2x15xf32>
    %711 = vector.extract_strided_slice %708 {offsets = [0, 1], sizes = [2, 14], strides = [1, 1]} : vector<2x15xf32> to vector<2x14xf32>
    %712 = vector.extract_strided_slice %708 {offsets = [0, 0], sizes = [2, 14], strides = [1, 1]} : vector<2x15xf32> to vector<2x14xf32>
    %713 = arith.subf %711, %712 : vector<2x14xf32>
    %714 = math.absf %713 : vector<2x14xf32>
    %715 = arith.addf %536, %714 : vector<2x14xf32>
    %716 = arith.subf %558, %612 : vector<2x16xf32>
    %717 = vector.extract_strided_slice %716 {offsets = [0, 1], sizes = [2, 15], strides = [1, 1]} : vector<2x16xf32> to vector<2x15xf32>
    %718 = vector.extract_strided_slice %716 {offsets = [0, 0], sizes = [2, 15], strides = [1, 1]} : vector<2x16xf32> to vector<2x15xf32>
    %719 = arith.subf %717, %718 : vector<2x15xf32>
    %720 = math.absf %719 : vector<2x15xf32>
    %721 = arith.addf %710, %720 : vector<2x15xf32>
    %722 = vector.extract_strided_slice %719 {offsets = [0, 1], sizes = [2, 14], strides = [1, 1]} : vector<2x15xf32> to vector<2x14xf32>
    %723 = vector.extract_strided_slice %719 {offsets = [0, 0], sizes = [2, 14], strides = [1, 1]} : vector<2x15xf32> to vector<2x14xf32>
    %724 = arith.subf %722, %723 : vector<2x14xf32>
    %725 = math.absf %724 : vector<2x14xf32>
    %726 = arith.addf %715, %725 : vector<2x14xf32>
    %727 = arith.subf %559, %613 : vector<2x16xf32>
    %728 = vector.extract_strided_slice %727 {offsets = [0, 1], sizes = [2, 15], strides = [1, 1]} : vector<2x16xf32> to vector<2x15xf32>
    %729 = vector.extract_strided_slice %727 {offsets = [0, 0], sizes = [2, 15], strides = [1, 1]} : vector<2x16xf32> to vector<2x15xf32>
    %730 = arith.subf %728, %729 : vector<2x15xf32>
    %731 = math.absf %730 : vector<2x15xf32>
    %732 = arith.addf %721, %731 : vector<2x15xf32>
    %733 = vector.extract_strided_slice %730 {offsets = [0, 1], sizes = [2, 14], strides = [1, 1]} : vector<2x15xf32> to vector<2x14xf32>
    %734 = vector.extract_strided_slice %730 {offsets = [0, 0], sizes = [2, 14], strides = [1, 1]} : vector<2x15xf32> to vector<2x14xf32>
    %735 = arith.subf %733, %734 : vector<2x14xf32>
    %736 = math.absf %735 : vector<2x14xf32>
    %737 = arith.addf %726, %736 : vector<2x14xf32>
    %738 = arith.subf %579, %633 : vector<2x16xf32>
    %739 = vector.extract_strided_slice %738 {offsets = [0, 1], sizes = [2, 15], strides = [1, 1]} : vector<2x16xf32> to vector<2x15xf32>
    %740 = vector.extract_strided_slice %738 {offsets = [0, 0], sizes = [2, 15], strides = [1, 1]} : vector<2x16xf32> to vector<2x15xf32>
    %741 = arith.subf %739, %740 : vector<2x15xf32>
    %742 = math.absf %741 : vector<2x15xf32>
    %743 = arith.addf %732, %742 : vector<2x15xf32>
    %744 = vector.extract_strided_slice %741 {offsets = [0, 1], sizes = [2, 14], strides = [1, 1]} : vector<2x15xf32> to vector<2x14xf32>
    %745 = vector.extract_strided_slice %741 {offsets = [0, 0], sizes = [2, 14], strides = [1, 1]} : vector<2x15xf32> to vector<2x14xf32>
    %746 = arith.subf %744, %745 : vector<2x14xf32>
    %747 = math.absf %746 : vector<2x14xf32>
    %748 = arith.addf %737, %747 : vector<2x14xf32>
    %749 = arith.subf %580, %634 : vector<2x16xf32>
    %750 = vector.extract_strided_slice %749 {offsets = [0, 1], sizes = [2, 15], strides = [1, 1]} : vector<2x16xf32> to vector<2x15xf32>
    %751 = vector.extract_strided_slice %749 {offsets = [0, 0], sizes = [2, 15], strides = [1, 1]} : vector<2x16xf32> to vector<2x15xf32>
    %752 = arith.subf %750, %751 : vector<2x15xf32>
    %753 = math.absf %752 : vector<2x15xf32>
    %754 = arith.addf %743, %753 : vector<2x15xf32>
    %755 = vector.extract_strided_slice %752 {offsets = [0, 1], sizes = [2, 14], strides = [1, 1]} : vector<2x15xf32> to vector<2x14xf32>
    %756 = vector.extract_strided_slice %752 {offsets = [0, 0], sizes = [2, 14], strides = [1, 1]} : vector<2x15xf32> to vector<2x14xf32>
    %757 = arith.subf %755, %756 : vector<2x14xf32>
    %758 = math.absf %757 : vector<2x14xf32>
    %759 = arith.addf %748, %758 : vector<2x14xf32>
    %760 = arith.subf %581, %635 : vector<2x16xf32>
    %761 = vector.extract_strided_slice %760 {offsets = [0, 1], sizes = [2, 15], strides = [1, 1]} : vector<2x16xf32> to vector<2x15xf32>
    %762 = vector.extract_strided_slice %760 {offsets = [0, 0], sizes = [2, 15], strides = [1, 1]} : vector<2x16xf32> to vector<2x15xf32>
    %763 = arith.subf %761, %762 : vector<2x15xf32>
    %764 = math.absf %763 : vector<2x15xf32>
    %765 = arith.addf %754, %764 : vector<2x15xf32>
    %766 = vector.extract_strided_slice %763 {offsets = [0, 1], sizes = [2, 14], strides = [1, 1]} : vector<2x15xf32> to vector<2x14xf32>
    %767 = vector.extract_strided_slice %763 {offsets = [0, 0], sizes = [2, 14], strides = [1, 1]} : vector<2x15xf32> to vector<2x14xf32>
    %768 = arith.subf %766, %767 : vector<2x14xf32>
    %769 = math.absf %768 : vector<2x14xf32>
    %770 = arith.addf %759, %769 : vector<2x14xf32>
    %771 = arith.subf %584, %638 : vector<2x16xf32>
    %772 = vector.extract_strided_slice %771 {offsets = [0, 1], sizes = [2, 15], strides = [1, 1]} : vector<2x16xf32> to vector<2x15xf32>
    %773 = vector.extract_strided_slice %771 {offsets = [0, 0], sizes = [2, 15], strides = [1, 1]} : vector<2x16xf32> to vector<2x15xf32>
    %774 = arith.subf %772, %773 : vector<2x15xf32>
    %775 = math.absf %774 : vector<2x15xf32>
    %776 = arith.addf %765, %775 : vector<2x15xf32>
    %777 = vector.extract_strided_slice %774 {offsets = [0, 1], sizes = [2, 14], strides = [1, 1]} : vector<2x15xf32> to vector<2x14xf32>
    %778 = vector.extract_strided_slice %774 {offsets = [0, 0], sizes = [2, 14], strides = [1, 1]} : vector<2x15xf32> to vector<2x14xf32>
    %779 = arith.subf %777, %778 : vector<2x14xf32>
    %780 = math.absf %779 : vector<2x14xf32>
    %781 = arith.addf %770, %780 : vector<2x14xf32>
    %782 = arith.subf %587, %641 : vector<2x16xf32>
    %783 = vector.extract_strided_slice %782 {offsets = [0, 1], sizes = [2, 15], strides = [1, 1]} : vector<2x16xf32> to vector<2x15xf32>
    %784 = vector.extract_strided_slice %782 {offsets = [0, 0], sizes = [2, 15], strides = [1, 1]} : vector<2x16xf32> to vector<2x15xf32>
    %785 = arith.subf %783, %784 : vector<2x15xf32>
    %786 = math.absf %785 : vector<2x15xf32>
    %787 = arith.addf %776, %786 : vector<2x15xf32>
    %788 = vector.extract_strided_slice %785 {offsets = [0, 1], sizes = [2, 14], strides = [1, 1]} : vector<2x15xf32> to vector<2x14xf32>
    %789 = vector.extract_strided_slice %785 {offsets = [0, 0], sizes = [2, 14], strides = [1, 1]} : vector<2x15xf32> to vector<2x14xf32>
    %790 = arith.subf %788, %789 : vector<2x14xf32>
    %791 = math.absf %790 : vector<2x14xf32>
    %792 = arith.addf %781, %791 : vector<2x14xf32>
    %793 = arith.subf %590, %644 : vector<2x16xf32>
    %794 = vector.extract_strided_slice %793 {offsets = [0, 1], sizes = [2, 15], strides = [1, 1]} : vector<2x16xf32> to vector<2x15xf32>
    %795 = vector.extract_strided_slice %793 {offsets = [0, 0], sizes = [2, 15], strides = [1, 1]} : vector<2x16xf32> to vector<2x15xf32>
    %796 = arith.subf %794, %795 : vector<2x15xf32>
    %797 = math.absf %796 : vector<2x15xf32>
    %798 = arith.addf %787, %797 : vector<2x15xf32>
    %799 = vector.extract_strided_slice %796 {offsets = [0, 1], sizes = [2, 14], strides = [1, 1]} : vector<2x15xf32> to vector<2x14xf32>
    %800 = vector.extract_strided_slice %796 {offsets = [0, 0], sizes = [2, 14], strides = [1, 1]} : vector<2x15xf32> to vector<2x14xf32>
    %801 = arith.subf %799, %800 : vector<2x14xf32>
    %802 = math.absf %801 : vector<2x14xf32>
    %803 = arith.addf %792, %802 : vector<2x14xf32>
    %c18 = arith.constant 18 : index
    %c0_152 = arith.constant 0 : index
    %c0_153 = arith.constant 0 : index
    %804 = vector.load %arg1[%c18, %c0_152, %c0_153] : memref<61x2x16xf32, #tpu.memory_space<vmem>>, vector<1x2x16xf32>
    %805 = vector.shape_cast %804 : vector<1x2x16xf32> to vector<2x16xf32>
    %c19 = arith.constant 19 : index
    %c0_154 = arith.constant 0 : index
    %c0_155 = arith.constant 0 : index
    %806 = vector.load %arg1[%c19, %c0_154, %c0_155] : memref<61x2x16xf32, #tpu.memory_space<vmem>>, vector<1x2x16xf32>
    %807 = vector.shape_cast %806 : vector<1x2x16xf32> to vector<2x16xf32>
    %c20 = arith.constant 20 : index
    %c0_156 = arith.constant 0 : index
    %c0_157 = arith.constant 0 : index
    %808 = vector.load %arg1[%c20, %c0_156, %c0_157] : memref<61x2x16xf32, #tpu.memory_space<vmem>>, vector<1x2x16xf32>
    %809 = vector.shape_cast %808 : vector<1x2x16xf32> to vector<2x16xf32>
    %c21 = arith.constant 21 : index
    %c0_158 = arith.constant 0 : index
    %c0_159 = arith.constant 0 : index
    %810 = vector.load %arg1[%c21, %c0_158, %c0_159] : memref<61x2x16xf32, #tpu.memory_space<vmem>>, vector<1x2x16xf32>
    %811 = vector.shape_cast %810 : vector<1x2x16xf32> to vector<2x16xf32>
    %c22 = arith.constant 22 : index
    %c0_160 = arith.constant 0 : index
    %c0_161 = arith.constant 0 : index
    %812 = vector.load %arg1[%c22, %c0_160, %c0_161] : memref<61x2x16xf32, #tpu.memory_space<vmem>>, vector<1x2x16xf32>
    %813 = vector.shape_cast %812 : vector<1x2x16xf32> to vector<2x16xf32>
    %c23 = arith.constant 23 : index
    %c0_162 = arith.constant 0 : index
    %c0_163 = arith.constant 0 : index
    %814 = vector.load %arg1[%c23, %c0_162, %c0_163] : memref<61x2x16xf32, #tpu.memory_space<vmem>>, vector<1x2x16xf32>
    %815 = vector.shape_cast %814 : vector<1x2x16xf32> to vector<2x16xf32>
    %816 = arith.mulf %805, %805 : vector<2x16xf32>
    %817 = arith.mulf %807, %807 : vector<2x16xf32>
    %818 = arith.addf %816, %817 : vector<2x16xf32>
    %819 = arith.mulf %809, %809 : vector<2x16xf32>
    %820 = arith.addf %818, %819 : vector<2x16xf32>
    %cst_164 = arith.constant 1.000000e-24 : f32
    %821 = vector.broadcast %cst_164 : f32 to vector<2x16xf32>
    %822 = arith.maximumf %820, %821 : vector<2x16xf32>
    %823 = math.rsqrt %822 : vector<2x16xf32>
    %824 = arith.mulf %805, %823 : vector<2x16xf32>
    %825 = arith.mulf %807, %823 : vector<2x16xf32>
    %826 = arith.mulf %809, %823 : vector<2x16xf32>
    %827 = arith.mulf %824, %811 : vector<2x16xf32>
    %828 = arith.mulf %825, %813 : vector<2x16xf32>
    %829 = arith.addf %827, %828 : vector<2x16xf32>
    %830 = arith.mulf %826, %815 : vector<2x16xf32>
    %831 = arith.addf %829, %830 : vector<2x16xf32>
    %832 = arith.mulf %831, %824 : vector<2x16xf32>
    %833 = arith.subf %811, %832 : vector<2x16xf32>
    %834 = arith.mulf %831, %825 : vector<2x16xf32>
    %835 = arith.subf %813, %834 : vector<2x16xf32>
    %836 = arith.mulf %831, %826 : vector<2x16xf32>
    %837 = arith.subf %815, %836 : vector<2x16xf32>
    %838 = arith.mulf %833, %833 : vector<2x16xf32>
    %839 = arith.mulf %835, %835 : vector<2x16xf32>
    %840 = arith.addf %838, %839 : vector<2x16xf32>
    %841 = arith.mulf %837, %837 : vector<2x16xf32>
    %842 = arith.addf %840, %841 : vector<2x16xf32>
    %cst_165 = arith.constant 1.000000e-24 : f32
    %843 = vector.broadcast %cst_165 : f32 to vector<2x16xf32>
    %844 = arith.maximumf %842, %843 : vector<2x16xf32>
    %845 = math.rsqrt %844 : vector<2x16xf32>
    %846 = arith.mulf %833, %845 : vector<2x16xf32>
    %847 = arith.mulf %835, %845 : vector<2x16xf32>
    %848 = arith.mulf %837, %845 : vector<2x16xf32>
    %849 = arith.mulf %825, %848 : vector<2x16xf32>
    %850 = arith.mulf %826, %847 : vector<2x16xf32>
    %851 = arith.subf %849, %850 : vector<2x16xf32>
    %852 = arith.mulf %826, %846 : vector<2x16xf32>
    %853 = arith.mulf %824, %848 : vector<2x16xf32>
    %854 = arith.subf %852, %853 : vector<2x16xf32>
    %855 = arith.mulf %824, %847 : vector<2x16xf32>
    %856 = arith.mulf %825, %846 : vector<2x16xf32>
    %857 = arith.subf %855, %856 : vector<2x16xf32>
    %c18_166 = arith.constant 18 : index
    %c0_167 = arith.constant 0 : index
    %c0_168 = arith.constant 0 : index
    %858 = vector.load %arg2[%c18_166, %c0_167, %c0_168] : memref<61x2x16xf32, #tpu.memory_space<vmem>>, vector<1x2x16xf32>
    %859 = vector.shape_cast %858 : vector<1x2x16xf32> to vector<2x16xf32>
    %c19_169 = arith.constant 19 : index
    %c0_170 = arith.constant 0 : index
    %c0_171 = arith.constant 0 : index
    %860 = vector.load %arg2[%c19_169, %c0_170, %c0_171] : memref<61x2x16xf32, #tpu.memory_space<vmem>>, vector<1x2x16xf32>
    %861 = vector.shape_cast %860 : vector<1x2x16xf32> to vector<2x16xf32>
    %c20_172 = arith.constant 20 : index
    %c0_173 = arith.constant 0 : index
    %c0_174 = arith.constant 0 : index
    %862 = vector.load %arg2[%c20_172, %c0_173, %c0_174] : memref<61x2x16xf32, #tpu.memory_space<vmem>>, vector<1x2x16xf32>
    %863 = vector.shape_cast %862 : vector<1x2x16xf32> to vector<2x16xf32>
    %c21_175 = arith.constant 21 : index
    %c0_176 = arith.constant 0 : index
    %c0_177 = arith.constant 0 : index
    %864 = vector.load %arg2[%c21_175, %c0_176, %c0_177] : memref<61x2x16xf32, #tpu.memory_space<vmem>>, vector<1x2x16xf32>
    %865 = vector.shape_cast %864 : vector<1x2x16xf32> to vector<2x16xf32>
    %c22_178 = arith.constant 22 : index
    %c0_179 = arith.constant 0 : index
    %c0_180 = arith.constant 0 : index
    %866 = vector.load %arg2[%c22_178, %c0_179, %c0_180] : memref<61x2x16xf32, #tpu.memory_space<vmem>>, vector<1x2x16xf32>
    %867 = vector.shape_cast %866 : vector<1x2x16xf32> to vector<2x16xf32>
    %c23_181 = arith.constant 23 : index
    %c0_182 = arith.constant 0 : index
    %c0_183 = arith.constant 0 : index
    %868 = vector.load %arg2[%c23_181, %c0_182, %c0_183] : memref<61x2x16xf32, #tpu.memory_space<vmem>>, vector<1x2x16xf32>
    %869 = vector.shape_cast %868 : vector<1x2x16xf32> to vector<2x16xf32>
    %870 = arith.mulf %859, %859 : vector<2x16xf32>
    %871 = arith.mulf %861, %861 : vector<2x16xf32>
    %872 = arith.addf %870, %871 : vector<2x16xf32>
    %873 = arith.mulf %863, %863 : vector<2x16xf32>
    %874 = arith.addf %872, %873 : vector<2x16xf32>
    %cst_184 = arith.constant 1.000000e-24 : f32
    %875 = vector.broadcast %cst_184 : f32 to vector<2x16xf32>
    %876 = arith.maximumf %874, %875 : vector<2x16xf32>
    %877 = math.rsqrt %876 : vector<2x16xf32>
    %878 = arith.mulf %859, %877 : vector<2x16xf32>
    %879 = arith.mulf %861, %877 : vector<2x16xf32>
    %880 = arith.mulf %863, %877 : vector<2x16xf32>
    %881 = arith.mulf %878, %865 : vector<2x16xf32>
    %882 = arith.mulf %879, %867 : vector<2x16xf32>
    %883 = arith.addf %881, %882 : vector<2x16xf32>
    %884 = arith.mulf %880, %869 : vector<2x16xf32>
    %885 = arith.addf %883, %884 : vector<2x16xf32>
    %886 = arith.mulf %885, %878 : vector<2x16xf32>
    %887 = arith.subf %865, %886 : vector<2x16xf32>
    %888 = arith.mulf %885, %879 : vector<2x16xf32>
    %889 = arith.subf %867, %888 : vector<2x16xf32>
    %890 = arith.mulf %885, %880 : vector<2x16xf32>
    %891 = arith.subf %869, %890 : vector<2x16xf32>
    %892 = arith.mulf %887, %887 : vector<2x16xf32>
    %893 = arith.mulf %889, %889 : vector<2x16xf32>
    %894 = arith.addf %892, %893 : vector<2x16xf32>
    %895 = arith.mulf %891, %891 : vector<2x16xf32>
    %896 = arith.addf %894, %895 : vector<2x16xf32>
    %cst_185 = arith.constant 1.000000e-24 : f32
    %897 = vector.broadcast %cst_185 : f32 to vector<2x16xf32>
    %898 = arith.maximumf %896, %897 : vector<2x16xf32>
    %899 = math.rsqrt %898 : vector<2x16xf32>
    %900 = arith.mulf %887, %899 : vector<2x16xf32>
    %901 = arith.mulf %889, %899 : vector<2x16xf32>
    %902 = arith.mulf %891, %899 : vector<2x16xf32>
    %903 = arith.mulf %879, %902 : vector<2x16xf32>
    %904 = arith.mulf %880, %901 : vector<2x16xf32>
    %905 = arith.subf %903, %904 : vector<2x16xf32>
    %906 = arith.mulf %880, %900 : vector<2x16xf32>
    %907 = arith.mulf %878, %902 : vector<2x16xf32>
    %908 = arith.subf %906, %907 : vector<2x16xf32>
    %909 = arith.mulf %878, %901 : vector<2x16xf32>
    %910 = arith.mulf %879, %900 : vector<2x16xf32>
    %911 = arith.subf %909, %910 : vector<2x16xf32>
    %912 = arith.mulf %824, %878 : vector<2x16xf32>
    %913 = arith.mulf %825, %879 : vector<2x16xf32>
    %914 = arith.addf %912, %913 : vector<2x16xf32>
    %915 = arith.mulf %826, %880 : vector<2x16xf32>
    %916 = arith.addf %914, %915 : vector<2x16xf32>
    %917 = arith.mulf %846, %900 : vector<2x16xf32>
    %918 = arith.addf %916, %917 : vector<2x16xf32>
    %919 = arith.mulf %847, %901 : vector<2x16xf32>
    %920 = arith.addf %918, %919 : vector<2x16xf32>
    %921 = arith.mulf %848, %902 : vector<2x16xf32>
    %922 = arith.addf %920, %921 : vector<2x16xf32>
    %923 = arith.mulf %851, %905 : vector<2x16xf32>
    %924 = arith.addf %922, %923 : vector<2x16xf32>
    %925 = arith.mulf %854, %908 : vector<2x16xf32>
    %926 = arith.addf %924, %925 : vector<2x16xf32>
    %927 = arith.mulf %857, %911 : vector<2x16xf32>
    %928 = arith.addf %926, %927 : vector<2x16xf32>
    %cst_186 = arith.constant 1.000000e+00 : f32
    %929 = vector.broadcast %cst_186 : f32 to vector<2x16xf32>
    %930 = arith.subf %928, %929 : vector<2x16xf32>
    %cst_187 = arith.constant 5.000000e-01 : f32
    %931 = vector.broadcast %cst_187 : f32 to vector<2x16xf32>
    %932 = arith.mulf %931, %930 : vector<2x16xf32>
    %cst_188 = arith.constant -0.999998986 : f32
    %cst_189 = arith.constant 0.999998986 : f32
    %933 = vector.broadcast %cst_188 : f32 to vector<2x16xf32>
    %934 = arith.maximumf %933, %932 : vector<2x16xf32>
    %935 = vector.broadcast %cst_189 : f32 to vector<2x16xf32>
    %936 = arith.minimumf %935, %934 : vector<2x16xf32>
    %937 = math.absf %936 : vector<2x16xf32>
    %cst_190 = arith.constant -0.0012624911 : f32
    %938 = vector.broadcast %cst_190 : f32 to vector<2x16xf32>
    %939 = arith.mulf %938, %937 : vector<2x16xf32>
    %cst_191 = arith.constant 6.670090e-03 : f32
    %940 = vector.broadcast %cst_191 : f32 to vector<2x16xf32>
    %941 = arith.addf %939, %940 : vector<2x16xf32>
    %942 = arith.mulf %941, %937 : vector<2x16xf32>
    %cst_192 = arith.constant -0.0170881264 : f32
    %943 = vector.broadcast %cst_192 : f32 to vector<2x16xf32>
    %944 = arith.addf %942, %943 : vector<2x16xf32>
    %945 = arith.mulf %944, %937 : vector<2x16xf32>
    %cst_193 = arith.constant 0.0308918804 : f32
    %946 = vector.broadcast %cst_193 : f32 to vector<2x16xf32>
    %947 = arith.addf %945, %946 : vector<2x16xf32>
    %948 = arith.mulf %947, %937 : vector<2x16xf32>
    %cst_194 = arith.constant -0.0501743034 : f32
    %949 = vector.broadcast %cst_194 : f32 to vector<2x16xf32>
    %950 = arith.addf %948, %949 : vector<2x16xf32>
    %951 = arith.mulf %950, %937 : vector<2x16xf32>
    %cst_195 = arith.constant 0.0889789909 : f32
    %952 = vector.broadcast %cst_195 : f32 to vector<2x16xf32>
    %953 = arith.addf %951, %952 : vector<2x16xf32>
    %954 = arith.mulf %953, %937 : vector<2x16xf32>
    %cst_196 = arith.constant -0.214598805 : f32
    %955 = vector.broadcast %cst_196 : f32 to vector<2x16xf32>
    %956 = arith.addf %954, %955 : vector<2x16xf32>
    %957 = arith.mulf %956, %937 : vector<2x16xf32>
    %cst_197 = arith.constant 1.57079625 : f32
    %958 = vector.broadcast %cst_197 : f32 to vector<2x16xf32>
    %959 = arith.addf %957, %958 : vector<2x16xf32>
    %cst_198 = arith.constant 1.000000e+00 : f32
    %960 = vector.broadcast %cst_198 : f32 to vector<2x16xf32>
    %961 = arith.subf %960, %937 : vector<2x16xf32>
    %cst_199 = arith.constant 0.000000e+00 : f32
    %962 = vector.broadcast %cst_199 : f32 to vector<2x16xf32>
    %963 = arith.maximumf %961, %962 : vector<2x16xf32>
    %964 = math.sqrt %963 : vector<2x16xf32>
    %965 = arith.mulf %964, %959 : vector<2x16xf32>
    %cst_200 = arith.constant 0.000000e+00 : f32
    %966 = vector.broadcast %cst_200 : f32 to vector<2x16xf32>
    %967 = arith.cmpf olt, %936, %966 : vector<2x16xf32>
    %cst_201 = arith.constant 3.14159274 : f32
    %968 = vector.broadcast %cst_201 : f32 to vector<2x16xf32>
    %969 = arith.subf %968, %965 : vector<2x16xf32>
    %970 = arith.select %967, %969, %965 : vector<2x16xi1>, vector<2x16xf32>
    %971 = arith.addf %704, %970 : vector<2x16xf32>
    %972 = arith.subf %824, %878 : vector<2x16xf32>
    %973 = vector.extract_strided_slice %972 {offsets = [0, 1], sizes = [2, 15], strides = [1, 1]} : vector<2x16xf32> to vector<2x15xf32>
    %974 = vector.extract_strided_slice %972 {offsets = [0, 0], sizes = [2, 15], strides = [1, 1]} : vector<2x16xf32> to vector<2x15xf32>
    %975 = arith.subf %973, %974 : vector<2x15xf32>
    %976 = math.absf %975 : vector<2x15xf32>
    %977 = arith.addf %798, %976 : vector<2x15xf32>
    %978 = vector.extract_strided_slice %975 {offsets = [0, 1], sizes = [2, 14], strides = [1, 1]} : vector<2x15xf32> to vector<2x14xf32>
    %979 = vector.extract_strided_slice %975 {offsets = [0, 0], sizes = [2, 14], strides = [1, 1]} : vector<2x15xf32> to vector<2x14xf32>
    %980 = arith.subf %978, %979 : vector<2x14xf32>
    %981 = math.absf %980 : vector<2x14xf32>
    %982 = arith.addf %803, %981 : vector<2x14xf32>
    %983 = arith.subf %825, %879 : vector<2x16xf32>
    %984 = vector.extract_strided_slice %983 {offsets = [0, 1], sizes = [2, 15], strides = [1, 1]} : vector<2x16xf32> to vector<2x15xf32>
    %985 = vector.extract_strided_slice %983 {offsets = [0, 0], sizes = [2, 15], strides = [1, 1]} : vector<2x16xf32> to vector<2x15xf32>
    %986 = arith.subf %984, %985 : vector<2x15xf32>
    %987 = math.absf %986 : vector<2x15xf32>
    %988 = arith.addf %977, %987 : vector<2x15xf32>
    %989 = vector.extract_strided_slice %986 {offsets = [0, 1], sizes = [2, 14], strides = [1, 1]} : vector<2x15xf32> to vector<2x14xf32>
    %990 = vector.extract_strided_slice %986 {offsets = [0, 0], sizes = [2, 14], strides = [1, 1]} : vector<2x15xf32> to vector<2x14xf32>
    %991 = arith.subf %989, %990 : vector<2x14xf32>
    %992 = math.absf %991 : vector<2x14xf32>
    %993 = arith.addf %982, %992 : vector<2x14xf32>
    %994 = arith.subf %826, %880 : vector<2x16xf32>
    %995 = vector.extract_strided_slice %994 {offsets = [0, 1], sizes = [2, 15], strides = [1, 1]} : vector<2x16xf32> to vector<2x15xf32>
    %996 = vector.extract_strided_slice %994 {offsets = [0, 0], sizes = [2, 15], strides = [1, 1]} : vector<2x16xf32> to vector<2x15xf32>
    %997 = arith.subf %995, %996 : vector<2x15xf32>
    %998 = math.absf %997 : vector<2x15xf32>
    %999 = arith.addf %988, %998 : vector<2x15xf32>
    %1000 = vector.extract_strided_slice %997 {offsets = [0, 1], sizes = [2, 14], strides = [1, 1]} : vector<2x15xf32> to vector<2x14xf32>
    %1001 = vector.extract_strided_slice %997 {offsets = [0, 0], sizes = [2, 14], strides = [1, 1]} : vector<2x15xf32> to vector<2x14xf32>
    %1002 = arith.subf %1000, %1001 : vector<2x14xf32>
    %1003 = math.absf %1002 : vector<2x14xf32>
    %1004 = arith.addf %993, %1003 : vector<2x14xf32>
    %1005 = arith.subf %846, %900 : vector<2x16xf32>
    %1006 = vector.extract_strided_slice %1005 {offsets = [0, 1], sizes = [2, 15], strides = [1, 1]} : vector<2x16xf32> to vector<2x15xf32>
    %1007 = vector.extract_strided_slice %1005 {offsets = [0, 0], sizes = [2, 15], strides = [1, 1]} : vector<2x16xf32> to vector<2x15xf32>
    %1008 = arith.subf %1006, %1007 : vector<2x15xf32>
    %1009 = math.absf %1008 : vector<2x15xf32>
    %1010 = arith.addf %999, %1009 : vector<2x15xf32>
    %1011 = vector.extract_strided_slice %1008 {offsets = [0, 1], sizes = [2, 14], strides = [1, 1]} : vector<2x15xf32> to vector<2x14xf32>
    %1012 = vector.extract_strided_slice %1008 {offsets = [0, 0], sizes = [2, 14], strides = [1, 1]} : vector<2x15xf32> to vector<2x14xf32>
    %1013 = arith.subf %1011, %1012 : vector<2x14xf32>
    %1014 = math.absf %1013 : vector<2x14xf32>
    %1015 = arith.addf %1004, %1014 : vector<2x14xf32>
    %1016 = arith.subf %847, %901 : vector<2x16xf32>
    %1017 = vector.extract_strided_slice %1016 {offsets = [0, 1], sizes = [2, 15], strides = [1, 1]} : vector<2x16xf32> to vector<2x15xf32>
    %1018 = vector.extract_strided_slice %1016 {offsets = [0, 0], sizes = [2, 15], strides = [1, 1]} : vector<2x16xf32> to vector<2x15xf32>
    %1019 = arith.subf %1017, %1018 : vector<2x15xf32>
    %1020 = math.absf %1019 : vector<2x15xf32>
    %1021 = arith.addf %1010, %1020 : vector<2x15xf32>
    %1022 = vector.extract_strided_slice %1019 {offsets = [0, 1], sizes = [2, 14], strides = [1, 1]} : vector<2x15xf32> to vector<2x14xf32>
    %1023 = vector.extract_strided_slice %1019 {offsets = [0, 0], sizes = [2, 14], strides = [1, 1]} : vector<2x15xf32> to vector<2x14xf32>
    %1024 = arith.subf %1022, %1023 : vector<2x14xf32>
    %1025 = math.absf %1024 : vector<2x14xf32>
    %1026 = arith.addf %1015, %1025 : vector<2x14xf32>
    %1027 = arith.subf %848, %902 : vector<2x16xf32>
    %1028 = vector.extract_strided_slice %1027 {offsets = [0, 1], sizes = [2, 15], strides = [1, 1]} : vector<2x16xf32> to vector<2x15xf32>
    %1029 = vector.extract_strided_slice %1027 {offsets = [0, 0], sizes = [2, 15], strides = [1, 1]} : vector<2x16xf32> to vector<2x15xf32>
    %1030 = arith.subf %1028, %1029 : vector<2x15xf32>
    %1031 = math.absf %1030 : vector<2x15xf32>
    %1032 = arith.addf %1021, %1031 : vector<2x15xf32>
    %1033 = vector.extract_strided_slice %1030 {offsets = [0, 1], sizes = [2, 14], strides = [1, 1]} : vector<2x15xf32> to vector<2x14xf32>
    %1034 = vector.extract_strided_slice %1030 {offsets = [0, 0], sizes = [2, 14], strides = [1, 1]} : vector<2x15xf32> to vector<2x14xf32>
    %1035 = arith.subf %1033, %1034 : vector<2x14xf32>
    %1036 = math.absf %1035 : vector<2x14xf32>
    %1037 = arith.addf %1026, %1036 : vector<2x14xf32>
    %1038 = arith.subf %851, %905 : vector<2x16xf32>
    %1039 = vector.extract_strided_slice %1038 {offsets = [0, 1], sizes = [2, 15], strides = [1, 1]} : vector<2x16xf32> to vector<2x15xf32>
    %1040 = vector.extract_strided_slice %1038 {offsets = [0, 0], sizes = [2, 15], strides = [1, 1]} : vector<2x16xf32> to vector<2x15xf32>
    %1041 = arith.subf %1039, %1040 : vector<2x15xf32>
    %1042 = math.absf %1041 : vector<2x15xf32>
    %1043 = arith.addf %1032, %1042 : vector<2x15xf32>
    %1044 = vector.extract_strided_slice %1041 {offsets = [0, 1], sizes = [2, 14], strides = [1, 1]} : vector<2x15xf32> to vector<2x14xf32>
    %1045 = vector.extract_strided_slice %1041 {offsets = [0, 0], sizes = [2, 14], strides = [1, 1]} : vector<2x15xf32> to vector<2x14xf32>
    %1046 = arith.subf %1044, %1045 : vector<2x14xf32>
    %1047 = math.absf %1046 : vector<2x14xf32>
    %1048 = arith.addf %1037, %1047 : vector<2x14xf32>
    %1049 = arith.subf %854, %908 : vector<2x16xf32>
    %1050 = vector.extract_strided_slice %1049 {offsets = [0, 1], sizes = [2, 15], strides = [1, 1]} : vector<2x16xf32> to vector<2x15xf32>
    %1051 = vector.extract_strided_slice %1049 {offsets = [0, 0], sizes = [2, 15], strides = [1, 1]} : vector<2x16xf32> to vector<2x15xf32>
    %1052 = arith.subf %1050, %1051 : vector<2x15xf32>
    %1053 = math.absf %1052 : vector<2x15xf32>
    %1054 = arith.addf %1043, %1053 : vector<2x15xf32>
    %1055 = vector.extract_strided_slice %1052 {offsets = [0, 1], sizes = [2, 14], strides = [1, 1]} : vector<2x15xf32> to vector<2x14xf32>
    %1056 = vector.extract_strided_slice %1052 {offsets = [0, 0], sizes = [2, 14], strides = [1, 1]} : vector<2x15xf32> to vector<2x14xf32>
    %1057 = arith.subf %1055, %1056 : vector<2x14xf32>
    %1058 = math.absf %1057 : vector<2x14xf32>
    %1059 = arith.addf %1048, %1058 : vector<2x14xf32>
    %1060 = arith.subf %857, %911 : vector<2x16xf32>
    %1061 = vector.extract_strided_slice %1060 {offsets = [0, 1], sizes = [2, 15], strides = [1, 1]} : vector<2x16xf32> to vector<2x15xf32>
    %1062 = vector.extract_strided_slice %1060 {offsets = [0, 0], sizes = [2, 15], strides = [1, 1]} : vector<2x16xf32> to vector<2x15xf32>
    %1063 = arith.subf %1061, %1062 : vector<2x15xf32>
    %1064 = math.absf %1063 : vector<2x15xf32>
    %1065 = arith.addf %1054, %1064 : vector<2x15xf32>
    %1066 = vector.extract_strided_slice %1063 {offsets = [0, 1], sizes = [2, 14], strides = [1, 1]} : vector<2x15xf32> to vector<2x14xf32>
    %1067 = vector.extract_strided_slice %1063 {offsets = [0, 0], sizes = [2, 14], strides = [1, 1]} : vector<2x15xf32> to vector<2x14xf32>
    %1068 = arith.subf %1066, %1067 : vector<2x14xf32>
    %1069 = math.absf %1068 : vector<2x14xf32>
    %1070 = arith.addf %1059, %1069 : vector<2x14xf32>
    %c24 = arith.constant 24 : index
    %c0_202 = arith.constant 0 : index
    %c0_203 = arith.constant 0 : index
    %1071 = vector.load %arg1[%c24, %c0_202, %c0_203] : memref<61x2x16xf32, #tpu.memory_space<vmem>>, vector<1x2x16xf32>
    %1072 = vector.shape_cast %1071 : vector<1x2x16xf32> to vector<2x16xf32>
    %c25 = arith.constant 25 : index
    %c0_204 = arith.constant 0 : index
    %c0_205 = arith.constant 0 : index
    %1073 = vector.load %arg1[%c25, %c0_204, %c0_205] : memref<61x2x16xf32, #tpu.memory_space<vmem>>, vector<1x2x16xf32>
    %1074 = vector.shape_cast %1073 : vector<1x2x16xf32> to vector<2x16xf32>
    %c26 = arith.constant 26 : index
    %c0_206 = arith.constant 0 : index
    %c0_207 = arith.constant 0 : index
    %1075 = vector.load %arg1[%c26, %c0_206, %c0_207] : memref<61x2x16xf32, #tpu.memory_space<vmem>>, vector<1x2x16xf32>
    %1076 = vector.shape_cast %1075 : vector<1x2x16xf32> to vector<2x16xf32>
    %c27 = arith.constant 27 : index
    %c0_208 = arith.constant 0 : index
    %c0_209 = arith.constant 0 : index
    %1077 = vector.load %arg1[%c27, %c0_208, %c0_209] : memref<61x2x16xf32, #tpu.memory_space<vmem>>, vector<1x2x16xf32>
    %1078 = vector.shape_cast %1077 : vector<1x2x16xf32> to vector<2x16xf32>
    %c28 = arith.constant 28 : index
    %c0_210 = arith.constant 0 : index
    %c0_211 = arith.constant 0 : index
    %1079 = vector.load %arg1[%c28, %c0_210, %c0_211] : memref<61x2x16xf32, #tpu.memory_space<vmem>>, vector<1x2x16xf32>
    %1080 = vector.shape_cast %1079 : vector<1x2x16xf32> to vector<2x16xf32>
    %c29 = arith.constant 29 : index
    %c0_212 = arith.constant 0 : index
    %c0_213 = arith.constant 0 : index
    %1081 = vector.load %arg1[%c29, %c0_212, %c0_213] : memref<61x2x16xf32, #tpu.memory_space<vmem>>, vector<1x2x16xf32>
    %1082 = vector.shape_cast %1081 : vector<1x2x16xf32> to vector<2x16xf32>
    %1083 = arith.mulf %1072, %1072 : vector<2x16xf32>
    %1084 = arith.mulf %1074, %1074 : vector<2x16xf32>
    %1085 = arith.addf %1083, %1084 : vector<2x16xf32>
    %1086 = arith.mulf %1076, %1076 : vector<2x16xf32>
    %1087 = arith.addf %1085, %1086 : vector<2x16xf32>
    %cst_214 = arith.constant 1.000000e-24 : f32
    %1088 = vector.broadcast %cst_214 : f32 to vector<2x16xf32>
    %1089 = arith.maximumf %1087, %1088 : vector<2x16xf32>
    %1090 = math.rsqrt %1089 : vector<2x16xf32>
    %1091 = arith.mulf %1072, %1090 : vector<2x16xf32>
    %1092 = arith.mulf %1074, %1090 : vector<2x16xf32>
    %1093 = arith.mulf %1076, %1090 : vector<2x16xf32>
    %1094 = arith.mulf %1091, %1078 : vector<2x16xf32>
    %1095 = arith.mulf %1092, %1080 : vector<2x16xf32>
    %1096 = arith.addf %1094, %1095 : vector<2x16xf32>
    %1097 = arith.mulf %1093, %1082 : vector<2x16xf32>
    %1098 = arith.addf %1096, %1097 : vector<2x16xf32>
    %1099 = arith.mulf %1098, %1091 : vector<2x16xf32>
    %1100 = arith.subf %1078, %1099 : vector<2x16xf32>
    %1101 = arith.mulf %1098, %1092 : vector<2x16xf32>
    %1102 = arith.subf %1080, %1101 : vector<2x16xf32>
    %1103 = arith.mulf %1098, %1093 : vector<2x16xf32>
    %1104 = arith.subf %1082, %1103 : vector<2x16xf32>
    %1105 = arith.mulf %1100, %1100 : vector<2x16xf32>
    %1106 = arith.mulf %1102, %1102 : vector<2x16xf32>
    %1107 = arith.addf %1105, %1106 : vector<2x16xf32>
    %1108 = arith.mulf %1104, %1104 : vector<2x16xf32>
    %1109 = arith.addf %1107, %1108 : vector<2x16xf32>
    %cst_215 = arith.constant 1.000000e-24 : f32
    %1110 = vector.broadcast %cst_215 : f32 to vector<2x16xf32>
    %1111 = arith.maximumf %1109, %1110 : vector<2x16xf32>
    %1112 = math.rsqrt %1111 : vector<2x16xf32>
    %1113 = arith.mulf %1100, %1112 : vector<2x16xf32>
    %1114 = arith.mulf %1102, %1112 : vector<2x16xf32>
    %1115 = arith.mulf %1104, %1112 : vector<2x16xf32>
    %1116 = arith.mulf %1092, %1115 : vector<2x16xf32>
    %1117 = arith.mulf %1093, %1114 : vector<2x16xf32>
    %1118 = arith.subf %1116, %1117 : vector<2x16xf32>
    %1119 = arith.mulf %1093, %1113 : vector<2x16xf32>
    %1120 = arith.mulf %1091, %1115 : vector<2x16xf32>
    %1121 = arith.subf %1119, %1120 : vector<2x16xf32>
    %1122 = arith.mulf %1091, %1114 : vector<2x16xf32>
    %1123 = arith.mulf %1092, %1113 : vector<2x16xf32>
    %1124 = arith.subf %1122, %1123 : vector<2x16xf32>
    %c24_216 = arith.constant 24 : index
    %c0_217 = arith.constant 0 : index
    %c0_218 = arith.constant 0 : index
    %1125 = vector.load %arg2[%c24_216, %c0_217, %c0_218] : memref<61x2x16xf32, #tpu.memory_space<vmem>>, vector<1x2x16xf32>
    %1126 = vector.shape_cast %1125 : vector<1x2x16xf32> to vector<2x16xf32>
    %c25_219 = arith.constant 25 : index
    %c0_220 = arith.constant 0 : index
    %c0_221 = arith.constant 0 : index
    %1127 = vector.load %arg2[%c25_219, %c0_220, %c0_221] : memref<61x2x16xf32, #tpu.memory_space<vmem>>, vector<1x2x16xf32>
    %1128 = vector.shape_cast %1127 : vector<1x2x16xf32> to vector<2x16xf32>
    %c26_222 = arith.constant 26 : index
    %c0_223 = arith.constant 0 : index
    %c0_224 = arith.constant 0 : index
    %1129 = vector.load %arg2[%c26_222, %c0_223, %c0_224] : memref<61x2x16xf32, #tpu.memory_space<vmem>>, vector<1x2x16xf32>
    %1130 = vector.shape_cast %1129 : vector<1x2x16xf32> to vector<2x16xf32>
    %c27_225 = arith.constant 27 : index
    %c0_226 = arith.constant 0 : index
    %c0_227 = arith.constant 0 : index
    %1131 = vector.load %arg2[%c27_225, %c0_226, %c0_227] : memref<61x2x16xf32, #tpu.memory_space<vmem>>, vector<1x2x16xf32>
    %1132 = vector.shape_cast %1131 : vector<1x2x16xf32> to vector<2x16xf32>
    %c28_228 = arith.constant 28 : index
    %c0_229 = arith.constant 0 : index
    %c0_230 = arith.constant 0 : index
    %1133 = vector.load %arg2[%c28_228, %c0_229, %c0_230] : memref<61x2x16xf32, #tpu.memory_space<vmem>>, vector<1x2x16xf32>
    %1134 = vector.shape_cast %1133 : vector<1x2x16xf32> to vector<2x16xf32>
    %c29_231 = arith.constant 29 : index
    %c0_232 = arith.constant 0 : index
    %c0_233 = arith.constant 0 : index
    %1135 = vector.load %arg2[%c29_231, %c0_232, %c0_233] : memref<61x2x16xf32, #tpu.memory_space<vmem>>, vector<1x2x16xf32>
    %1136 = vector.shape_cast %1135 : vector<1x2x16xf32> to vector<2x16xf32>
    %1137 = arith.mulf %1126, %1126 : vector<2x16xf32>
    %1138 = arith.mulf %1128, %1128 : vector<2x16xf32>
    %1139 = arith.addf %1137, %1138 : vector<2x16xf32>
    %1140 = arith.mulf %1130, %1130 : vector<2x16xf32>
    %1141 = arith.addf %1139, %1140 : vector<2x16xf32>
    %cst_234 = arith.constant 1.000000e-24 : f32
    %1142 = vector.broadcast %cst_234 : f32 to vector<2x16xf32>
    %1143 = arith.maximumf %1141, %1142 : vector<2x16xf32>
    %1144 = math.rsqrt %1143 : vector<2x16xf32>
    %1145 = arith.mulf %1126, %1144 : vector<2x16xf32>
    %1146 = arith.mulf %1128, %1144 : vector<2x16xf32>
    %1147 = arith.mulf %1130, %1144 : vector<2x16xf32>
    %1148 = arith.mulf %1145, %1132 : vector<2x16xf32>
    %1149 = arith.mulf %1146, %1134 : vector<2x16xf32>
    %1150 = arith.addf %1148, %1149 : vector<2x16xf32>
    %1151 = arith.mulf %1147, %1136 : vector<2x16xf32>
    %1152 = arith.addf %1150, %1151 : vector<2x16xf32>
    %1153 = arith.mulf %1152, %1145 : vector<2x16xf32>
    %1154 = arith.subf %1132, %1153 : vector<2x16xf32>
    %1155 = arith.mulf %1152, %1146 : vector<2x16xf32>
    %1156 = arith.subf %1134, %1155 : vector<2x16xf32>
    %1157 = arith.mulf %1152, %1147 : vector<2x16xf32>
    %1158 = arith.subf %1136, %1157 : vector<2x16xf32>
    %1159 = arith.mulf %1154, %1154 : vector<2x16xf32>
    %1160 = arith.mulf %1156, %1156 : vector<2x16xf32>
    %1161 = arith.addf %1159, %1160 : vector<2x16xf32>
    %1162 = arith.mulf %1158, %1158 : vector<2x16xf32>
    %1163 = arith.addf %1161, %1162 : vector<2x16xf32>
    %cst_235 = arith.constant 1.000000e-24 : f32
    %1164 = vector.broadcast %cst_235 : f32 to vector<2x16xf32>
    %1165 = arith.maximumf %1163, %1164 : vector<2x16xf32>
    %1166 = math.rsqrt %1165 : vector<2x16xf32>
    %1167 = arith.mulf %1154, %1166 : vector<2x16xf32>
    %1168 = arith.mulf %1156, %1166 : vector<2x16xf32>
    %1169 = arith.mulf %1158, %1166 : vector<2x16xf32>
    %1170 = arith.mulf %1146, %1169 : vector<2x16xf32>
    %1171 = arith.mulf %1147, %1168 : vector<2x16xf32>
    %1172 = arith.subf %1170, %1171 : vector<2x16xf32>
    %1173 = arith.mulf %1147, %1167 : vector<2x16xf32>
    %1174 = arith.mulf %1145, %1169 : vector<2x16xf32>
    %1175 = arith.subf %1173, %1174 : vector<2x16xf32>
    %1176 = arith.mulf %1145, %1168 : vector<2x16xf32>
    %1177 = arith.mulf %1146, %1167 : vector<2x16xf32>
    %1178 = arith.subf %1176, %1177 : vector<2x16xf32>
    %1179 = arith.mulf %1091, %1145 : vector<2x16xf32>
    %1180 = arith.mulf %1092, %1146 : vector<2x16xf32>
    %1181 = arith.addf %1179, %1180 : vector<2x16xf32>
    %1182 = arith.mulf %1093, %1147 : vector<2x16xf32>
    %1183 = arith.addf %1181, %1182 : vector<2x16xf32>
    %1184 = arith.mulf %1113, %1167 : vector<2x16xf32>
    %1185 = arith.addf %1183, %1184 : vector<2x16xf32>
    %1186 = arith.mulf %1114, %1168 : vector<2x16xf32>
    %1187 = arith.addf %1185, %1186 : vector<2x16xf32>
    %1188 = arith.mulf %1115, %1169 : vector<2x16xf32>
    %1189 = arith.addf %1187, %1188 : vector<2x16xf32>
    %1190 = arith.mulf %1118, %1172 : vector<2x16xf32>
    %1191 = arith.addf %1189, %1190 : vector<2x16xf32>
    %1192 = arith.mulf %1121, %1175 : vector<2x16xf32>
    %1193 = arith.addf %1191, %1192 : vector<2x16xf32>
    %1194 = arith.mulf %1124, %1178 : vector<2x16xf32>
    %1195 = arith.addf %1193, %1194 : vector<2x16xf32>
    %cst_236 = arith.constant 1.000000e+00 : f32
    %1196 = vector.broadcast %cst_236 : f32 to vector<2x16xf32>
    %1197 = arith.subf %1195, %1196 : vector<2x16xf32>
    %cst_237 = arith.constant 5.000000e-01 : f32
    %1198 = vector.broadcast %cst_237 : f32 to vector<2x16xf32>
    %1199 = arith.mulf %1198, %1197 : vector<2x16xf32>
    %cst_238 = arith.constant -0.999998986 : f32
    %cst_239 = arith.constant 0.999998986 : f32
    %1200 = vector.broadcast %cst_238 : f32 to vector<2x16xf32>
    %1201 = arith.maximumf %1200, %1199 : vector<2x16xf32>
    %1202 = vector.broadcast %cst_239 : f32 to vector<2x16xf32>
    %1203 = arith.minimumf %1202, %1201 : vector<2x16xf32>
    %1204 = math.absf %1203 : vector<2x16xf32>
    %cst_240 = arith.constant -0.0012624911 : f32
    %1205 = vector.broadcast %cst_240 : f32 to vector<2x16xf32>
    %1206 = arith.mulf %1205, %1204 : vector<2x16xf32>
    %cst_241 = arith.constant 6.670090e-03 : f32
    %1207 = vector.broadcast %cst_241 : f32 to vector<2x16xf32>
    %1208 = arith.addf %1206, %1207 : vector<2x16xf32>
    %1209 = arith.mulf %1208, %1204 : vector<2x16xf32>
    %cst_242 = arith.constant -0.0170881264 : f32
    %1210 = vector.broadcast %cst_242 : f32 to vector<2x16xf32>
    %1211 = arith.addf %1209, %1210 : vector<2x16xf32>
    %1212 = arith.mulf %1211, %1204 : vector<2x16xf32>
    %cst_243 = arith.constant 0.0308918804 : f32
    %1213 = vector.broadcast %cst_243 : f32 to vector<2x16xf32>
    %1214 = arith.addf %1212, %1213 : vector<2x16xf32>
    %1215 = arith.mulf %1214, %1204 : vector<2x16xf32>
    %cst_244 = arith.constant -0.0501743034 : f32
    %1216 = vector.broadcast %cst_244 : f32 to vector<2x16xf32>
    %1217 = arith.addf %1215, %1216 : vector<2x16xf32>
    %1218 = arith.mulf %1217, %1204 : vector<2x16xf32>
    %cst_245 = arith.constant 0.0889789909 : f32
    %1219 = vector.broadcast %cst_245 : f32 to vector<2x16xf32>
    %1220 = arith.addf %1218, %1219 : vector<2x16xf32>
    %1221 = arith.mulf %1220, %1204 : vector<2x16xf32>
    %cst_246 = arith.constant -0.214598805 : f32
    %1222 = vector.broadcast %cst_246 : f32 to vector<2x16xf32>
    %1223 = arith.addf %1221, %1222 : vector<2x16xf32>
    %1224 = arith.mulf %1223, %1204 : vector<2x16xf32>
    %cst_247 = arith.constant 1.57079625 : f32
    %1225 = vector.broadcast %cst_247 : f32 to vector<2x16xf32>
    %1226 = arith.addf %1224, %1225 : vector<2x16xf32>
    %cst_248 = arith.constant 1.000000e+00 : f32
    %1227 = vector.broadcast %cst_248 : f32 to vector<2x16xf32>
    %1228 = arith.subf %1227, %1204 : vector<2x16xf32>
    %cst_249 = arith.constant 0.000000e+00 : f32
    %1229 = vector.broadcast %cst_249 : f32 to vector<2x16xf32>
    %1230 = arith.maximumf %1228, %1229 : vector<2x16xf32>
    %1231 = math.sqrt %1230 : vector<2x16xf32>
    %1232 = arith.mulf %1231, %1226 : vector<2x16xf32>
    %cst_250 = arith.constant 0.000000e+00 : f32
    %1233 = vector.broadcast %cst_250 : f32 to vector<2x16xf32>
    %1234 = arith.cmpf olt, %1203, %1233 : vector<2x16xf32>
    %cst_251 = arith.constant 3.14159274 : f32
    %1235 = vector.broadcast %cst_251 : f32 to vector<2x16xf32>
    %1236 = arith.subf %1235, %1232 : vector<2x16xf32>
    %1237 = arith.select %1234, %1236, %1232 : vector<2x16xi1>, vector<2x16xf32>
    %1238 = arith.addf %971, %1237 : vector<2x16xf32>
    %1239 = arith.subf %1091, %1145 : vector<2x16xf32>
    %1240 = vector.extract_strided_slice %1239 {offsets = [0, 1], sizes = [2, 15], strides = [1, 1]} : vector<2x16xf32> to vector<2x15xf32>
    %1241 = vector.extract_strided_slice %1239 {offsets = [0, 0], sizes = [2, 15], strides = [1, 1]} : vector<2x16xf32> to vector<2x15xf32>
    %1242 = arith.subf %1240, %1241 : vector<2x15xf32>
    %1243 = math.absf %1242 : vector<2x15xf32>
    %1244 = arith.addf %1065, %1243 : vector<2x15xf32>
    %1245 = vector.extract_strided_slice %1242 {offsets = [0, 1], sizes = [2, 14], strides = [1, 1]} : vector<2x15xf32> to vector<2x14xf32>
    %1246 = vector.extract_strided_slice %1242 {offsets = [0, 0], sizes = [2, 14], strides = [1, 1]} : vector<2x15xf32> to vector<2x14xf32>
    %1247 = arith.subf %1245, %1246 : vector<2x14xf32>
    %1248 = math.absf %1247 : vector<2x14xf32>
    %1249 = arith.addf %1070, %1248 : vector<2x14xf32>
    %1250 = arith.subf %1092, %1146 : vector<2x16xf32>
    %1251 = vector.extract_strided_slice %1250 {offsets = [0, 1], sizes = [2, 15], strides = [1, 1]} : vector<2x16xf32> to vector<2x15xf32>
    %1252 = vector.extract_strided_slice %1250 {offsets = [0, 0], sizes = [2, 15], strides = [1, 1]} : vector<2x16xf32> to vector<2x15xf32>
    %1253 = arith.subf %1251, %1252 : vector<2x15xf32>
    %1254 = math.absf %1253 : vector<2x15xf32>
    %1255 = arith.addf %1244, %1254 : vector<2x15xf32>
    %1256 = vector.extract_strided_slice %1253 {offsets = [0, 1], sizes = [2, 14], strides = [1, 1]} : vector<2x15xf32> to vector<2x14xf32>
    %1257 = vector.extract_strided_slice %1253 {offsets = [0, 0], sizes = [2, 14], strides = [1, 1]} : vector<2x15xf32> to vector<2x14xf32>
    %1258 = arith.subf %1256, %1257 : vector<2x14xf32>
    %1259 = math.absf %1258 : vector<2x14xf32>
    %1260 = arith.addf %1249, %1259 : vector<2x14xf32>
    %1261 = arith.subf %1093, %1147 : vector<2x16xf32>
    %1262 = vector.extract_strided_slice %1261 {offsets = [0, 1], sizes = [2, 15], strides = [1, 1]} : vector<2x16xf32> to vector<2x15xf32>
    %1263 = vector.extract_strided_slice %1261 {offsets = [0, 0], sizes = [2, 15], strides = [1, 1]} : vector<2x16xf32> to vector<2x15xf32>
    %1264 = arith.subf %1262, %1263 : vector<2x15xf32>
    %1265 = math.absf %1264 : vector<2x15xf32>
    %1266 = arith.addf %1255, %1265 : vector<2x15xf32>
    %1267 = vector.extract_strided_slice %1264 {offsets = [0, 1], sizes = [2, 14], strides = [1, 1]} : vector<2x15xf32> to vector<2x14xf32>
    %1268 = vector.extract_strided_slice %1264 {offsets = [0, 0], sizes = [2, 14], strides = [1, 1]} : vector<2x15xf32> to vector<2x14xf32>
    %1269 = arith.subf %1267, %1268 : vector<2x14xf32>
    %1270 = math.absf %1269 : vector<2x14xf32>
    %1271 = arith.addf %1260, %1270 : vector<2x14xf32>
    %1272 = arith.subf %1113, %1167 : vector<2x16xf32>
    %1273 = vector.extract_strided_slice %1272 {offsets = [0, 1], sizes = [2, 15], strides = [1, 1]} : vector<2x16xf32> to vector<2x15xf32>
    %1274 = vector.extract_strided_slice %1272 {offsets = [0, 0], sizes = [2, 15], strides = [1, 1]} : vector<2x16xf32> to vector<2x15xf32>
    %1275 = arith.subf %1273, %1274 : vector<2x15xf32>
    %1276 = math.absf %1275 : vector<2x15xf32>
    %1277 = arith.addf %1266, %1276 : vector<2x15xf32>
    %1278 = vector.extract_strided_slice %1275 {offsets = [0, 1], sizes = [2, 14], strides = [1, 1]} : vector<2x15xf32> to vector<2x14xf32>
    %1279 = vector.extract_strided_slice %1275 {offsets = [0, 0], sizes = [2, 14], strides = [1, 1]} : vector<2x15xf32> to vector<2x14xf32>
    %1280 = arith.subf %1278, %1279 : vector<2x14xf32>
    %1281 = math.absf %1280 : vector<2x14xf32>
    %1282 = arith.addf %1271, %1281 : vector<2x14xf32>
    %1283 = arith.subf %1114, %1168 : vector<2x16xf32>
    %1284 = vector.extract_strided_slice %1283 {offsets = [0, 1], sizes = [2, 15], strides = [1, 1]} : vector<2x16xf32> to vector<2x15xf32>
    %1285 = vector.extract_strided_slice %1283 {offsets = [0, 0], sizes = [2, 15], strides = [1, 1]} : vector<2x16xf32> to vector<2x15xf32>
    %1286 = arith.subf %1284, %1285 : vector<2x15xf32>
    %1287 = math.absf %1286 : vector<2x15xf32>
    %1288 = arith.addf %1277, %1287 : vector<2x15xf32>
    %1289 = vector.extract_strided_slice %1286 {offsets = [0, 1], sizes = [2, 14], strides = [1, 1]} : vector<2x15xf32> to vector<2x14xf32>
    %1290 = vector.extract_strided_slice %1286 {offsets = [0, 0], sizes = [2, 14], strides = [1, 1]} : vector<2x15xf32> to vector<2x14xf32>
    %1291 = arith.subf %1289, %1290 : vector<2x14xf32>
    %1292 = math.absf %1291 : vector<2x14xf32>
    %1293 = arith.addf %1282, %1292 : vector<2x14xf32>
    %1294 = arith.subf %1115, %1169 : vector<2x16xf32>
    %1295 = vector.extract_strided_slice %1294 {offsets = [0, 1], sizes = [2, 15], strides = [1, 1]} : vector<2x16xf32> to vector<2x15xf32>
    %1296 = vector.extract_strided_slice %1294 {offsets = [0, 0], sizes = [2, 15], strides = [1, 1]} : vector<2x16xf32> to vector<2x15xf32>
    %1297 = arith.subf %1295, %1296 : vector<2x15xf32>
    %1298 = math.absf %1297 : vector<2x15xf32>
    %1299 = arith.addf %1288, %1298 : vector<2x15xf32>
    %1300 = vector.extract_strided_slice %1297 {offsets = [0, 1], sizes = [2, 14], strides = [1, 1]} : vector<2x15xf32> to vector<2x14xf32>
    %1301 = vector.extract_strided_slice %1297 {offsets = [0, 0], sizes = [2, 14], strides = [1, 1]} : vector<2x15xf32> to vector<2x14xf32>
    %1302 = arith.subf %1300, %1301 : vector<2x14xf32>
    %1303 = math.absf %1302 : vector<2x14xf32>
    %1304 = arith.addf %1293, %1303 : vector<2x14xf32>
    %1305 = arith.subf %1118, %1172 : vector<2x16xf32>
    %1306 = vector.extract_strided_slice %1305 {offsets = [0, 1], sizes = [2, 15], strides = [1, 1]} : vector<2x16xf32> to vector<2x15xf32>
    %1307 = vector.extract_strided_slice %1305 {offsets = [0, 0], sizes = [2, 15], strides = [1, 1]} : vector<2x16xf32> to vector<2x15xf32>
    %1308 = arith.subf %1306, %1307 : vector<2x15xf32>
    %1309 = math.absf %1308 : vector<2x15xf32>
    %1310 = arith.addf %1299, %1309 : vector<2x15xf32>
    %1311 = vector.extract_strided_slice %1308 {offsets = [0, 1], sizes = [2, 14], strides = [1, 1]} : vector<2x15xf32> to vector<2x14xf32>
    %1312 = vector.extract_strided_slice %1308 {offsets = [0, 0], sizes = [2, 14], strides = [1, 1]} : vector<2x15xf32> to vector<2x14xf32>
    %1313 = arith.subf %1311, %1312 : vector<2x14xf32>
    %1314 = math.absf %1313 : vector<2x14xf32>
    %1315 = arith.addf %1304, %1314 : vector<2x14xf32>
    %1316 = arith.subf %1121, %1175 : vector<2x16xf32>
    %1317 = vector.extract_strided_slice %1316 {offsets = [0, 1], sizes = [2, 15], strides = [1, 1]} : vector<2x16xf32> to vector<2x15xf32>
    %1318 = vector.extract_strided_slice %1316 {offsets = [0, 0], sizes = [2, 15], strides = [1, 1]} : vector<2x16xf32> to vector<2x15xf32>
    %1319 = arith.subf %1317, %1318 : vector<2x15xf32>
    %1320 = math.absf %1319 : vector<2x15xf32>
    %1321 = arith.addf %1310, %1320 : vector<2x15xf32>
    %1322 = vector.extract_strided_slice %1319 {offsets = [0, 1], sizes = [2, 14], strides = [1, 1]} : vector<2x15xf32> to vector<2x14xf32>
    %1323 = vector.extract_strided_slice %1319 {offsets = [0, 0], sizes = [2, 14], strides = [1, 1]} : vector<2x15xf32> to vector<2x14xf32>
    %1324 = arith.subf %1322, %1323 : vector<2x14xf32>
    %1325 = math.absf %1324 : vector<2x14xf32>
    %1326 = arith.addf %1315, %1325 : vector<2x14xf32>
    %1327 = arith.subf %1124, %1178 : vector<2x16xf32>
    %1328 = vector.extract_strided_slice %1327 {offsets = [0, 1], sizes = [2, 15], strides = [1, 1]} : vector<2x16xf32> to vector<2x15xf32>
    %1329 = vector.extract_strided_slice %1327 {offsets = [0, 0], sizes = [2, 15], strides = [1, 1]} : vector<2x16xf32> to vector<2x15xf32>
    %1330 = arith.subf %1328, %1329 : vector<2x15xf32>
    %1331 = math.absf %1330 : vector<2x15xf32>
    %1332 = arith.addf %1321, %1331 : vector<2x15xf32>
    %1333 = vector.extract_strided_slice %1330 {offsets = [0, 1], sizes = [2, 14], strides = [1, 1]} : vector<2x15xf32> to vector<2x14xf32>
    %1334 = vector.extract_strided_slice %1330 {offsets = [0, 0], sizes = [2, 14], strides = [1, 1]} : vector<2x15xf32> to vector<2x14xf32>
    %1335 = arith.subf %1333, %1334 : vector<2x14xf32>
    %1336 = math.absf %1335 : vector<2x14xf32>
    %1337 = arith.addf %1326, %1336 : vector<2x14xf32>
    %c30 = arith.constant 30 : index
    %c0_252 = arith.constant 0 : index
    %c0_253 = arith.constant 0 : index
    %1338 = vector.load %arg1[%c30, %c0_252, %c0_253] : memref<61x2x16xf32, #tpu.memory_space<vmem>>, vector<1x2x16xf32>
    %1339 = vector.shape_cast %1338 : vector<1x2x16xf32> to vector<2x16xf32>
    %c31 = arith.constant 31 : index
    %c0_254 = arith.constant 0 : index
    %c0_255 = arith.constant 0 : index
    %1340 = vector.load %arg1[%c31, %c0_254, %c0_255] : memref<61x2x16xf32, #tpu.memory_space<vmem>>, vector<1x2x16xf32>
    %1341 = vector.shape_cast %1340 : vector<1x2x16xf32> to vector<2x16xf32>
    %c32 = arith.constant 32 : index
    %c0_256 = arith.constant 0 : index
    %c0_257 = arith.constant 0 : index
    %1342 = vector.load %arg1[%c32, %c0_256, %c0_257] : memref<61x2x16xf32, #tpu.memory_space<vmem>>, vector<1x2x16xf32>
    %1343 = vector.shape_cast %1342 : vector<1x2x16xf32> to vector<2x16xf32>
    %c33 = arith.constant 33 : index
    %c0_258 = arith.constant 0 : index
    %c0_259 = arith.constant 0 : index
    %1344 = vector.load %arg1[%c33, %c0_258, %c0_259] : memref<61x2x16xf32, #tpu.memory_space<vmem>>, vector<1x2x16xf32>
    %1345 = vector.shape_cast %1344 : vector<1x2x16xf32> to vector<2x16xf32>
    %c34 = arith.constant 34 : index
    %c0_260 = arith.constant 0 : index
    %c0_261 = arith.constant 0 : index
    %1346 = vector.load %arg1[%c34, %c0_260, %c0_261] : memref<61x2x16xf32, #tpu.memory_space<vmem>>, vector<1x2x16xf32>
    %1347 = vector.shape_cast %1346 : vector<1x2x16xf32> to vector<2x16xf32>
    %c35 = arith.constant 35 : index
    %c0_262 = arith.constant 0 : index
    %c0_263 = arith.constant 0 : index
    %1348 = vector.load %arg1[%c35, %c0_262, %c0_263] : memref<61x2x16xf32, #tpu.memory_space<vmem>>, vector<1x2x16xf32>
    %1349 = vector.shape_cast %1348 : vector<1x2x16xf32> to vector<2x16xf32>
    %1350 = arith.mulf %1339, %1339 : vector<2x16xf32>
    %1351 = arith.mulf %1341, %1341 : vector<2x16xf32>
    %1352 = arith.addf %1350, %1351 : vector<2x16xf32>
    %1353 = arith.mulf %1343, %1343 : vector<2x16xf32>
    %1354 = arith.addf %1352, %1353 : vector<2x16xf32>
    %cst_264 = arith.constant 1.000000e-24 : f32
    %1355 = vector.broadcast %cst_264 : f32 to vector<2x16xf32>
    %1356 = arith.maximumf %1354, %1355 : vector<2x16xf32>
    %1357 = math.rsqrt %1356 : vector<2x16xf32>
    %1358 = arith.mulf %1339, %1357 : vector<2x16xf32>
    %1359 = arith.mulf %1341, %1357 : vector<2x16xf32>
    %1360 = arith.mulf %1343, %1357 : vector<2x16xf32>
    %1361 = arith.mulf %1358, %1345 : vector<2x16xf32>
    %1362 = arith.mulf %1359, %1347 : vector<2x16xf32>
    %1363 = arith.addf %1361, %1362 : vector<2x16xf32>
    %1364 = arith.mulf %1360, %1349 : vector<2x16xf32>
    %1365 = arith.addf %1363, %1364 : vector<2x16xf32>
    %1366 = arith.mulf %1365, %1358 : vector<2x16xf32>
    %1367 = arith.subf %1345, %1366 : vector<2x16xf32>
    %1368 = arith.mulf %1365, %1359 : vector<2x16xf32>
    %1369 = arith.subf %1347, %1368 : vector<2x16xf32>
    %1370 = arith.mulf %1365, %1360 : vector<2x16xf32>
    %1371 = arith.subf %1349, %1370 : vector<2x16xf32>
    %1372 = arith.mulf %1367, %1367 : vector<2x16xf32>
    %1373 = arith.mulf %1369, %1369 : vector<2x16xf32>
    %1374 = arith.addf %1372, %1373 : vector<2x16xf32>
    %1375 = arith.mulf %1371, %1371 : vector<2x16xf32>
    %1376 = arith.addf %1374, %1375 : vector<2x16xf32>
    %cst_265 = arith.constant 1.000000e-24 : f32
    %1377 = vector.broadcast %cst_265 : f32 to vector<2x16xf32>
    %1378 = arith.maximumf %1376, %1377 : vector<2x16xf32>
    %1379 = math.rsqrt %1378 : vector<2x16xf32>
    %1380 = arith.mulf %1367, %1379 : vector<2x16xf32>
    %1381 = arith.mulf %1369, %1379 : vector<2x16xf32>
    %1382 = arith.mulf %1371, %1379 : vector<2x16xf32>
    %1383 = arith.mulf %1359, %1382 : vector<2x16xf32>
    %1384 = arith.mulf %1360, %1381 : vector<2x16xf32>
    %1385 = arith.subf %1383, %1384 : vector<2x16xf32>
    %1386 = arith.mulf %1360, %1380 : vector<2x16xf32>
    %1387 = arith.mulf %1358, %1382 : vector<2x16xf32>
    %1388 = arith.subf %1386, %1387 : vector<2x16xf32>
    %1389 = arith.mulf %1358, %1381 : vector<2x16xf32>
    %1390 = arith.mulf %1359, %1380 : vector<2x16xf32>
    %1391 = arith.subf %1389, %1390 : vector<2x16xf32>
    %c30_266 = arith.constant 30 : index
    %c0_267 = arith.constant 0 : index
    %c0_268 = arith.constant 0 : index
    %1392 = vector.load %arg2[%c30_266, %c0_267, %c0_268] : memref<61x2x16xf32, #tpu.memory_space<vmem>>, vector<1x2x16xf32>
    %1393 = vector.shape_cast %1392 : vector<1x2x16xf32> to vector<2x16xf32>
    %c31_269 = arith.constant 31 : index
    %c0_270 = arith.constant 0 : index
    %c0_271 = arith.constant 0 : index
    %1394 = vector.load %arg2[%c31_269, %c0_270, %c0_271] : memref<61x2x16xf32, #tpu.memory_space<vmem>>, vector<1x2x16xf32>
    %1395 = vector.shape_cast %1394 : vector<1x2x16xf32> to vector<2x16xf32>
    %c32_272 = arith.constant 32 : index
    %c0_273 = arith.constant 0 : index
    %c0_274 = arith.constant 0 : index
    %1396 = vector.load %arg2[%c32_272, %c0_273, %c0_274] : memref<61x2x16xf32, #tpu.memory_space<vmem>>, vector<1x2x16xf32>
    %1397 = vector.shape_cast %1396 : vector<1x2x16xf32> to vector<2x16xf32>
    %c33_275 = arith.constant 33 : index
    %c0_276 = arith.constant 0 : index
    %c0_277 = arith.constant 0 : index
    %1398 = vector.load %arg2[%c33_275, %c0_276, %c0_277] : memref<61x2x16xf32, #tpu.memory_space<vmem>>, vector<1x2x16xf32>
    %1399 = vector.shape_cast %1398 : vector<1x2x16xf32> to vector<2x16xf32>
    %c34_278 = arith.constant 34 : index
    %c0_279 = arith.constant 0 : index
    %c0_280 = arith.constant 0 : index
    %1400 = vector.load %arg2[%c34_278, %c0_279, %c0_280] : memref<61x2x16xf32, #tpu.memory_space<vmem>>, vector<1x2x16xf32>
    %1401 = vector.shape_cast %1400 : vector<1x2x16xf32> to vector<2x16xf32>
    %c35_281 = arith.constant 35 : index
    %c0_282 = arith.constant 0 : index
    %c0_283 = arith.constant 0 : index
    %1402 = vector.load %arg2[%c35_281, %c0_282, %c0_283] : memref<61x2x16xf32, #tpu.memory_space<vmem>>, vector<1x2x16xf32>
    %1403 = vector.shape_cast %1402 : vector<1x2x16xf32> to vector<2x16xf32>
    %1404 = arith.mulf %1393, %1393 : vector<2x16xf32>
    %1405 = arith.mulf %1395, %1395 : vector<2x16xf32>
    %1406 = arith.addf %1404, %1405 : vector<2x16xf32>
    %1407 = arith.mulf %1397, %1397 : vector<2x16xf32>
    %1408 = arith.addf %1406, %1407 : vector<2x16xf32>
    %cst_284 = arith.constant 1.000000e-24 : f32
    %1409 = vector.broadcast %cst_284 : f32 to vector<2x16xf32>
    %1410 = arith.maximumf %1408, %1409 : vector<2x16xf32>
    %1411 = math.rsqrt %1410 : vector<2x16xf32>
    %1412 = arith.mulf %1393, %1411 : vector<2x16xf32>
    %1413 = arith.mulf %1395, %1411 : vector<2x16xf32>
    %1414 = arith.mulf %1397, %1411 : vector<2x16xf32>
    %1415 = arith.mulf %1412, %1399 : vector<2x16xf32>
    %1416 = arith.mulf %1413, %1401 : vector<2x16xf32>
    %1417 = arith.addf %1415, %1416 : vector<2x16xf32>
    %1418 = arith.mulf %1414, %1403 : vector<2x16xf32>
    %1419 = arith.addf %1417, %1418 : vector<2x16xf32>
    %1420 = arith.mulf %1419, %1412 : vector<2x16xf32>
    %1421 = arith.subf %1399, %1420 : vector<2x16xf32>
    %1422 = arith.mulf %1419, %1413 : vector<2x16xf32>
    %1423 = arith.subf %1401, %1422 : vector<2x16xf32>
    %1424 = arith.mulf %1419, %1414 : vector<2x16xf32>
    %1425 = arith.subf %1403, %1424 : vector<2x16xf32>
    %1426 = arith.mulf %1421, %1421 : vector<2x16xf32>
    %1427 = arith.mulf %1423, %1423 : vector<2x16xf32>
    %1428 = arith.addf %1426, %1427 : vector<2x16xf32>
    %1429 = arith.mulf %1425, %1425 : vector<2x16xf32>
    %1430 = arith.addf %1428, %1429 : vector<2x16xf32>
    %cst_285 = arith.constant 1.000000e-24 : f32
    %1431 = vector.broadcast %cst_285 : f32 to vector<2x16xf32>
    %1432 = arith.maximumf %1430, %1431 : vector<2x16xf32>
    %1433 = math.rsqrt %1432 : vector<2x16xf32>
    %1434 = arith.mulf %1421, %1433 : vector<2x16xf32>
    %1435 = arith.mulf %1423, %1433 : vector<2x16xf32>
    %1436 = arith.mulf %1425, %1433 : vector<2x16xf32>
    %1437 = arith.mulf %1413, %1436 : vector<2x16xf32>
    %1438 = arith.mulf %1414, %1435 : vector<2x16xf32>
    %1439 = arith.subf %1437, %1438 : vector<2x16xf32>
    %1440 = arith.mulf %1414, %1434 : vector<2x16xf32>
    %1441 = arith.mulf %1412, %1436 : vector<2x16xf32>
    %1442 = arith.subf %1440, %1441 : vector<2x16xf32>
    %1443 = arith.mulf %1412, %1435 : vector<2x16xf32>
    %1444 = arith.mulf %1413, %1434 : vector<2x16xf32>
    %1445 = arith.subf %1443, %1444 : vector<2x16xf32>
    %1446 = arith.mulf %1358, %1412 : vector<2x16xf32>
    %1447 = arith.mulf %1359, %1413 : vector<2x16xf32>
    %1448 = arith.addf %1446, %1447 : vector<2x16xf32>
    %1449 = arith.mulf %1360, %1414 : vector<2x16xf32>
    %1450 = arith.addf %1448, %1449 : vector<2x16xf32>
    %1451 = arith.mulf %1380, %1434 : vector<2x16xf32>
    %1452 = arith.addf %1450, %1451 : vector<2x16xf32>
    %1453 = arith.mulf %1381, %1435 : vector<2x16xf32>
    %1454 = arith.addf %1452, %1453 : vector<2x16xf32>
    %1455 = arith.mulf %1382, %1436 : vector<2x16xf32>
    %1456 = arith.addf %1454, %1455 : vector<2x16xf32>
    %1457 = arith.mulf %1385, %1439 : vector<2x16xf32>
    %1458 = arith.addf %1456, %1457 : vector<2x16xf32>
    %1459 = arith.mulf %1388, %1442 : vector<2x16xf32>
    %1460 = arith.addf %1458, %1459 : vector<2x16xf32>
    %1461 = arith.mulf %1391, %1445 : vector<2x16xf32>
    %1462 = arith.addf %1460, %1461 : vector<2x16xf32>
    %cst_286 = arith.constant 1.000000e+00 : f32
    %1463 = vector.broadcast %cst_286 : f32 to vector<2x16xf32>
    %1464 = arith.subf %1462, %1463 : vector<2x16xf32>
    %cst_287 = arith.constant 5.000000e-01 : f32
    %1465 = vector.broadcast %cst_287 : f32 to vector<2x16xf32>
    %1466 = arith.mulf %1465, %1464 : vector<2x16xf32>
    %cst_288 = arith.constant -0.999998986 : f32
    %cst_289 = arith.constant 0.999998986 : f32
    %1467 = vector.broadcast %cst_288 : f32 to vector<2x16xf32>
    %1468 = arith.maximumf %1467, %1466 : vector<2x16xf32>
    %1469 = vector.broadcast %cst_289 : f32 to vector<2x16xf32>
    %1470 = arith.minimumf %1469, %1468 : vector<2x16xf32>
    %1471 = math.absf %1470 : vector<2x16xf32>
    %cst_290 = arith.constant -0.0012624911 : f32
    %1472 = vector.broadcast %cst_290 : f32 to vector<2x16xf32>
    %1473 = arith.mulf %1472, %1471 : vector<2x16xf32>
    %cst_291 = arith.constant 6.670090e-03 : f32
    %1474 = vector.broadcast %cst_291 : f32 to vector<2x16xf32>
    %1475 = arith.addf %1473, %1474 : vector<2x16xf32>
    %1476 = arith.mulf %1475, %1471 : vector<2x16xf32>
    %cst_292 = arith.constant -0.0170881264 : f32
    %1477 = vector.broadcast %cst_292 : f32 to vector<2x16xf32>
    %1478 = arith.addf %1476, %1477 : vector<2x16xf32>
    %1479 = arith.mulf %1478, %1471 : vector<2x16xf32>
    %cst_293 = arith.constant 0.0308918804 : f32
    %1480 = vector.broadcast %cst_293 : f32 to vector<2x16xf32>
    %1481 = arith.addf %1479, %1480 : vector<2x16xf32>
    %1482 = arith.mulf %1481, %1471 : vector<2x16xf32>
    %cst_294 = arith.constant -0.0501743034 : f32
    %1483 = vector.broadcast %cst_294 : f32 to vector<2x16xf32>
    %1484 = arith.addf %1482, %1483 : vector<2x16xf32>
    %1485 = arith.mulf %1484, %1471 : vector<2x16xf32>
    %cst_295 = arith.constant 0.0889789909 : f32
    %1486 = vector.broadcast %cst_295 : f32 to vector<2x16xf32>
    %1487 = arith.addf %1485, %1486 : vector<2x16xf32>
    %1488 = arith.mulf %1487, %1471 : vector<2x16xf32>
    %cst_296 = arith.constant -0.214598805 : f32
    %1489 = vector.broadcast %cst_296 : f32 to vector<2x16xf32>
    %1490 = arith.addf %1488, %1489 : vector<2x16xf32>
    %1491 = arith.mulf %1490, %1471 : vector<2x16xf32>
    %cst_297 = arith.constant 1.57079625 : f32
    %1492 = vector.broadcast %cst_297 : f32 to vector<2x16xf32>
    %1493 = arith.addf %1491, %1492 : vector<2x16xf32>
    %cst_298 = arith.constant 1.000000e+00 : f32
    %1494 = vector.broadcast %cst_298 : f32 to vector<2x16xf32>
    %1495 = arith.subf %1494, %1471 : vector<2x16xf32>
    %cst_299 = arith.constant 0.000000e+00 : f32
    %1496 = vector.broadcast %cst_299 : f32 to vector<2x16xf32>
    %1497 = arith.maximumf %1495, %1496 : vector<2x16xf32>
    %1498 = math.sqrt %1497 : vector<2x16xf32>
    %1499 = arith.mulf %1498, %1493 : vector<2x16xf32>
    %cst_300 = arith.constant 0.000000e+00 : f32
    %1500 = vector.broadcast %cst_300 : f32 to vector<2x16xf32>
    %1501 = arith.cmpf olt, %1470, %1500 : vector<2x16xf32>
    %cst_301 = arith.constant 3.14159274 : f32
    %1502 = vector.broadcast %cst_301 : f32 to vector<2x16xf32>
    %1503 = arith.subf %1502, %1499 : vector<2x16xf32>
    %1504 = arith.select %1501, %1503, %1499 : vector<2x16xi1>, vector<2x16xf32>
    %1505 = arith.addf %1238, %1504 : vector<2x16xf32>
    %1506 = arith.subf %1358, %1412 : vector<2x16xf32>
    %1507 = vector.extract_strided_slice %1506 {offsets = [0, 1], sizes = [2, 15], strides = [1, 1]} : vector<2x16xf32> to vector<2x15xf32>
    %1508 = vector.extract_strided_slice %1506 {offsets = [0, 0], sizes = [2, 15], strides = [1, 1]} : vector<2x16xf32> to vector<2x15xf32>
    %1509 = arith.subf %1507, %1508 : vector<2x15xf32>
    %1510 = math.absf %1509 : vector<2x15xf32>
    %1511 = arith.addf %1332, %1510 : vector<2x15xf32>
    %1512 = vector.extract_strided_slice %1509 {offsets = [0, 1], sizes = [2, 14], strides = [1, 1]} : vector<2x15xf32> to vector<2x14xf32>
    %1513 = vector.extract_strided_slice %1509 {offsets = [0, 0], sizes = [2, 14], strides = [1, 1]} : vector<2x15xf32> to vector<2x14xf32>
    %1514 = arith.subf %1512, %1513 : vector<2x14xf32>
    %1515 = math.absf %1514 : vector<2x14xf32>
    %1516 = arith.addf %1337, %1515 : vector<2x14xf32>
    %1517 = arith.subf %1359, %1413 : vector<2x16xf32>
    %1518 = vector.extract_strided_slice %1517 {offsets = [0, 1], sizes = [2, 15], strides = [1, 1]} : vector<2x16xf32> to vector<2x15xf32>
    %1519 = vector.extract_strided_slice %1517 {offsets = [0, 0], sizes = [2, 15], strides = [1, 1]} : vector<2x16xf32> to vector<2x15xf32>
    %1520 = arith.subf %1518, %1519 : vector<2x15xf32>
    %1521 = math.absf %1520 : vector<2x15xf32>
    %1522 = arith.addf %1511, %1521 : vector<2x15xf32>
    %1523 = vector.extract_strided_slice %1520 {offsets = [0, 1], sizes = [2, 14], strides = [1, 1]} : vector<2x15xf32> to vector<2x14xf32>
    %1524 = vector.extract_strided_slice %1520 {offsets = [0, 0], sizes = [2, 14], strides = [1, 1]} : vector<2x15xf32> to vector<2x14xf32>
    %1525 = arith.subf %1523, %1524 : vector<2x14xf32>
    %1526 = math.absf %1525 : vector<2x14xf32>
    %1527 = arith.addf %1516, %1526 : vector<2x14xf32>
    %1528 = arith.subf %1360, %1414 : vector<2x16xf32>
    %1529 = vector.extract_strided_slice %1528 {offsets = [0, 1], sizes = [2, 15], strides = [1, 1]} : vector<2x16xf32> to vector<2x15xf32>
    %1530 = vector.extract_strided_slice %1528 {offsets = [0, 0], sizes = [2, 15], strides = [1, 1]} : vector<2x16xf32> to vector<2x15xf32>
    %1531 = arith.subf %1529, %1530 : vector<2x15xf32>
    %1532 = math.absf %1531 : vector<2x15xf32>
    %1533 = arith.addf %1522, %1532 : vector<2x15xf32>
    %1534 = vector.extract_strided_slice %1531 {offsets = [0, 1], sizes = [2, 14], strides = [1, 1]} : vector<2x15xf32> to vector<2x14xf32>
    %1535 = vector.extract_strided_slice %1531 {offsets = [0, 0], sizes = [2, 14], strides = [1, 1]} : vector<2x15xf32> to vector<2x14xf32>
    %1536 = arith.subf %1534, %1535 : vector<2x14xf32>
    %1537 = math.absf %1536 : vector<2x14xf32>
    %1538 = arith.addf %1527, %1537 : vector<2x14xf32>
    %1539 = arith.subf %1380, %1434 : vector<2x16xf32>
    %1540 = vector.extract_strided_slice %1539 {offsets = [0, 1], sizes = [2, 15], strides = [1, 1]} : vector<2x16xf32> to vector<2x15xf32>
    %1541 = vector.extract_strided_slice %1539 {offsets = [0, 0], sizes = [2, 15], strides = [1, 1]} : vector<2x16xf32> to vector<2x15xf32>
    %1542 = arith.subf %1540, %1541 : vector<2x15xf32>
    %1543 = math.absf %1542 : vector<2x15xf32>
    %1544 = arith.addf %1533, %1543 : vector<2x15xf32>
    %1545 = vector.extract_strided_slice %1542 {offsets = [0, 1], sizes = [2, 14], strides = [1, 1]} : vector<2x15xf32> to vector<2x14xf32>
    %1546 = vector.extract_strided_slice %1542 {offsets = [0, 0], sizes = [2, 14], strides = [1, 1]} : vector<2x15xf32> to vector<2x14xf32>
    %1547 = arith.subf %1545, %1546 : vector<2x14xf32>
    %1548 = math.absf %1547 : vector<2x14xf32>
    %1549 = arith.addf %1538, %1548 : vector<2x14xf32>
    %1550 = arith.subf %1381, %1435 : vector<2x16xf32>
    %1551 = vector.extract_strided_slice %1550 {offsets = [0, 1], sizes = [2, 15], strides = [1, 1]} : vector<2x16xf32> to vector<2x15xf32>
    %1552 = vector.extract_strided_slice %1550 {offsets = [0, 0], sizes = [2, 15], strides = [1, 1]} : vector<2x16xf32> to vector<2x15xf32>
    %1553 = arith.subf %1551, %1552 : vector<2x15xf32>
    %1554 = math.absf %1553 : vector<2x15xf32>
    %1555 = arith.addf %1544, %1554 : vector<2x15xf32>
    %1556 = vector.extract_strided_slice %1553 {offsets = [0, 1], sizes = [2, 14], strides = [1, 1]} : vector<2x15xf32> to vector<2x14xf32>
    %1557 = vector.extract_strided_slice %1553 {offsets = [0, 0], sizes = [2, 14], strides = [1, 1]} : vector<2x15xf32> to vector<2x14xf32>
    %1558 = arith.subf %1556, %1557 : vector<2x14xf32>
    %1559 = math.absf %1558 : vector<2x14xf32>
    %1560 = arith.addf %1549, %1559 : vector<2x14xf32>
    %1561 = arith.subf %1382, %1436 : vector<2x16xf32>
    %1562 = vector.extract_strided_slice %1561 {offsets = [0, 1], sizes = [2, 15], strides = [1, 1]} : vector<2x16xf32> to vector<2x15xf32>
    %1563 = vector.extract_strided_slice %1561 {offsets = [0, 0], sizes = [2, 15], strides = [1, 1]} : vector<2x16xf32> to vector<2x15xf32>
    %1564 = arith.subf %1562, %1563 : vector<2x15xf32>
    %1565 = math.absf %1564 : vector<2x15xf32>
    %1566 = arith.addf %1555, %1565 : vector<2x15xf32>
    %1567 = vector.extract_strided_slice %1564 {offsets = [0, 1], sizes = [2, 14], strides = [1, 1]} : vector<2x15xf32> to vector<2x14xf32>
    %1568 = vector.extract_strided_slice %1564 {offsets = [0, 0], sizes = [2, 14], strides = [1, 1]} : vector<2x15xf32> to vector<2x14xf32>
    %1569 = arith.subf %1567, %1568 : vector<2x14xf32>
    %1570 = math.absf %1569 : vector<2x14xf32>
    %1571 = arith.addf %1560, %1570 : vector<2x14xf32>
    %1572 = arith.subf %1385, %1439 : vector<2x16xf32>
    %1573 = vector.extract_strided_slice %1572 {offsets = [0, 1], sizes = [2, 15], strides = [1, 1]} : vector<2x16xf32> to vector<2x15xf32>
    %1574 = vector.extract_strided_slice %1572 {offsets = [0, 0], sizes = [2, 15], strides = [1, 1]} : vector<2x16xf32> to vector<2x15xf32>
    %1575 = arith.subf %1573, %1574 : vector<2x15xf32>
    %1576 = math.absf %1575 : vector<2x15xf32>
    %1577 = arith.addf %1566, %1576 : vector<2x15xf32>
    %1578 = vector.extract_strided_slice %1575 {offsets = [0, 1], sizes = [2, 14], strides = [1, 1]} : vector<2x15xf32> to vector<2x14xf32>
    %1579 = vector.extract_strided_slice %1575 {offsets = [0, 0], sizes = [2, 14], strides = [1, 1]} : vector<2x15xf32> to vector<2x14xf32>
    %1580 = arith.subf %1578, %1579 : vector<2x14xf32>
    %1581 = math.absf %1580 : vector<2x14xf32>
    %1582 = arith.addf %1571, %1581 : vector<2x14xf32>
    %1583 = arith.subf %1388, %1442 : vector<2x16xf32>
    %1584 = vector.extract_strided_slice %1583 {offsets = [0, 1], sizes = [2, 15], strides = [1, 1]} : vector<2x16xf32> to vector<2x15xf32>
    %1585 = vector.extract_strided_slice %1583 {offsets = [0, 0], sizes = [2, 15], strides = [1, 1]} : vector<2x16xf32> to vector<2x15xf32>
    %1586 = arith.subf %1584, %1585 : vector<2x15xf32>
    %1587 = math.absf %1586 : vector<2x15xf32>
    %1588 = arith.addf %1577, %1587 : vector<2x15xf32>
    %1589 = vector.extract_strided_slice %1586 {offsets = [0, 1], sizes = [2, 14], strides = [1, 1]} : vector<2x15xf32> to vector<2x14xf32>
    %1590 = vector.extract_strided_slice %1586 {offsets = [0, 0], sizes = [2, 14], strides = [1, 1]} : vector<2x15xf32> to vector<2x14xf32>
    %1591 = arith.subf %1589, %1590 : vector<2x14xf32>
    %1592 = math.absf %1591 : vector<2x14xf32>
    %1593 = arith.addf %1582, %1592 : vector<2x14xf32>
    %1594 = arith.subf %1391, %1445 : vector<2x16xf32>
    %1595 = vector.extract_strided_slice %1594 {offsets = [0, 1], sizes = [2, 15], strides = [1, 1]} : vector<2x16xf32> to vector<2x15xf32>
    %1596 = vector.extract_strided_slice %1594 {offsets = [0, 0], sizes = [2, 15], strides = [1, 1]} : vector<2x16xf32> to vector<2x15xf32>
    %1597 = arith.subf %1595, %1596 : vector<2x15xf32>
    %1598 = math.absf %1597 : vector<2x15xf32>
    %1599 = arith.addf %1588, %1598 : vector<2x15xf32>
    %1600 = vector.extract_strided_slice %1597 {offsets = [0, 1], sizes = [2, 14], strides = [1, 1]} : vector<2x15xf32> to vector<2x14xf32>
    %1601 = vector.extract_strided_slice %1597 {offsets = [0, 0], sizes = [2, 14], strides = [1, 1]} : vector<2x15xf32> to vector<2x14xf32>
    %1602 = arith.subf %1600, %1601 : vector<2x14xf32>
    %1603 = math.absf %1602 : vector<2x14xf32>
    %1604 = arith.addf %1593, %1603 : vector<2x14xf32>
    %c36 = arith.constant 36 : index
    %c0_302 = arith.constant 0 : index
    %c0_303 = arith.constant 0 : index
    %1605 = vector.load %arg1[%c36, %c0_302, %c0_303] : memref<61x2x16xf32, #tpu.memory_space<vmem>>, vector<1x2x16xf32>
    %1606 = vector.shape_cast %1605 : vector<1x2x16xf32> to vector<2x16xf32>
    %c37 = arith.constant 37 : index
    %c0_304 = arith.constant 0 : index
    %c0_305 = arith.constant 0 : index
    %1607 = vector.load %arg1[%c37, %c0_304, %c0_305] : memref<61x2x16xf32, #tpu.memory_space<vmem>>, vector<1x2x16xf32>
    %1608 = vector.shape_cast %1607 : vector<1x2x16xf32> to vector<2x16xf32>
    %c38 = arith.constant 38 : index
    %c0_306 = arith.constant 0 : index
    %c0_307 = arith.constant 0 : index
    %1609 = vector.load %arg1[%c38, %c0_306, %c0_307] : memref<61x2x16xf32, #tpu.memory_space<vmem>>, vector<1x2x16xf32>
    %1610 = vector.shape_cast %1609 : vector<1x2x16xf32> to vector<2x16xf32>
    %c39 = arith.constant 39 : index
    %c0_308 = arith.constant 0 : index
    %c0_309 = arith.constant 0 : index
    %1611 = vector.load %arg1[%c39, %c0_308, %c0_309] : memref<61x2x16xf32, #tpu.memory_space<vmem>>, vector<1x2x16xf32>
    %1612 = vector.shape_cast %1611 : vector<1x2x16xf32> to vector<2x16xf32>
    %c40 = arith.constant 40 : index
    %c0_310 = arith.constant 0 : index
    %c0_311 = arith.constant 0 : index
    %1613 = vector.load %arg1[%c40, %c0_310, %c0_311] : memref<61x2x16xf32, #tpu.memory_space<vmem>>, vector<1x2x16xf32>
    %1614 = vector.shape_cast %1613 : vector<1x2x16xf32> to vector<2x16xf32>
    %c41 = arith.constant 41 : index
    %c0_312 = arith.constant 0 : index
    %c0_313 = arith.constant 0 : index
    %1615 = vector.load %arg1[%c41, %c0_312, %c0_313] : memref<61x2x16xf32, #tpu.memory_space<vmem>>, vector<1x2x16xf32>
    %1616 = vector.shape_cast %1615 : vector<1x2x16xf32> to vector<2x16xf32>
    %1617 = arith.mulf %1606, %1606 : vector<2x16xf32>
    %1618 = arith.mulf %1608, %1608 : vector<2x16xf32>
    %1619 = arith.addf %1617, %1618 : vector<2x16xf32>
    %1620 = arith.mulf %1610, %1610 : vector<2x16xf32>
    %1621 = arith.addf %1619, %1620 : vector<2x16xf32>
    %cst_314 = arith.constant 1.000000e-24 : f32
    %1622 = vector.broadcast %cst_314 : f32 to vector<2x16xf32>
    %1623 = arith.maximumf %1621, %1622 : vector<2x16xf32>
    %1624 = math.rsqrt %1623 : vector<2x16xf32>
    %1625 = arith.mulf %1606, %1624 : vector<2x16xf32>
    %1626 = arith.mulf %1608, %1624 : vector<2x16xf32>
    %1627 = arith.mulf %1610, %1624 : vector<2x16xf32>
    %1628 = arith.mulf %1625, %1612 : vector<2x16xf32>
    %1629 = arith.mulf %1626, %1614 : vector<2x16xf32>
    %1630 = arith.addf %1628, %1629 : vector<2x16xf32>
    %1631 = arith.mulf %1627, %1616 : vector<2x16xf32>
    %1632 = arith.addf %1630, %1631 : vector<2x16xf32>
    %1633 = arith.mulf %1632, %1625 : vector<2x16xf32>
    %1634 = arith.subf %1612, %1633 : vector<2x16xf32>
    %1635 = arith.mulf %1632, %1626 : vector<2x16xf32>
    %1636 = arith.subf %1614, %1635 : vector<2x16xf32>
    %1637 = arith.mulf %1632, %1627 : vector<2x16xf32>
    %1638 = arith.subf %1616, %1637 : vector<2x16xf32>
    %1639 = arith.mulf %1634, %1634 : vector<2x16xf32>
    %1640 = arith.mulf %1636, %1636 : vector<2x16xf32>
    %1641 = arith.addf %1639, %1640 : vector<2x16xf32>
    %1642 = arith.mulf %1638, %1638 : vector<2x16xf32>
    %1643 = arith.addf %1641, %1642 : vector<2x16xf32>
    %cst_315 = arith.constant 1.000000e-24 : f32
    %1644 = vector.broadcast %cst_315 : f32 to vector<2x16xf32>
    %1645 = arith.maximumf %1643, %1644 : vector<2x16xf32>
    %1646 = math.rsqrt %1645 : vector<2x16xf32>
    %1647 = arith.mulf %1634, %1646 : vector<2x16xf32>
    %1648 = arith.mulf %1636, %1646 : vector<2x16xf32>
    %1649 = arith.mulf %1638, %1646 : vector<2x16xf32>
    %1650 = arith.mulf %1626, %1649 : vector<2x16xf32>
    %1651 = arith.mulf %1627, %1648 : vector<2x16xf32>
    %1652 = arith.subf %1650, %1651 : vector<2x16xf32>
    %1653 = arith.mulf %1627, %1647 : vector<2x16xf32>
    %1654 = arith.mulf %1625, %1649 : vector<2x16xf32>
    %1655 = arith.subf %1653, %1654 : vector<2x16xf32>
    %1656 = arith.mulf %1625, %1648 : vector<2x16xf32>
    %1657 = arith.mulf %1626, %1647 : vector<2x16xf32>
    %1658 = arith.subf %1656, %1657 : vector<2x16xf32>
    %c36_316 = arith.constant 36 : index
    %c0_317 = arith.constant 0 : index
    %c0_318 = arith.constant 0 : index
    %1659 = vector.load %arg2[%c36_316, %c0_317, %c0_318] : memref<61x2x16xf32, #tpu.memory_space<vmem>>, vector<1x2x16xf32>
    %1660 = vector.shape_cast %1659 : vector<1x2x16xf32> to vector<2x16xf32>
    %c37_319 = arith.constant 37 : index
    %c0_320 = arith.constant 0 : index
    %c0_321 = arith.constant 0 : index
    %1661 = vector.load %arg2[%c37_319, %c0_320, %c0_321] : memref<61x2x16xf32, #tpu.memory_space<vmem>>, vector<1x2x16xf32>
    %1662 = vector.shape_cast %1661 : vector<1x2x16xf32> to vector<2x16xf32>
    %c38_322 = arith.constant 38 : index
    %c0_323 = arith.constant 0 : index
    %c0_324 = arith.constant 0 : index
    %1663 = vector.load %arg2[%c38_322, %c0_323, %c0_324] : memref<61x2x16xf32, #tpu.memory_space<vmem>>, vector<1x2x16xf32>
    %1664 = vector.shape_cast %1663 : vector<1x2x16xf32> to vector<2x16xf32>
    %c39_325 = arith.constant 39 : index
    %c0_326 = arith.constant 0 : index
    %c0_327 = arith.constant 0 : index
    %1665 = vector.load %arg2[%c39_325, %c0_326, %c0_327] : memref<61x2x16xf32, #tpu.memory_space<vmem>>, vector<1x2x16xf32>
    %1666 = vector.shape_cast %1665 : vector<1x2x16xf32> to vector<2x16xf32>
    %c40_328 = arith.constant 40 : index
    %c0_329 = arith.constant 0 : index
    %c0_330 = arith.constant 0 : index
    %1667 = vector.load %arg2[%c40_328, %c0_329, %c0_330] : memref<61x2x16xf32, #tpu.memory_space<vmem>>, vector<1x2x16xf32>
    %1668 = vector.shape_cast %1667 : vector<1x2x16xf32> to vector<2x16xf32>
    %c41_331 = arith.constant 41 : index
    %c0_332 = arith.constant 0 : index
    %c0_333 = arith.constant 0 : index
    %1669 = vector.load %arg2[%c41_331, %c0_332, %c0_333] : memref<61x2x16xf32, #tpu.memory_space<vmem>>, vector<1x2x16xf32>
    %1670 = vector.shape_cast %1669 : vector<1x2x16xf32> to vector<2x16xf32>
    %1671 = arith.mulf %1660, %1660 : vector<2x16xf32>
    %1672 = arith.mulf %1662, %1662 : vector<2x16xf32>
    %1673 = arith.addf %1671, %1672 : vector<2x16xf32>
    %1674 = arith.mulf %1664, %1664 : vector<2x16xf32>
    %1675 = arith.addf %1673, %1674 : vector<2x16xf32>
    %cst_334 = arith.constant 1.000000e-24 : f32
    %1676 = vector.broadcast %cst_334 : f32 to vector<2x16xf32>
    %1677 = arith.maximumf %1675, %1676 : vector<2x16xf32>
    %1678 = math.rsqrt %1677 : vector<2x16xf32>
    %1679 = arith.mulf %1660, %1678 : vector<2x16xf32>
    %1680 = arith.mulf %1662, %1678 : vector<2x16xf32>
    %1681 = arith.mulf %1664, %1678 : vector<2x16xf32>
    %1682 = arith.mulf %1679, %1666 : vector<2x16xf32>
    %1683 = arith.mulf %1680, %1668 : vector<2x16xf32>
    %1684 = arith.addf %1682, %1683 : vector<2x16xf32>
    %1685 = arith.mulf %1681, %1670 : vector<2x16xf32>
    %1686 = arith.addf %1684, %1685 : vector<2x16xf32>
    %1687 = arith.mulf %1686, %1679 : vector<2x16xf32>
    %1688 = arith.subf %1666, %1687 : vector<2x16xf32>
    %1689 = arith.mulf %1686, %1680 : vector<2x16xf32>
    %1690 = arith.subf %1668, %1689 : vector<2x16xf32>
    %1691 = arith.mulf %1686, %1681 : vector<2x16xf32>
    %1692 = arith.subf %1670, %1691 : vector<2x16xf32>
    %1693 = arith.mulf %1688, %1688 : vector<2x16xf32>
    %1694 = arith.mulf %1690, %1690 : vector<2x16xf32>
    %1695 = arith.addf %1693, %1694 : vector<2x16xf32>
    %1696 = arith.mulf %1692, %1692 : vector<2x16xf32>
    %1697 = arith.addf %1695, %1696 : vector<2x16xf32>
    %cst_335 = arith.constant 1.000000e-24 : f32
    %1698 = vector.broadcast %cst_335 : f32 to vector<2x16xf32>
    %1699 = arith.maximumf %1697, %1698 : vector<2x16xf32>
    %1700 = math.rsqrt %1699 : vector<2x16xf32>
    %1701 = arith.mulf %1688, %1700 : vector<2x16xf32>
    %1702 = arith.mulf %1690, %1700 : vector<2x16xf32>
    %1703 = arith.mulf %1692, %1700 : vector<2x16xf32>
    %1704 = arith.mulf %1680, %1703 : vector<2x16xf32>
    %1705 = arith.mulf %1681, %1702 : vector<2x16xf32>
    %1706 = arith.subf %1704, %1705 : vector<2x16xf32>
    %1707 = arith.mulf %1681, %1701 : vector<2x16xf32>
    %1708 = arith.mulf %1679, %1703 : vector<2x16xf32>
    %1709 = arith.subf %1707, %1708 : vector<2x16xf32>
    %1710 = arith.mulf %1679, %1702 : vector<2x16xf32>
    %1711 = arith.mulf %1680, %1701 : vector<2x16xf32>
    %1712 = arith.subf %1710, %1711 : vector<2x16xf32>
    %1713 = arith.mulf %1625, %1679 : vector<2x16xf32>
    %1714 = arith.mulf %1626, %1680 : vector<2x16xf32>
    %1715 = arith.addf %1713, %1714 : vector<2x16xf32>
    %1716 = arith.mulf %1627, %1681 : vector<2x16xf32>
    %1717 = arith.addf %1715, %1716 : vector<2x16xf32>
    %1718 = arith.mulf %1647, %1701 : vector<2x16xf32>
    %1719 = arith.addf %1717, %1718 : vector<2x16xf32>
    %1720 = arith.mulf %1648, %1702 : vector<2x16xf32>
    %1721 = arith.addf %1719, %1720 : vector<2x16xf32>
    %1722 = arith.mulf %1649, %1703 : vector<2x16xf32>
    %1723 = arith.addf %1721, %1722 : vector<2x16xf32>
    %1724 = arith.mulf %1652, %1706 : vector<2x16xf32>
    %1725 = arith.addf %1723, %1724 : vector<2x16xf32>
    %1726 = arith.mulf %1655, %1709 : vector<2x16xf32>
    %1727 = arith.addf %1725, %1726 : vector<2x16xf32>
    %1728 = arith.mulf %1658, %1712 : vector<2x16xf32>
    %1729 = arith.addf %1727, %1728 : vector<2x16xf32>
    %cst_336 = arith.constant 1.000000e+00 : f32
    %1730 = vector.broadcast %cst_336 : f32 to vector<2x16xf32>
    %1731 = arith.subf %1729, %1730 : vector<2x16xf32>
    %cst_337 = arith.constant 5.000000e-01 : f32
    %1732 = vector.broadcast %cst_337 : f32 to vector<2x16xf32>
    %1733 = arith.mulf %1732, %1731 : vector<2x16xf32>
    %cst_338 = arith.constant -0.999998986 : f32
    %cst_339 = arith.constant 0.999998986 : f32
    %1734 = vector.broadcast %cst_338 : f32 to vector<2x16xf32>
    %1735 = arith.maximumf %1734, %1733 : vector<2x16xf32>
    %1736 = vector.broadcast %cst_339 : f32 to vector<2x16xf32>
    %1737 = arith.minimumf %1736, %1735 : vector<2x16xf32>
    %1738 = math.absf %1737 : vector<2x16xf32>
    %cst_340 = arith.constant -0.0012624911 : f32
    %1739 = vector.broadcast %cst_340 : f32 to vector<2x16xf32>
    %1740 = arith.mulf %1739, %1738 : vector<2x16xf32>
    %cst_341 = arith.constant 6.670090e-03 : f32
    %1741 = vector.broadcast %cst_341 : f32 to vector<2x16xf32>
    %1742 = arith.addf %1740, %1741 : vector<2x16xf32>
    %1743 = arith.mulf %1742, %1738 : vector<2x16xf32>
    %cst_342 = arith.constant -0.0170881264 : f32
    %1744 = vector.broadcast %cst_342 : f32 to vector<2x16xf32>
    %1745 = arith.addf %1743, %1744 : vector<2x16xf32>
    %1746 = arith.mulf %1745, %1738 : vector<2x16xf32>
    %cst_343 = arith.constant 0.0308918804 : f32
    %1747 = vector.broadcast %cst_343 : f32 to vector<2x16xf32>
    %1748 = arith.addf %1746, %1747 : vector<2x16xf32>
    %1749 = arith.mulf %1748, %1738 : vector<2x16xf32>
    %cst_344 = arith.constant -0.0501743034 : f32
    %1750 = vector.broadcast %cst_344 : f32 to vector<2x16xf32>
    %1751 = arith.addf %1749, %1750 : vector<2x16xf32>
    %1752 = arith.mulf %1751, %1738 : vector<2x16xf32>
    %cst_345 = arith.constant 0.0889789909 : f32
    %1753 = vector.broadcast %cst_345 : f32 to vector<2x16xf32>
    %1754 = arith.addf %1752, %1753 : vector<2x16xf32>
    %1755 = arith.mulf %1754, %1738 : vector<2x16xf32>
    %cst_346 = arith.constant -0.214598805 : f32
    %1756 = vector.broadcast %cst_346 : f32 to vector<2x16xf32>
    %1757 = arith.addf %1755, %1756 : vector<2x16xf32>
    %1758 = arith.mulf %1757, %1738 : vector<2x16xf32>
    %cst_347 = arith.constant 1.57079625 : f32
    %1759 = vector.broadcast %cst_347 : f32 to vector<2x16xf32>
    %1760 = arith.addf %1758, %1759 : vector<2x16xf32>
    %cst_348 = arith.constant 1.000000e+00 : f32
    %1761 = vector.broadcast %cst_348 : f32 to vector<2x16xf32>
    %1762 = arith.subf %1761, %1738 : vector<2x16xf32>
    %cst_349 = arith.constant 0.000000e+00 : f32
    %1763 = vector.broadcast %cst_349 : f32 to vector<2x16xf32>
    %1764 = arith.maximumf %1762, %1763 : vector<2x16xf32>
    %1765 = math.sqrt %1764 : vector<2x16xf32>
    %1766 = arith.mulf %1765, %1760 : vector<2x16xf32>
    %cst_350 = arith.constant 0.000000e+00 : f32
    %1767 = vector.broadcast %cst_350 : f32 to vector<2x16xf32>
    %1768 = arith.cmpf olt, %1737, %1767 : vector<2x16xf32>
    %cst_351 = arith.constant 3.14159274 : f32
    %1769 = vector.broadcast %cst_351 : f32 to vector<2x16xf32>
    %1770 = arith.subf %1769, %1766 : vector<2x16xf32>
    %1771 = arith.select %1768, %1770, %1766 : vector<2x16xi1>, vector<2x16xf32>
    %1772 = arith.addf %1505, %1771 : vector<2x16xf32>
    %1773 = arith.subf %1625, %1679 : vector<2x16xf32>
    %1774 = vector.extract_strided_slice %1773 {offsets = [0, 1], sizes = [2, 15], strides = [1, 1]} : vector<2x16xf32> to vector<2x15xf32>
    %1775 = vector.extract_strided_slice %1773 {offsets = [0, 0], sizes = [2, 15], strides = [1, 1]} : vector<2x16xf32> to vector<2x15xf32>
    %1776 = arith.subf %1774, %1775 : vector<2x15xf32>
    %1777 = math.absf %1776 : vector<2x15xf32>
    %1778 = arith.addf %1599, %1777 : vector<2x15xf32>
    %1779 = vector.extract_strided_slice %1776 {offsets = [0, 1], sizes = [2, 14], strides = [1, 1]} : vector<2x15xf32> to vector<2x14xf32>
    %1780 = vector.extract_strided_slice %1776 {offsets = [0, 0], sizes = [2, 14], strides = [1, 1]} : vector<2x15xf32> to vector<2x14xf32>
    %1781 = arith.subf %1779, %1780 : vector<2x14xf32>
    %1782 = math.absf %1781 : vector<2x14xf32>
    %1783 = arith.addf %1604, %1782 : vector<2x14xf32>
    %1784 = arith.subf %1626, %1680 : vector<2x16xf32>
    %1785 = vector.extract_strided_slice %1784 {offsets = [0, 1], sizes = [2, 15], strides = [1, 1]} : vector<2x16xf32> to vector<2x15xf32>
    %1786 = vector.extract_strided_slice %1784 {offsets = [0, 0], sizes = [2, 15], strides = [1, 1]} : vector<2x16xf32> to vector<2x15xf32>
    %1787 = arith.subf %1785, %1786 : vector<2x15xf32>
    %1788 = math.absf %1787 : vector<2x15xf32>
    %1789 = arith.addf %1778, %1788 : vector<2x15xf32>
    %1790 = vector.extract_strided_slice %1787 {offsets = [0, 1], sizes = [2, 14], strides = [1, 1]} : vector<2x15xf32> to vector<2x14xf32>
    %1791 = vector.extract_strided_slice %1787 {offsets = [0, 0], sizes = [2, 14], strides = [1, 1]} : vector<2x15xf32> to vector<2x14xf32>
    %1792 = arith.subf %1790, %1791 : vector<2x14xf32>
    %1793 = math.absf %1792 : vector<2x14xf32>
    %1794 = arith.addf %1783, %1793 : vector<2x14xf32>
    %1795 = arith.subf %1627, %1681 : vector<2x16xf32>
    %1796 = vector.extract_strided_slice %1795 {offsets = [0, 1], sizes = [2, 15], strides = [1, 1]} : vector<2x16xf32> to vector<2x15xf32>
    %1797 = vector.extract_strided_slice %1795 {offsets = [0, 0], sizes = [2, 15], strides = [1, 1]} : vector<2x16xf32> to vector<2x15xf32>
    %1798 = arith.subf %1796, %1797 : vector<2x15xf32>
    %1799 = math.absf %1798 : vector<2x15xf32>
    %1800 = arith.addf %1789, %1799 : vector<2x15xf32>
    %1801 = vector.extract_strided_slice %1798 {offsets = [0, 1], sizes = [2, 14], strides = [1, 1]} : vector<2x15xf32> to vector<2x14xf32>
    %1802 = vector.extract_strided_slice %1798 {offsets = [0, 0], sizes = [2, 14], strides = [1, 1]} : vector<2x15xf32> to vector<2x14xf32>
    %1803 = arith.subf %1801, %1802 : vector<2x14xf32>
    %1804 = math.absf %1803 : vector<2x14xf32>
    %1805 = arith.addf %1794, %1804 : vector<2x14xf32>
    %1806 = arith.subf %1647, %1701 : vector<2x16xf32>
    %1807 = vector.extract_strided_slice %1806 {offsets = [0, 1], sizes = [2, 15], strides = [1, 1]} : vector<2x16xf32> to vector<2x15xf32>
    %1808 = vector.extract_strided_slice %1806 {offsets = [0, 0], sizes = [2, 15], strides = [1, 1]} : vector<2x16xf32> to vector<2x15xf32>
    %1809 = arith.subf %1807, %1808 : vector<2x15xf32>
    %1810 = math.absf %1809 : vector<2x15xf32>
    %1811 = arith.addf %1800, %1810 : vector<2x15xf32>
    %1812 = vector.extract_strided_slice %1809 {offsets = [0, 1], sizes = [2, 14], strides = [1, 1]} : vector<2x15xf32> to vector<2x14xf32>
    %1813 = vector.extract_strided_slice %1809 {offsets = [0, 0], sizes = [2, 14], strides = [1, 1]} : vector<2x15xf32> to vector<2x14xf32>
    %1814 = arith.subf %1812, %1813 : vector<2x14xf32>
    %1815 = math.absf %1814 : vector<2x14xf32>
    %1816 = arith.addf %1805, %1815 : vector<2x14xf32>
    %1817 = arith.subf %1648, %1702 : vector<2x16xf32>
    %1818 = vector.extract_strided_slice %1817 {offsets = [0, 1], sizes = [2, 15], strides = [1, 1]} : vector<2x16xf32> to vector<2x15xf32>
    %1819 = vector.extract_strided_slice %1817 {offsets = [0, 0], sizes = [2, 15], strides = [1, 1]} : vector<2x16xf32> to vector<2x15xf32>
    %1820 = arith.subf %1818, %1819 : vector<2x15xf32>
    %1821 = math.absf %1820 : vector<2x15xf32>
    %1822 = arith.addf %1811, %1821 : vector<2x15xf32>
    %1823 = vector.extract_strided_slice %1820 {offsets = [0, 1], sizes = [2, 14], strides = [1, 1]} : vector<2x15xf32> to vector<2x14xf32>
    %1824 = vector.extract_strided_slice %1820 {offsets = [0, 0], sizes = [2, 14], strides = [1, 1]} : vector<2x15xf32> to vector<2x14xf32>
    %1825 = arith.subf %1823, %1824 : vector<2x14xf32>
    %1826 = math.absf %1825 : vector<2x14xf32>
    %1827 = arith.addf %1816, %1826 : vector<2x14xf32>
    %1828 = arith.subf %1649, %1703 : vector<2x16xf32>
    %1829 = vector.extract_strided_slice %1828 {offsets = [0, 1], sizes = [2, 15], strides = [1, 1]} : vector<2x16xf32> to vector<2x15xf32>
    %1830 = vector.extract_strided_slice %1828 {offsets = [0, 0], sizes = [2, 15], strides = [1, 1]} : vector<2x16xf32> to vector<2x15xf32>
    %1831 = arith.subf %1829, %1830 : vector<2x15xf32>
    %1832 = math.absf %1831 : vector<2x15xf32>
    %1833 = arith.addf %1822, %1832 : vector<2x15xf32>
    %1834 = vector.extract_strided_slice %1831 {offsets = [0, 1], sizes = [2, 14], strides = [1, 1]} : vector<2x15xf32> to vector<2x14xf32>
    %1835 = vector.extract_strided_slice %1831 {offsets = [0, 0], sizes = [2, 14], strides = [1, 1]} : vector<2x15xf32> to vector<2x14xf32>
    %1836 = arith.subf %1834, %1835 : vector<2x14xf32>
    %1837 = math.absf %1836 : vector<2x14xf32>
    %1838 = arith.addf %1827, %1837 : vector<2x14xf32>
    %1839 = arith.subf %1652, %1706 : vector<2x16xf32>
    %1840 = vector.extract_strided_slice %1839 {offsets = [0, 1], sizes = [2, 15], strides = [1, 1]} : vector<2x16xf32> to vector<2x15xf32>
    %1841 = vector.extract_strided_slice %1839 {offsets = [0, 0], sizes = [2, 15], strides = [1, 1]} : vector<2x16xf32> to vector<2x15xf32>
    %1842 = arith.subf %1840, %1841 : vector<2x15xf32>
    %1843 = math.absf %1842 : vector<2x15xf32>
    %1844 = arith.addf %1833, %1843 : vector<2x15xf32>
    %1845 = vector.extract_strided_slice %1842 {offsets = [0, 1], sizes = [2, 14], strides = [1, 1]} : vector<2x15xf32> to vector<2x14xf32>
    %1846 = vector.extract_strided_slice %1842 {offsets = [0, 0], sizes = [2, 14], strides = [1, 1]} : vector<2x15xf32> to vector<2x14xf32>
    %1847 = arith.subf %1845, %1846 : vector<2x14xf32>
    %1848 = math.absf %1847 : vector<2x14xf32>
    %1849 = arith.addf %1838, %1848 : vector<2x14xf32>
    %1850 = arith.subf %1655, %1709 : vector<2x16xf32>
    %1851 = vector.extract_strided_slice %1850 {offsets = [0, 1], sizes = [2, 15], strides = [1, 1]} : vector<2x16xf32> to vector<2x15xf32>
    %1852 = vector.extract_strided_slice %1850 {offsets = [0, 0], sizes = [2, 15], strides = [1, 1]} : vector<2x16xf32> to vector<2x15xf32>
    %1853 = arith.subf %1851, %1852 : vector<2x15xf32>
    %1854 = math.absf %1853 : vector<2x15xf32>
    %1855 = arith.addf %1844, %1854 : vector<2x15xf32>
    %1856 = vector.extract_strided_slice %1853 {offsets = [0, 1], sizes = [2, 14], strides = [1, 1]} : vector<2x15xf32> to vector<2x14xf32>
    %1857 = vector.extract_strided_slice %1853 {offsets = [0, 0], sizes = [2, 14], strides = [1, 1]} : vector<2x15xf32> to vector<2x14xf32>
    %1858 = arith.subf %1856, %1857 : vector<2x14xf32>
    %1859 = math.absf %1858 : vector<2x14xf32>
    %1860 = arith.addf %1849, %1859 : vector<2x14xf32>
    %1861 = arith.subf %1658, %1712 : vector<2x16xf32>
    %1862 = vector.extract_strided_slice %1861 {offsets = [0, 1], sizes = [2, 15], strides = [1, 1]} : vector<2x16xf32> to vector<2x15xf32>
    %1863 = vector.extract_strided_slice %1861 {offsets = [0, 0], sizes = [2, 15], strides = [1, 1]} : vector<2x16xf32> to vector<2x15xf32>
    %1864 = arith.subf %1862, %1863 : vector<2x15xf32>
    %1865 = math.absf %1864 : vector<2x15xf32>
    %1866 = arith.addf %1855, %1865 : vector<2x15xf32>
    %1867 = vector.extract_strided_slice %1864 {offsets = [0, 1], sizes = [2, 14], strides = [1, 1]} : vector<2x15xf32> to vector<2x14xf32>
    %1868 = vector.extract_strided_slice %1864 {offsets = [0, 0], sizes = [2, 14], strides = [1, 1]} : vector<2x15xf32> to vector<2x14xf32>
    %1869 = arith.subf %1867, %1868 : vector<2x14xf32>
    %1870 = math.absf %1869 : vector<2x14xf32>
    %1871 = arith.addf %1860, %1870 : vector<2x14xf32>
    %c42 = arith.constant 42 : index
    %c0_352 = arith.constant 0 : index
    %c0_353 = arith.constant 0 : index
    %1872 = vector.load %arg1[%c42, %c0_352, %c0_353] : memref<61x2x16xf32, #tpu.memory_space<vmem>>, vector<1x2x16xf32>
    %1873 = vector.shape_cast %1872 : vector<1x2x16xf32> to vector<2x16xf32>
    %c43 = arith.constant 43 : index
    %c0_354 = arith.constant 0 : index
    %c0_355 = arith.constant 0 : index
    %1874 = vector.load %arg1[%c43, %c0_354, %c0_355] : memref<61x2x16xf32, #tpu.memory_space<vmem>>, vector<1x2x16xf32>
    %1875 = vector.shape_cast %1874 : vector<1x2x16xf32> to vector<2x16xf32>
    %c44 = arith.constant 44 : index
    %c0_356 = arith.constant 0 : index
    %c0_357 = arith.constant 0 : index
    %1876 = vector.load %arg1[%c44, %c0_356, %c0_357] : memref<61x2x16xf32, #tpu.memory_space<vmem>>, vector<1x2x16xf32>
    %1877 = vector.shape_cast %1876 : vector<1x2x16xf32> to vector<2x16xf32>
    %c45 = arith.constant 45 : index
    %c0_358 = arith.constant 0 : index
    %c0_359 = arith.constant 0 : index
    %1878 = vector.load %arg1[%c45, %c0_358, %c0_359] : memref<61x2x16xf32, #tpu.memory_space<vmem>>, vector<1x2x16xf32>
    %1879 = vector.shape_cast %1878 : vector<1x2x16xf32> to vector<2x16xf32>
    %c46 = arith.constant 46 : index
    %c0_360 = arith.constant 0 : index
    %c0_361 = arith.constant 0 : index
    %1880 = vector.load %arg1[%c46, %c0_360, %c0_361] : memref<61x2x16xf32, #tpu.memory_space<vmem>>, vector<1x2x16xf32>
    %1881 = vector.shape_cast %1880 : vector<1x2x16xf32> to vector<2x16xf32>
    %c47 = arith.constant 47 : index
    %c0_362 = arith.constant 0 : index
    %c0_363 = arith.constant 0 : index
    %1882 = vector.load %arg1[%c47, %c0_362, %c0_363] : memref<61x2x16xf32, #tpu.memory_space<vmem>>, vector<1x2x16xf32>
    %1883 = vector.shape_cast %1882 : vector<1x2x16xf32> to vector<2x16xf32>
    %1884 = arith.mulf %1873, %1873 : vector<2x16xf32>
    %1885 = arith.mulf %1875, %1875 : vector<2x16xf32>
    %1886 = arith.addf %1884, %1885 : vector<2x16xf32>
    %1887 = arith.mulf %1877, %1877 : vector<2x16xf32>
    %1888 = arith.addf %1886, %1887 : vector<2x16xf32>
    %cst_364 = arith.constant 1.000000e-24 : f32
    %1889 = vector.broadcast %cst_364 : f32 to vector<2x16xf32>
    %1890 = arith.maximumf %1888, %1889 : vector<2x16xf32>
    %1891 = math.rsqrt %1890 : vector<2x16xf32>
    %1892 = arith.mulf %1873, %1891 : vector<2x16xf32>
    %1893 = arith.mulf %1875, %1891 : vector<2x16xf32>
    %1894 = arith.mulf %1877, %1891 : vector<2x16xf32>
    %1895 = arith.mulf %1892, %1879 : vector<2x16xf32>
    %1896 = arith.mulf %1893, %1881 : vector<2x16xf32>
    %1897 = arith.addf %1895, %1896 : vector<2x16xf32>
    %1898 = arith.mulf %1894, %1883 : vector<2x16xf32>
    %1899 = arith.addf %1897, %1898 : vector<2x16xf32>
    %1900 = arith.mulf %1899, %1892 : vector<2x16xf32>
    %1901 = arith.subf %1879, %1900 : vector<2x16xf32>
    %1902 = arith.mulf %1899, %1893 : vector<2x16xf32>
    %1903 = arith.subf %1881, %1902 : vector<2x16xf32>
    %1904 = arith.mulf %1899, %1894 : vector<2x16xf32>
    %1905 = arith.subf %1883, %1904 : vector<2x16xf32>
    %1906 = arith.mulf %1901, %1901 : vector<2x16xf32>
    %1907 = arith.mulf %1903, %1903 : vector<2x16xf32>
    %1908 = arith.addf %1906, %1907 : vector<2x16xf32>
    %1909 = arith.mulf %1905, %1905 : vector<2x16xf32>
    %1910 = arith.addf %1908, %1909 : vector<2x16xf32>
    %cst_365 = arith.constant 1.000000e-24 : f32
    %1911 = vector.broadcast %cst_365 : f32 to vector<2x16xf32>
    %1912 = arith.maximumf %1910, %1911 : vector<2x16xf32>
    %1913 = math.rsqrt %1912 : vector<2x16xf32>
    %1914 = arith.mulf %1901, %1913 : vector<2x16xf32>
    %1915 = arith.mulf %1903, %1913 : vector<2x16xf32>
    %1916 = arith.mulf %1905, %1913 : vector<2x16xf32>
    %1917 = arith.mulf %1893, %1916 : vector<2x16xf32>
    %1918 = arith.mulf %1894, %1915 : vector<2x16xf32>
    %1919 = arith.subf %1917, %1918 : vector<2x16xf32>
    %1920 = arith.mulf %1894, %1914 : vector<2x16xf32>
    %1921 = arith.mulf %1892, %1916 : vector<2x16xf32>
    %1922 = arith.subf %1920, %1921 : vector<2x16xf32>
    %1923 = arith.mulf %1892, %1915 : vector<2x16xf32>
    %1924 = arith.mulf %1893, %1914 : vector<2x16xf32>
    %1925 = arith.subf %1923, %1924 : vector<2x16xf32>
    %c42_366 = arith.constant 42 : index
    %c0_367 = arith.constant 0 : index
    %c0_368 = arith.constant 0 : index
    %1926 = vector.load %arg2[%c42_366, %c0_367, %c0_368] : memref<61x2x16xf32, #tpu.memory_space<vmem>>, vector<1x2x16xf32>
    %1927 = vector.shape_cast %1926 : vector<1x2x16xf32> to vector<2x16xf32>
    %c43_369 = arith.constant 43 : index
    %c0_370 = arith.constant 0 : index
    %c0_371 = arith.constant 0 : index
    %1928 = vector.load %arg2[%c43_369, %c0_370, %c0_371] : memref<61x2x16xf32, #tpu.memory_space<vmem>>, vector<1x2x16xf32>
    %1929 = vector.shape_cast %1928 : vector<1x2x16xf32> to vector<2x16xf32>
    %c44_372 = arith.constant 44 : index
    %c0_373 = arith.constant 0 : index
    %c0_374 = arith.constant 0 : index
    %1930 = vector.load %arg2[%c44_372, %c0_373, %c0_374] : memref<61x2x16xf32, #tpu.memory_space<vmem>>, vector<1x2x16xf32>
    %1931 = vector.shape_cast %1930 : vector<1x2x16xf32> to vector<2x16xf32>
    %c45_375 = arith.constant 45 : index
    %c0_376 = arith.constant 0 : index
    %c0_377 = arith.constant 0 : index
    %1932 = vector.load %arg2[%c45_375, %c0_376, %c0_377] : memref<61x2x16xf32, #tpu.memory_space<vmem>>, vector<1x2x16xf32>
    %1933 = vector.shape_cast %1932 : vector<1x2x16xf32> to vector<2x16xf32>
    %c46_378 = arith.constant 46 : index
    %c0_379 = arith.constant 0 : index
    %c0_380 = arith.constant 0 : index
    %1934 = vector.load %arg2[%c46_378, %c0_379, %c0_380] : memref<61x2x16xf32, #tpu.memory_space<vmem>>, vector<1x2x16xf32>
    %1935 = vector.shape_cast %1934 : vector<1x2x16xf32> to vector<2x16xf32>
    %c47_381 = arith.constant 47 : index
    %c0_382 = arith.constant 0 : index
    %c0_383 = arith.constant 0 : index
    %1936 = vector.load %arg2[%c47_381, %c0_382, %c0_383] : memref<61x2x16xf32, #tpu.memory_space<vmem>>, vector<1x2x16xf32>
    %1937 = vector.shape_cast %1936 : vector<1x2x16xf32> to vector<2x16xf32>
    %1938 = arith.mulf %1927, %1927 : vector<2x16xf32>
    %1939 = arith.mulf %1929, %1929 : vector<2x16xf32>
    %1940 = arith.addf %1938, %1939 : vector<2x16xf32>
    %1941 = arith.mulf %1931, %1931 : vector<2x16xf32>
    %1942 = arith.addf %1940, %1941 : vector<2x16xf32>
    %cst_384 = arith.constant 1.000000e-24 : f32
    %1943 = vector.broadcast %cst_384 : f32 to vector<2x16xf32>
    %1944 = arith.maximumf %1942, %1943 : vector<2x16xf32>
    %1945 = math.rsqrt %1944 : vector<2x16xf32>
    %1946 = arith.mulf %1927, %1945 : vector<2x16xf32>
    %1947 = arith.mulf %1929, %1945 : vector<2x16xf32>
    %1948 = arith.mulf %1931, %1945 : vector<2x16xf32>
    %1949 = arith.mulf %1946, %1933 : vector<2x16xf32>
    %1950 = arith.mulf %1947, %1935 : vector<2x16xf32>
    %1951 = arith.addf %1949, %1950 : vector<2x16xf32>
    %1952 = arith.mulf %1948, %1937 : vector<2x16xf32>
    %1953 = arith.addf %1951, %1952 : vector<2x16xf32>
    %1954 = arith.mulf %1953, %1946 : vector<2x16xf32>
    %1955 = arith.subf %1933, %1954 : vector<2x16xf32>
    %1956 = arith.mulf %1953, %1947 : vector<2x16xf32>
    %1957 = arith.subf %1935, %1956 : vector<2x16xf32>
    %1958 = arith.mulf %1953, %1948 : vector<2x16xf32>
    %1959 = arith.subf %1937, %1958 : vector<2x16xf32>
    %1960 = arith.mulf %1955, %1955 : vector<2x16xf32>
    %1961 = arith.mulf %1957, %1957 : vector<2x16xf32>
    %1962 = arith.addf %1960, %1961 : vector<2x16xf32>
    %1963 = arith.mulf %1959, %1959 : vector<2x16xf32>
    %1964 = arith.addf %1962, %1963 : vector<2x16xf32>
    %cst_385 = arith.constant 1.000000e-24 : f32
    %1965 = vector.broadcast %cst_385 : f32 to vector<2x16xf32>
    %1966 = arith.maximumf %1964, %1965 : vector<2x16xf32>
    %1967 = math.rsqrt %1966 : vector<2x16xf32>
    %1968 = arith.mulf %1955, %1967 : vector<2x16xf32>
    %1969 = arith.mulf %1957, %1967 : vector<2x16xf32>
    %1970 = arith.mulf %1959, %1967 : vector<2x16xf32>
    %1971 = arith.mulf %1947, %1970 : vector<2x16xf32>
    %1972 = arith.mulf %1948, %1969 : vector<2x16xf32>
    %1973 = arith.subf %1971, %1972 : vector<2x16xf32>
    %1974 = arith.mulf %1948, %1968 : vector<2x16xf32>
    %1975 = arith.mulf %1946, %1970 : vector<2x16xf32>
    %1976 = arith.subf %1974, %1975 : vector<2x16xf32>
    %1977 = arith.mulf %1946, %1969 : vector<2x16xf32>
    %1978 = arith.mulf %1947, %1968 : vector<2x16xf32>
    %1979 = arith.subf %1977, %1978 : vector<2x16xf32>
    %1980 = arith.mulf %1892, %1946 : vector<2x16xf32>
    %1981 = arith.mulf %1893, %1947 : vector<2x16xf32>
    %1982 = arith.addf %1980, %1981 : vector<2x16xf32>
    %1983 = arith.mulf %1894, %1948 : vector<2x16xf32>
    %1984 = arith.addf %1982, %1983 : vector<2x16xf32>
    %1985 = arith.mulf %1914, %1968 : vector<2x16xf32>
    %1986 = arith.addf %1984, %1985 : vector<2x16xf32>
    %1987 = arith.mulf %1915, %1969 : vector<2x16xf32>
    %1988 = arith.addf %1986, %1987 : vector<2x16xf32>
    %1989 = arith.mulf %1916, %1970 : vector<2x16xf32>
    %1990 = arith.addf %1988, %1989 : vector<2x16xf32>
    %1991 = arith.mulf %1919, %1973 : vector<2x16xf32>
    %1992 = arith.addf %1990, %1991 : vector<2x16xf32>
    %1993 = arith.mulf %1922, %1976 : vector<2x16xf32>
    %1994 = arith.addf %1992, %1993 : vector<2x16xf32>
    %1995 = arith.mulf %1925, %1979 : vector<2x16xf32>
    %1996 = arith.addf %1994, %1995 : vector<2x16xf32>
    %cst_386 = arith.constant 1.000000e+00 : f32
    %1997 = vector.broadcast %cst_386 : f32 to vector<2x16xf32>
    %1998 = arith.subf %1996, %1997 : vector<2x16xf32>
    %cst_387 = arith.constant 5.000000e-01 : f32
    %1999 = vector.broadcast %cst_387 : f32 to vector<2x16xf32>
    %2000 = arith.mulf %1999, %1998 : vector<2x16xf32>
    %cst_388 = arith.constant -0.999998986 : f32
    %cst_389 = arith.constant 0.999998986 : f32
    %2001 = vector.broadcast %cst_388 : f32 to vector<2x16xf32>
    %2002 = arith.maximumf %2001, %2000 : vector<2x16xf32>
    %2003 = vector.broadcast %cst_389 : f32 to vector<2x16xf32>
    %2004 = arith.minimumf %2003, %2002 : vector<2x16xf32>
    %2005 = math.absf %2004 : vector<2x16xf32>
    %cst_390 = arith.constant -0.0012624911 : f32
    %2006 = vector.broadcast %cst_390 : f32 to vector<2x16xf32>
    %2007 = arith.mulf %2006, %2005 : vector<2x16xf32>
    %cst_391 = arith.constant 6.670090e-03 : f32
    %2008 = vector.broadcast %cst_391 : f32 to vector<2x16xf32>
    %2009 = arith.addf %2007, %2008 : vector<2x16xf32>
    %2010 = arith.mulf %2009, %2005 : vector<2x16xf32>
    %cst_392 = arith.constant -0.0170881264 : f32
    %2011 = vector.broadcast %cst_392 : f32 to vector<2x16xf32>
    %2012 = arith.addf %2010, %2011 : vector<2x16xf32>
    %2013 = arith.mulf %2012, %2005 : vector<2x16xf32>
    %cst_393 = arith.constant 0.0308918804 : f32
    %2014 = vector.broadcast %cst_393 : f32 to vector<2x16xf32>
    %2015 = arith.addf %2013, %2014 : vector<2x16xf32>
    %2016 = arith.mulf %2015, %2005 : vector<2x16xf32>
    %cst_394 = arith.constant -0.0501743034 : f32
    %2017 = vector.broadcast %cst_394 : f32 to vector<2x16xf32>
    %2018 = arith.addf %2016, %2017 : vector<2x16xf32>
    %2019 = arith.mulf %2018, %2005 : vector<2x16xf32>
    %cst_395 = arith.constant 0.0889789909 : f32
    %2020 = vector.broadcast %cst_395 : f32 to vector<2x16xf32>
    %2021 = arith.addf %2019, %2020 : vector<2x16xf32>
    %2022 = arith.mulf %2021, %2005 : vector<2x16xf32>
    %cst_396 = arith.constant -0.214598805 : f32
    %2023 = vector.broadcast %cst_396 : f32 to vector<2x16xf32>
    %2024 = arith.addf %2022, %2023 : vector<2x16xf32>
    %2025 = arith.mulf %2024, %2005 : vector<2x16xf32>
    %cst_397 = arith.constant 1.57079625 : f32
    %2026 = vector.broadcast %cst_397 : f32 to vector<2x16xf32>
    %2027 = arith.addf %2025, %2026 : vector<2x16xf32>
    %cst_398 = arith.constant 1.000000e+00 : f32
    %2028 = vector.broadcast %cst_398 : f32 to vector<2x16xf32>
    %2029 = arith.subf %2028, %2005 : vector<2x16xf32>
    %cst_399 = arith.constant 0.000000e+00 : f32
    %2030 = vector.broadcast %cst_399 : f32 to vector<2x16xf32>
    %2031 = arith.maximumf %2029, %2030 : vector<2x16xf32>
    %2032 = math.sqrt %2031 : vector<2x16xf32>
    %2033 = arith.mulf %2032, %2027 : vector<2x16xf32>
    %cst_400 = arith.constant 0.000000e+00 : f32
    %2034 = vector.broadcast %cst_400 : f32 to vector<2x16xf32>
    %2035 = arith.cmpf olt, %2004, %2034 : vector<2x16xf32>
    %cst_401 = arith.constant 3.14159274 : f32
    %2036 = vector.broadcast %cst_401 : f32 to vector<2x16xf32>
    %2037 = arith.subf %2036, %2033 : vector<2x16xf32>
    %2038 = arith.select %2035, %2037, %2033 : vector<2x16xi1>, vector<2x16xf32>
    %2039 = arith.addf %1772, %2038 : vector<2x16xf32>
    %2040 = arith.subf %1892, %1946 : vector<2x16xf32>
    %2041 = vector.extract_strided_slice %2040 {offsets = [0, 1], sizes = [2, 15], strides = [1, 1]} : vector<2x16xf32> to vector<2x15xf32>
    %2042 = vector.extract_strided_slice %2040 {offsets = [0, 0], sizes = [2, 15], strides = [1, 1]} : vector<2x16xf32> to vector<2x15xf32>
    %2043 = arith.subf %2041, %2042 : vector<2x15xf32>
    %2044 = math.absf %2043 : vector<2x15xf32>
    %2045 = arith.addf %1866, %2044 : vector<2x15xf32>
    %2046 = vector.extract_strided_slice %2043 {offsets = [0, 1], sizes = [2, 14], strides = [1, 1]} : vector<2x15xf32> to vector<2x14xf32>
    %2047 = vector.extract_strided_slice %2043 {offsets = [0, 0], sizes = [2, 14], strides = [1, 1]} : vector<2x15xf32> to vector<2x14xf32>
    %2048 = arith.subf %2046, %2047 : vector<2x14xf32>
    %2049 = math.absf %2048 : vector<2x14xf32>
    %2050 = arith.addf %1871, %2049 : vector<2x14xf32>
    %2051 = arith.subf %1893, %1947 : vector<2x16xf32>
    %2052 = vector.extract_strided_slice %2051 {offsets = [0, 1], sizes = [2, 15], strides = [1, 1]} : vector<2x16xf32> to vector<2x15xf32>
    %2053 = vector.extract_strided_slice %2051 {offsets = [0, 0], sizes = [2, 15], strides = [1, 1]} : vector<2x16xf32> to vector<2x15xf32>
    %2054 = arith.subf %2052, %2053 : vector<2x15xf32>
    %2055 = math.absf %2054 : vector<2x15xf32>
    %2056 = arith.addf %2045, %2055 : vector<2x15xf32>
    %2057 = vector.extract_strided_slice %2054 {offsets = [0, 1], sizes = [2, 14], strides = [1, 1]} : vector<2x15xf32> to vector<2x14xf32>
    %2058 = vector.extract_strided_slice %2054 {offsets = [0, 0], sizes = [2, 14], strides = [1, 1]} : vector<2x15xf32> to vector<2x14xf32>
    %2059 = arith.subf %2057, %2058 : vector<2x14xf32>
    %2060 = math.absf %2059 : vector<2x14xf32>
    %2061 = arith.addf %2050, %2060 : vector<2x14xf32>
    %2062 = arith.subf %1894, %1948 : vector<2x16xf32>
    %2063 = vector.extract_strided_slice %2062 {offsets = [0, 1], sizes = [2, 15], strides = [1, 1]} : vector<2x16xf32> to vector<2x15xf32>
    %2064 = vector.extract_strided_slice %2062 {offsets = [0, 0], sizes = [2, 15], strides = [1, 1]} : vector<2x16xf32> to vector<2x15xf32>
    %2065 = arith.subf %2063, %2064 : vector<2x15xf32>
    %2066 = math.absf %2065 : vector<2x15xf32>
    %2067 = arith.addf %2056, %2066 : vector<2x15xf32>
    %2068 = vector.extract_strided_slice %2065 {offsets = [0, 1], sizes = [2, 14], strides = [1, 1]} : vector<2x15xf32> to vector<2x14xf32>
    %2069 = vector.extract_strided_slice %2065 {offsets = [0, 0], sizes = [2, 14], strides = [1, 1]} : vector<2x15xf32> to vector<2x14xf32>
    %2070 = arith.subf %2068, %2069 : vector<2x14xf32>
    %2071 = math.absf %2070 : vector<2x14xf32>
    %2072 = arith.addf %2061, %2071 : vector<2x14xf32>
    %2073 = arith.subf %1914, %1968 : vector<2x16xf32>
    %2074 = vector.extract_strided_slice %2073 {offsets = [0, 1], sizes = [2, 15], strides = [1, 1]} : vector<2x16xf32> to vector<2x15xf32>
    %2075 = vector.extract_strided_slice %2073 {offsets = [0, 0], sizes = [2, 15], strides = [1, 1]} : vector<2x16xf32> to vector<2x15xf32>
    %2076 = arith.subf %2074, %2075 : vector<2x15xf32>
    %2077 = math.absf %2076 : vector<2x15xf32>
    %2078 = arith.addf %2067, %2077 : vector<2x15xf32>
    %2079 = vector.extract_strided_slice %2076 {offsets = [0, 1], sizes = [2, 14], strides = [1, 1]} : vector<2x15xf32> to vector<2x14xf32>
    %2080 = vector.extract_strided_slice %2076 {offsets = [0, 0], sizes = [2, 14], strides = [1, 1]} : vector<2x15xf32> to vector<2x14xf32>
    %2081 = arith.subf %2079, %2080 : vector<2x14xf32>
    %2082 = math.absf %2081 : vector<2x14xf32>
    %2083 = arith.addf %2072, %2082 : vector<2x14xf32>
    %2084 = arith.subf %1915, %1969 : vector<2x16xf32>
    %2085 = vector.extract_strided_slice %2084 {offsets = [0, 1], sizes = [2, 15], strides = [1, 1]} : vector<2x16xf32> to vector<2x15xf32>
    %2086 = vector.extract_strided_slice %2084 {offsets = [0, 0], sizes = [2, 15], strides = [1, 1]} : vector<2x16xf32> to vector<2x15xf32>
    %2087 = arith.subf %2085, %2086 : vector<2x15xf32>
    %2088 = math.absf %2087 : vector<2x15xf32>
    %2089 = arith.addf %2078, %2088 : vector<2x15xf32>
    %2090 = vector.extract_strided_slice %2087 {offsets = [0, 1], sizes = [2, 14], strides = [1, 1]} : vector<2x15xf32> to vector<2x14xf32>
    %2091 = vector.extract_strided_slice %2087 {offsets = [0, 0], sizes = [2, 14], strides = [1, 1]} : vector<2x15xf32> to vector<2x14xf32>
    %2092 = arith.subf %2090, %2091 : vector<2x14xf32>
    %2093 = math.absf %2092 : vector<2x14xf32>
    %2094 = arith.addf %2083, %2093 : vector<2x14xf32>
    %2095 = arith.subf %1916, %1970 : vector<2x16xf32>
    %2096 = vector.extract_strided_slice %2095 {offsets = [0, 1], sizes = [2, 15], strides = [1, 1]} : vector<2x16xf32> to vector<2x15xf32>
    %2097 = vector.extract_strided_slice %2095 {offsets = [0, 0], sizes = [2, 15], strides = [1, 1]} : vector<2x16xf32> to vector<2x15xf32>
    %2098 = arith.subf %2096, %2097 : vector<2x15xf32>
    %2099 = math.absf %2098 : vector<2x15xf32>
    %2100 = arith.addf %2089, %2099 : vector<2x15xf32>
    %2101 = vector.extract_strided_slice %2098 {offsets = [0, 1], sizes = [2, 14], strides = [1, 1]} : vector<2x15xf32> to vector<2x14xf32>
    %2102 = vector.extract_strided_slice %2098 {offsets = [0, 0], sizes = [2, 14], strides = [1, 1]} : vector<2x15xf32> to vector<2x14xf32>
    %2103 = arith.subf %2101, %2102 : vector<2x14xf32>
    %2104 = math.absf %2103 : vector<2x14xf32>
    %2105 = arith.addf %2094, %2104 : vector<2x14xf32>
    %2106 = arith.subf %1919, %1973 : vector<2x16xf32>
    %2107 = vector.extract_strided_slice %2106 {offsets = [0, 1], sizes = [2, 15], strides = [1, 1]} : vector<2x16xf32> to vector<2x15xf32>
    %2108 = vector.extract_strided_slice %2106 {offsets = [0, 0], sizes = [2, 15], strides = [1, 1]} : vector<2x16xf32> to vector<2x15xf32>
    %2109 = arith.subf %2107, %2108 : vector<2x15xf32>
    %2110 = math.absf %2109 : vector<2x15xf32>
    %2111 = arith.addf %2100, %2110 : vector<2x15xf32>
    %2112 = vector.extract_strided_slice %2109 {offsets = [0, 1], sizes = [2, 14], strides = [1, 1]} : vector<2x15xf32> to vector<2x14xf32>
    %2113 = vector.extract_strided_slice %2109 {offsets = [0, 0], sizes = [2, 14], strides = [1, 1]} : vector<2x15xf32> to vector<2x14xf32>
    %2114 = arith.subf %2112, %2113 : vector<2x14xf32>
    %2115 = math.absf %2114 : vector<2x14xf32>
    %2116 = arith.addf %2105, %2115 : vector<2x14xf32>
    %2117 = arith.subf %1922, %1976 : vector<2x16xf32>
    %2118 = vector.extract_strided_slice %2117 {offsets = [0, 1], sizes = [2, 15], strides = [1, 1]} : vector<2x16xf32> to vector<2x15xf32>
    %2119 = vector.extract_strided_slice %2117 {offsets = [0, 0], sizes = [2, 15], strides = [1, 1]} : vector<2x16xf32> to vector<2x15xf32>
    %2120 = arith.subf %2118, %2119 : vector<2x15xf32>
    %2121 = math.absf %2120 : vector<2x15xf32>
    %2122 = arith.addf %2111, %2121 : vector<2x15xf32>
    %2123 = vector.extract_strided_slice %2120 {offsets = [0, 1], sizes = [2, 14], strides = [1, 1]} : vector<2x15xf32> to vector<2x14xf32>
    %2124 = vector.extract_strided_slice %2120 {offsets = [0, 0], sizes = [2, 14], strides = [1, 1]} : vector<2x15xf32> to vector<2x14xf32>
    %2125 = arith.subf %2123, %2124 : vector<2x14xf32>
    %2126 = math.absf %2125 : vector<2x14xf32>
    %2127 = arith.addf %2116, %2126 : vector<2x14xf32>
    %2128 = arith.subf %1925, %1979 : vector<2x16xf32>
    %2129 = vector.extract_strided_slice %2128 {offsets = [0, 1], sizes = [2, 15], strides = [1, 1]} : vector<2x16xf32> to vector<2x15xf32>
    %2130 = vector.extract_strided_slice %2128 {offsets = [0, 0], sizes = [2, 15], strides = [1, 1]} : vector<2x16xf32> to vector<2x15xf32>
    %2131 = arith.subf %2129, %2130 : vector<2x15xf32>
    %2132 = math.absf %2131 : vector<2x15xf32>
    %2133 = arith.addf %2122, %2132 : vector<2x15xf32>
    %2134 = vector.extract_strided_slice %2131 {offsets = [0, 1], sizes = [2, 14], strides = [1, 1]} : vector<2x15xf32> to vector<2x14xf32>
    %2135 = vector.extract_strided_slice %2131 {offsets = [0, 0], sizes = [2, 14], strides = [1, 1]} : vector<2x15xf32> to vector<2x14xf32>
    %2136 = arith.subf %2134, %2135 : vector<2x14xf32>
    %2137 = math.absf %2136 : vector<2x14xf32>
    %2138 = arith.addf %2127, %2137 : vector<2x14xf32>
    %c48 = arith.constant 48 : index
    %c0_402 = arith.constant 0 : index
    %c0_403 = arith.constant 0 : index
    %2139 = vector.load %arg1[%c48, %c0_402, %c0_403] : memref<61x2x16xf32, #tpu.memory_space<vmem>>, vector<1x2x16xf32>
    %2140 = vector.shape_cast %2139 : vector<1x2x16xf32> to vector<2x16xf32>
    %c49 = arith.constant 49 : index
    %c0_404 = arith.constant 0 : index
    %c0_405 = arith.constant 0 : index
    %2141 = vector.load %arg1[%c49, %c0_404, %c0_405] : memref<61x2x16xf32, #tpu.memory_space<vmem>>, vector<1x2x16xf32>
    %2142 = vector.shape_cast %2141 : vector<1x2x16xf32> to vector<2x16xf32>
    %c50 = arith.constant 50 : index
    %c0_406 = arith.constant 0 : index
    %c0_407 = arith.constant 0 : index
    %2143 = vector.load %arg1[%c50, %c0_406, %c0_407] : memref<61x2x16xf32, #tpu.memory_space<vmem>>, vector<1x2x16xf32>
    %2144 = vector.shape_cast %2143 : vector<1x2x16xf32> to vector<2x16xf32>
    %c51 = arith.constant 51 : index
    %c0_408 = arith.constant 0 : index
    %c0_409 = arith.constant 0 : index
    %2145 = vector.load %arg1[%c51, %c0_408, %c0_409] : memref<61x2x16xf32, #tpu.memory_space<vmem>>, vector<1x2x16xf32>
    %2146 = vector.shape_cast %2145 : vector<1x2x16xf32> to vector<2x16xf32>
    %c52 = arith.constant 52 : index
    %c0_410 = arith.constant 0 : index
    %c0_411 = arith.constant 0 : index
    %2147 = vector.load %arg1[%c52, %c0_410, %c0_411] : memref<61x2x16xf32, #tpu.memory_space<vmem>>, vector<1x2x16xf32>
    %2148 = vector.shape_cast %2147 : vector<1x2x16xf32> to vector<2x16xf32>
    %c53 = arith.constant 53 : index
    %c0_412 = arith.constant 0 : index
    %c0_413 = arith.constant 0 : index
    %2149 = vector.load %arg1[%c53, %c0_412, %c0_413] : memref<61x2x16xf32, #tpu.memory_space<vmem>>, vector<1x2x16xf32>
    %2150 = vector.shape_cast %2149 : vector<1x2x16xf32> to vector<2x16xf32>
    %2151 = arith.mulf %2140, %2140 : vector<2x16xf32>
    %2152 = arith.mulf %2142, %2142 : vector<2x16xf32>
    %2153 = arith.addf %2151, %2152 : vector<2x16xf32>
    %2154 = arith.mulf %2144, %2144 : vector<2x16xf32>
    %2155 = arith.addf %2153, %2154 : vector<2x16xf32>
    %cst_414 = arith.constant 1.000000e-24 : f32
    %2156 = vector.broadcast %cst_414 : f32 to vector<2x16xf32>
    %2157 = arith.maximumf %2155, %2156 : vector<2x16xf32>
    %2158 = math.rsqrt %2157 : vector<2x16xf32>
    %2159 = arith.mulf %2140, %2158 : vector<2x16xf32>
    %2160 = arith.mulf %2142, %2158 : vector<2x16xf32>
    %2161 = arith.mulf %2144, %2158 : vector<2x16xf32>
    %2162 = arith.mulf %2159, %2146 : vector<2x16xf32>
    %2163 = arith.mulf %2160, %2148 : vector<2x16xf32>
    %2164 = arith.addf %2162, %2163 : vector<2x16xf32>
    %2165 = arith.mulf %2161, %2150 : vector<2x16xf32>
    %2166 = arith.addf %2164, %2165 : vector<2x16xf32>
    %2167 = arith.mulf %2166, %2159 : vector<2x16xf32>
    %2168 = arith.subf %2146, %2167 : vector<2x16xf32>
    %2169 = arith.mulf %2166, %2160 : vector<2x16xf32>
    %2170 = arith.subf %2148, %2169 : vector<2x16xf32>
    %2171 = arith.mulf %2166, %2161 : vector<2x16xf32>
    %2172 = arith.subf %2150, %2171 : vector<2x16xf32>
    %2173 = arith.mulf %2168, %2168 : vector<2x16xf32>
    %2174 = arith.mulf %2170, %2170 : vector<2x16xf32>
    %2175 = arith.addf %2173, %2174 : vector<2x16xf32>
    %2176 = arith.mulf %2172, %2172 : vector<2x16xf32>
    %2177 = arith.addf %2175, %2176 : vector<2x16xf32>
    %cst_415 = arith.constant 1.000000e-24 : f32
    %2178 = vector.broadcast %cst_415 : f32 to vector<2x16xf32>
    %2179 = arith.maximumf %2177, %2178 : vector<2x16xf32>
    %2180 = math.rsqrt %2179 : vector<2x16xf32>
    %2181 = arith.mulf %2168, %2180 : vector<2x16xf32>
    %2182 = arith.mulf %2170, %2180 : vector<2x16xf32>
    %2183 = arith.mulf %2172, %2180 : vector<2x16xf32>
    %2184 = arith.mulf %2160, %2183 : vector<2x16xf32>
    %2185 = arith.mulf %2161, %2182 : vector<2x16xf32>
    %2186 = arith.subf %2184, %2185 : vector<2x16xf32>
    %2187 = arith.mulf %2161, %2181 : vector<2x16xf32>
    %2188 = arith.mulf %2159, %2183 : vector<2x16xf32>
    %2189 = arith.subf %2187, %2188 : vector<2x16xf32>
    %2190 = arith.mulf %2159, %2182 : vector<2x16xf32>
    %2191 = arith.mulf %2160, %2181 : vector<2x16xf32>
    %2192 = arith.subf %2190, %2191 : vector<2x16xf32>
    %c48_416 = arith.constant 48 : index
    %c0_417 = arith.constant 0 : index
    %c0_418 = arith.constant 0 : index
    %2193 = vector.load %arg2[%c48_416, %c0_417, %c0_418] : memref<61x2x16xf32, #tpu.memory_space<vmem>>, vector<1x2x16xf32>
    %2194 = vector.shape_cast %2193 : vector<1x2x16xf32> to vector<2x16xf32>
    %c49_419 = arith.constant 49 : index
    %c0_420 = arith.constant 0 : index
    %c0_421 = arith.constant 0 : index
    %2195 = vector.load %arg2[%c49_419, %c0_420, %c0_421] : memref<61x2x16xf32, #tpu.memory_space<vmem>>, vector<1x2x16xf32>
    %2196 = vector.shape_cast %2195 : vector<1x2x16xf32> to vector<2x16xf32>
    %c50_422 = arith.constant 50 : index
    %c0_423 = arith.constant 0 : index
    %c0_424 = arith.constant 0 : index
    %2197 = vector.load %arg2[%c50_422, %c0_423, %c0_424] : memref<61x2x16xf32, #tpu.memory_space<vmem>>, vector<1x2x16xf32>
    %2198 = vector.shape_cast %2197 : vector<1x2x16xf32> to vector<2x16xf32>
    %c51_425 = arith.constant 51 : index
    %c0_426 = arith.constant 0 : index
    %c0_427 = arith.constant 0 : index
    %2199 = vector.load %arg2[%c51_425, %c0_426, %c0_427] : memref<61x2x16xf32, #tpu.memory_space<vmem>>, vector<1x2x16xf32>
    %2200 = vector.shape_cast %2199 : vector<1x2x16xf32> to vector<2x16xf32>
    %c52_428 = arith.constant 52 : index
    %c0_429 = arith.constant 0 : index
    %c0_430 = arith.constant 0 : index
    %2201 = vector.load %arg2[%c52_428, %c0_429, %c0_430] : memref<61x2x16xf32, #tpu.memory_space<vmem>>, vector<1x2x16xf32>
    %2202 = vector.shape_cast %2201 : vector<1x2x16xf32> to vector<2x16xf32>
    %c53_431 = arith.constant 53 : index
    %c0_432 = arith.constant 0 : index
    %c0_433 = arith.constant 0 : index
    %2203 = vector.load %arg2[%c53_431, %c0_432, %c0_433] : memref<61x2x16xf32, #tpu.memory_space<vmem>>, vector<1x2x16xf32>
    %2204 = vector.shape_cast %2203 : vector<1x2x16xf32> to vector<2x16xf32>
    %2205 = arith.mulf %2194, %2194 : vector<2x16xf32>
    %2206 = arith.mulf %2196, %2196 : vector<2x16xf32>
    %2207 = arith.addf %2205, %2206 : vector<2x16xf32>
    %2208 = arith.mulf %2198, %2198 : vector<2x16xf32>
    %2209 = arith.addf %2207, %2208 : vector<2x16xf32>
    %cst_434 = arith.constant 1.000000e-24 : f32
    %2210 = vector.broadcast %cst_434 : f32 to vector<2x16xf32>
    %2211 = arith.maximumf %2209, %2210 : vector<2x16xf32>
    %2212 = math.rsqrt %2211 : vector<2x16xf32>
    %2213 = arith.mulf %2194, %2212 : vector<2x16xf32>
    %2214 = arith.mulf %2196, %2212 : vector<2x16xf32>
    %2215 = arith.mulf %2198, %2212 : vector<2x16xf32>
    %2216 = arith.mulf %2213, %2200 : vector<2x16xf32>
    %2217 = arith.mulf %2214, %2202 : vector<2x16xf32>
    %2218 = arith.addf %2216, %2217 : vector<2x16xf32>
    %2219 = arith.mulf %2215, %2204 : vector<2x16xf32>
    %2220 = arith.addf %2218, %2219 : vector<2x16xf32>
    %2221 = arith.mulf %2220, %2213 : vector<2x16xf32>
    %2222 = arith.subf %2200, %2221 : vector<2x16xf32>
    %2223 = arith.mulf %2220, %2214 : vector<2x16xf32>
    %2224 = arith.subf %2202, %2223 : vector<2x16xf32>
    %2225 = arith.mulf %2220, %2215 : vector<2x16xf32>
    %2226 = arith.subf %2204, %2225 : vector<2x16xf32>
    %2227 = arith.mulf %2222, %2222 : vector<2x16xf32>
    %2228 = arith.mulf %2224, %2224 : vector<2x16xf32>
    %2229 = arith.addf %2227, %2228 : vector<2x16xf32>
    %2230 = arith.mulf %2226, %2226 : vector<2x16xf32>
    %2231 = arith.addf %2229, %2230 : vector<2x16xf32>
    %cst_435 = arith.constant 1.000000e-24 : f32
    %2232 = vector.broadcast %cst_435 : f32 to vector<2x16xf32>
    %2233 = arith.maximumf %2231, %2232 : vector<2x16xf32>
    %2234 = math.rsqrt %2233 : vector<2x16xf32>
    %2235 = arith.mulf %2222, %2234 : vector<2x16xf32>
    %2236 = arith.mulf %2224, %2234 : vector<2x16xf32>
    %2237 = arith.mulf %2226, %2234 : vector<2x16xf32>
    %2238 = arith.mulf %2214, %2237 : vector<2x16xf32>
    %2239 = arith.mulf %2215, %2236 : vector<2x16xf32>
    %2240 = arith.subf %2238, %2239 : vector<2x16xf32>
    %2241 = arith.mulf %2215, %2235 : vector<2x16xf32>
    %2242 = arith.mulf %2213, %2237 : vector<2x16xf32>
    %2243 = arith.subf %2241, %2242 : vector<2x16xf32>
    %2244 = arith.mulf %2213, %2236 : vector<2x16xf32>
    %2245 = arith.mulf %2214, %2235 : vector<2x16xf32>
    %2246 = arith.subf %2244, %2245 : vector<2x16xf32>
    %2247 = arith.mulf %2159, %2213 : vector<2x16xf32>
    %2248 = arith.mulf %2160, %2214 : vector<2x16xf32>
    %2249 = arith.addf %2247, %2248 : vector<2x16xf32>
    %2250 = arith.mulf %2161, %2215 : vector<2x16xf32>
    %2251 = arith.addf %2249, %2250 : vector<2x16xf32>
    %2252 = arith.mulf %2181, %2235 : vector<2x16xf32>
    %2253 = arith.addf %2251, %2252 : vector<2x16xf32>
    %2254 = arith.mulf %2182, %2236 : vector<2x16xf32>
    %2255 = arith.addf %2253, %2254 : vector<2x16xf32>
    %2256 = arith.mulf %2183, %2237 : vector<2x16xf32>
    %2257 = arith.addf %2255, %2256 : vector<2x16xf32>
    %2258 = arith.mulf %2186, %2240 : vector<2x16xf32>
    %2259 = arith.addf %2257, %2258 : vector<2x16xf32>
    %2260 = arith.mulf %2189, %2243 : vector<2x16xf32>
    %2261 = arith.addf %2259, %2260 : vector<2x16xf32>
    %2262 = arith.mulf %2192, %2246 : vector<2x16xf32>
    %2263 = arith.addf %2261, %2262 : vector<2x16xf32>
    %cst_436 = arith.constant 1.000000e+00 : f32
    %2264 = vector.broadcast %cst_436 : f32 to vector<2x16xf32>
    %2265 = arith.subf %2263, %2264 : vector<2x16xf32>
    %cst_437 = arith.constant 5.000000e-01 : f32
    %2266 = vector.broadcast %cst_437 : f32 to vector<2x16xf32>
    %2267 = arith.mulf %2266, %2265 : vector<2x16xf32>
    %cst_438 = arith.constant -0.999998986 : f32
    %cst_439 = arith.constant 0.999998986 : f32
    %2268 = vector.broadcast %cst_438 : f32 to vector<2x16xf32>
    %2269 = arith.maximumf %2268, %2267 : vector<2x16xf32>
    %2270 = vector.broadcast %cst_439 : f32 to vector<2x16xf32>
    %2271 = arith.minimumf %2270, %2269 : vector<2x16xf32>
    %2272 = math.absf %2271 : vector<2x16xf32>
    %cst_440 = arith.constant -0.0012624911 : f32
    %2273 = vector.broadcast %cst_440 : f32 to vector<2x16xf32>
    %2274 = arith.mulf %2273, %2272 : vector<2x16xf32>
    %cst_441 = arith.constant 6.670090e-03 : f32
    %2275 = vector.broadcast %cst_441 : f32 to vector<2x16xf32>
    %2276 = arith.addf %2274, %2275 : vector<2x16xf32>
    %2277 = arith.mulf %2276, %2272 : vector<2x16xf32>
    %cst_442 = arith.constant -0.0170881264 : f32
    %2278 = vector.broadcast %cst_442 : f32 to vector<2x16xf32>
    %2279 = arith.addf %2277, %2278 : vector<2x16xf32>
    %2280 = arith.mulf %2279, %2272 : vector<2x16xf32>
    %cst_443 = arith.constant 0.0308918804 : f32
    %2281 = vector.broadcast %cst_443 : f32 to vector<2x16xf32>
    %2282 = arith.addf %2280, %2281 : vector<2x16xf32>
    %2283 = arith.mulf %2282, %2272 : vector<2x16xf32>
    %cst_444 = arith.constant -0.0501743034 : f32
    %2284 = vector.broadcast %cst_444 : f32 to vector<2x16xf32>
    %2285 = arith.addf %2283, %2284 : vector<2x16xf32>
    %2286 = arith.mulf %2285, %2272 : vector<2x16xf32>
    %cst_445 = arith.constant 0.0889789909 : f32
    %2287 = vector.broadcast %cst_445 : f32 to vector<2x16xf32>
    %2288 = arith.addf %2286, %2287 : vector<2x16xf32>
    %2289 = arith.mulf %2288, %2272 : vector<2x16xf32>
    %cst_446 = arith.constant -0.214598805 : f32
    %2290 = vector.broadcast %cst_446 : f32 to vector<2x16xf32>
    %2291 = arith.addf %2289, %2290 : vector<2x16xf32>
    %2292 = arith.mulf %2291, %2272 : vector<2x16xf32>
    %cst_447 = arith.constant 1.57079625 : f32
    %2293 = vector.broadcast %cst_447 : f32 to vector<2x16xf32>
    %2294 = arith.addf %2292, %2293 : vector<2x16xf32>
    %cst_448 = arith.constant 1.000000e+00 : f32
    %2295 = vector.broadcast %cst_448 : f32 to vector<2x16xf32>
    %2296 = arith.subf %2295, %2272 : vector<2x16xf32>
    %cst_449 = arith.constant 0.000000e+00 : f32
    %2297 = vector.broadcast %cst_449 : f32 to vector<2x16xf32>
    %2298 = arith.maximumf %2296, %2297 : vector<2x16xf32>
    %2299 = math.sqrt %2298 : vector<2x16xf32>
    %2300 = arith.mulf %2299, %2294 : vector<2x16xf32>
    %cst_450 = arith.constant 0.000000e+00 : f32
    %2301 = vector.broadcast %cst_450 : f32 to vector<2x16xf32>
    %2302 = arith.cmpf olt, %2271, %2301 : vector<2x16xf32>
    %cst_451 = arith.constant 3.14159274 : f32
    %2303 = vector.broadcast %cst_451 : f32 to vector<2x16xf32>
    %2304 = arith.subf %2303, %2300 : vector<2x16xf32>
    %2305 = arith.select %2302, %2304, %2300 : vector<2x16xi1>, vector<2x16xf32>
    %2306 = arith.addf %2039, %2305 : vector<2x16xf32>
    %2307 = arith.subf %2159, %2213 : vector<2x16xf32>
    %2308 = vector.extract_strided_slice %2307 {offsets = [0, 1], sizes = [2, 15], strides = [1, 1]} : vector<2x16xf32> to vector<2x15xf32>
    %2309 = vector.extract_strided_slice %2307 {offsets = [0, 0], sizes = [2, 15], strides = [1, 1]} : vector<2x16xf32> to vector<2x15xf32>
    %2310 = arith.subf %2308, %2309 : vector<2x15xf32>
    %2311 = math.absf %2310 : vector<2x15xf32>
    %2312 = arith.addf %2133, %2311 : vector<2x15xf32>
    %2313 = vector.extract_strided_slice %2310 {offsets = [0, 1], sizes = [2, 14], strides = [1, 1]} : vector<2x15xf32> to vector<2x14xf32>
    %2314 = vector.extract_strided_slice %2310 {offsets = [0, 0], sizes = [2, 14], strides = [1, 1]} : vector<2x15xf32> to vector<2x14xf32>
    %2315 = arith.subf %2313, %2314 : vector<2x14xf32>
    %2316 = math.absf %2315 : vector<2x14xf32>
    %2317 = arith.addf %2138, %2316 : vector<2x14xf32>
    %2318 = arith.subf %2160, %2214 : vector<2x16xf32>
    %2319 = vector.extract_strided_slice %2318 {offsets = [0, 1], sizes = [2, 15], strides = [1, 1]} : vector<2x16xf32> to vector<2x15xf32>
    %2320 = vector.extract_strided_slice %2318 {offsets = [0, 0], sizes = [2, 15], strides = [1, 1]} : vector<2x16xf32> to vector<2x15xf32>
    %2321 = arith.subf %2319, %2320 : vector<2x15xf32>
    %2322 = math.absf %2321 : vector<2x15xf32>
    %2323 = arith.addf %2312, %2322 : vector<2x15xf32>
    %2324 = vector.extract_strided_slice %2321 {offsets = [0, 1], sizes = [2, 14], strides = [1, 1]} : vector<2x15xf32> to vector<2x14xf32>
    %2325 = vector.extract_strided_slice %2321 {offsets = [0, 0], sizes = [2, 14], strides = [1, 1]} : vector<2x15xf32> to vector<2x14xf32>
    %2326 = arith.subf %2324, %2325 : vector<2x14xf32>
    %2327 = math.absf %2326 : vector<2x14xf32>
    %2328 = arith.addf %2317, %2327 : vector<2x14xf32>
    %2329 = arith.subf %2161, %2215 : vector<2x16xf32>
    %2330 = vector.extract_strided_slice %2329 {offsets = [0, 1], sizes = [2, 15], strides = [1, 1]} : vector<2x16xf32> to vector<2x15xf32>
    %2331 = vector.extract_strided_slice %2329 {offsets = [0, 0], sizes = [2, 15], strides = [1, 1]} : vector<2x16xf32> to vector<2x15xf32>
    %2332 = arith.subf %2330, %2331 : vector<2x15xf32>
    %2333 = math.absf %2332 : vector<2x15xf32>
    %2334 = arith.addf %2323, %2333 : vector<2x15xf32>
    %2335 = vector.extract_strided_slice %2332 {offsets = [0, 1], sizes = [2, 14], strides = [1, 1]} : vector<2x15xf32> to vector<2x14xf32>
    %2336 = vector.extract_strided_slice %2332 {offsets = [0, 0], sizes = [2, 14], strides = [1, 1]} : vector<2x15xf32> to vector<2x14xf32>
    %2337 = arith.subf %2335, %2336 : vector<2x14xf32>
    %2338 = math.absf %2337 : vector<2x14xf32>
    %2339 = arith.addf %2328, %2338 : vector<2x14xf32>
    %2340 = arith.subf %2181, %2235 : vector<2x16xf32>
    %2341 = vector.extract_strided_slice %2340 {offsets = [0, 1], sizes = [2, 15], strides = [1, 1]} : vector<2x16xf32> to vector<2x15xf32>
    %2342 = vector.extract_strided_slice %2340 {offsets = [0, 0], sizes = [2, 15], strides = [1, 1]} : vector<2x16xf32> to vector<2x15xf32>
    %2343 = arith.subf %2341, %2342 : vector<2x15xf32>
    %2344 = math.absf %2343 : vector<2x15xf32>
    %2345 = arith.addf %2334, %2344 : vector<2x15xf32>
    %2346 = vector.extract_strided_slice %2343 {offsets = [0, 1], sizes = [2, 14], strides = [1, 1]} : vector<2x15xf32> to vector<2x14xf32>
    %2347 = vector.extract_strided_slice %2343 {offsets = [0, 0], sizes = [2, 14], strides = [1, 1]} : vector<2x15xf32> to vector<2x14xf32>
    %2348 = arith.subf %2346, %2347 : vector<2x14xf32>
    %2349 = math.absf %2348 : vector<2x14xf32>
    %2350 = arith.addf %2339, %2349 : vector<2x14xf32>
    %2351 = arith.subf %2182, %2236 : vector<2x16xf32>
    %2352 = vector.extract_strided_slice %2351 {offsets = [0, 1], sizes = [2, 15], strides = [1, 1]} : vector<2x16xf32> to vector<2x15xf32>
    %2353 = vector.extract_strided_slice %2351 {offsets = [0, 0], sizes = [2, 15], strides = [1, 1]} : vector<2x16xf32> to vector<2x15xf32>
    %2354 = arith.subf %2352, %2353 : vector<2x15xf32>
    %2355 = math.absf %2354 : vector<2x15xf32>
    %2356 = arith.addf %2345, %2355 : vector<2x15xf32>
    %2357 = vector.extract_strided_slice %2354 {offsets = [0, 1], sizes = [2, 14], strides = [1, 1]} : vector<2x15xf32> to vector<2x14xf32>
    %2358 = vector.extract_strided_slice %2354 {offsets = [0, 0], sizes = [2, 14], strides = [1, 1]} : vector<2x15xf32> to vector<2x14xf32>
    %2359 = arith.subf %2357, %2358 : vector<2x14xf32>
    %2360 = math.absf %2359 : vector<2x14xf32>
    %2361 = arith.addf %2350, %2360 : vector<2x14xf32>
    %2362 = arith.subf %2183, %2237 : vector<2x16xf32>
    %2363 = vector.extract_strided_slice %2362 {offsets = [0, 1], sizes = [2, 15], strides = [1, 1]} : vector<2x16xf32> to vector<2x15xf32>
    %2364 = vector.extract_strided_slice %2362 {offsets = [0, 0], sizes = [2, 15], strides = [1, 1]} : vector<2x16xf32> to vector<2x15xf32>
    %2365 = arith.subf %2363, %2364 : vector<2x15xf32>
    %2366 = math.absf %2365 : vector<2x15xf32>
    %2367 = arith.addf %2356, %2366 : vector<2x15xf32>
    %2368 = vector.extract_strided_slice %2365 {offsets = [0, 1], sizes = [2, 14], strides = [1, 1]} : vector<2x15xf32> to vector<2x14xf32>
    %2369 = vector.extract_strided_slice %2365 {offsets = [0, 0], sizes = [2, 14], strides = [1, 1]} : vector<2x15xf32> to vector<2x14xf32>
    %2370 = arith.subf %2368, %2369 : vector<2x14xf32>
    %2371 = math.absf %2370 : vector<2x14xf32>
    %2372 = arith.addf %2361, %2371 : vector<2x14xf32>
    %2373 = arith.subf %2186, %2240 : vector<2x16xf32>
    %2374 = vector.extract_strided_slice %2373 {offsets = [0, 1], sizes = [2, 15], strides = [1, 1]} : vector<2x16xf32> to vector<2x15xf32>
    %2375 = vector.extract_strided_slice %2373 {offsets = [0, 0], sizes = [2, 15], strides = [1, 1]} : vector<2x16xf32> to vector<2x15xf32>
    %2376 = arith.subf %2374, %2375 : vector<2x15xf32>
    %2377 = math.absf %2376 : vector<2x15xf32>
    %2378 = arith.addf %2367, %2377 : vector<2x15xf32>
    %2379 = vector.extract_strided_slice %2376 {offsets = [0, 1], sizes = [2, 14], strides = [1, 1]} : vector<2x15xf32> to vector<2x14xf32>
    %2380 = vector.extract_strided_slice %2376 {offsets = [0, 0], sizes = [2, 14], strides = [1, 1]} : vector<2x15xf32> to vector<2x14xf32>
    %2381 = arith.subf %2379, %2380 : vector<2x14xf32>
    %2382 = math.absf %2381 : vector<2x14xf32>
    %2383 = arith.addf %2372, %2382 : vector<2x14xf32>
    %2384 = arith.subf %2189, %2243 : vector<2x16xf32>
    %2385 = vector.extract_strided_slice %2384 {offsets = [0, 1], sizes = [2, 15], strides = [1, 1]} : vector<2x16xf32> to vector<2x15xf32>
    %2386 = vector.extract_strided_slice %2384 {offsets = [0, 0], sizes = [2, 15], strides = [1, 1]} : vector<2x16xf32> to vector<2x15xf32>
    %2387 = arith.subf %2385, %2386 : vector<2x15xf32>
    %2388 = math.absf %2387 : vector<2x15xf32>
    %2389 = arith.addf %2378, %2388 : vector<2x15xf32>
    %2390 = vector.extract_strided_slice %2387 {offsets = [0, 1], sizes = [2, 14], strides = [1, 1]} : vector<2x15xf32> to vector<2x14xf32>
    %2391 = vector.extract_strided_slice %2387 {offsets = [0, 0], sizes = [2, 14], strides = [1, 1]} : vector<2x15xf32> to vector<2x14xf32>
    %2392 = arith.subf %2390, %2391 : vector<2x14xf32>
    %2393 = math.absf %2392 : vector<2x14xf32>
    %2394 = arith.addf %2383, %2393 : vector<2x14xf32>
    %2395 = arith.subf %2192, %2246 : vector<2x16xf32>
    %2396 = vector.extract_strided_slice %2395 {offsets = [0, 1], sizes = [2, 15], strides = [1, 1]} : vector<2x16xf32> to vector<2x15xf32>
    %2397 = vector.extract_strided_slice %2395 {offsets = [0, 0], sizes = [2, 15], strides = [1, 1]} : vector<2x16xf32> to vector<2x15xf32>
    %2398 = arith.subf %2396, %2397 : vector<2x15xf32>
    %2399 = math.absf %2398 : vector<2x15xf32>
    %2400 = arith.addf %2389, %2399 : vector<2x15xf32>
    %2401 = vector.extract_strided_slice %2398 {offsets = [0, 1], sizes = [2, 14], strides = [1, 1]} : vector<2x15xf32> to vector<2x14xf32>
    %2402 = vector.extract_strided_slice %2398 {offsets = [0, 0], sizes = [2, 14], strides = [1, 1]} : vector<2x15xf32> to vector<2x14xf32>
    %2403 = arith.subf %2401, %2402 : vector<2x14xf32>
    %2404 = math.absf %2403 : vector<2x14xf32>
    %2405 = arith.addf %2394, %2404 : vector<2x14xf32>
    %cst_452 = arith.constant 0.000000e+00 : f32
    %2406 = vector.broadcast %cst_452 : f32 to vector<2x16xf32>
    %c57 = arith.constant 57 : index
    %c0_453 = arith.constant 0 : index
    %c0_454 = arith.constant 0 : index
    %2407 = vector.load %arg1[%c57, %c0_453, %c0_454] : memref<61x2x16xf32, #tpu.memory_space<vmem>>, vector<1x2x16xf32>
    %2408 = vector.shape_cast %2407 : vector<1x2x16xf32> to vector<2x16xf32>
    %c57_455 = arith.constant 57 : index
    %c0_456 = arith.constant 0 : index
    %c0_457 = arith.constant 0 : index
    %2409 = vector.load %arg2[%c57_455, %c0_456, %c0_457] : memref<61x2x16xf32, #tpu.memory_space<vmem>>, vector<1x2x16xf32>
    %2410 = vector.shape_cast %2409 : vector<1x2x16xf32> to vector<2x16xf32>
    %2411 = arith.subf %2408, %2410 : vector<2x16xf32>
    %2412 = arith.mulf %2411, %2411 : vector<2x16xf32>
    %2413 = arith.addf %2406, %2412 : vector<2x16xf32>
    %2414 = vector.extract_strided_slice %2408 {offsets = [0, 0], sizes = [2, 15], strides = [1, 1]} : vector<2x16xf32> to vector<2x15xf32>
    %cst_458 = arith.constant 0.949999988 : f32
    %2415 = vector.broadcast %cst_458 : f32 to vector<2x15xf32>
    %2416 = arith.cmpf ogt, %2414, %2415 : vector<2x15xf32>
    %2417 = arith.extui %2416 : vector<2x15xi1> to vector<2x15xi32>
    %2418 = arith.sitofp %2417 : vector<2x15xi32> to vector<2x15xf32>
    %c58 = arith.constant 58 : index
    %c0_459 = arith.constant 0 : index
    %c0_460 = arith.constant 0 : index
    %2419 = vector.load %arg1[%c58, %c0_459, %c0_460] : memref<61x2x16xf32, #tpu.memory_space<vmem>>, vector<1x2x16xf32>
    %2420 = vector.shape_cast %2419 : vector<1x2x16xf32> to vector<2x16xf32>
    %c58_461 = arith.constant 58 : index
    %c0_462 = arith.constant 0 : index
    %c0_463 = arith.constant 0 : index
    %2421 = vector.load %arg2[%c58_461, %c0_462, %c0_463] : memref<61x2x16xf32, #tpu.memory_space<vmem>>, vector<1x2x16xf32>
    %2422 = vector.shape_cast %2421 : vector<1x2x16xf32> to vector<2x16xf32>
    %2423 = arith.subf %2420, %2422 : vector<2x16xf32>
    %2424 = arith.mulf %2423, %2423 : vector<2x16xf32>
    %2425 = arith.addf %2413, %2424 : vector<2x16xf32>
    %2426 = vector.extract_strided_slice %2420 {offsets = [0, 0], sizes = [2, 15], strides = [1, 1]} : vector<2x16xf32> to vector<2x15xf32>
    %cst_464 = arith.constant 0.949999988 : f32
    %2427 = vector.broadcast %cst_464 : f32 to vector<2x15xf32>
    %2428 = arith.cmpf ogt, %2426, %2427 : vector<2x15xf32>
    %2429 = arith.extui %2428 : vector<2x15xi1> to vector<2x15xi32>
    %2430 = arith.sitofp %2429 : vector<2x15xi32> to vector<2x15xf32>
    %c59 = arith.constant 59 : index
    %c0_465 = arith.constant 0 : index
    %c0_466 = arith.constant 0 : index
    %2431 = vector.load %arg1[%c59, %c0_465, %c0_466] : memref<61x2x16xf32, #tpu.memory_space<vmem>>, vector<1x2x16xf32>
    %2432 = vector.shape_cast %2431 : vector<1x2x16xf32> to vector<2x16xf32>
    %c59_467 = arith.constant 59 : index
    %c0_468 = arith.constant 0 : index
    %c0_469 = arith.constant 0 : index
    %2433 = vector.load %arg2[%c59_467, %c0_468, %c0_469] : memref<61x2x16xf32, #tpu.memory_space<vmem>>, vector<1x2x16xf32>
    %2434 = vector.shape_cast %2433 : vector<1x2x16xf32> to vector<2x16xf32>
    %2435 = arith.subf %2432, %2434 : vector<2x16xf32>
    %2436 = arith.mulf %2435, %2435 : vector<2x16xf32>
    %2437 = arith.addf %2425, %2436 : vector<2x16xf32>
    %2438 = vector.extract_strided_slice %2432 {offsets = [0, 0], sizes = [2, 15], strides = [1, 1]} : vector<2x16xf32> to vector<2x15xf32>
    %cst_470 = arith.constant 0.949999988 : f32
    %2439 = vector.broadcast %cst_470 : f32 to vector<2x15xf32>
    %2440 = arith.cmpf ogt, %2438, %2439 : vector<2x15xf32>
    %2441 = arith.extui %2440 : vector<2x15xi1> to vector<2x15xi32>
    %2442 = arith.sitofp %2441 : vector<2x15xi32> to vector<2x15xf32>
    %c60 = arith.constant 60 : index
    %c0_471 = arith.constant 0 : index
    %c0_472 = arith.constant 0 : index
    %2443 = vector.load %arg1[%c60, %c0_471, %c0_472] : memref<61x2x16xf32, #tpu.memory_space<vmem>>, vector<1x2x16xf32>
    %2444 = vector.shape_cast %2443 : vector<1x2x16xf32> to vector<2x16xf32>
    %c60_473 = arith.constant 60 : index
    %c0_474 = arith.constant 0 : index
    %c0_475 = arith.constant 0 : index
    %2445 = vector.load %arg2[%c60_473, %c0_474, %c0_475] : memref<61x2x16xf32, #tpu.memory_space<vmem>>, vector<1x2x16xf32>
    %2446 = vector.shape_cast %2445 : vector<1x2x16xf32> to vector<2x16xf32>
    %2447 = arith.subf %2444, %2446 : vector<2x16xf32>
    %2448 = arith.mulf %2447, %2447 : vector<2x16xf32>
    %2449 = arith.addf %2437, %2448 : vector<2x16xf32>
    %2450 = vector.extract_strided_slice %2444 {offsets = [0, 0], sizes = [2, 15], strides = [1, 1]} : vector<2x16xf32> to vector<2x15xf32>
    %cst_476 = arith.constant 0.949999988 : f32
    %2451 = vector.broadcast %cst_476 : f32 to vector<2x15xf32>
    %2452 = arith.cmpf ogt, %2450, %2451 : vector<2x15xf32>
    %2453 = arith.extui %2452 : vector<2x15xi1> to vector<2x15xi32>
    %2454 = arith.sitofp %2453 : vector<2x15xi32> to vector<2x15xf32>
    %c0_477 = arith.constant 0 : index
    %c0_478 = arith.constant 0 : index
    %c0_479 = arith.constant 0 : index
    %2455 = vector.load %arg3[%c0_477, %c0_478, %c0_479] : memref<36x2x16xf32, #tpu.memory_space<vmem>>, vector<36x2x16xf32>
    %c0_480 = arith.constant 0 : index
    %c0_481 = arith.constant 0 : index
    %c0_482 = arith.constant 0 : index
    %2456 = vector.load %arg4[%c0_480, %c0_481, %c0_482] : memref<36x2x16xf32, #tpu.memory_space<vmem>>, vector<36x2x16xf32>
    %2457 = arith.subf %2455, %2456 : vector<36x2x16xf32>
    %2458 = arith.mulf %2457, %2457 : vector<36x2x16xf32>
    %cst_483 = arith.constant dense<0.000000e+00> : vector<2x16xf32>
    %2459 = vector.multi_reduction <add>, %2458, %cst_483 [0] : vector<36x2x16xf32> to vector<2x16xf32>
    %cst_484 = arith.constant 0.000000e+00 : f32
    %2460 = vector.broadcast %cst_484 : f32 to vector<2x15xf32>
    %c21_485 = arith.constant 21 : index
    %c0_486 = arith.constant 0 : index
    %c0_487 = arith.constant 0 : index
    %2461 = vector.load %arg3[%c21_485, %c0_486, %c0_487] : memref<36x2x16xf32, #tpu.memory_space<vmem>>, vector<1x2x16xf32>
    %2462 = vector.shape_cast %2461 : vector<1x2x16xf32> to vector<2x16xf32>
    %2463 = vector.extract_strided_slice %2462 {offsets = [0, 1], sizes = [2, 15], strides = [1, 1]} : vector<2x16xf32> to vector<2x15xf32>
    %2464 = vector.extract_strided_slice %2462 {offsets = [0, 0], sizes = [2, 15], strides = [1, 1]} : vector<2x16xf32> to vector<2x15xf32>
    %2465 = arith.subf %2463, %2464 : vector<2x15xf32>
    %2466 = math.absf %2465 : vector<2x15xf32>
    %2467 = arith.mulf %2466, %2418 : vector<2x15xf32>
    %2468 = arith.addf %2460, %2467 : vector<2x15xf32>
    %c22_488 = arith.constant 22 : index
    %c0_489 = arith.constant 0 : index
    %c0_490 = arith.constant 0 : index
    %2469 = vector.load %arg3[%c22_488, %c0_489, %c0_490] : memref<36x2x16xf32, #tpu.memory_space<vmem>>, vector<1x2x16xf32>
    %2470 = vector.shape_cast %2469 : vector<1x2x16xf32> to vector<2x16xf32>
    %2471 = vector.extract_strided_slice %2470 {offsets = [0, 1], sizes = [2, 15], strides = [1, 1]} : vector<2x16xf32> to vector<2x15xf32>
    %2472 = vector.extract_strided_slice %2470 {offsets = [0, 0], sizes = [2, 15], strides = [1, 1]} : vector<2x16xf32> to vector<2x15xf32>
    %2473 = arith.subf %2471, %2472 : vector<2x15xf32>
    %2474 = math.absf %2473 : vector<2x15xf32>
    %2475 = arith.mulf %2474, %2418 : vector<2x15xf32>
    %2476 = arith.addf %2468, %2475 : vector<2x15xf32>
    %c23_491 = arith.constant 23 : index
    %c0_492 = arith.constant 0 : index
    %c0_493 = arith.constant 0 : index
    %2477 = vector.load %arg3[%c23_491, %c0_492, %c0_493] : memref<36x2x16xf32, #tpu.memory_space<vmem>>, vector<1x2x16xf32>
    %2478 = vector.shape_cast %2477 : vector<1x2x16xf32> to vector<2x16xf32>
    %2479 = vector.extract_strided_slice %2478 {offsets = [0, 1], sizes = [2, 15], strides = [1, 1]} : vector<2x16xf32> to vector<2x15xf32>
    %2480 = vector.extract_strided_slice %2478 {offsets = [0, 0], sizes = [2, 15], strides = [1, 1]} : vector<2x16xf32> to vector<2x15xf32>
    %2481 = arith.subf %2479, %2480 : vector<2x15xf32>
    %2482 = math.absf %2481 : vector<2x15xf32>
    %2483 = arith.mulf %2482, %2418 : vector<2x15xf32>
    %2484 = arith.addf %2476, %2483 : vector<2x15xf32>
    %c24_494 = arith.constant 24 : index
    %c0_495 = arith.constant 0 : index
    %c0_496 = arith.constant 0 : index
    %2485 = vector.load %arg3[%c24_494, %c0_495, %c0_496] : memref<36x2x16xf32, #tpu.memory_space<vmem>>, vector<1x2x16xf32>
    %2486 = vector.shape_cast %2485 : vector<1x2x16xf32> to vector<2x16xf32>
    %2487 = vector.extract_strided_slice %2486 {offsets = [0, 1], sizes = [2, 15], strides = [1, 1]} : vector<2x16xf32> to vector<2x15xf32>
    %2488 = vector.extract_strided_slice %2486 {offsets = [0, 0], sizes = [2, 15], strides = [1, 1]} : vector<2x16xf32> to vector<2x15xf32>
    %2489 = arith.subf %2487, %2488 : vector<2x15xf32>
    %2490 = math.absf %2489 : vector<2x15xf32>
    %2491 = arith.mulf %2490, %2430 : vector<2x15xf32>
    %2492 = arith.addf %2484, %2491 : vector<2x15xf32>
    %c25_497 = arith.constant 25 : index
    %c0_498 = arith.constant 0 : index
    %c0_499 = arith.constant 0 : index
    %2493 = vector.load %arg3[%c25_497, %c0_498, %c0_499] : memref<36x2x16xf32, #tpu.memory_space<vmem>>, vector<1x2x16xf32>
    %2494 = vector.shape_cast %2493 : vector<1x2x16xf32> to vector<2x16xf32>
    %2495 = vector.extract_strided_slice %2494 {offsets = [0, 1], sizes = [2, 15], strides = [1, 1]} : vector<2x16xf32> to vector<2x15xf32>
    %2496 = vector.extract_strided_slice %2494 {offsets = [0, 0], sizes = [2, 15], strides = [1, 1]} : vector<2x16xf32> to vector<2x15xf32>
    %2497 = arith.subf %2495, %2496 : vector<2x15xf32>
    %2498 = math.absf %2497 : vector<2x15xf32>
    %2499 = arith.mulf %2498, %2430 : vector<2x15xf32>
    %2500 = arith.addf %2492, %2499 : vector<2x15xf32>
    %c26_500 = arith.constant 26 : index
    %c0_501 = arith.constant 0 : index
    %c0_502 = arith.constant 0 : index
    %2501 = vector.load %arg3[%c26_500, %c0_501, %c0_502] : memref<36x2x16xf32, #tpu.memory_space<vmem>>, vector<1x2x16xf32>
    %2502 = vector.shape_cast %2501 : vector<1x2x16xf32> to vector<2x16xf32>
    %2503 = vector.extract_strided_slice %2502 {offsets = [0, 1], sizes = [2, 15], strides = [1, 1]} : vector<2x16xf32> to vector<2x15xf32>
    %2504 = vector.extract_strided_slice %2502 {offsets = [0, 0], sizes = [2, 15], strides = [1, 1]} : vector<2x16xf32> to vector<2x15xf32>
    %2505 = arith.subf %2503, %2504 : vector<2x15xf32>
    %2506 = math.absf %2505 : vector<2x15xf32>
    %2507 = arith.mulf %2506, %2430 : vector<2x15xf32>
    %2508 = arith.addf %2500, %2507 : vector<2x15xf32>
    %c30_503 = arith.constant 30 : index
    %c0_504 = arith.constant 0 : index
    %c0_505 = arith.constant 0 : index
    %2509 = vector.load %arg3[%c30_503, %c0_504, %c0_505] : memref<36x2x16xf32, #tpu.memory_space<vmem>>, vector<1x2x16xf32>
    %2510 = vector.shape_cast %2509 : vector<1x2x16xf32> to vector<2x16xf32>
    %2511 = vector.extract_strided_slice %2510 {offsets = [0, 1], sizes = [2, 15], strides = [1, 1]} : vector<2x16xf32> to vector<2x15xf32>
    %2512 = vector.extract_strided_slice %2510 {offsets = [0, 0], sizes = [2, 15], strides = [1, 1]} : vector<2x16xf32> to vector<2x15xf32>
    %2513 = arith.subf %2511, %2512 : vector<2x15xf32>
    %2514 = math.absf %2513 : vector<2x15xf32>
    %2515 = arith.mulf %2514, %2442 : vector<2x15xf32>
    %2516 = arith.addf %2508, %2515 : vector<2x15xf32>
    %c31_506 = arith.constant 31 : index
    %c0_507 = arith.constant 0 : index
    %c0_508 = arith.constant 0 : index
    %2517 = vector.load %arg3[%c31_506, %c0_507, %c0_508] : memref<36x2x16xf32, #tpu.memory_space<vmem>>, vector<1x2x16xf32>
    %2518 = vector.shape_cast %2517 : vector<1x2x16xf32> to vector<2x16xf32>
    %2519 = vector.extract_strided_slice %2518 {offsets = [0, 1], sizes = [2, 15], strides = [1, 1]} : vector<2x16xf32> to vector<2x15xf32>
    %2520 = vector.extract_strided_slice %2518 {offsets = [0, 0], sizes = [2, 15], strides = [1, 1]} : vector<2x16xf32> to vector<2x15xf32>
    %2521 = arith.subf %2519, %2520 : vector<2x15xf32>
    %2522 = math.absf %2521 : vector<2x15xf32>
    %2523 = arith.mulf %2522, %2442 : vector<2x15xf32>
    %2524 = arith.addf %2516, %2523 : vector<2x15xf32>
    %c32_509 = arith.constant 32 : index
    %c0_510 = arith.constant 0 : index
    %c0_511 = arith.constant 0 : index
    %2525 = vector.load %arg3[%c32_509, %c0_510, %c0_511] : memref<36x2x16xf32, #tpu.memory_space<vmem>>, vector<1x2x16xf32>
    %2526 = vector.shape_cast %2525 : vector<1x2x16xf32> to vector<2x16xf32>
    %2527 = vector.extract_strided_slice %2526 {offsets = [0, 1], sizes = [2, 15], strides = [1, 1]} : vector<2x16xf32> to vector<2x15xf32>
    %2528 = vector.extract_strided_slice %2526 {offsets = [0, 0], sizes = [2, 15], strides = [1, 1]} : vector<2x16xf32> to vector<2x15xf32>
    %2529 = arith.subf %2527, %2528 : vector<2x15xf32>
    %2530 = math.absf %2529 : vector<2x15xf32>
    %2531 = arith.mulf %2530, %2442 : vector<2x15xf32>
    %2532 = arith.addf %2524, %2531 : vector<2x15xf32>
    %c33_512 = arith.constant 33 : index
    %c0_513 = arith.constant 0 : index
    %c0_514 = arith.constant 0 : index
    %2533 = vector.load %arg3[%c33_512, %c0_513, %c0_514] : memref<36x2x16xf32, #tpu.memory_space<vmem>>, vector<1x2x16xf32>
    %2534 = vector.shape_cast %2533 : vector<1x2x16xf32> to vector<2x16xf32>
    %2535 = vector.extract_strided_slice %2534 {offsets = [0, 1], sizes = [2, 15], strides = [1, 1]} : vector<2x16xf32> to vector<2x15xf32>
    %2536 = vector.extract_strided_slice %2534 {offsets = [0, 0], sizes = [2, 15], strides = [1, 1]} : vector<2x16xf32> to vector<2x15xf32>
    %2537 = arith.subf %2535, %2536 : vector<2x15xf32>
    %2538 = math.absf %2537 : vector<2x15xf32>
    %2539 = arith.mulf %2538, %2454 : vector<2x15xf32>
    %2540 = arith.addf %2532, %2539 : vector<2x15xf32>
    %c34_515 = arith.constant 34 : index
    %c0_516 = arith.constant 0 : index
    %c0_517 = arith.constant 0 : index
    %2541 = vector.load %arg3[%c34_515, %c0_516, %c0_517] : memref<36x2x16xf32, #tpu.memory_space<vmem>>, vector<1x2x16xf32>
    %2542 = vector.shape_cast %2541 : vector<1x2x16xf32> to vector<2x16xf32>
    %2543 = vector.extract_strided_slice %2542 {offsets = [0, 1], sizes = [2, 15], strides = [1, 1]} : vector<2x16xf32> to vector<2x15xf32>
    %2544 = vector.extract_strided_slice %2542 {offsets = [0, 0], sizes = [2, 15], strides = [1, 1]} : vector<2x16xf32> to vector<2x15xf32>
    %2545 = arith.subf %2543, %2544 : vector<2x15xf32>
    %2546 = math.absf %2545 : vector<2x15xf32>
    %2547 = arith.mulf %2546, %2454 : vector<2x15xf32>
    %2548 = arith.addf %2540, %2547 : vector<2x15xf32>
    %c35_518 = arith.constant 35 : index
    %c0_519 = arith.constant 0 : index
    %c0_520 = arith.constant 0 : index
    %2549 = vector.load %arg3[%c35_518, %c0_519, %c0_520] : memref<36x2x16xf32, #tpu.memory_space<vmem>>, vector<1x2x16xf32>
    %2550 = vector.shape_cast %2549 : vector<1x2x16xf32> to vector<2x16xf32>
    %2551 = vector.extract_strided_slice %2550 {offsets = [0, 1], sizes = [2, 15], strides = [1, 1]} : vector<2x16xf32> to vector<2x15xf32>
    %2552 = vector.extract_strided_slice %2550 {offsets = [0, 0], sizes = [2, 15], strides = [1, 1]} : vector<2x16xf32> to vector<2x15xf32>
    %2553 = arith.subf %2551, %2552 : vector<2x15xf32>
    %2554 = math.absf %2553 : vector<2x15xf32>
    %2555 = arith.mulf %2554, %2454 : vector<2x15xf32>
    %2556 = arith.addf %2548, %2555 : vector<2x15xf32>
    %2557 = vector.shape_cast %2306 : vector<2x16xf32> to vector<1x2x16xf32>
    %cst_521 = arith.constant dense<0.000000e+00> : vector<1xf32>
    %2558 = vector.multi_reduction <add>, %2557, %cst_521 [1, 2] : vector<1x2x16xf32> to vector<1xf32>
    %2559 = vector.shape_cast %2558 : vector<1xf32> to vector<1x1x1xf32>
    %2560 = vector.extract %2559[0, 0, 0] : f32 from vector<1x1x1xf32>
    %2561 = vector.broadcast %2560 : f32 to vector<1x1xf32>
    %2562 = vector.shape_cast %2449 : vector<2x16xf32> to vector<1x2x16xf32>
    %cst_522 = arith.constant dense<0.000000e+00> : vector<1xf32>
    %2563 = vector.multi_reduction <add>, %2562, %cst_522 [1, 2] : vector<1x2x16xf32> to vector<1xf32>
    %2564 = vector.shape_cast %2563 : vector<1xf32> to vector<1x1x1xf32>
    %2565 = vector.extract %2564[0, 0, 0] : f32 from vector<1x1x1xf32>
    %2566 = vector.broadcast %2565 : f32 to vector<1x1xf32>
    %2567 = vector.shape_cast %2400 : vector<2x15xf32> to vector<1x2x15xf32>
    %cst_523 = arith.constant dense<0.000000e+00> : vector<1xf32>
    %2568 = vector.multi_reduction <add>, %2567, %cst_523 [1, 2] : vector<1x2x15xf32> to vector<1xf32>
    %2569 = vector.shape_cast %2568 : vector<1xf32> to vector<1x1x1xf32>
    %2570 = vector.extract %2569[0, 0, 0] : f32 from vector<1x1x1xf32>
    %2571 = vector.broadcast %2570 : f32 to vector<1x1xf32>
    %2572 = vector.shape_cast %2405 : vector<2x14xf32> to vector<1x2x14xf32>
    %cst_524 = arith.constant dense<0.000000e+00> : vector<1xf32>
    %2573 = vector.multi_reduction <add>, %2572, %cst_524 [1, 2] : vector<1x2x14xf32> to vector<1xf32>
    %2574 = vector.shape_cast %2573 : vector<1xf32> to vector<1x1x1xf32>
    %2575 = vector.extract %2574[0, 0, 0] : f32 from vector<1x1x1xf32>
    %2576 = vector.broadcast %2575 : f32 to vector<1x1xf32>
    %2577 = vector.shape_cast %2459 : vector<2x16xf32> to vector<1x2x16xf32>
    %cst_525 = arith.constant dense<0.000000e+00> : vector<1xf32>
    %2578 = vector.multi_reduction <add>, %2577, %cst_525 [1, 2] : vector<1x2x16xf32> to vector<1xf32>
    %2579 = vector.shape_cast %2578 : vector<1xf32> to vector<1x1x1xf32>
    %2580 = vector.extract %2579[0, 0, 0] : f32 from vector<1x1x1xf32>
    %2581 = vector.broadcast %2580 : f32 to vector<1x1xf32>
    %2582 = vector.shape_cast %2556 : vector<2x15xf32> to vector<1x2x15xf32>
    %cst_526 = arith.constant dense<0.000000e+00> : vector<1xf32>
    %2583 = vector.multi_reduction <add>, %2582, %cst_526 [1, 2] : vector<1x2x15xf32> to vector<1xf32>
    %2584 = vector.shape_cast %2583 : vector<1xf32> to vector<1x1x1xf32>
    %2585 = vector.extract %2584[0, 0, 0] : f32 from vector<1x1x1xf32>
    %2586 = vector.broadcast %2585 : f32 to vector<1x1xf32>
    %2587 = tpu.iota {dimensions = array<i32: 0>} : vector<8x128xi32>
    %c0_i32 = arith.constant 0 : i32
    %2588 = vector.broadcast %c0_i32 : i32 to vector<8x128xi32>
    %2589 = arith.cmpi eq, %2587, %2588 : vector<8x128xi32>
    %cst_527 = arith.constant 0.000000e+00 : f32
    %2590 = vector.shape_cast %2561 : vector<1x1xf32> to vector<1x1xf32>
    %2591 = vector.broadcast %2590 : vector<1x1xf32> to vector<8x128xf32>
    %2592 = vector.broadcast %cst_527 : f32 to vector<8x128xf32>
    %2593 = arith.select %2589, %2591, %2592 : vector<8x128xi1>, vector<8x128xf32>
    %c1_i32 = arith.constant 1 : i32
    %2594 = vector.broadcast %c1_i32 : i32 to vector<8x128xi32>
    %2595 = arith.cmpi eq, %2587, %2594 : vector<8x128xi32>
    %cst_528 = arith.constant 0.000000e+00 : f32
    %2596 = vector.shape_cast %2566 : vector<1x1xf32> to vector<1x1xf32>
    %2597 = vector.broadcast %2596 : vector<1x1xf32> to vector<8x128xf32>
    %2598 = vector.broadcast %cst_528 : f32 to vector<8x128xf32>
    %2599 = arith.select %2595, %2597, %2598 : vector<8x128xi1>, vector<8x128xf32>
    %2600 = arith.addf %2593, %2599 : vector<8x128xf32>
    %c2_i32 = arith.constant 2 : i32
    %2601 = vector.broadcast %c2_i32 : i32 to vector<8x128xi32>
    %2602 = arith.cmpi eq, %2587, %2601 : vector<8x128xi32>
    %cst_529 = arith.constant 0.000000e+00 : f32
    %2603 = vector.shape_cast %2571 : vector<1x1xf32> to vector<1x1xf32>
    %2604 = vector.broadcast %2603 : vector<1x1xf32> to vector<8x128xf32>
    %2605 = vector.broadcast %cst_529 : f32 to vector<8x128xf32>
    %2606 = arith.select %2602, %2604, %2605 : vector<8x128xi1>, vector<8x128xf32>
    %2607 = arith.addf %2600, %2606 : vector<8x128xf32>
    %c3_i32 = arith.constant 3 : i32
    %2608 = vector.broadcast %c3_i32 : i32 to vector<8x128xi32>
    %2609 = arith.cmpi eq, %2587, %2608 : vector<8x128xi32>
    %cst_530 = arith.constant 0.000000e+00 : f32
    %2610 = vector.shape_cast %2576 : vector<1x1xf32> to vector<1x1xf32>
    %2611 = vector.broadcast %2610 : vector<1x1xf32> to vector<8x128xf32>
    %2612 = vector.broadcast %cst_530 : f32 to vector<8x128xf32>
    %2613 = arith.select %2609, %2611, %2612 : vector<8x128xi1>, vector<8x128xf32>
    %2614 = arith.addf %2607, %2613 : vector<8x128xf32>
    %c4_i32 = arith.constant 4 : i32
    %2615 = vector.broadcast %c4_i32 : i32 to vector<8x128xi32>
    %2616 = arith.cmpi eq, %2587, %2615 : vector<8x128xi32>
    %cst_531 = arith.constant 0.000000e+00 : f32
    %2617 = vector.shape_cast %2581 : vector<1x1xf32> to vector<1x1xf32>
    %2618 = vector.broadcast %2617 : vector<1x1xf32> to vector<8x128xf32>
    %2619 = vector.broadcast %cst_531 : f32 to vector<8x128xf32>
    %2620 = arith.select %2616, %2618, %2619 : vector<8x128xi1>, vector<8x128xf32>
    %2621 = arith.addf %2614, %2620 : vector<8x128xf32>
    %c5_i32 = arith.constant 5 : i32
    %2622 = vector.broadcast %c5_i32 : i32 to vector<8x128xi32>
    %2623 = arith.cmpi eq, %2587, %2622 : vector<8x128xi32>
    %cst_532 = arith.constant 0.000000e+00 : f32
    %2624 = vector.shape_cast %2586 : vector<1x1xf32> to vector<1x1xf32>
    %2625 = vector.broadcast %2624 : vector<1x1xf32> to vector<8x128xf32>
    %2626 = vector.broadcast %cst_532 : f32 to vector<8x128xf32>
    %2627 = arith.select %2623, %2625, %2626 : vector<8x128xi1>, vector<8x128xf32>
    %2628 = arith.addf %2621, %2627 : vector<8x128xf32>
    %c0_533 = arith.constant 0 : index
    %c0_534 = arith.constant 0 : index
    %c0_535 = arith.constant 0 : index
    %2629 = vector.load %arg5[%c0_533, %c0_534, %c0_535] : memref<1x8x128xf32, #tpu.memory_space<vmem>>, vector<1x8x128xf32>
    %2630 = vector.shape_cast %2629 : vector<1x8x128xf32> to vector<8x128xf32>
    %2631 = vector.shape_cast %2628 : vector<8x128xf32> to vector<1x8x128xf32>
    tpu.vector_store %arg5[%c0_533, %c0_534, %c0_535], %2631 {strides = array<i32>} : memref<1x8x128xf32, #tpu.memory_space<vmem>>, vector<1x8x128xf32>,
    return
  }
  func.func @transform_0(%arg0: i32) -> (i32, i32, i32) {
    %c0_i32 = arith.constant 0 : i32
    %c0_i32_0 = arith.constant 0 : i32
    %c0_i32_1 = arith.constant 0 : i32
    return %c0_i32, %arg0, %c0_i32_0 : i32, i32, i32
  }
  func.func @transform_1(%arg0: i32) -> (i32, i32, i32) {
    %c0_i32 = arith.constant 0 : i32
    %c0_i32_0 = arith.constant 0 : i32
    %c0_i32_1 = arith.constant 0 : i32
    return %c0_i32, %arg0, %c0_i32_0 : i32, i32, i32
  }
  func.func @transform_2(%arg0: i32) -> (i32, i32, i32) {
    %c0_i32 = arith.constant 0 : i32
    %c0_i32_0 = arith.constant 0 : i32
    %c0_i32_1 = arith.constant 0 : i32
    return %c0_i32, %arg0, %c0_i32_0 : i32, i32, i32
  }
  func.func @transform_3(%arg0: i32) -> (i32, i32, i32) {
    %c0_i32 = arith.constant 0 : i32
    %c0_i32_0 = arith.constant 0 : i32
    %c0_i32_1 = arith.constant 0 : i32
    return %c0_i32, %arg0, %c0_i32_0 : i32, i32, i32
  }
  func.func @transform_4(%arg0: i32) -> (i32, i32, i32) {
    %c0_i32 = arith.constant 0 : i32
    %c0_i32_0 = arith.constant 0 : i32
    %c0_i32_1 = arith.constant 0 : i32
    return %arg0, %c0_i32, %c0_i32_0 : i32, i32, i32
  }
}

</mosaic_0001>

<llo_original>
// kernel: tpu_custom_call.1
$region0: #{tpu_custom_call.1}
  #allocation0 [shape = 'u32[]', space=smem, size = 0x4, offset = 0x4, fixed_abs, tag = 'smem constant byte address 0x4 - core index']
  #allocation1 [shape = 'u32[72,128]{1,0:T(1,128)}', space=vmem, size = 0x9000, scoped, tag = 'internal scratch']
  %s0 = inlined_call_operand.vmem [shape: f32[61,2,16], index: 0, kind: input, shape index: {}]
  %s1 = inlined_call_operand.vmem [shape: f32[61,2,16], index: 1, kind: input, shape index: {}]
  %s2 = inlined_call_operand.vmem [shape: f32[36,2,16], index: 2, kind: input, shape index: {}]
  %s3 = inlined_call_operand.vmem [shape: f32[36,2,16], index: 3, kind: input, shape index: {}]
  %s4 = inlined_call_operand.hbm [shape: f32[1,8,128], index: 4, kind: output, shape index: {}]
  %s5 = sld [smem:[#allocation0]]
  $region26: #{tpu_custom_call.1} parent=0
    _
  %s7 = ssub.s32 1, %s5
  %s8 = scalar_select 0, %s7, %s5
  $region1: #{tpu_custom_call.1} parent=0
    #allocation2 [shape = 'u8[4096]{0}', space=vmem, size = 0x1000, scoped, tag = 'output window, operand 0, single buffered']
    #allocation3 [shape = 's32[1]{0}', space=sflag, size = 0x4, scoped, tag = 'scoped memory for tpu_custom_call.1']
    %9 = vsyncpa [#allocation3], 0
    // Predicated region
    $region2: #{tpu_custom_call.1} parent=1 // pred_check
      _
    $region3: #{tpu_custom_call.1} parent=1 // pred_check_branch
      %11 = sbr.rel (0) target = $region5
    $region4: #{tpu_custom_call.1} parent=1 // pred_region
      _
    $region5: #{tpu_custom_call.1} parent=1 // pred_fallthru
      _
    // Predicated region
    $region6: #{tpu_custom_call.1} parent=1 // pred_check
      _
    $region7: #{tpu_custom_call.1} parent=1 // pred_check_branch
      %13 = sbr.rel (0) target = $region9
    $region8: #{tpu_custom_call.1} parent=1 // pred_region
      _
    $region9: #{tpu_custom_call.1} parent=1 // pred_fallthru
      _
    // Predicated region
    $region10: #{tpu_custom_call.1} parent=1 // pred_check
      _
    $region11: #{tpu_custom_call.1} parent=1 // pred_check_branch
      %15 = sbr.rel (0) target = $region13
    $region12: #{tpu_custom_call.1} parent=1 // pred_region
      _
    $region13: #{tpu_custom_call.1} parent=1 // pred_fallthru
      _
    // Predicated region
    $region14: #{tpu_custom_call.1} parent=1 // pred_check
      _
    $region15: #{tpu_custom_call.1} parent=1 // pred_check_branch
      %17 = sbr.rel (0) target = $region17
    $region16: #{tpu_custom_call.1} parent=1 // pred_region
      _
    $region17: #{tpu_custom_call.1} parent=1 // pred_fallthru
      _
    %v18 = vld [vmem:[%s0] sm:$0x3]
    %s19 = scalar_lea.vmem %s0, 2
    %v20 = vld [vmem:[%s19] sm:$0x3]
    %s21 = scalar_lea.vmem %s0, 4
    %v22 = vld [vmem:[%s21] sm:$0x3]
    %s23 = scalar_lea.vmem %s0, 6
    %v24 = vld [vmem:[%s23] sm:$0x3]
    %s25 = scalar_lea.vmem %s0, 8
    %v26 = vld [vmem:[%s25] sm:$0x3]
    %s27 = scalar_lea.vmem %s0, 10
    %v28 = vld [vmem:[%s27] sm:$0x3]
    %v29 = vmul.f32 %v18, %v18
    %v30 = vmul.f32 %v20, %v20
    %v31 = vadd.f32 %v29, %v30
    %v32 = vmul.f32 %v22, %v22
    %v33 = vadd.f32 %v31, %v32
    %v34 = vmax.f32 %v33, 1e-24
    %v35 = vrsqrt.pop %v34
    %v36 = vmul.f32 %v35, %v34
    %v37 = vmul.f32 %v36, %v35
    %v38 = vmul.f32 0.5, %v37
    %v39 = vsub.f32 1.5, %v38
    %v40 = vmul.f32 %v35, %v39
    %vm41 = vweird.f32 %v34
    %vm42 = vweird.f32 %v35
    %vm43 = vmor %vm41, %vm42
    %v44 = vsel %vm43, %v35, %v40
    %v45 = vmul.f32 %v18, %v44
    %v46 = vmul.f32 %v20, %v44
    %v47 = vmul.f32 %v22, %v44
    %v48 = vmul.f32 %v45, %v24
    %v49 = vmul.f32 %v46, %v26
    %v50 = vadd.f32 %v48, %v49
    %v51 = vmul.f32 %v47, %v28
    %v52 = vadd.f32 %v50, %v51
    %v53 = vmul.f32 %v52, %v45
    %v54 = vsub.f32 %v24, %v53
    %v55 = vmul.f32 %v52, %v46
    %v56 = vsub.f32 %v26, %v55
    %v57 = vmul.f32 %v52, %v47
    %v58 = vsub.f32 %v28, %v57
    %v59 = vmul.f32 %v54, %v54
    %v60 = vmul.f32 %v56, %v56
    %v61 = vadd.f32 %v59, %v60
    %v62 = vmul.f32 %v58, %v58
    %v63 = vadd.f32 %v61, %v62
    %v64 = vmax.f32 %v63, 1e-24
    %v65 = vrsqrt.pop %v64
    %v66 = vmul.f32 %v65, %v64
    %v67 = vmul.f32 %v66, %v65
    %v68 = vmul.f32 0.5, %v67
    %v69 = vsub.f32 1.5, %v68
    %v70 = vmul.f32 %v65, %v69
    %vm71 = vweird.f32 %v64
    %vm72 = vweird.f32 %v65
    %vm73 = vmor %vm71, %vm72
    %v74 = vsel %vm73, %v65, %v70
    %v75 = vmul.f32 %v54, %v74
    %v76 = vmul.f32 %v56, %v74
    %v77 = vmul.f32 %v58, %v74
    %v78 = vmul.f32 %v46, %v77
    %v79 = vmul.f32 %v47, %v76
    %v80 = vsub.f32 %v78, %v79
    %v81 = vmul.f32 %v47, %v75
    %v82 = vmul.f32 %v45, %v77
    %v83 = vsub.f32 %v81, %v82
    %v84 = vmul.f32 %v45, %v76
    %v85 = vmul.f32 %v46, %v75
    %v86 = vsub.f32 %v84, %v85
    %v87 = vld [vmem:[%s1] sm:$0x3]
    %s88 = scalar_lea.vmem %s1, 2
    %v89 = vld [vmem:[%s88] sm:$0x3]
    %s90 = scalar_lea.vmem %s1, 4
    %v91 = vld [vmem:[%s90] sm:$0x3]
    %s92 = scalar_lea.vmem %s1, 6
    %v93 = vld [vmem:[%s92] sm:$0x3]
    %s94 = scalar_lea.vmem %s1, 8
    %v95 = vld [vmem:[%s94] sm:$0x3]
    %s96 = scalar_lea.vmem %s1, 10
    %v97 = vld [vmem:[%s96] sm:$0x3]
    %v98 = vmul.f32 %v87, %v87
    %v99 = vmul.f32 %v89, %v89
    %v100 = vadd.f32 %v98, %v99
    %v101 = vmul.f32 %v91, %v91
    %v102 = vadd.f32 %v100, %v101
    %v103 = vmax.f32 %v102, 1e-24
    %v104 = vrsqrt.pop %v103
    %v105 = vmul.f32 %v104, %v103
    %v106 = vmul.f32 %v105, %v104
    %v107 = vmul.f32 0.5, %v106
    %v108 = vsub.f32 1.5, %v107
    %v109 = vmul.f32 %v104, %v108
    %vm110 = vweird.f32 %v103
    %vm111 = vweird.f32 %v104
    %vm112 = vmor %vm110, %vm111
    %v113 = vsel %vm112, %v104, %v109
    %v114 = vmul.f32 %v87, %v113
    %v115 = vmul.f32 %v89, %v113
    %v116 = vmul.f32 %v91, %v113
    %v117 = vmul.f32 %v114, %v93
    %v118 = vmul.f32 %v115, %v95
    %v119 = vadd.f32 %v117, %v118
    %v120 = vmul.f32 %v116, %v97
    %v121 = vadd.f32 %v119, %v120
    %v122 = vmul.f32 %v121, %v114
    %v123 = vsub.f32 %v93, %v122
    %v124 = vmul.f32 %v121, %v115
    %v125 = vsub.f32 %v95, %v124
    %v126 = vmul.f32 %v121, %v116
    %v127 = vsub.f32 %v97, %v126
    %v128 = vmul.f32 %v123, %v123
    %v129 = vmul.f32 %v125, %v125
    %v130 = vadd.f32 %v128, %v129
    %v131 = vmul.f32 %v127, %v127
    %v132 = vadd.f32 %v130, %v131
    %v133 = vmax.f32 %v132, 1e-24
    %v134 = vrsqrt.pop %v133
    %v135 = vmul.f32 %v134, %v133
    %v136 = vmul.f32 %v135, %v134
    %v137 = vmul.f32 0.5, %v136
    %v138 = vsub.f32 1.5, %v137
    %v139 = vmul.f32 %v134, %v138
    %vm140 = vweird.f32 %v133
    %vm141 = vweird.f32 %v134
    %vm142 = vmor %vm140, %vm141
    %v143 = vsel %vm142, %v134, %v139
    %v144 = vmul.f32 %v123, %v143
    %v145 = vmul.f32 %v125, %v143
    %v146 = vmul.f32 %v127, %v143
    %v147 = vmul.f32 %v115, %v146
    %v148 = vmul.f32 %v116, %v145
    %v149 = vsub.f32 %v147, %v148
    %v150 = vmul.f32 %v116, %v144
    %v151 = vmul.f32 %v114, %v146
    %v152 = vsub.f32 %v150, %v151
    %v153 = vmul.f32 %v114, %v145
    %v154 = vmul.f32 %v115, %v144
    %v155 = vsub.f32 %v153, %v154
    %v156 = vmul.f32 %v45, %v114
    %v157 = vmul.f32 %v46, %v115
    %v158 = vadd.f32 %v156, %v157
    %v159 = vmul.f32 %v47, %v116
    %v160 = vadd.f32 %v158, %v159
    %v161 = vmul.f32 %v75, %v144
    %v162 = vadd.f32 %v160, %v161
    %v163 = vmul.f32 %v76, %v145
    %v164 = vadd.f32 %v162, %v163
    %v165 = vmul.f32 %v77, %v146
    %v166 = vadd.f32 %v164, %v165
    %v167 = vmul.f32 %v80, %v149
    %v168 = vadd.f32 %v166, %v167
    %v169 = vmul.f32 %v83, %v152
    %v170 = vadd.f32 %v168, %v169
    %v171 = vmul.f32 %v86, %v155
    %v172 = vadd.f32 %v170, %v171
    %v173 = vsub.f32 %v172, 1.0
    %v174 = vmul.f32 %v173, 0.5
    %v175 = vmax.f32 %v174, -0.999999
    %v176 = vmin.f32 %v175, 0.999999
    %v177 = vand.u32 2147483647, %v176
    %v178 = vmul.f32 %v177, -0.0012624911
    %v179 = vadd.f32 %v178, 0.00667009
    %v180 = vmul.f32 %v179, %v177
    %v181 = vadd.f32 %v180, -0.017088126
    %v182 = vmul.f32 %v181, %v177
    %v183 = vadd.f32 %v182, 0.03089188
    %v184 = vmul.f32 %v183, %v177
    %v185 = vadd.f32 %v184, -0.050174303
    %v186 = vmul.f32 %v185, %v177
    %v187 = vadd.f32 %v186, 0.08897899
    %v188 = vmul.f32 %v187, %v177
    %v189 = vadd.f32 %v188, -0.2145988
    %v190 = vmul.f32 %v189, %v177
    %v191 = vadd.f32 %v190, 1.5707963
    %v192 = vsub.f32 1.0, %v177
    %v193 = vmax.f32 %v192, 0.0
    %v194 = vrsqrt.pop %v193
    %v195 = vmul.f32 %v194, %v193
    %v196 = vmul.f32 %v195, %v194
    %v197 = vmul.f32 0.5, %v196
    %v198 = vsub.f32 1.5, %v197
    %v199 = vmul.f32 %v194, %v198
    %v200 = vmul.f32 %v193, %v199
    %vm201 = vcmp.eq.f32.partialorder %v193, inf
    %v202 = vsel %vm201, %v193, %v200
    %vm203 = vcmp.eq.f32.partialorder %v193, 0.0
    %v204 = vand.u32 %v193, 2147483648
    %v205 = vsel %vm203, %v204, %v202
    %v206 = vmul.f32 %v205, %v191
    %vm207 = vcmp.lt.f32.partialorder %v176, 0.0
    %v208 = vsub.f32 3.1415927, %v206
    %v209 = vsel %vm207, %v208, %v206
    %v210 = vadd.f32 %v209, 0.0
    %v211 = vsub.f32 %v45, %v114
    %213 = vrot.lane.b32.xlu0 %v211, 1
    %v214 = vpop.permute.xlu0 %213
    %v216 = vsub.f32 %v211, %v214
    %v217 = vand.u32 2147483647, %v216
    %v218 = vadd.f32 %v217, 0.0
    %220 = vrot.lane.b32.xlu0 %v216, 1
    %v221 = vpop.permute.xlu0 %220
    %v223 = vsub.f32 %v216, %v221
    %v224 = vand.u32 2147483647, %v223
    %v225 = vadd.f32 %v224, 0.0
    %v226 = vsub.f32 %v46, %v115
    %228 = vrot.lane.b32.xlu0 %v226, 1
    %v229 = vpop.permute.xlu0 %228
    %v231 = vsub.f32 %v226, %v229
    %v232 = vand.u32 2147483647, %v231
    %v233 = vadd.f32 %v218, %v232
    %235 = vrot.lane.b32.xlu0 %v231, 1
    %v236 = vpop.permute.xlu0 %235
    %v238 = vsub.f32 %v231, %v236
    %v239 = vand.u32 2147483647, %v238
    %v240 = vadd.f32 %v225, %v239
    %v241 = vsub.f32 %v47, %v116
    %243 = vrot.lane.b32.xlu0 %v241, 1
    %v244 = vpop.permute.xlu0 %243
    %v246 = vsub.f32 %v241, %v244
    %v247 = vand.u32 2147483647, %v246
    %v248 = vadd.f32 %v233, %v247
    %250 = vrot.lane.b32.xlu0 %v246, 1
    %v251 = vpop.permute.xlu0 %250
    %v253 = vsub.f32 %v246, %v251
    %v254 = vand.u32 2147483647, %v253
    %v255 = vadd.f32 %v240, %v254
    %v256 = vsub.f32 %v75, %v144
    %258 = vrot.lane.b32.xlu0 %v256, 1
    %v259 = vpop.permute.xlu0 %258
    %v261 = vsub.f32 %v256, %v259
    %v262 = vand.u32 2147483647, %v261
    %v263 = vadd.f32 %v248, %v262
    %265 = vrot.lane.b32.xlu0 %v261, 1
    %v266 = vpop.permute.xlu0 %265
    %v268 = vsub.f32 %v261, %v266
    %v269 = vand.u32 2147483647, %v268
    %v270 = vadd.f32 %v255, %v269
    %v271 = vsub.f32 %v76, %v145
    %273 = vrot.lane.b32.xlu0 %v271, 1
    %v274 = vpop.permute.xlu0 %273
    %v276 = vsub.f32 %v271, %v274
    %v277 = vand.u32 2147483647, %v276
    %v278 = vadd.f32 %v263, %v277
    %280 = vrot.lane.b32.xlu0 %v276, 1
    %v281 = vpop.permute.xlu0 %280
    %v283 = vsub.f32 %v276, %v281
    %v284 = vand.u32 2147483647, %v283
    %v285 = vadd.f32 %v270, %v284
    %v286 = vsub.f32 %v77, %v146
    %288 = vrot.lane.b32.xlu0 %v286, 1
    %v289 = vpop.permute.xlu0 %288
    %v291 = vsub.f32 %v286, %v289
    %v292 = vand.u32 2147483647, %v291
    %v293 = vadd.f32 %v278, %v292
    %295 = vrot.lane.b32.xlu0 %v291, 1
    %v296 = vpop.permute.xlu0 %295
    %v298 = vsub.f32 %v291, %v296
    %v299 = vand.u32 2147483647, %v298
    %v300 = vadd.f32 %v285, %v299
    %v301 = vsub.f32 %v80, %v149
    %303 = vrot.lane.b32.xlu0 %v301, 1
    %v304 = vpop.permute.xlu0 %303
    %v306 = vsub.f32 %v301, %v304
    %v307 = vand.u32 2147483647, %v306
    %v308 = vadd.f32 %v293, %v307
    %310 = vrot.lane.b32.xlu0 %v306, 1
    %v311 = vpop.permute.xlu0 %310
    %v313 = vsub.f32 %v306, %v311
    %v314 = vand.u32 2147483647, %v313
    %v315 = vadd.f32 %v300, %v314
    %v316 = vsub.f32 %v83, %v152
    %318 = vrot.lane.b32.xlu0 %v316, 1
    %v319 = vpop.permute.xlu0 %318
    %v321 = vsub.f32 %v316, %v319
    %v322 = vand.u32 2147483647, %v321
    %v323 = vadd.f32 %v308, %v322
    %325 = vrot.lane.b32.xlu0 %v321, 1
    %v326 = vpop.permute.xlu0 %325
    %v328 = vsub.f32 %v321, %v326
    %v329 = vand.u32 2147483647, %v328
    %v330 = vadd.f32 %v315, %v329
    %v331 = vsub.f32 %v86, %v155
    %333 = vrot.lane.b32.xlu0 %v331, 1
    %v334 = vpop.permute.xlu0 %333
    %v336 = vsub.f32 %v331, %v334
    %v337 = vand.u32 2147483647, %v336
    %v338 = vadd.f32 %v323, %v337
    %340 = vrot.lane.b32.xlu0 %v336, 1
    %v341 = vpop.permute.xlu0 %340
    %v343 = vsub.f32 %v336, %v341
    %v344 = vand.u32 2147483647, %v343
    %v345 = vadd.f32 %v330, %v344
    %s346 = scalar_lea.vmem %s0, 12
    %v347 = vld [vmem:[%s346] sm:$0x3]
    %s348 = scalar_lea.vmem %s0, 14
    %v349 = vld [vmem:[%s348] sm:$0x3]
    %s350 = scalar_lea.vmem %s0, 16
    %v351 = vld [vmem:[%s350] sm:$0x3]
    %s352 = scalar_lea.vmem %s0, 18
    %v353 = vld [vmem:[%s352] sm:$0x3]
    %s354 = scalar_lea.vmem %s0, 20
    %v355 = vld [vmem:[%s354] sm:$0x3]
    %s356 = scalar_lea.vmem %s0, 22
    %v357 = vld [vmem:[%s356] sm:$0x3]
    %v358 = vmul.f32 %v347, %v347
    %v359 = vmul.f32 %v349, %v349
    %v360 = vadd.f32 %v358, %v359
    %v361 = vmul.f32 %v351, %v351
    %v362 = vadd.f32 %v360, %v361
    %v363 = vmax.f32 %v362, 1e-24
    %v364 = vrsqrt.pop %v363
    %v365 = vmul.f32 %v364, %v363
    %v366 = vmul.f32 %v365, %v364
    %v367 = vmul.f32 0.5, %v366
    %v368 = vsub.f32 1.5, %v367
    %v369 = vmul.f32 %v364, %v368
    %vm370 = vweird.f32 %v363
    %vm371 = vweird.f32 %v364
    %vm372 = vmor %vm370, %vm371
    %v373 = vsel %vm372, %v364, %v369
    %v374 = vmul.f32 %v347, %v373
    %v375 = vmul.f32 %v349, %v373
    %v376 = vmul.f32 %v351, %v373
    %v377 = vmul.f32 %v374, %v353
    %v378 = vmul.f32 %v375, %v355
    %v379 = vadd.f32 %v377, %v378
    %v380 = vmul.f32 %v376, %v357
    %v381 = vadd.f32 %v379, %v380
    %v382 = vmul.f32 %v381, %v374
    %v383 = vsub.f32 %v353, %v382
    %v384 = vmul.f32 %v381, %v375
    %v385 = vsub.f32 %v355, %v384
    %v386 = vmul.f32 %v381, %v376
    %v387 = vsub.f32 %v357, %v386
    %v388 = vmul.f32 %v383, %v383
    %v389 = vmul.f32 %v385, %v385
    %v390 = vadd.f32 %v388, %v389
    %v391 = vmul.f32 %v387, %v387
    %v392 = vadd.f32 %v390, %v391
    %v393 = vmax.f32 %v392, 1e-24
    %v394 = vrsqrt.pop %v393
    %v395 = vmul.f32 %v394, %v393
    %v396 = vmul.f32 %v395, %v394
    %v397 = vmul.f32 0.5, %v396
    %v398 = vsub.f32 1.5, %v397
    %v399 = vmul.f32 %v394, %v398
    %vm400 = vweird.f32 %v393
    %vm401 = vweird.f32 %v394
    %vm402 = vmor %vm400, %vm401
    %v403 = vsel %vm402, %v394, %v399
    %v404 = vmul.f32 %v383, %v403
    %v405 = vmul.f32 %v385, %v403
    %v406 = vmul.f32 %v387, %v403
    %v407 = vmul.f32 %v375, %v406
    %v408 = vmul.f32 %v376, %v405
    %v409 = vsub.f32 %v407, %v408
    %v410 = vmul.f32 %v376, %v404
    %v411 = vmul.f32 %v374, %v406
    %v412 = vsub.f32 %v410, %v411
    %v413 = vmul.f32 %v374, %v405
    %v414 = vmul.f32 %v375, %v404
    %v415 = vsub.f32 %v413, %v414
    %s416 = scalar_lea.vmem %s1, 12
    %v417 = vld [vmem:[%s416] sm:$0x3]
    %s418 = scalar_lea.vmem %s1, 14
    %v419 = vld [vmem:[%s418] sm:$0x3]
    %s420 = scalar_lea.vmem %s1, 16
    %v421 = vld [vmem:[%s420] sm:$0x3]
    %s422 = scalar_lea.vmem %s1, 18
    %v423 = vld [vmem:[%s422] sm:$0x3]
    %s424 = scalar_lea.vmem %s1, 20
    %v425 = vld [vmem:[%s424] sm:$0x3]
    %s426 = scalar_lea.vmem %s1, 22
    %v427 = vld [vmem:[%s426] sm:$0x3]
    %v428 = vmul.f32 %v417, %v417
    %v429 = vmul.f32 %v419, %v419
    %v430 = vadd.f32 %v428, %v429
    %v431 = vmul.f32 %v421, %v421
    %v432 = vadd.f32 %v430, %v431
    %v433 = vmax.f32 %v432, 1e-24
    %v434 = vrsqrt.pop %v433
    %v435 = vmul.f32 %v434, %v433
    %v436 = vmul.f32 %v435, %v434
    %v437 = vmul.f32 0.5, %v436
    %v438 = vsub.f32 1.5, %v437
    %v439 = vmul.f32 %v434, %v438
    %vm440 = vweird.f32 %v433
    %vm441 = vweird.f32 %v434
    %vm442 = vmor %vm440, %vm441
    %v443 = vsel %vm442, %v434, %v439
    %v444 = vmul.f32 %v417, %v443
    %v445 = vmul.f32 %v419, %v443
    %v446 = vmul.f32 %v421, %v443
    %v447 = vmul.f32 %v444, %v423
    %v448 = vmul.f32 %v445, %v425
    %v449 = vadd.f32 %v447, %v448
    %v450 = vmul.f32 %v446, %v427
    %v451 = vadd.f32 %v449, %v450
    %v452 = vmul.f32 %v451, %v444
    %v453 = vsub.f32 %v423, %v452
    %v454 = vmul.f32 %v451, %v445
    %v455 = vsub.f32 %v425, %v454
    %v456 = vmul.f32 %v451, %v446
    %v457 = vsub.f32 %v427, %v456
    %v458 = vmul.f32 %v453, %v453
    %v459 = vmul.f32 %v455, %v455
    %v460 = vadd.f32 %v458, %v459
    %v461 = vmul.f32 %v457, %v457
    %v462 = vadd.f32 %v460, %v461
    %v463 = vmax.f32 %v462, 1e-24
    %v464 = vrsqrt.pop %v463
    %v465 = vmul.f32 %v464, %v463
    %v466 = vmul.f32 %v465, %v464
    %v467 = vmul.f32 0.5, %v466
    %v468 = vsub.f32 1.5, %v467
    %v469 = vmul.f32 %v464, %v468
    %vm470 = vweird.f32 %v463
    %vm471 = vweird.f32 %v464
    %vm472 = vmor %vm470, %vm471
    %v473 = vsel %vm472, %v464, %v469
    %v474 = vmul.f32 %v453, %v473
    %v475 = vmul.f32 %v455, %v473
    %v476 = vmul.f32 %v457, %v473
    %v477 = vmul.f32 %v445, %v476
    %v478 = vmul.f32 %v446, %v475
    %v479 = vsub.f32 %v477, %v478
    %v480 = vmul.f32 %v446, %v474
    %v481 = vmul.f32 %v444, %v476
    %v482 = vsub.f32 %v480, %v481
    %v483 = vmul.f32 %v444, %v475
    %v484 = vmul.f32 %v445, %v474
    %v485 = vsub.f32 %v483, %v484
    %v486 = vmul.f32 %v374, %v444
    %v487 = vmul.f32 %v375, %v445
    %v488 = vadd.f32 %v486, %v487
    %v489 = vmul.f32 %v376, %v446
    %v490 = vadd.f32 %v488, %v489
    %v491 = vmul.f32 %v404, %v474
    %v492 = vadd.f32 %v490, %v491
    %v493 = vmul.f32 %v405, %v475
    %v494 = vadd.f32 %v492, %v493
    %v495 = vmul.f32 %v406, %v476
    %v496 = vadd.f32 %v494, %v495
    %v497 = vmul.f32 %v409, %v479
    %v498 = vadd.f32 %v496, %v497
    %v499 = vmul.f32 %v412, %v482
    %v500 = vadd.f32 %v498, %v499
    %v501 = vmul.f32 %v415, %v485
    %v502 = vadd.f32 %v500, %v501
    %v503 = vsub.f32 %v502, 1.0
    %v504 = vmul.f32 %v503, 0.5
    %v505 = vmax.f32 %v504, -0.999999
    %v506 = vmin.f32 %v505, 0.999999
    %v507 = vand.u32 2147483647, %v506
    %v508 = vmul.f32 %v507, -0.0012624911
    %v509 = vadd.f32 %v508, 0.00667009
    %v510 = vmul.f32 %v509, %v507
    %v511 = vadd.f32 %v510, -0.017088126
    %v512 = vmul.f32 %v511, %v507
    %v513 = vadd.f32 %v512, 0.03089188
    %v514 = vmul.f32 %v513, %v507
    %v515 = vadd.f32 %v514, -0.050174303
    %v516 = vmul.f32 %v515, %v507
    %v517 = vadd.f32 %v516, 0.08897899
    %v518 = vmul.f32 %v517, %v507
    %v519 = vadd.f32 %v518, -0.2145988
    %v520 = vmul.f32 %v519, %v507
    %v521 = vadd.f32 %v520, 1.5707963
    %v522 = vsub.f32 1.0, %v507
    %v523 = vmax.f32 %v522, 0.0
    %v524 = vrsqrt.pop %v523
    %v525 = vmul.f32 %v524, %v523
    %v526 = vmul.f32 %v525, %v524
    %v527 = vmul.f32 0.5, %v526
    %v528 = vsub.f32 1.5, %v527
    %v529 = vmul.f32 %v524, %v528
    %v530 = vmul.f32 %v523, %v529
    %vm531 = vcmp.eq.f32.partialorder %v523, inf
    %v532 = vsel %vm531, %v523, %v530
    %vm533 = vcmp.eq.f32.partialorder %v523, 0.0
    %v534 = vand.u32 %v523, 2147483648
    %v535 = vsel %vm533, %v534, %v532
    %v536 = vmul.f32 %v535, %v521
    %vm537 = vcmp.lt.f32.partialorder %v506, 0.0
    %v538 = vsub.f32 3.1415927, %v536
    %v539 = vsel %vm537, %v538, %v536
    %v540 = vadd.f32 %v210, %v539
    %v541 = vsub.f32 %v374, %v444
    %543 = vrot.lane.b32.xlu0 %v541, 1
    %v544 = vpop.permute.xlu0 %543
    %v546 = vsub.f32 %v541, %v544
    %v547 = vand.u32 2147483647, %v546
    %v548 = vadd.f32 %v338, %v547
    %550 = vrot.lane.b32.xlu0 %v546, 1
    %v551 = vpop.permute.xlu0 %550
    %v553 = vsub.f32 %v546, %v551
    %v554 = vand.u32 2147483647, %v553
    %v555 = vadd.f32 %v345, %v554
    %v556 = vsub.f32 %v375, %v445
    %558 = vrot.lane.b32.xlu0 %v556, 1
    %v559 = vpop.permute.xlu0 %558
    %v561 = vsub.f32 %v556, %v559
    %v562 = vand.u32 2147483647, %v561
    %v563 = vadd.f32 %v548, %v562
    %565 = vrot.lane.b32.xlu0 %v561, 1
    %v566 = vpop.permute.xlu0 %565
    %v568 = vsub.f32 %v561, %v566
    %v569 = vand.u32 2147483647, %v568
    %v570 = vadd.f32 %v555, %v569
    %v571 = vsub.f32 %v376, %v446
    %573 = vrot.lane.b32.xlu0 %v571, 1
    %v574 = vpop.permute.xlu0 %573
    %v576 = vsub.f32 %v571, %v574
    %v577 = vand.u32 2147483647, %v576
    %v578 = vadd.f32 %v563, %v577
    %580 = vrot.lane.b32.xlu0 %v576, 1
    %v581 = vpop.permute.xlu0 %580
    %v583 = vsub.f32 %v576, %v581
    %v584 = vand.u32 2147483647, %v583
    %v585 = vadd.f32 %v570, %v584
    %v586 = vsub.f32 %v404, %v474
    %588 = vrot.lane.b32.xlu0 %v586, 1
    %v589 = vpop.permute.xlu0 %588
    %v591 = vsub.f32 %v586, %v589
    %v592 = vand.u32 2147483647, %v591
    %v593 = vadd.f32 %v578, %v592
    %595 = vrot.lane.b32.xlu0 %v591, 1
    %v596 = vpop.permute.xlu0 %595
    %v598 = vsub.f32 %v591, %v596
    %v599 = vand.u32 2147483647, %v598
    %v600 = vadd.f32 %v585, %v599
    %v601 = vsub.f32 %v405, %v475
    %603 = vrot.lane.b32.xlu0 %v601, 1
    %v604 = vpop.permute.xlu0 %603
    %v606 = vsub.f32 %v601, %v604
    %v607 = vand.u32 2147483647, %v606
    %v608 = vadd.f32 %v593, %v607
    %610 = vrot.lane.b32.xlu0 %v606, 1
    %v611 = vpop.permute.xlu0 %610
    %v613 = vsub.f32 %v606, %v611
    %v614 = vand.u32 2147483647, %v613
    %v615 = vadd.f32 %v600, %v614
    %v616 = vsub.f32 %v406, %v476
    %618 = vrot.lane.b32.xlu0 %v616, 1
    %v619 = vpop.permute.xlu0 %618
    %v621 = vsub.f32 %v616, %v619
    %v622 = vand.u32 2147483647, %v621
    %v623 = vadd.f32 %v608, %v622
    %625 = vrot.lane.b32.xlu0 %v621, 1
    %v626 = vpop.permute.xlu0 %625
    %v628 = vsub.f32 %v621, %v626
    %v629 = vand.u32 2147483647, %v628
    %v630 = vadd.f32 %v615, %v629
    %v631 = vsub.f32 %v409, %v479
    %633 = vrot.lane.b32.xlu0 %v631, 1
    %v634 = vpop.permute.xlu0 %633
    %v636 = vsub.f32 %v631, %v634
    %v637 = vand.u32 2147483647, %v636
    %v638 = vadd.f32 %v623, %v637
    %640 = vrot.lane.b32.xlu0 %v636, 1
    %v641 = vpop.permute.xlu0 %640
    %v643 = vsub.f32 %v636, %v641
    %v644 = vand.u32 2147483647, %v643
    %v645 = vadd.f32 %v630, %v644
    %v646 = vsub.f32 %v412, %v482
    %648 = vrot.lane.b32.xlu0 %v646, 1
    %v649 = vpop.permute.xlu0 %648
    %v651 = vsub.f32 %v646, %v649
    %v652 = vand.u32 2147483647, %v651
    %v653 = vadd.f32 %v638, %v652
    %655 = vrot.lane.b32.xlu0 %v651, 1
    %v656 = vpop.permute.xlu0 %655
    %v658 = vsub.f32 %v651, %v656
    %v659 = vand.u32 2147483647, %v658
    %v660 = vadd.f32 %v645, %v659
    %v661 = vsub.f32 %v415, %v485
    %663 = vrot.lane.b32.xlu0 %v661, 1
    %v664 = vpop.permute.xlu0 %663
    %v666 = vsub.f32 %v661, %v664
    %v667 = vand.u32 2147483647, %v666
    %v668 = vadd.f32 %v653, %v667
    %670 = vrot.lane.b32.xlu0 %v666, 1
    %v671 = vpop.permute.xlu0 %670
    %v673 = vsub.f32 %v666, %v671
    %v674 = vand.u32 2147483647, %v673
    %v675 = vadd.f32 %v660, %v674
    %s676 = scalar_lea.vmem %s0, 24
    %v677 = vld [vmem:[%s676] sm:$0x3]
    %s678 = scalar_lea.vmem %s0, 26
    %v679 = vld [vmem:[%s678] sm:$0x3]
    %s680 = scalar_lea.vmem %s0, 28
    %v681 = vld [vmem:[%s680] sm:$0x3]
    %s682 = scalar_lea.vmem %s0, 30
    %v683 = vld [vmem:[%s682] sm:$0x3]
    %s684 = scalar_lea.vmem %s0, 32
    %v685 = vld [vmem:[%s684] sm:$0x3]
    %s686 = scalar_lea.vmem %s0, 34
    %v687 = vld [vmem:[%s686] sm:$0x3]
    %v688 = vmul.f32 %v677, %v677
    %v689 = vmul.f32 %v679, %v679
    %v690 = vadd.f32 %v688, %v689
    %v691 = vmul.f32 %v681, %v681
    %v692 = vadd.f32 %v690, %v691
    %v693 = vmax.f32 %v692, 1e-24
    %v694 = vrsqrt.pop %v693
    %v695 = vmul.f32 %v694, %v693
    %v696 = vmul.f32 %v695, %v694
    %v697 = vmul.f32 0.5, %v696
    %v698 = vsub.f32 1.5, %v697
    %v699 = vmul.f32 %v694, %v698
    %vm700 = vweird.f32 %v693
    %vm701 = vweird.f32 %v694
    %vm702 = vmor %vm700, %vm701
    %v703 = vsel %vm702, %v694, %v699
    %v704 = vmul.f32 %v677, %v703
    %v705 = vmul.f32 %v679, %v703
    %v706 = vmul.f32 %v681, %v703
    %v707 = vmul.f32 %v704, %v683
    %v708 = vmul.f32 %v705, %v685
    %v709 = vadd.f32 %v707, %v708
    %v710 = vmul.f32 %v706, %v687
    %v711 = vadd.f32 %v709, %v710
    %v712 = vmul.f32 %v711, %v704
    %v713 = vsub.f32 %v683, %v712
    %v714 = vmul.f32 %v711, %v705
    %v715 = vsub.f32 %v685, %v714
    %v716 = vmul.f32 %v711, %v706
    %v717 = vsub.f32 %v687, %v716
    %v718 = vmul.f32 %v713, %v713
    %v719 = vmul.f32 %v715, %v715
    %v720 = vadd.f32 %v718, %v719
    %v721 = vmul.f32 %v717, %v717
    %v722 = vadd.f32 %v720, %v721
    %v723 = vmax.f32 %v722, 1e-24
    %v724 = vrsqrt.pop %v723
    %v725 = vmul.f32 %v724, %v723
    %v726 = vmul.f32 %v725, %v724
    %v727 = vmul.f32 0.5, %v726
    %v728 = vsub.f32 1.5, %v727
    %v729 = vmul.f32 %v724, %v728
    %vm730 = vweird.f32 %v723
    %vm731 = vweird.f32 %v724
    %vm732 = vmor %vm730, %vm731
    %v733 = vsel %vm732, %v724, %v729
    %v734 = vmul.f32 %v713, %v733
    %v735 = vmul.f32 %v715, %v733
    %v736 = vmul.f32 %v717, %v733
    %v737 = vmul.f32 %v705, %v736
    %v738 = vmul.f32 %v706, %v735
    %v739 = vsub.f32 %v737, %v738
    %v740 = vmul.f32 %v706, %v734
    %v741 = vmul.f32 %v704, %v736
    %v742 = vsub.f32 %v740, %v741
    %v743 = vmul.f32 %v704, %v735
    %v744 = vmul.f32 %v705, %v734
    %v745 = vsub.f32 %v743, %v744
    %s746 = scalar_lea.vmem %s1, 24
    %v747 = vld [vmem:[%s746] sm:$0x3]
    %s748 = scalar_lea.vmem %s1, 26
    %v749 = vld [vmem:[%s748] sm:$0x3]
    %s750 = scalar_lea.vmem %s1, 28
    %v751 = vld [vmem:[%s750] sm:$0x3]
    %s752 = scalar_lea.vmem %s1, 30
    %v753 = vld [vmem:[%s752] sm:$0x3]
    %s754 = scalar_lea.vmem %s1, 32
    %v755 = vld [vmem:[%s754] sm:$0x3]
    %s756 = scalar_lea.vmem %s1, 34
    %v757 = vld [vmem:[%s756] sm:$0x3]
    %v758 = vmul.f32 %v747, %v747
    %v759 = vmul.f32 %v749, %v749
    %v760 = vadd.f32 %v758, %v759
    %v761 = vmul.f32 %v751, %v751
    %v762 = vadd.f32 %v760, %v761
    %v763 = vmax.f32 %v762, 1e-24
    %v764 = vrsqrt.pop %v763
    %v765 = vmul.f32 %v764, %v763
    %v766 = vmul.f32 %v765, %v764
    %v767 = vmul.f32 0.5, %v766
    %v768 = vsub.f32 1.5, %v767
    %v769 = vmul.f32 %v764, %v768
    %vm770 = vweird.f32 %v763
    %vm771 = vweird.f32 %v764
    %vm772 = vmor %vm770, %vm771
    %v773 = vsel %vm772, %v764, %v769
    %v774 = vmul.f32 %v747, %v773
    %v775 = vmul.f32 %v749, %v773
    %v776 = vmul.f32 %v751, %v773
    %v777 = vmul.f32 %v774, %v753
    %v778 = vmul.f32 %v775, %v755
    %v779 = vadd.f32 %v777, %v778
    %v780 = vmul.f32 %v776, %v757
    %v781 = vadd.f32 %v779, %v780
    %v782 = vmul.f32 %v781, %v774
    %v783 = vsub.f32 %v753, %v782
    %v784 = vmul.f32 %v781, %v775
    %v785 = vsub.f32 %v755, %v784
    %v786 = vmul.f32 %v781, %v776
    %v787 = vsub.f32 %v757, %v786
    %v788 = vmul.f32 %v783, %v783
    %v789 = vmul.f32 %v785, %v785
    %v790 = vadd.f32 %v788, %v789
    %v791 = vmul.f32 %v787, %v787
    %v792 = vadd.f32 %v790, %v791
    %v793 = vmax.f32 %v792, 1e-24
    %v794 = vrsqrt.pop %v793
    %v795 = vmul.f32 %v794, %v793
    %v796 = vmul.f32 %v795, %v794
    %v797 = vmul.f32 0.5, %v796
    %v798 = vsub.f32 1.5, %v797
    %v799 = vmul.f32 %v794, %v798
    %vm800 = vweird.f32 %v793
    %vm801 = vweird.f32 %v794
    %vm802 = vmor %vm800, %vm801
    %v803 = vsel %vm802, %v794, %v799
    %v804 = vmul.f32 %v783, %v803
    %v805 = vmul.f32 %v785, %v803
    %v806 = vmul.f32 %v787, %v803
    %v807 = vmul.f32 %v775, %v806
    %v808 = vmul.f32 %v776, %v805
    %v809 = vsub.f32 %v807, %v808
    %v810 = vmul.f32 %v776, %v804
    %v811 = vmul.f32 %v774, %v806
    %v812 = vsub.f32 %v810, %v811
    %v813 = vmul.f32 %v774, %v805
    %v814 = vmul.f32 %v775, %v804
    %v815 = vsub.f32 %v813, %v814
    %v816 = vmul.f32 %v704, %v774
    %v817 = vmul.f32 %v705, %v775
    %v818 = vadd.f32 %v816, %v817
    %v819 = vmul.f32 %v706, %v776
    %v820 = vadd.f32 %v818, %v819
    %v821 = vmul.f32 %v734, %v804
    %v822 = vadd.f32 %v820, %v821
    %v823 = vmul.f32 %v735, %v805
    %v824 = vadd.f32 %v822, %v823
    %v825 = vmul.f32 %v736, %v806
    %v826 = vadd.f32 %v824, %v825
    %v827 = vmul.f32 %v739, %v809
    %v828 = vadd.f32 %v826, %v827
    %v829 = vmul.f32 %v742, %v812
    %v830 = vadd.f32 %v828, %v829
    %v831 = vmul.f32 %v745, %v815
    %v832 = vadd.f32 %v830, %v831
    %v833 = vsub.f32 %v832, 1.0
    %v834 = vmul.f32 %v833, 0.5
    %v835 = vmax.f32 %v834, -0.999999
    %v836 = vmin.f32 %v835, 0.999999
    %v837 = vand.u32 2147483647, %v836
    %v838 = vmul.f32 %v837, -0.0012624911
    %v839 = vadd.f32 %v838, 0.00667009
    %v840 = vmul.f32 %v839, %v837
    %v841 = vadd.f32 %v840, -0.017088126
    %v842 = vmul.f32 %v841, %v837
    %v843 = vadd.f32 %v842, 0.03089188
    %v844 = vmul.f32 %v843, %v837
    %v845 = vadd.f32 %v844, -0.050174303
    %v846 = vmul.f32 %v845, %v837
    %v847 = vadd.f32 %v846, 0.08897899
    %v848 = vmul.f32 %v847, %v837
    %v849 = vadd.f32 %v848, -0.2145988
    %v850 = vmul.f32 %v849, %v837
    %v851 = vadd.f32 %v850, 1.5707963
    %v852 = vsub.f32 1.0, %v837
    %v853 = vmax.f32 %v852, 0.0
    %v854 = vrsqrt.pop %v853
    %v855 = vmul.f32 %v854, %v853
    %v856 = vmul.f32 %v855, %v854
    %v857 = vmul.f32 0.5, %v856
    %v858 = vsub.f32 1.5, %v857
    %v859 = vmul.f32 %v854, %v858
    %v860 = vmul.f32 %v853, %v859
    %vm861 = vcmp.eq.f32.partialorder %v853, inf
    %v862 = vsel %vm861, %v853, %v860
    %vm863 = vcmp.eq.f32.partialorder %v853, 0.0
    %v864 = vand.u32 %v853, 2147483648
    %v865 = vsel %vm863, %v864, %v862
    %v866 = vmul.f32 %v865, %v851
    %vm867 = vcmp.lt.f32.partialorder %v836, 0.0
    %v868 = vsub.f32 3.1415927, %v866
    %v869 = vsel %vm867, %v868, %v866
    %v870 = vadd.f32 %v540, %v869
    %v871 = vsub.f32 %v704, %v774
    %873 = vrot.lane.b32.xlu0 %v871, 1
    %v874 = vpop.permute.xlu0 %873
    %v876 = vsub.f32 %v871, %v874
    %v877 = vand.u32 2147483647, %v876
    %v878 = vadd.f32 %v668, %v877
    %880 = vrot.lane.b32.xlu0 %v876, 1
    %v881 = vpop.permute.xlu0 %880
    %v883 = vsub.f32 %v876, %v881
    %v884 = vand.u32 2147483647, %v883
    %v885 = vadd.f32 %v675, %v884
    %v886 = vsub.f32 %v705, %v775
    %888 = vrot.lane.b32.xlu0 %v886, 1
    %v889 = vpop.permute.xlu0 %888
    %v891 = vsub.f32 %v886, %v889
    %v892 = vand.u32 2147483647, %v891
    %v893 = vadd.f32 %v878, %v892
    %895 = vrot.lane.b32.xlu0 %v891, 1
    %v896 = vpop.permute.xlu0 %895
    %v898 = vsub.f32 %v891, %v896
    %v899 = vand.u32 2147483647, %v898
    %v900 = vadd.f32 %v885, %v899
    %v901 = vsub.f32 %v706, %v776
    %903 = vrot.lane.b32.xlu0 %v901, 1
    %v904 = vpop.permute.xlu0 %903
    %v906 = vsub.f32 %v901, %v904
    %v907 = vand.u32 2147483647, %v906
    %v908 = vadd.f32 %v893, %v907
    %910 = vrot.lane.b32.xlu0 %v906, 1
    %v911 = vpop.permute.xlu0 %910
    %v913 = vsub.f32 %v906, %v911
    %v914 = vand.u32 2147483647, %v913
    %v915 = vadd.f32 %v900, %v914
    %v916 = vsub.f32 %v734, %v804
    %918 = vrot.lane.b32.xlu0 %v916, 1
    %v919 = vpop.permute.xlu0 %918
    %v921 = vsub.f32 %v916, %v919
    %v922 = vand.u32 2147483647, %v921
    %v923 = vadd.f32 %v908, %v922
    %925 = vrot.lane.b32.xlu0 %v921, 1
    %v926 = vpop.permute.xlu0 %925
    %v928 = vsub.f32 %v921, %v926
    %v929 = vand.u32 2147483647, %v928
    %v930 = vadd.f32 %v915, %v929
    %v931 = vsub.f32 %v735, %v805
    %933 = vrot.lane.b32.xlu0 %v931, 1
    %v934 = vpop.permute.xlu0 %933
    %v936 = vsub.f32 %v931, %v934
    %v937 = vand.u32 2147483647, %v936
    %v938 = vadd.f32 %v923, %v937
    %940 = vrot.lane.b32.xlu0 %v936, 1
    %v941 = vpop.permute.xlu0 %940
    %v943 = vsub.f32 %v936, %v941
    %v944 = vand.u32 2147483647, %v943
    %v945 = vadd.f32 %v930, %v944
    %v946 = vsub.f32 %v736, %v806
    %948 = vrot.lane.b32.xlu0 %v946, 1
    %v949 = vpop.permute.xlu0 %948
    %v951 = vsub.f32 %v946, %v949
    %v952 = vand.u32 2147483647, %v951
    %v953 = vadd.f32 %v938, %v952
    %955 = vrot.lane.b32.xlu0 %v951, 1
    %v956 = vpop.permute.xlu0 %955
    %v958 = vsub.f32 %v951, %v956
    %v959 = vand.u32 2147483647, %v958
    %v960 = vadd.f32 %v945, %v959
    %v961 = vsub.f32 %v739, %v809
    %963 = vrot.lane.b32.xlu0 %v961, 1
    %v964 = vpop.permute.xlu0 %963
    %v966 = vsub.f32 %v961, %v964
    %v967 = vand.u32 2147483647, %v966
    %v968 = vadd.f32 %v953, %v967
    %970 = vrot.lane.b32.xlu0 %v966, 1
    %v971 = vpop.permute.xlu0 %970
    %v973 = vsub.f32 %v966, %v971
    %v974 = vand.u32 2147483647, %v973
    %v975 = vadd.f32 %v960, %v974
    %v976 = vsub.f32 %v742, %v812
    %978 = vrot.lane.b32.xlu0 %v976, 1
    %v979 = vpop.permute.xlu0 %978
    %v981 = vsub.f32 %v976, %v979
    %v982 = vand.u32 2147483647, %v981
    %v983 = vadd.f32 %v968, %v982
    %985 = vrot.lane.b32.xlu0 %v981, 1
    %v986 = vpop.permute.xlu0 %985
    %v988 = vsub.f32 %v981, %v986
    %v989 = vand.u32 2147483647, %v988
    %v990 = vadd.f32 %v975, %v989
    %v991 = vsub.f32 %v745, %v815
    %993 = vrot.lane.b32.xlu0 %v991, 1
    %v994 = vpop.permute.xlu0 %993
    %v996 = vsub.f32 %v991, %v994
    %v997 = vand.u32 2147483647, %v996
    %v998 = vadd.f32 %v983, %v997
    %1000 = vrot.lane.b32.xlu0 %v996, 1
    %v1001 = vpop.permute.xlu0 %1000
    %v1003 = vsub.f32 %v996, %v1001
    %v1004 = vand.u32 2147483647, %v1003
    %v1005 = vadd.f32 %v990, %v1004
    %s1006 = scalar_lea.vmem %s0, 36
    %v1007 = vld [vmem:[%s1006] sm:$0x3]
    %s1008 = scalar_lea.vmem %s0, 38
    %v1009 = vld [vmem:[%s1008] sm:$0x3]
    %s1010 = scalar_lea.vmem %s0, 40
    %v1011 = vld [vmem:[%s1010] sm:$0x3]
    %s1012 = scalar_lea.vmem %s0, 42
    %v1013 = vld [vmem:[%s1012] sm:$0x3]
    %s1014 = scalar_lea.vmem %s0, 44
    %v1015 = vld [vmem:[%s1014] sm:$0x3]
    %s1016 = scalar_lea.vmem %s0, 46
    %v1017 = vld [vmem:[%s1016] sm:$0x3]
    %v1018 = vmul.f32 %v1007, %v1007
    %v1019 = vmul.f32 %v1009, %v1009
    %v1020 = vadd.f32 %v1018, %v1019
    %v1021 = vmul.f32 %v1011, %v1011
    %v1022 = vadd.f32 %v1020, %v1021
    %v1023 = vmax.f32 %v1022, 1e-24
    %v1024 = vrsqrt.pop %v1023
    %v1025 = vmul.f32 %v1024, %v1023
    %v1026 = vmul.f32 %v1025, %v1024
    %v1027 = vmul.f32 0.5, %v1026
    %v1028 = vsub.f32 1.5, %v1027
    %v1029 = vmul.f32 %v1024, %v1028
    %vm1030 = vweird.f32 %v1023
    %vm1031 = vweird.f32 %v1024
    %vm1032 = vmor %vm1030, %vm1031
    %v1033 = vsel %vm1032, %v1024, %v1029
    %v1034 = vmul.f32 %v1007, %v1033
    %v1035 = vmul.f32 %v1009, %v1033
    %v1036 = vmul.f32 %v1011, %v1033
    %v1037 = vmul.f32 %v1034, %v1013
    %v1038 = vmul.f32 %v1035, %v1015
    %v1039 = vadd.f32 %v1037, %v1038
    %v1040 = vmul.f32 %v1036, %v1017
    %v1041 = vadd.f32 %v1039, %v1040
    %v1042 = vmul.f32 %v1041, %v1034
    %v1043 = vsub.f32 %v1013, %v1042
    %v1044 = vmul.f32 %v1041, %v1035
    %v1045 = vsub.f32 %v1015, %v1044
    %v1046 = vmul.f32 %v1041, %v1036
    %v1047 = vsub.f32 %v1017, %v1046
    %v1048 = vmul.f32 %v1043, %v1043
    %v1049 = vmul.f32 %v1045, %v1045
    %v1050 = vadd.f32 %v1048, %v1049
    %v1051 = vmul.f32 %v1047, %v1047
    %v1052 = vadd.f32 %v1050, %v1051
    %v1053 = vmax.f32 %v1052, 1e-24
    %v1054 = vrsqrt.pop %v1053
    %v1055 = vmul.f32 %v1054, %v1053
    %v1056 = vmul.f32 %v1055, %v1054
    %v1057 = vmul.f32 0.5, %v1056
    %v1058 = vsub.f32 1.5, %v1057
    %v1059 = vmul.f32 %v1054, %v1058
    %vm1060 = vweird.f32 %v1053
    %vm1061 = vweird.f32 %v1054
    %vm1062 = vmor %vm1060, %vm1061
    %v1063 = vsel %vm1062, %v1054, %v1059
    %v1064 = vmul.f32 %v1043, %v1063
    %v1065 = vmul.f32 %v1045, %v1063
    %v1066 = vmul.f32 %v1047, %v1063
    %v1067 = vmul.f32 %v1035, %v1066
    %v1068 = vmul.f32 %v1036, %v1065
    %v1069 = vsub.f32 %v1067, %v1068
    %v1070 = vmul.f32 %v1036, %v1064
    %v1071 = vmul.f32 %v1034, %v1066
    %v1072 = vsub.f32 %v1070, %v1071
    %v1073 = vmul.f32 %v1034, %v1065
    %v1074 = vmul.f32 %v1035, %v1064
    %v1075 = vsub.f32 %v1073, %v1074
    %s1076 = scalar_lea.vmem %s1, 36
    %v1077 = vld [vmem:[%s1076] sm:$0x3]
    %s1078 = scalar_lea.vmem %s1, 38
    %v1079 = vld [vmem:[%s1078] sm:$0x3]
    %s1080 = scalar_lea.vmem %s1, 40
    %v1081 = vld [vmem:[%s1080] sm:$0x3]
    %s1082 = scalar_lea.vmem %s1, 42
    %v1083 = vld [vmem:[%s1082] sm:$0x3]
    %s1084 = scalar_lea.vmem %s1, 44
    %v1085 = vld [vmem:[%s1084] sm:$0x3]
    %s1086 = scalar_lea.vmem %s1, 46
    %v1087 = vld [vmem:[%s1086] sm:$0x3]
    %v1088 = vmul.f32 %v1077, %v1077
    %v1089 = vmul.f32 %v1079, %v1079
    %v1090 = vadd.f32 %v1088, %v1089
    %v1091 = vmul.f32 %v1081, %v1081
    %v1092 = vadd.f32 %v1090, %v1091
    %v1093 = vmax.f32 %v1092, 1e-24
    %v1094 = vrsqrt.pop %v1093
    %v1095 = vmul.f32 %v1094, %v1093
    %v1096 = vmul.f32 %v1095, %v1094
    %v1097 = vmul.f32 0.5, %v1096
    %v1098 = vsub.f32 1.5, %v1097
    %v1099 = vmul.f32 %v1094, %v1098
    %vm1100 = vweird.f32 %v1093
    %vm1101 = vweird.f32 %v1094
    %vm1102 = vmor %vm1100, %vm1101
    %v1103 = vsel %vm1102, %v1094, %v1099
    %v1104 = vmul.f32 %v1077, %v1103
    %v1105 = vmul.f32 %v1079, %v1103
    %v1106 = vmul.f32 %v1081, %v1103
    %v1107 = vmul.f32 %v1104, %v1083
    %v1108 = vmul.f32 %v1105, %v1085
    %v1109 = vadd.f32 %v1107, %v1108
    %v1110 = vmul.f32 %v1106, %v1087
    %v1111 = vadd.f32 %v1109, %v1110
    %v1112 = vmul.f32 %v1111, %v1104
    %v1113 = vsub.f32 %v1083, %v1112
    %v1114 = vmul.f32 %v1111, %v1105
    %v1115 = vsub.f32 %v1085, %v1114
    %v1116 = vmul.f32 %v1111, %v1106
    %v1117 = vsub.f32 %v1087, %v1116
    %v1118 = vmul.f32 %v1113, %v1113
    %v1119 = vmul.f32 %v1115, %v1115
    %v1120 = vadd.f32 %v1118, %v1119
    %v1121 = vmul.f32 %v1117, %v1117
    %v1122 = vadd.f32 %v1120, %v1121
    %v1123 = vmax.f32 %v1122, 1e-24
    %v1124 = vrsqrt.pop %v1123
    %v1125 = vmul.f32 %v1124, %v1123
    %v1126 = vmul.f32 %v1125, %v1124
    %v1127 = vmul.f32 0.5, %v1126
    %v1128 = vsub.f32 1.5, %v1127
    %v1129 = vmul.f32 %v1124, %v1128
    %vm1130 = vweird.f32 %v1123
    %vm1131 = vweird.f32 %v1124
    %vm1132 = vmor %vm1130, %vm1131
    %v1133 = vsel %vm1132, %v1124, %v1129
    %v1134 = vmul.f32 %v1113, %v1133
    %v1135 = vmul.f32 %v1115, %v1133
    %v1136 = vmul.f32 %v1117, %v1133
    %v1137 = vmul.f32 %v1105, %v1136
    %v1138 = vmul.f32 %v1106, %v1135
    %v1139 = vsub.f32 %v1137, %v1138
    %v1140 = vmul.f32 %v1106, %v1134
    %v1141 = vmul.f32 %v1104, %v1136
    %v1142 = vsub.f32 %v1140, %v1141
    %v1143 = vmul.f32 %v1104, %v1135
    %v1144 = vmul.f32 %v1105, %v1134
    %v1145 = vsub.f32 %v1143, %v1144
    %v1146 = vmul.f32 %v1034, %v1104
    %v1147 = vmul.f32 %v1035, %v1105
    %v1148 = vadd.f32 %v1146, %v1147
    %v1149 = vmul.f32 %v1036, %v1106
    %v1150 = vadd.f32 %v1148, %v1149
    %v1151 = vmul.f32 %v1064, %v1134
    %v1152 = vadd.f32 %v1150, %v1151
    %v1153 = vmul.f32 %v1065, %v1135
    %v1154 = vadd.f32 %v1152, %v1153
    %v1155 = vmul.f32 %v1066, %v1136
    %v1156 = vadd.f32 %v1154, %v1155
    %v1157 = vmul.f32 %v1069, %v1139
    %v1158 = vadd.f32 %v1156, %v1157
    %v1159 = vmul.f32 %v1072, %v1142
    %v1160 = vadd.f32 %v1158, %v1159
    %v1161 = vmul.f32 %v1075, %v1145
    %v1162 = vadd.f32 %v1160, %v1161
    %v1163 = vsub.f32 %v1162, 1.0
    %v1164 = vmul.f32 %v1163, 0.5
    %v1165 = vmax.f32 %v1164, -0.999999
    %v1166 = vmin.f32 %v1165, 0.999999
    %v1167 = vand.u32 2147483647, %v1166
    %v1168 = vmul.f32 %v1167, -0.0012624911
    %v1169 = vadd.f32 %v1168, 0.00667009
    %v1170 = vmul.f32 %v1169, %v1167
    %v1171 = vadd.f32 %v1170, -0.017088126
    %v1172 = vmul.f32 %v1171, %v1167
    %v1173 = vadd.f32 %v1172, 0.03089188
    %v1174 = vmul.f32 %v1173, %v1167
    %v1175 = vadd.f32 %v1174, -0.050174303
    %v1176 = vmul.f32 %v1175, %v1167
    %v1177 = vadd.f32 %v1176, 0.08897899
    %v1178 = vmul.f32 %v1177, %v1167
    %v1179 = vadd.f32 %v1178, -0.2145988
    %v1180 = vmul.f32 %v1179, %v1167
    %v1181 = vadd.f32 %v1180, 1.5707963
    %v1182 = vsub.f32 1.0, %v1167
    %v1183 = vmax.f32 %v1182, 0.0
    %v1184 = vrsqrt.pop %v1183
    %v1185 = vmul.f32 %v1184, %v1183
    %v1186 = vmul.f32 %v1185, %v1184
    %v1187 = vmul.f32 0.5, %v1186
    %v1188 = vsub.f32 1.5, %v1187
    %v1189 = vmul.f32 %v1184, %v1188
    %v1190 = vmul.f32 %v1183, %v1189
    %vm1191 = vcmp.eq.f32.partialorder %v1183, inf
    %v1192 = vsel %vm1191, %v1183, %v1190
    %vm1193 = vcmp.eq.f32.partialorder %v1183, 0.0
    %v1194 = vand.u32 %v1183, 2147483648
    %v1195 = vsel %vm1193, %v1194, %v1192
    %v1196 = vmul.f32 %v1195, %v1181
    %vm1197 = vcmp.lt.f32.partialorder %v1166, 0.0
    %v1198 = vsub.f32 3.1415927, %v1196
    %v1199 = vsel %vm1197, %v1198, %v1196
    %v1200 = vadd.f32 %v870, %v1199
    %v1201 = vsub.f32 %v1034, %v1104
    %1203 = vrot.lane.b32.xlu0 %v1201, 1
    %v1204 = vpop.permute.xlu0 %1203
    %v1206 = vsub.f32 %v1201, %v1204
    %v1207 = vand.u32 2147483647, %v1206
    %v1208 = vadd.f32 %v998, %v1207
    %1210 = vrot.lane.b32.xlu0 %v1206, 1
    %v1211 = vpop.permute.xlu0 %1210
    %v1213 = vsub.f32 %v1206, %v1211
    %v1214 = vand.u32 2147483647, %v1213
    %v1215 = vadd.f32 %v1005, %v1214
    %v1216 = vsub.f32 %v1035, %v1105
    %1218 = vrot.lane.b32.xlu0 %v1216, 1
    %v1219 = vpop.permute.xlu0 %1218
    %v1221 = vsub.f32 %v1216, %v1219
    %v1222 = vand.u32 2147483647, %v1221
    %v1223 = vadd.f32 %v1208, %v1222
    %1225 = vrot.lane.b32.xlu0 %v1221, 1
    %v1226 = vpop.permute.xlu0 %1225
    %v1228 = vsub.f32 %v1221, %v1226
    %v1229 = vand.u32 2147483647, %v1228
    %v1230 = vadd.f32 %v1215, %v1229
    %v1231 = vsub.f32 %v1036, %v1106
    %1233 = vrot.lane.b32.xlu0 %v1231, 1
    %v1234 = vpop.permute.xlu0 %1233
    %v1236 = vsub.f32 %v1231, %v1234
    %v1237 = vand.u32 2147483647, %v1236
    %v1238 = vadd.f32 %v1223, %v1237
    %1240 = vrot.lane.b32.xlu0 %v1236, 1
    %v1241 = vpop.permute.xlu0 %1240
    %v1243 = vsub.f32 %v1236, %v1241
    %v1244 = vand.u32 2147483647, %v1243
    %v1245 = vadd.f32 %v1230, %v1244
    %v1246 = vsub.f32 %v1064, %v1134
    %1248 = vrot.lane.b32.xlu0 %v1246, 1
    %v1249 = vpop.permute.xlu0 %1248
    %v1251 = vsub.f32 %v1246, %v1249
    %v1252 = vand.u32 2147483647, %v1251
    %v1253 = vadd.f32 %v1238, %v1252
    %1255 = vrot.lane.b32.xlu0 %v1251, 1
    %v1256 = vpop.permute.xlu0 %1255
    %v1258 = vsub.f32 %v1251, %v1256
    %v1259 = vand.u32 2147483647, %v1258
    %v1260 = vadd.f32 %v1245, %v1259
    %v1261 = vsub.f32 %v1065, %v1135
    %1263 = vrot.lane.b32.xlu0 %v1261, 1
    %v1264 = vpop.permute.xlu0 %1263
    %v1266 = vsub.f32 %v1261, %v1264
    %v1267 = vand.u32 2147483647, %v1266
    %v1268 = vadd.f32 %v1253, %v1267
    %1270 = vrot.lane.b32.xlu0 %v1266, 1
    %v1271 = vpop.permute.xlu0 %1270
    %v1273 = vsub.f32 %v1266, %v1271
    %v1274 = vand.u32 2147483647, %v1273
    %v1275 = vadd.f32 %v1260, %v1274
    %v1276 = vsub.f32 %v1066, %v1136
    %1278 = vrot.lane.b32.xlu0 %v1276, 1
    %v1279 = vpop.permute.xlu0 %1278
    %v1281 = vsub.f32 %v1276, %v1279
    %v1282 = vand.u32 2147483647, %v1281
    %v1283 = vadd.f32 %v1268, %v1282
    %1285 = vrot.lane.b32.xlu0 %v1281, 1
    %v1286 = vpop.permute.xlu0 %1285
    %v1288 = vsub.f32 %v1281, %v1286
    %v1289 = vand.u32 2147483647, %v1288
    %v1290 = vadd.f32 %v1275, %v1289
    %v1291 = vsub.f32 %v1069, %v1139
    %1293 = vrot.lane.b32.xlu0 %v1291, 1
    %v1294 = vpop.permute.xlu0 %1293
    %v1296 = vsub.f32 %v1291, %v1294
    %v1297 = vand.u32 2147483647, %v1296
    %v1298 = vadd.f32 %v1283, %v1297
    %1300 = vrot.lane.b32.xlu0 %v1296, 1
    %v1301 = vpop.permute.xlu0 %1300
    %v1303 = vsub.f32 %v1296, %v1301
    %v1304 = vand.u32 2147483647, %v1303
    %v1305 = vadd.f32 %v1290, %v1304
    %v1306 = vsub.f32 %v1072, %v1142
    %1308 = vrot.lane.b32.xlu0 %v1306, 1
    %v1309 = vpop.permute.xlu0 %1308
    %v1311 = vsub.f32 %v1306, %v1309
    %v1312 = vand.u32 2147483647, %v1311
    %v1313 = vadd.f32 %v1298, %v1312
    %1315 = vrot.lane.b32.xlu0 %v1311, 1
    %v1316 = vpop.permute.xlu0 %1315
    %v1318 = vsub.f32 %v1311, %v1316
    %v1319 = vand.u32 2147483647, %v1318
    %v1320 = vadd.f32 %v1305, %v1319
    %v1321 = vsub.f32 %v1075, %v1145
    %1323 = vrot.lane.b32.xlu0 %v1321, 1
    %v1324 = vpop.permute.xlu0 %1323
    %v1326 = vsub.f32 %v1321, %v1324
    %v1327 = vand.u32 2147483647, %v1326
    %v1328 = vadd.f32 %v1313, %v1327
    %1330 = vrot.lane.b32.xlu0 %v1326, 1
    %v1331 = vpop.permute.xlu0 %1330
    %v1333 = vsub.f32 %v1326, %v1331
    %v1334 = vand.u32 2147483647, %v1333
    %v1335 = vadd.f32 %v1320, %v1334
    %s1336 = scalar_lea.vmem %s0, 48
    %v1337 = vld [vmem:[%s1336] sm:$0x3]
    %s1338 = scalar_lea.vmem %s0, 50
    %v1339 = vld [vmem:[%s1338] sm:$0x3]
    %s1340 = scalar_lea.vmem %s0, 52
    %v1341 = vld [vmem:[%s1340] sm:$0x3]
    %s1342 = scalar_lea.vmem %s0, 54
    %v1343 = vld [vmem:[%s1342] sm:$0x3]
    %s1344 = scalar_lea.vmem %s0, 56
    %v1345 = vld [vmem:[%s1344] sm:$0x3]
    %s1346 = scalar_lea.vmem %s0, 58
    %v1347 = vld [vmem:[%s1346] sm:$0x3]
    %v1348 = vmul.f32 %v1337, %v1337
    %v1349 = vmul.f32 %v1339, %v1339
    %v1350 = vadd.f32 %v1348, %v1349
    %v1351 = vmul.f32 %v1341, %v1341
    %v1352 = vadd.f32 %v1350, %v1351
    %v1353 = vmax.f32 %v1352, 1e-24
    %v1354 = vrsqrt.pop %v1353
    %v1355 = vmul.f32 %v1354, %v1353
    %v1356 = vmul.f32 %v1355, %v1354
    %v1357 = vmul.f32 0.5, %v1356
    %v1358 = vsub.f32 1.5, %v1357
    %v1359 = vmul.f32 %v1354, %v1358
    %vm1360 = vweird.f32 %v1353
    %vm1361 = vweird.f32 %v1354
    %vm1362 = vmor %vm1360, %vm1361
    %v1363 = vsel %vm1362, %v1354, %v1359
    %v1364 = vmul.f32 %v1337, %v1363
    %v1365 = vmul.f32 %v1339, %v1363
    %v1366 = vmul.f32 %v1341, %v1363
    %v1367 = vmul.f32 %v1364, %v1343
    %v1368 = vmul.f32 %v1365, %v1345
    %v1369 = vadd.f32 %v1367, %v1368
    %v1370 = vmul.f32 %v1366, %v1347
    %v1371 = vadd.f32 %v1369, %v1370
    %v1372 = vmul.f32 %v1371, %v1364
    %v1373 = vsub.f32 %v1343, %v1372
    %v1374 = vmul.f32 %v1371, %v1365
    %v1375 = vsub.f32 %v1345, %v1374
    %v1376 = vmul.f32 %v1371, %v1366
    %v1377 = vsub.f32 %v1347, %v1376
    %v1378 = vmul.f32 %v1373, %v1373
    %v1379 = vmul.f32 %v1375, %v1375
    %v1380 = vadd.f32 %v1378, %v1379
    %v1381 = vmul.f32 %v1377, %v1377
    %v1382 = vadd.f32 %v1380, %v1381
    %v1383 = vmax.f32 %v1382, 1e-24
    %v1384 = vrsqrt.pop %v1383
    %v1385 = vmul.f32 %v1384, %v1383
    %v1386 = vmul.f32 %v1385, %v1384
    %v1387 = vmul.f32 0.5, %v1386
    %v1388 = vsub.f32 1.5, %v1387
    %v1389 = vmul.f32 %v1384, %v1388
    %vm1390 = vweird.f32 %v1383
    %vm1391 = vweird.f32 %v1384
    %vm1392 = vmor %vm1390, %vm1391
    %v1393 = vsel %vm1392, %v1384, %v1389
    %v1394 = vmul.f32 %v1373, %v1393
    %v1395 = vmul.f32 %v1375, %v1393
    %v1396 = vmul.f32 %v1377, %v1393
    %v1397 = vmul.f32 %v1365, %v1396
    %v1398 = vmul.f32 %v1366, %v1395
    %v1399 = vsub.f32 %v1397, %v1398
    %v1400 = vmul.f32 %v1366, %v1394
    %v1401 = vmul.f32 %v1364, %v1396
    %v1402 = vsub.f32 %v1400, %v1401
    %v1403 = vmul.f32 %v1364, %v1395
    %v1404 = vmul.f32 %v1365, %v1394
    %v1405 = vsub.f32 %v1403, %v1404
    %s1406 = scalar_lea.vmem %s1, 48
    %v1407 = vld [vmem:[%s1406] sm:$0x3]
    %s1408 = scalar_lea.vmem %s1, 50
    %v1409 = vld [vmem:[%s1408] sm:$0x3]
    %s1410 = scalar_lea.vmem %s1, 52
    %v1411 = vld [vmem:[%s1410] sm:$0x3]
    %s1412 = scalar_lea.vmem %s1, 54
    %v1413 = vld [vmem:[%s1412] sm:$0x3]
    %s1414 = scalar_lea.vmem %s1, 56
    %v1415 = vld [vmem:[%s1414] sm:$0x3]
    %s1416 = scalar_lea.vmem %s1, 58
    %v1417 = vld [vmem:[%s1416] sm:$0x3]
    %v1418 = vmul.f32 %v1407, %v1407
    %v1419 = vmul.f32 %v1409, %v1409
    %v1420 = vadd.f32 %v1418, %v1419
    %v1421 = vmul.f32 %v1411, %v1411
    %v1422 = vadd.f32 %v1420, %v1421
    %v1423 = vmax.f32 %v1422, 1e-24
    %v1424 = vrsqrt.pop %v1423
    %v1425 = vmul.f32 %v1424, %v1423
    %v1426 = vmul.f32 %v1425, %v1424
    %v1427 = vmul.f32 0.5, %v1426
    %v1428 = vsub.f32 1.5, %v1427
    %v1429 = vmul.f32 %v1424, %v1428
    %vm1430 = vweird.f32 %v1423
    %vm1431 = vweird.f32 %v1424
    %vm1432 = vmor %vm1430, %vm1431
    %v1433 = vsel %vm1432, %v1424, %v1429
    %v1434 = vmul.f32 %v1407, %v1433
    %v1435 = vmul.f32 %v1409, %v1433
    %v1436 = vmul.f32 %v1411, %v1433
    %v1437 = vmul.f32 %v1434, %v1413
    %v1438 = vmul.f32 %v1435, %v1415
    %v1439 = vadd.f32 %v1437, %v1438
    %v1440 = vmul.f32 %v1436, %v1417
    %v1441 = vadd.f32 %v1439, %v1440
    %v1442 = vmul.f32 %v1441, %v1434
    %v1443 = vsub.f32 %v1413, %v1442
    %v1444 = vmul.f32 %v1441, %v1435
    %v1445 = vsub.f32 %v1415, %v1444
    %v1446 = vmul.f32 %v1441, %v1436
    %v1447 = vsub.f32 %v1417, %v1446
    %v1448 = vmul.f32 %v1443, %v1443
    %v1449 = vmul.f32 %v1445, %v1445
    %v1450 = vadd.f32 %v1448, %v1449
    %v1451 = vmul.f32 %v1447, %v1447
    %v1452 = vadd.f32 %v1450, %v1451
    %v1453 = vmax.f32 %v1452, 1e-24
    %v1454 = vrsqrt.pop %v1453
    %v1455 = vmul.f32 %v1454, %v1453
    %v1456 = vmul.f32 %v1455, %v1454
    %v1457 = vmul.f32 0.5, %v1456
    %v1458 = vsub.f32 1.5, %v1457
    %v1459 = vmul.f32 %v1454, %v1458
    %vm1460 = vweird.f32 %v1453
    %vm1461 = vweird.f32 %v1454
    %vm1462 = vmor %vm1460, %vm1461
    %v1463 = vsel %vm1462, %v1454, %v1459
    %v1464 = vmul.f32 %v1443, %v1463
    %v1465 = vmul.f32 %v1445, %v1463
    %v1466 = vmul.f32 %v1447, %v1463
    %v1467 = vmul.f32 %v1435, %v1466
    %v1468 = vmul.f32 %v1436, %v1465
    %v1469 = vsub.f32 %v1467, %v1468
    %v1470 = vmul.f32 %v1436, %v1464
    %v1471 = vmul.f32 %v1434, %v1466
    %v1472 = vsub.f32 %v1470, %v1471
    %v1473 = vmul.f32 %v1434, %v1465
    %v1474 = vmul.f32 %v1435, %v1464
    %v1475 = vsub.f32 %v1473, %v1474
    %v1476 = vmul.f32 %v1364, %v1434
    %v1477 = vmul.f32 %v1365, %v1435
    %v1478 = vadd.f32 %v1476, %v1477
    %v1479 = vmul.f32 %v1366, %v1436
    %v1480 = vadd.f32 %v1478, %v1479
    %v1481 = vmul.f32 %v1394, %v1464
    %v1482 = vadd.f32 %v1480, %v1481
    %v1483 = vmul.f32 %v1395, %v1465
    %v1484 = vadd.f32 %v1482, %v1483
    %v1485 = vmul.f32 %v1396, %v1466
    %v1486 = vadd.f32 %v1484, %v1485
    %v1487 = vmul.f32 %v1399, %v1469
    %v1488 = vadd.f32 %v1486, %v1487
    %v1489 = vmul.f32 %v1402, %v1472
    %v1490 = vadd.f32 %v1488, %v1489
    %v1491 = vmul.f32 %v1405, %v1475
    %v1492 = vadd.f32 %v1490, %v1491
    %v1493 = vsub.f32 %v1492, 1.0
    %v1494 = vmul.f32 %v1493, 0.5
    %v1495 = vmax.f32 %v1494, -0.999999
    %v1496 = vmin.f32 %v1495, 0.999999
    %v1497 = vand.u32 2147483647, %v1496
    %v1498 = vmul.f32 %v1497, -0.0012624911
    %v1499 = vadd.f32 %v1498, 0.00667009
    %v1500 = vmul.f32 %v1499, %v1497
    %v1501 = vadd.f32 %v1500, -0.017088126
    %v1502 = vmul.f32 %v1501, %v1497
    %v1503 = vadd.f32 %v1502, 0.03089188
    %v1504 = vmul.f32 %v1503, %v1497
    %v1505 = vadd.f32 %v1504, -0.050174303
    %v1506 = vmul.f32 %v1505, %v1497
    %v1507 = vadd.f32 %v1506, 0.08897899
    %v1508 = vmul.f32 %v1507, %v1497
    %v1509 = vadd.f32 %v1508, -0.2145988
    %v1510 = vmul.f32 %v1509, %v1497
    %v1511 = vadd.f32 %v1510, 1.5707963
    %v1512 = vsub.f32 1.0, %v1497
    %v1513 = vmax.f32 %v1512, 0.0
    %v1514 = vrsqrt.pop %v1513
    %v1515 = vmul.f32 %v1514, %v1513
    %v1516 = vmul.f32 %v1515, %v1514
    %v1517 = vmul.f32 0.5, %v1516
    %v1518 = vsub.f32 1.5, %v1517
    %v1519 = vmul.f32 %v1514, %v1518
    %v1520 = vmul.f32 %v1513, %v1519
    %vm1521 = vcmp.eq.f32.partialorder %v1513, inf
    %v1522 = vsel %vm1521, %v1513, %v1520
    %vm1523 = vcmp.eq.f32.partialorder %v1513, 0.0
    %v1524 = vand.u32 %v1513, 2147483648
    %v1525 = vsel %vm1523, %v1524, %v1522
    %v1526 = vmul.f32 %v1525, %v1511
    %vm1527 = vcmp.lt.f32.partialorder %v1496, 0.0
    %v1528 = vsub.f32 3.1415927, %v1526
    %v1529 = vsel %vm1527, %v1528, %v1526
    %v1530 = vadd.f32 %v1200, %v1529
    %v1531 = vsub.f32 %v1364, %v1434
    %1533 = vrot.lane.b32.xlu0 %v1531, 1
    %v1534 = vpop.permute.xlu0 %1533
    %v1536 = vsub.f32 %v1531, %v1534
    %v1537 = vand.u32 2147483647, %v1536
    %v1538 = vadd.f32 %v1328, %v1537
    %1540 = vrot.lane.b32.xlu0 %v1536, 1
    %v1541 = vpop.permute.xlu0 %1540
    %v1543 = vsub.f32 %v1536, %v1541
    %v1544 = vand.u32 2147483647, %v1543
    %v1545 = vadd.f32 %v1335, %v1544
    %v1546 = vsub.f32 %v1365, %v1435
    %1548 = vrot.lane.b32.xlu0 %v1546, 1
    %v1549 = vpop.permute.xlu0 %1548
    %v1551 = vsub.f32 %v1546, %v1549
    %v1552 = vand.u32 2147483647, %v1551
    %v1553 = vadd.f32 %v1538, %v1552
    %1555 = vrot.lane.b32.xlu0 %v1551, 1
    %v1556 = vpop.permute.xlu0 %1555
    %v1558 = vsub.f32 %v1551, %v1556
    %v1559 = vand.u32 2147483647, %v1558
    %v1560 = vadd.f32 %v1545, %v1559
    %v1561 = vsub.f32 %v1366, %v1436
    %1563 = vrot.lane.b32.xlu0 %v1561, 1
    %v1564 = vpop.permute.xlu0 %1563
    %v1566 = vsub.f32 %v1561, %v1564
    %v1567 = vand.u32 2147483647, %v1566
    %v1568 = vadd.f32 %v1553, %v1567
    %1570 = vrot.lane.b32.xlu0 %v1566, 1
    %v1571 = vpop.permute.xlu0 %1570
    %v1573 = vsub.f32 %v1566, %v1571
    %v1574 = vand.u32 2147483647, %v1573
    %v1575 = vadd.f32 %v1560, %v1574
    %v1576 = vsub.f32 %v1394, %v1464
    %1578 = vrot.lane.b32.xlu0 %v1576, 1
    %v1579 = vpop.permute.xlu0 %1578
    %v1581 = vsub.f32 %v1576, %v1579
    %v1582 = vand.u32 2147483647, %v1581
    %v1583 = vadd.f32 %v1568, %v1582
    %1585 = vrot.lane.b32.xlu0 %v1581, 1
    %v1586 = vpop.permute.xlu0 %1585
    %v1588 = vsub.f32 %v1581, %v1586
    %v1589 = vand.u32 2147483647, %v1588
    %v1590 = vadd.f32 %v1575, %v1589
    %v1591 = vsub.f32 %v1395, %v1465
    %1593 = vrot.lane.b32.xlu0 %v1591, 1
    %v1594 = vpop.permute.xlu0 %1593
    %v1596 = vsub.f32 %v1591, %v1594
    %v1597 = vand.u32 2147483647, %v1596
    %v1598 = vadd.f32 %v1583, %v1597
    %1600 = vrot.lane.b32.xlu0 %v1596, 1
    %v1601 = vpop.permute.xlu0 %1600
    %v1603 = vsub.f32 %v1596, %v1601
    %v1604 = vand.u32 2147483647, %v1603
    %v1605 = vadd.f32 %v1590, %v1604
    %v1606 = vsub.f32 %v1396, %v1466
    %1608 = vrot.lane.b32.xlu0 %v1606, 1
    %v1609 = vpop.permute.xlu0 %1608
    %v1611 = vsub.f32 %v1606, %v1609
    %v1612 = vand.u32 2147483647, %v1611
    %v1613 = vadd.f32 %v1598, %v1612
    %1615 = vrot.lane.b32.xlu0 %v1611, 1
    %v1616 = vpop.permute.xlu0 %1615
    %v1618 = vsub.f32 %v1611, %v1616
    %v1619 = vand.u32 2147483647, %v1618
    %v1620 = vadd.f32 %v1605, %v1619
    %v1621 = vsub.f32 %v1399, %v1469
    %1623 = vrot.lane.b32.xlu0 %v1621, 1
    %v1624 = vpop.permute.xlu0 %1623
    %v1626 = vsub.f32 %v1621, %v1624
    %v1627 = vand.u32 2147483647, %v1626
    %v1628 = vadd.f32 %v1613, %v1627
    %1630 = vrot.lane.b32.xlu0 %v1626, 1
    %v1631 = vpop.permute.xlu0 %1630
    %v1633 = vsub.f32 %v1626, %v1631
    %v1634 = vand.u32 2147483647, %v1633
    %v1635 = vadd.f32 %v1620, %v1634
    %v1636 = vsub.f32 %v1402, %v1472
    %1638 = vrot.lane.b32.xlu0 %v1636, 1
    %v1639 = vpop.permute.xlu0 %1638
    %v1641 = vsub.f32 %v1636, %v1639
    %v1642 = vand.u32 2147483647, %v1641
    %v1643 = vadd.f32 %v1628, %v1642
    %1645 = vrot.lane.b32.xlu0 %v1641, 1
    %v1646 = vpop.permute.xlu0 %1645
    %v1648 = vsub.f32 %v1641, %v1646
    %v1649 = vand.u32 2147483647, %v1648
    %v1650 = vadd.f32 %v1635, %v1649
    %v1651 = vsub.f32 %v1405, %v1475
    %1653 = vrot.lane.b32.xlu0 %v1651, 1
    %v1654 = vpop.permute.xlu0 %1653
    %v1656 = vsub.f32 %v1651, %v1654
    %v1657 = vand.u32 2147483647, %v1656
    %v1658 = vadd.f32 %v1643, %v1657
    %1660 = vrot.lane.b32.xlu0 %v1656, 1
    %v1661 = vpop.permute.xlu0 %1660
    %v1663 = vsub.f32 %v1656, %v1661
    %v1664 = vand.u32 2147483647, %v1663
    %v1665 = vadd.f32 %v1650, %v1664
    %s1666 = scalar_lea.vmem %s0, 60
    %v1667 = vld [vmem:[%s1666] sm:$0x3]
    %s1668 = scalar_lea.vmem %s0, 62
    %v1669 = vld [vmem:[%s1668] sm:$0x3]
    %s1670 = scalar_lea.vmem %s0, 64
    %v1671 = vld [vmem:[%s1670] sm:$0x3]
    %s1672 = scalar_lea.vmem %s0, 66
    %v1673 = vld [vmem:[%s1672] sm:$0x3]
    %s1674 = scalar_lea.vmem %s0, 68
    %v1675 = vld [vmem:[%s1674] sm:$0x3]
    %s1676 = scalar_lea.vmem %s0, 70
    %v1677 = vld [vmem:[%s1676] sm:$0x3]
    %v1678 = vmul.f32 %v1667, %v1667
    %v1679 = vmul.f32 %v1669, %v1669
    %v1680 = vadd.f32 %v1678, %v1679
    %v1681 = vmul.f32 %v1671, %v1671
    %v1682 = vadd.f32 %v1680, %v1681
    %v1683 = vmax.f32 %v1682, 1e-24
    %v1684 = vrsqrt.pop %v1683
    %v1685 = vmul.f32 %v1684, %v1683
    %v1686 = vmul.f32 %v1685, %v1684
    %v1687 = vmul.f32 0.5, %v1686
    %v1688 = vsub.f32 1.5, %v1687
    %v1689 = vmul.f32 %v1684, %v1688
    %vm1690 = vweird.f32 %v1683
    %vm1691 = vweird.f32 %v1684
    %vm1692 = vmor %vm1690, %vm1691
    %v1693 = vsel %vm1692, %v1684, %v1689
    %v1694 = vmul.f32 %v1667, %v1693
    %v1695 = vmul.f32 %v1669, %v1693
    %v1696 = vmul.f32 %v1671, %v1693
    %v1697 = vmul.f32 %v1694, %v1673
    %v1698 = vmul.f32 %v1695, %v1675
    %v1699 = vadd.f32 %v1697, %v1698
    %v1700 = vmul.f32 %v1696, %v1677
    %v1701 = vadd.f32 %v1699, %v1700
    %v1702 = vmul.f32 %v1701, %v1694
    %v1703 = vsub.f32 %v1673, %v1702
    %v1704 = vmul.f32 %v1701, %v1695
    %v1705 = vsub.f32 %v1675, %v1704
    %v1706 = vmul.f32 %v1701, %v1696
    %v1707 = vsub.f32 %v1677, %v1706
    %v1708 = vmul.f32 %v1703, %v1703
    %v1709 = vmul.f32 %v1705, %v1705
    %v1710 = vadd.f32 %v1708, %v1709
    %v1711 = vmul.f32 %v1707, %v1707
    %v1712 = vadd.f32 %v1710, %v1711
    %v1713 = vmax.f32 %v1712, 1e-24
    %v1714 = vrsqrt.pop %v1713
    %v1715 = vmul.f32 %v1714, %v1713
    %v1716 = vmul.f32 %v1715, %v1714
    %v1717 = vmul.f32 0.5, %v1716
    %v1718 = vsub.f32 1.5, %v1717
    %v1719 = vmul.f32 %v1714, %v1718
    %vm1720 = vweird.f32 %v1713
    %vm1721 = vweird.f32 %v1714
    %vm1722 = vmor %vm1720, %vm1721
    %v1723 = vsel %vm1722, %v1714, %v1719
    %v1724 = vmul.f32 %v1703, %v1723
    %v1725 = vmul.f32 %v1705, %v1723
    %v1726 = vmul.f32 %v1707, %v1723
    %v1727 = vmul.f32 %v1695, %v1726
    %v1728 = vmul.f32 %v1696, %v1725
    %v1729 = vsub.f32 %v1727, %v1728
    %v1730 = vmul.f32 %v1696, %v1724
    %v1731 = vmul.f32 %v1694, %v1726
    %v1732 = vsub.f32 %v1730, %v1731
    %v1733 = vmul.f32 %v1694, %v1725
    %v1734 = vmul.f32 %v1695, %v1724
    %v1735 = vsub.f32 %v1733, %v1734
    %s1736 = scalar_lea.vmem %s1, 60
    %v1737 = vld [vmem:[%s1736] sm:$0x3]
    %s1738 = scalar_lea.vmem %s1, 62
    %v1739 = vld [vmem:[%s1738] sm:$0x3]
    %s1740 = scalar_lea.vmem %s1, 64
    %v1741 = vld [vmem:[%s1740] sm:$0x3]
    %s1742 = scalar_lea.vmem %s1, 66
    %v1743 = vld [vmem:[%s1742] sm:$0x3]
    %s1744 = scalar_lea.vmem %s1, 68
    %v1745 = vld [vmem:[%s1744] sm:$0x3]
    %s1746 = scalar_lea.vmem %s1, 70
    %v1747 = vld [vmem:[%s1746] sm:$0x3]
    %v1748 = vmul.f32 %v1737, %v1737
    %v1749 = vmul.f32 %v1739, %v1739
    %v1750 = vadd.f32 %v1748, %v1749
    %v1751 = vmul.f32 %v1741, %v1741
    %v1752 = vadd.f32 %v1750, %v1751
    %v1753 = vmax.f32 %v1752, 1e-24
    %v1754 = vrsqrt.pop %v1753
    %v1755 = vmul.f32 %v1754, %v1753
    %v1756 = vmul.f32 %v1755, %v1754
    %v1757 = vmul.f32 0.5, %v1756
    %v1758 = vsub.f32 1.5, %v1757
    %v1759 = vmul.f32 %v1754, %v1758
    %vm1760 = vweird.f32 %v1753
    %vm1761 = vweird.f32 %v1754
    %vm1762 = vmor %vm1760, %vm1761
    %v1763 = vsel %vm1762, %v1754, %v1759
    %v1764 = vmul.f32 %v1737, %v1763
    %v1765 = vmul.f32 %v1739, %v1763
    %v1766 = vmul.f32 %v1741, %v1763
    %v1767 = vmul.f32 %v1764, %v1743
    %v1768 = vmul.f32 %v1765, %v1745
    %v1769 = vadd.f32 %v1767, %v1768
    %v1770 = vmul.f32 %v1766, %v1747
    %v1771 = vadd.f32 %v1769, %v1770
    %v1772 = vmul.f32 %v1771, %v1764
    %v1773 = vsub.f32 %v1743, %v1772
    %v1774 = vmul.f32 %v1771, %v1765
    %v1775 = vsub.f32 %v1745, %v1774
    %v1776 = vmul.f32 %v1771, %v1766
    %v1777 = vsub.f32 %v1747, %v1776
    %v1778 = vmul.f32 %v1773, %v1773
    %v1779 = vmul.f32 %v1775, %v1775
    %v1780 = vadd.f32 %v1778, %v1779
    %v1781 = vmul.f32 %v1777, %v1777
    %v1782 = vadd.f32 %v1780, %v1781
    %v1783 = vmax.f32 %v1782, 1e-24
    %v1784 = vrsqrt.pop %v1783
    %v1785 = vmul.f32 %v1784, %v1783
    %v1786 = vmul.f32 %v1785, %v1784
    %v1787 = vmul.f32 0.5, %v1786
    %v1788 = vsub.f32 1.5, %v1787
    %v1789 = vmul.f32 %v1784, %v1788
    %vm1790 = vweird.f32 %v1783
    %vm1791 = vweird.f32 %v1784
    %vm1792 = vmor %vm1790, %vm1791
    %v1793 = vsel %vm1792, %v1784, %v1789
    %v1794 = vmul.f32 %v1773, %v1793
    %v1795 = vmul.f32 %v1775, %v1793
    %v1796 = vmul.f32 %v1777, %v1793
    %v1797 = vmul.f32 %v1765, %v1796
    %v1798 = vmul.f32 %v1766, %v1795
    %v1799 = vsub.f32 %v1797, %v1798
    %v1800 = vmul.f32 %v1766, %v1794
    %v1801 = vmul.f32 %v1764, %v1796
    %v1802 = vsub.f32 %v1800, %v1801
    %v1803 = vmul.f32 %v1764, %v1795
    %v1804 = vmul.f32 %v1765, %v1794
    %v1805 = vsub.f32 %v1803, %v1804
    %v1806 = vmul.f32 %v1694, %v1764
    %v1807 = vmul.f32 %v1695, %v1765
    %v1808 = vadd.f32 %v1806, %v1807
    %v1809 = vmul.f32 %v1696, %v1766
    %v1810 = vadd.f32 %v1808, %v1809
    %v1811 = vmul.f32 %v1724, %v1794
    %v1812 = vadd.f32 %v1810, %v1811
    %v1813 = vmul.f32 %v1725, %v1795
    %v1814 = vadd.f32 %v1812, %v1813
    %v1815 = vmul.f32 %v1726, %v1796
    %v1816 = vadd.f32 %v1814, %v1815
    %v1817 = vmul.f32 %v1729, %v1799
    %v1818 = vadd.f32 %v1816, %v1817
    %v1819 = vmul.f32 %v1732, %v1802
    %v1820 = vadd.f32 %v1818, %v1819
    %v1821 = vmul.f32 %v1735, %v1805
    %v1822 = vadd.f32 %v1820, %v1821
    %v1823 = vsub.f32 %v1822, 1.0
    %v1824 = vmul.f32 %v1823, 0.5
    %v1825 = vmax.f32 %v1824, -0.999999
    %v1826 = vmin.f32 %v1825, 0.999999
    %v1827 = vand.u32 2147483647, %v1826
    %v1828 = vmul.f32 %v1827, -0.0012624911
    %v1829 = vadd.f32 %v1828, 0.00667009
    %v1830 = vmul.f32 %v1829, %v1827
    %v1831 = vadd.f32 %v1830, -0.017088126
    %v1832 = vmul.f32 %v1831, %v1827
    %v1833 = vadd.f32 %v1832, 0.03089188
    %v1834 = vmul.f32 %v1833, %v1827
    %v1835 = vadd.f32 %v1834, -0.050174303
    %v1836 = vmul.f32 %v1835, %v1827
    %v1837 = vadd.f32 %v1836, 0.08897899
    %v1838 = vmul.f32 %v1837, %v1827
    %v1839 = vadd.f32 %v1838, -0.2145988
    %v1840 = vmul.f32 %v1839, %v1827
    %v1841 = vadd.f32 %v1840, 1.5707963
    %v1842 = vsub.f32 1.0, %v1827
    %v1843 = vmax.f32 %v1842, 0.0
    %v1844 = vrsqrt.pop %v1843
    %v1845 = vmul.f32 %v1844, %v1843
    %v1846 = vmul.f32 %v1845, %v1844
    %v1847 = vmul.f32 0.5, %v1846
    %v1848 = vsub.f32 1.5, %v1847
    %v1849 = vmul.f32 %v1844, %v1848
    %v1850 = vmul.f32 %v1843, %v1849
    %vm1851 = vcmp.eq.f32.partialorder %v1843, inf
    %v1852 = vsel %vm1851, %v1843, %v1850
    %vm1853 = vcmp.eq.f32.partialorder %v1843, 0.0
    %v1854 = vand.u32 %v1843, 2147483648
    %v1855 = vsel %vm1853, %v1854, %v1852
    %v1856 = vmul.f32 %v1855, %v1841
    %vm1857 = vcmp.lt.f32.partialorder %v1826, 0.0
    %v1858 = vsub.f32 3.1415927, %v1856
    %v1859 = vsel %vm1857, %v1858, %v1856
    %v1860 = vadd.f32 %v1530, %v1859
    %v1861 = vsub.f32 %v1694, %v1764
    %1863 = vrot.lane.b32.xlu0 %v1861, 1
    %v1864 = vpop.permute.xlu0 %1863
    %v1866 = vsub.f32 %v1861, %v1864
    %v1867 = vand.u32 2147483647, %v1866
    %v1868 = vadd.f32 %v1658, %v1867
    %1870 = vrot.lane.b32.xlu0 %v1866, 1
    %v1871 = vpop.permute.xlu0 %1870
    %v1873 = vsub.f32 %v1866, %v1871
    %v1874 = vand.u32 2147483647, %v1873
    %v1875 = vadd.f32 %v1665, %v1874
    %v1876 = vsub.f32 %v1695, %v1765
    %1878 = vrot.lane.b32.xlu0 %v1876, 1
    %v1879 = vpop.permute.xlu0 %1878
    %v1881 = vsub.f32 %v1876, %v1879
    %v1882 = vand.u32 2147483647, %v1881
    %v1883 = vadd.f32 %v1868, %v1882
    %1885 = vrot.lane.b32.xlu0 %v1881, 1
    %v1886 = vpop.permute.xlu0 %1885
    %v1888 = vsub.f32 %v1881, %v1886
    %v1889 = vand.u32 2147483647, %v1888
    %v1890 = vadd.f32 %v1875, %v1889
    %v1891 = vsub.f32 %v1696, %v1766
    %1893 = vrot.lane.b32.xlu0 %v1891, 1
    %v1894 = vpop.permute.xlu0 %1893
    %v1896 = vsub.f32 %v1891, %v1894
    %v1897 = vand.u32 2147483647, %v1896
    %v1898 = vadd.f32 %v1883, %v1897
    %1900 = vrot.lane.b32.xlu0 %v1896, 1
    %v1901 = vpop.permute.xlu0 %1900
    %v1903 = vsub.f32 %v1896, %v1901
    %v1904 = vand.u32 2147483647, %v1903
    %v1905 = vadd.f32 %v1890, %v1904
    %v1906 = vsub.f32 %v1724, %v1794
    %1908 = vrot.lane.b32.xlu0 %v1906, 1
    %v1909 = vpop.permute.xlu0 %1908
    %v1911 = vsub.f32 %v1906, %v1909
    %v1912 = vand.u32 2147483647, %v1911
    %v1913 = vadd.f32 %v1898, %v1912
    %1915 = vrot.lane.b32.xlu0 %v1911, 1
    %v1916 = vpop.permute.xlu0 %1915
    %v1918 = vsub.f32 %v1911, %v1916
    %v1919 = vand.u32 2147483647, %v1918
    %v1920 = vadd.f32 %v1905, %v1919
    %v1921 = vsub.f32 %v1725, %v1795
    %1923 = vrot.lane.b32.xlu0 %v1921, 1
    %v1924 = vpop.permute.xlu0 %1923
    %v1926 = vsub.f32 %v1921, %v1924
    %v1927 = vand.u32 2147483647, %v1926
    %v1928 = vadd.f32 %v1913, %v1927
    %1930 = vrot.lane.b32.xlu0 %v1926, 1
    %v1931 = vpop.permute.xlu0 %1930
    %v1933 = vsub.f32 %v1926, %v1931
    %v1934 = vand.u32 2147483647, %v1933
    %v1935 = vadd.f32 %v1920, %v1934
    %v1936 = vsub.f32 %v1726, %v1796
    %1938 = vrot.lane.b32.xlu0 %v1936, 1
    %v1939 = vpop.permute.xlu0 %1938
    %v1941 = vsub.f32 %v1936, %v1939
    %v1942 = vand.u32 2147483647, %v1941
    %v1943 = vadd.f32 %v1928, %v1942
    %1945 = vrot.lane.b32.xlu0 %v1941, 1
    %v1946 = vpop.permute.xlu0 %1945
    %v1948 = vsub.f32 %v1941, %v1946
    %v1949 = vand.u32 2147483647, %v1948
    %v1950 = vadd.f32 %v1935, %v1949
    %v1951 = vsub.f32 %v1729, %v1799
    %1953 = vrot.lane.b32.xlu0 %v1951, 1
    %v1954 = vpop.permute.xlu0 %1953
    %v1956 = vsub.f32 %v1951, %v1954
    %v1957 = vand.u32 2147483647, %v1956
    %v1958 = vadd.f32 %v1943, %v1957
    %1960 = vrot.lane.b32.xlu0 %v1956, 1
    %v1961 = vpop.permute.xlu0 %1960
    %v1963 = vsub.f32 %v1956, %v1961
    %v1964 = vand.u32 2147483647, %v1963
    %v1965 = vadd.f32 %v1950, %v1964
    %v1966 = vsub.f32 %v1732, %v1802
    %1968 = vrot.lane.b32.xlu0 %v1966, 1
    %v1969 = vpop.permute.xlu0 %1968
    %v1971 = vsub.f32 %v1966, %v1969
    %v1972 = vand.u32 2147483647, %v1971
    %v1973 = vadd.f32 %v1958, %v1972
    %1975 = vrot.lane.b32.xlu0 %v1971, 1
    %v1976 = vpop.permute.xlu0 %1975
    %v1978 = vsub.f32 %v1971, %v1976
    %v1979 = vand.u32 2147483647, %v1978
    %v1980 = vadd.f32 %v1965, %v1979
    %v1981 = vsub.f32 %v1735, %v1805
    %1983 = vrot.lane.b32.xlu0 %v1981, 1
    %v1984 = vpop.permute.xlu0 %1983
    %v1986 = vsub.f32 %v1981, %v1984
    %v1987 = vand.u32 2147483647, %v1986
    %v1988 = vadd.f32 %v1973, %v1987
    %1990 = vrot.lane.b32.xlu0 %v1986, 1
    %v1991 = vpop.permute.xlu0 %1990
    %v1993 = vsub.f32 %v1986, %v1991
    %v1994 = vand.u32 2147483647, %v1993
    %v1995 = vadd.f32 %v1980, %v1994
    %s1996 = scalar_lea.vmem %s0, 72
    %v1997 = vld [vmem:[%s1996] sm:$0x3]
    %s1998 = scalar_lea.vmem %s0, 74
    %v1999 = vld [vmem:[%s1998] sm:$0x3]
    %s2000 = scalar_lea.vmem %s0, 76
    %v2001 = vld [vmem:[%s2000] sm:$0x3]
    %s2002 = scalar_lea.vmem %s0, 78
    %v2003 = vld [vmem:[%s2002] sm:$0x3]
    %s2004 = scalar_lea.vmem %s0, 80
    %v2005 = vld [vmem:[%s2004] sm:$0x3]
    %s2006 = scalar_lea.vmem %s0, 82
    %v2007 = vld [vmem:[%s2006] sm:$0x3]
    %v2008 = vmul.f32 %v1997, %v1997
    %v2009 = vmul.f32 %v1999, %v1999
    %v2010 = vadd.f32 %v2008, %v2009
    %v2011 = vmul.f32 %v2001, %v2001
    %v2012 = vadd.f32 %v2010, %v2011
    %v2013 = vmax.f32 %v2012, 1e-24
    %v2014 = vrsqrt.pop %v2013
    %v2015 = vmul.f32 %v2014, %v2013
    %v2016 = vmul.f32 %v2015, %v2014
    %v2017 = vmul.f32 0.5, %v2016
    %v2018 = vsub.f32 1.5, %v2017
    %v2019 = vmul.f32 %v2014, %v2018
    %vm2020 = vweird.f32 %v2013
    %vm2021 = vweird.f32 %v2014
    %vm2022 = vmor %vm2020, %vm2021
    %v2023 = vsel %vm2022, %v2014, %v2019
    %v2024 = vmul.f32 %v1997, %v2023
    %v2025 = vmul.f32 %v1999, %v2023
    %v2026 = vmul.f32 %v2001, %v2023
    %v2027 = vmul.f32 %v2024, %v2003
    %v2028 = vmul.f32 %v2025, %v2005
    %v2029 = vadd.f32 %v2027, %v2028
    %v2030 = vmul.f32 %v2026, %v2007
    %v2031 = vadd.f32 %v2029, %v2030
    %v2032 = vmul.f32 %v2031, %v2024
    %v2033 = vsub.f32 %v2003, %v2032
    %v2034 = vmul.f32 %v2031, %v2025
    %v2035 = vsub.f32 %v2005, %v2034
    %v2036 = vmul.f32 %v2031, %v2026
    %v2037 = vsub.f32 %v2007, %v2036
    %v2038 = vmul.f32 %v2033, %v2033
    %v2039 = vmul.f32 %v2035, %v2035
    %v2040 = vadd.f32 %v2038, %v2039
    %v2041 = vmul.f32 %v2037, %v2037
    %v2042 = vadd.f32 %v2040, %v2041
    %v2043 = vmax.f32 %v2042, 1e-24
    %v2044 = vrsqrt.pop %v2043
    %v2045 = vmul.f32 %v2044, %v2043
    %v2046 = vmul.f32 %v2045, %v2044
    %v2047 = vmul.f32 0.5, %v2046
    %v2048 = vsub.f32 1.5, %v2047
    %v2049 = vmul.f32 %v2044, %v2048
    %vm2050 = vweird.f32 %v2043
    %vm2051 = vweird.f32 %v2044
    %vm2052 = vmor %vm2050, %vm2051
    %v2053 = vsel %vm2052, %v2044, %v2049
    %v2054 = vmul.f32 %v2033, %v2053
    %v2055 = vmul.f32 %v2035, %v2053
    %v2056 = vmul.f32 %v2037, %v2053
    %v2057 = vmul.f32 %v2025, %v2056
    %v2058 = vmul.f32 %v2026, %v2055
    %v2059 = vsub.f32 %v2057, %v2058
    %v2060 = vmul.f32 %v2026, %v2054
    %v2061 = vmul.f32 %v2024, %v2056
    %v2062 = vsub.f32 %v2060, %v2061
    %v2063 = vmul.f32 %v2024, %v2055
    %v2064 = vmul.f32 %v2025, %v2054
    %v2065 = vsub.f32 %v2063, %v2064
    %s2066 = scalar_lea.vmem %s1, 72
    %v2067 = vld [vmem:[%s2066] sm:$0x3]
    %s2068 = scalar_lea.vmem %s1, 74
    %v2069 = vld [vmem:[%s2068] sm:$0x3]
    %s2070 = scalar_lea.vmem %s1, 76
    %v2071 = vld [vmem:[%s2070] sm:$0x3]
    %s2072 = scalar_lea.vmem %s1, 78
    %v2073 = vld [vmem:[%s2072] sm:$0x3]
    %s2074 = scalar_lea.vmem %s1, 80
    %v2075 = vld [vmem:[%s2074] sm:$0x3]
    %s2076 = scalar_lea.vmem %s1, 82
    %v2077 = vld [vmem:[%s2076] sm:$0x3]
    %v2078 = vmul.f32 %v2067, %v2067
    %v2079 = vmul.f32 %v2069, %v2069
    %v2080 = vadd.f32 %v2078, %v2079
    %v2081 = vmul.f32 %v2071, %v2071
    %v2082 = vadd.f32 %v2080, %v2081
    %v2083 = vmax.f32 %v2082, 1e-24
    %v2084 = vrsqrt.pop %v2083
    %v2085 = vmul.f32 %v2084, %v2083
    %v2086 = vmul.f32 %v2085, %v2084
    %v2087 = vmul.f32 0.5, %v2086
    %v2088 = vsub.f32 1.5, %v2087
    %v2089 = vmul.f32 %v2084, %v2088
    %vm2090 = vweird.f32 %v2083
    %vm2091 = vweird.f32 %v2084
    %vm2092 = vmor %vm2090, %vm2091
    %v2093 = vsel %vm2092, %v2084, %v2089
    %v2094 = vmul.f32 %v2067, %v2093
    %v2095 = vmul.f32 %v2069, %v2093
    %v2096 = vmul.f32 %v2071, %v2093
    %v2097 = vmul.f32 %v2094, %v2073
    %v2098 = vmul.f32 %v2095, %v2075
    %v2099 = vadd.f32 %v2097, %v2098
    %v2100 = vmul.f32 %v2096, %v2077
    %v2101 = vadd.f32 %v2099, %v2100
    %v2102 = vmul.f32 %v2101, %v2094
    %v2103 = vsub.f32 %v2073, %v2102
    %v2104 = vmul.f32 %v2101, %v2095
    %v2105 = vsub.f32 %v2075, %v2104
    %v2106 = vmul.f32 %v2101, %v2096
    %v2107 = vsub.f32 %v2077, %v2106
    %v2108 = vmul.f32 %v2103, %v2103
    %v2109 = vmul.f32 %v2105, %v2105
    %v2110 = vadd.f32 %v2108, %v2109
    %v2111 = vmul.f32 %v2107, %v2107
    %v2112 = vadd.f32 %v2110, %v2111
    %v2113 = vmax.f32 %v2112, 1e-24
    %v2114 = vrsqrt.pop %v2113
    %v2115 = vmul.f32 %v2114, %v2113
    %v2116 = vmul.f32 %v2115, %v2114
    %v2117 = vmul.f32 0.5, %v2116
    %v2118 = vsub.f32 1.5, %v2117
    %v2119 = vmul.f32 %v2114, %v2118
    %vm2120 = vweird.f32 %v2113
    %vm2121 = vweird.f32 %v2114
    %vm2122 = vmor %vm2120, %vm2121
    %v2123 = vsel %vm2122, %v2114, %v2119
    %v2124 = vmul.f32 %v2103, %v2123
    %v2125 = vmul.f32 %v2105, %v2123
    %v2126 = vmul.f32 %v2107, %v2123
    %v2127 = vmul.f32 %v2095, %v2126
    %v2128 = vmul.f32 %v2096, %v2125
    %v2129 = vsub.f32 %v2127, %v2128
    %v2130 = vmul.f32 %v2096, %v2124
    %v2131 = vmul.f32 %v2094, %v2126
    %v2132 = vsub.f32 %v2130, %v2131
    %v2133 = vmul.f32 %v2094, %v2125
    %v2134 = vmul.f32 %v2095, %v2124
    %v2135 = vsub.f32 %v2133, %v2134
    %v2136 = vmul.f32 %v2024, %v2094
    %v2137 = vmul.f32 %v2025, %v2095
    %v2138 = vadd.f32 %v2136, %v2137
    %v2139 = vmul.f32 %v2026, %v2096
    %v2140 = vadd.f32 %v2138, %v2139
    %v2141 = vmul.f32 %v2054, %v2124
    %v2142 = vadd.f32 %v2140, %v2141
    %v2143 = vmul.f32 %v2055, %v2125
    %v2144 = vadd.f32 %v2142, %v2143
    %v2145 = vmul.f32 %v2056, %v2126
    %v2146 = vadd.f32 %v2144, %v2145
    %v2147 = vmul.f32 %v2059, %v2129
    %v2148 = vadd.f32 %v2146, %v2147
    %v2149 = vmul.f32 %v2062, %v2132
    %v2150 = vadd.f32 %v2148, %v2149
    %v2151 = vmul.f32 %v2065, %v2135
    %v2152 = vadd.f32 %v2150, %v2151
    %v2153 = vsub.f32 %v2152, 1.0
    %v2154 = vmul.f32 %v2153, 0.5
    %v2155 = vmax.f32 %v2154, -0.999999
    %v2156 = vmin.f32 %v2155, 0.999999
    %v2157 = vand.u32 2147483647, %v2156
    %v2158 = vmul.f32 %v2157, -0.0012624911
    %v2159 = vadd.f32 %v2158, 0.00667009
    %v2160 = vmul.f32 %v2159, %v2157
    %v2161 = vadd.f32 %v2160, -0.017088126
    %v2162 = vmul.f32 %v2161, %v2157
    %v2163 = vadd.f32 %v2162, 0.03089188
    %v2164 = vmul.f32 %v2163, %v2157
    %v2165 = vadd.f32 %v2164, -0.050174303
    %v2166 = vmul.f32 %v2165, %v2157
    %v2167 = vadd.f32 %v2166, 0.08897899
    %v2168 = vmul.f32 %v2167, %v2157
    %v2169 = vadd.f32 %v2168, -0.2145988
    %v2170 = vmul.f32 %v2169, %v2157
    %v2171 = vadd.f32 %v2170, 1.5707963
    %v2172 = vsub.f32 1.0, %v2157
    %v2173 = vmax.f32 %v2172, 0.0
    %v2174 = vrsqrt.pop %v2173
    %v2175 = vmul.f32 %v2174, %v2173
    %v2176 = vmul.f32 %v2175, %v2174
    %v2177 = vmul.f32 0.5, %v2176
    %v2178 = vsub.f32 1.5, %v2177
    %v2179 = vmul.f32 %v2174, %v2178
    %v2180 = vmul.f32 %v2173, %v2179
    %vm2181 = vcmp.eq.f32.partialorder %v2173, inf
    %v2182 = vsel %vm2181, %v2173, %v2180
    %vm2183 = vcmp.eq.f32.partialorder %v2173, 0.0
    %v2184 = vand.u32 %v2173, 2147483648
    %v2185 = vsel %vm2183, %v2184, %v2182
    %v2186 = vmul.f32 %v2185, %v2171
    %vm2187 = vcmp.lt.f32.partialorder %v2156, 0.0
    %v2188 = vsub.f32 3.1415927, %v2186
    %v2189 = vsel %vm2187, %v2188, %v2186
    %v2190 = vadd.f32 %v1860, %v2189
    %v2191 = vsub.f32 %v2024, %v2094
    %2193 = vrot.lane.b32.xlu0 %v2191, 1
    %v2194 = vpop.permute.xlu0 %2193
    %v2196 = vsub.f32 %v2191, %v2194
    %v2197 = vand.u32 2147483647, %v2196
    %v2198 = vadd.f32 %v1988, %v2197
    %2200 = vrot.lane.b32.xlu0 %v2196, 1
    %v2201 = vpop.permute.xlu0 %2200
    %v2203 = vsub.f32 %v2196, %v2201
    %v2204 = vand.u32 2147483647, %v2203
    %v2205 = vadd.f32 %v1995, %v2204
    %v2206 = vsub.f32 %v2025, %v2095
    %2208 = vrot.lane.b32.xlu0 %v2206, 1
    %v2209 = vpop.permute.xlu0 %2208
    %v2211 = vsub.f32 %v2206, %v2209
    %v2212 = vand.u32 2147483647, %v2211
    %v2213 = vadd.f32 %v2198, %v2212
    %2215 = vrot.lane.b32.xlu0 %v2211, 1
    %v2216 = vpop.permute.xlu0 %2215
    %v2218 = vsub.f32 %v2211, %v2216
    %v2219 = vand.u32 2147483647, %v2218
    %v2220 = vadd.f32 %v2205, %v2219
    %v2221 = vsub.f32 %v2026, %v2096
    %2223 = vrot.lane.b32.xlu0 %v2221, 1
    %v2224 = vpop.permute.xlu0 %2223
    %v2226 = vsub.f32 %v2221, %v2224
    %v2227 = vand.u32 2147483647, %v2226
    %v2228 = vadd.f32 %v2213, %v2227
    %2230 = vrot.lane.b32.xlu0 %v2226, 1
    %v2231 = vpop.permute.xlu0 %2230
    %v2233 = vsub.f32 %v2226, %v2231
    %v2234 = vand.u32 2147483647, %v2233
    %v2235 = vadd.f32 %v2220, %v2234
    %v2236 = vsub.f32 %v2054, %v2124
    %2238 = vrot.lane.b32.xlu0 %v2236, 1
    %v2239 = vpop.permute.xlu0 %2238
    %v2241 = vsub.f32 %v2236, %v2239
    %v2242 = vand.u32 2147483647, %v2241
    %v2243 = vadd.f32 %v2228, %v2242
    %2245 = vrot.lane.b32.xlu0 %v2241, 1
    %v2246 = vpop.permute.xlu0 %2245
    %v2248 = vsub.f32 %v2241, %v2246
    %v2249 = vand.u32 2147483647, %v2248
    %v2250 = vadd.f32 %v2235, %v2249
    %v2251 = vsub.f32 %v2055, %v2125
    %2253 = vrot.lane.b32.xlu0 %v2251, 1
    %v2254 = vpop.permute.xlu0 %2253
    %v2256 = vsub.f32 %v2251, %v2254
    %v2257 = vand.u32 2147483647, %v2256
    %v2258 = vadd.f32 %v2243, %v2257
    %2260 = vrot.lane.b32.xlu0 %v2256, 1
    %v2261 = vpop.permute.xlu0 %2260
    %v2263 = vsub.f32 %v2256, %v2261
    %v2264 = vand.u32 2147483647, %v2263
    %v2265 = vadd.f32 %v2250, %v2264
    %v2266 = vsub.f32 %v2056, %v2126
    %2268 = vrot.lane.b32.xlu0 %v2266, 1
    %v2269 = vpop.permute.xlu0 %2268
    %v2271 = vsub.f32 %v2266, %v2269
    %v2272 = vand.u32 2147483647, %v2271
    %v2273 = vadd.f32 %v2258, %v2272
    %2275 = vrot.lane.b32.xlu0 %v2271, 1
    %v2276 = vpop.permute.xlu0 %2275
    %v2278 = vsub.f32 %v2271, %v2276
    %v2279 = vand.u32 2147483647, %v2278
    %v2280 = vadd.f32 %v2265, %v2279
    %v2281 = vsub.f32 %v2059, %v2129
    %2283 = vrot.lane.b32.xlu0 %v2281, 1
    %v2284 = vpop.permute.xlu0 %2283
    %v2286 = vsub.f32 %v2281, %v2284
    %v2287 = vand.u32 2147483647, %v2286
    %v2288 = vadd.f32 %v2273, %v2287
    %2290 = vrot.lane.b32.xlu0 %v2286, 1
    %v2291 = vpop.permute.xlu0 %2290
    %v2293 = vsub.f32 %v2286, %v2291
    %v2294 = vand.u32 2147483647, %v2293
    %v2295 = vadd.f32 %v2280, %v2294
    %v2296 = vsub.f32 %v2062, %v2132
    %2298 = vrot.lane.b32.xlu0 %v2296, 1
    %v2299 = vpop.permute.xlu0 %2298
    %v2301 = vsub.f32 %v2296, %v2299
    %v2302 = vand.u32 2147483647, %v2301
    %v2303 = vadd.f32 %v2288, %v2302
    %2305 = vrot.lane.b32.xlu0 %v2301, 1
    %v2306 = vpop.permute.xlu0 %2305
    %v2308 = vsub.f32 %v2301, %v2306
    %v2309 = vand.u32 2147483647, %v2308
    %v2310 = vadd.f32 %v2295, %v2309
    %v2311 = vsub.f32 %v2065, %v2135
    %2313 = vrot.lane.b32.xlu0 %v2311, 1
    %v2314 = vpop.permute.xlu0 %2313
    %v2316 = vsub.f32 %v2311, %v2314
    %v2317 = vand.u32 2147483647, %v2316
    %v2318 = vadd.f32 %v2303, %v2317
    %2320 = vrot.lane.b32.xlu0 %v2316, 1
    %v2321 = vpop.permute.xlu0 %2320
    %v2323 = vsub.f32 %v2316, %v2321
    %v2324 = vand.u32 2147483647, %v2323
    %v2325 = vadd.f32 %v2310, %v2324
    %s2326 = scalar_lea.vmem %s0, 84
    %v2327 = vld [vmem:[%s2326] sm:$0x3]
    %s2328 = scalar_lea.vmem %s0, 86
    %v2329 = vld [vmem:[%s2328] sm:$0x3]
    %s2330 = scalar_lea.vmem %s0, 88
    %v2331 = vld [vmem:[%s2330] sm:$0x3]
    %s2332 = scalar_lea.vmem %s0, 90
    %v2333 = vld [vmem:[%s2332] sm:$0x3]
    %s2334 = scalar_lea.vmem %s0, 92
    %v2335 = vld [vmem:[%s2334] sm:$0x3]
    %s2336 = scalar_lea.vmem %s0, 94
    %v2337 = vld [vmem:[%s2336] sm:$0x3]
    %v2338 = vmul.f32 %v2327, %v2327
    %v2339 = vmul.f32 %v2329, %v2329
    %v2340 = vadd.f32 %v2338, %v2339
    %v2341 = vmul.f32 %v2331, %v2331
    %v2342 = vadd.f32 %v2340, %v2341
    %v2343 = vmax.f32 %v2342, 1e-24
    %v2344 = vrsqrt.pop %v2343
    %v2345 = vmul.f32 %v2344, %v2343
    %v2346 = vmul.f32 %v2345, %v2344
    %v2347 = vmul.f32 0.5, %v2346
    %v2348 = vsub.f32 1.5, %v2347
    %v2349 = vmul.f32 %v2344, %v2348
    %vm2350 = vweird.f32 %v2343
    %vm2351 = vweird.f32 %v2344
    %vm2352 = vmor %vm2350, %vm2351
    %v2353 = vsel %vm2352, %v2344, %v2349
    %v2354 = vmul.f32 %v2327, %v2353
    %v2355 = vmul.f32 %v2329, %v2353
    %v2356 = vmul.f32 %v2331, %v2353
    %v2357 = vmul.f32 %v2354, %v2333
    %v2358 = vmul.f32 %v2355, %v2335
    %v2359 = vadd.f32 %v2357, %v2358
    %v2360 = vmul.f32 %v2356, %v2337
    %v2361 = vadd.f32 %v2359, %v2360
    %v2362 = vmul.f32 %v2361, %v2354
    %v2363 = vsub.f32 %v2333, %v2362
    %v2364 = vmul.f32 %v2361, %v2355
    %v2365 = vsub.f32 %v2335, %v2364
    %v2366 = vmul.f32 %v2361, %v2356
    %v2367 = vsub.f32 %v2337, %v2366
    %v2368 = vmul.f32 %v2363, %v2363
    %v2369 = vmul.f32 %v2365, %v2365
    %v2370 = vadd.f32 %v2368, %v2369
    %v2371 = vmul.f32 %v2367, %v2367
    %v2372 = vadd.f32 %v2370, %v2371
    %v2373 = vmax.f32 %v2372, 1e-24
    %v2374 = vrsqrt.pop %v2373
    %v2375 = vmul.f32 %v2374, %v2373
    %v2376 = vmul.f32 %v2375, %v2374
    %v2377 = vmul.f32 0.5, %v2376
    %v2378 = vsub.f32 1.5, %v2377
    %v2379 = vmul.f32 %v2374, %v2378
    %vm2380 = vweird.f32 %v2373
    %vm2381 = vweird.f32 %v2374
    %vm2382 = vmor %vm2380, %vm2381
    %v2383 = vsel %vm2382, %v2374, %v2379
    %v2384 = vmul.f32 %v2363, %v2383
    %v2385 = vmul.f32 %v2365, %v2383
    %v2386 = vmul.f32 %v2367, %v2383
    %v2387 = vmul.f32 %v2355, %v2386
    %v2388 = vmul.f32 %v2356, %v2385
    %v2389 = vsub.f32 %v2387, %v2388
    %v2390 = vmul.f32 %v2356, %v2384
    %v2391 = vmul.f32 %v2354, %v2386
    %v2392 = vsub.f32 %v2390, %v2391
    %v2393 = vmul.f32 %v2354, %v2385
    %v2394 = vmul.f32 %v2355, %v2384
    %v2395 = vsub.f32 %v2393, %v2394
    %s2396 = scalar_lea.vmem %s1, 84
    %v2397 = vld [vmem:[%s2396] sm:$0x3]
    %s2398 = scalar_lea.vmem %s1, 86
    %v2399 = vld [vmem:[%s2398] sm:$0x3]
    %s2400 = scalar_lea.vmem %s1, 88
    %v2401 = vld [vmem:[%s2400] sm:$0x3]
    %s2402 = scalar_lea.vmem %s1, 90
    %v2403 = vld [vmem:[%s2402] sm:$0x3]
    %s2404 = scalar_lea.vmem %s1, 92
    %v2405 = vld [vmem:[%s2404] sm:$0x3]
    %s2406 = scalar_lea.vmem %s1, 94
    %v2407 = vld [vmem:[%s2406] sm:$0x3]
    %v2408 = vmul.f32 %v2397, %v2397
    %v2409 = vmul.f32 %v2399, %v2399
    %v2410 = vadd.f32 %v2408, %v2409
    %v2411 = vmul.f32 %v2401, %v2401
    %v2412 = vadd.f32 %v2410, %v2411
    %v2413 = vmax.f32 %v2412, 1e-24
    %v2414 = vrsqrt.pop %v2413
    %v2415 = vmul.f32 %v2414, %v2413
    %v2416 = vmul.f32 %v2415, %v2414
    %v2417 = vmul.f32 0.5, %v2416
    %v2418 = vsub.f32 1.5, %v2417
    %v2419 = vmul.f32 %v2414, %v2418
    %vm2420 = vweird.f32 %v2413
    %vm2421 = vweird.f32 %v2414
    %vm2422 = vmor %vm2420, %vm2421
    %v2423 = vsel %vm2422, %v2414, %v2419
    %v2424 = vmul.f32 %v2397, %v2423
    %v2425 = vmul.f32 %v2399, %v2423
    %v2426 = vmul.f32 %v2401, %v2423
    %v2427 = vmul.f32 %v2424, %v2403
    %v2428 = vmul.f32 %v2425, %v2405
    %v2429 = vadd.f32 %v2427, %v2428
    %v2430 = vmul.f32 %v2426, %v2407
    %v2431 = vadd.f32 %v2429, %v2430
    %v2432 = vmul.f32 %v2431, %v2424
    %v2433 = vsub.f32 %v2403, %v2432
    %v2434 = vmul.f32 %v2431, %v2425
    %v2435 = vsub.f32 %v2405, %v2434
    %v2436 = vmul.f32 %v2431, %v2426
    %v2437 = vsub.f32 %v2407, %v2436
    %v2438 = vmul.f32 %v2433, %v2433
    %v2439 = vmul.f32 %v2435, %v2435
    %v2440 = vadd.f32 %v2438, %v2439
    %v2441 = vmul.f32 %v2437, %v2437
    %v2442 = vadd.f32 %v2440, %v2441
    %v2443 = vmax.f32 %v2442, 1e-24
    %v2444 = vrsqrt.pop %v2443
    %v2445 = vmul.f32 %v2444, %v2443
    %v2446 = vmul.f32 %v2445, %v2444
    %v2447 = vmul.f32 0.5, %v2446
    %v2448 = vsub.f32 1.5, %v2447
    %v2449 = vmul.f32 %v2444, %v2448
    %vm2450 = vweird.f32 %v2443
    %vm2451 = vweird.f32 %v2444
    %vm2452 = vmor %vm2450, %vm2451
    %v2453 = vsel %vm2452, %v2444, %v2449
    %v2454 = vmul.f32 %v2433, %v2453
    %v2455 = vmul.f32 %v2435, %v2453
    %v2456 = vmul.f32 %v2437, %v2453
    %v2457 = vmul.f32 %v2425, %v2456
    %v2458 = vmul.f32 %v2426, %v2455
    %v2459 = vsub.f32 %v2457, %v2458
    %v2460 = vmul.f32 %v2426, %v2454
    %v2461 = vmul.f32 %v2424, %v2456
    %v2462 = vsub.f32 %v2460, %v2461
    %v2463 = vmul.f32 %v2424, %v2455
    %v2464 = vmul.f32 %v2425, %v2454
    %v2465 = vsub.f32 %v2463, %v2464
    %v2466 = vmul.f32 %v2354, %v2424
    %v2467 = vmul.f32 %v2355, %v2425
    %v2468 = vadd.f32 %v2466, %v2467
    %v2469 = vmul.f32 %v2356, %v2426
    %v2470 = vadd.f32 %v2468, %v2469
    %v2471 = vmul.f32 %v2384, %v2454
    %v2472 = vadd.f32 %v2470, %v2471
    %v2473 = vmul.f32 %v2385, %v2455
    %v2474 = vadd.f32 %v2472, %v2473
    %v2475 = vmul.f32 %v2386, %v2456
    %v2476 = vadd.f32 %v2474, %v2475
    %v2477 = vmul.f32 %v2389, %v2459
    %v2478 = vadd.f32 %v2476, %v2477
    %v2479 = vmul.f32 %v2392, %v2462
    %v2480 = vadd.f32 %v2478, %v2479
    %v2481 = vmul.f32 %v2395, %v2465
    %v2482 = vadd.f32 %v2480, %v2481
    %v2483 = vsub.f32 %v2482, 1.0
    %v2484 = vmul.f32 %v2483, 0.5
    %v2485 = vmax.f32 %v2484, -0.999999
    %v2486 = vmin.f32 %v2485, 0.999999
    %v2487 = vand.u32 2147483647, %v2486
    %v2488 = vmul.f32 %v2487, -0.0012624911
    %v2489 = vadd.f32 %v2488, 0.00667009
    %v2490 = vmul.f32 %v2489, %v2487
    %v2491 = vadd.f32 %v2490, -0.017088126
    %v2492 = vmul.f32 %v2491, %v2487
    %v2493 = vadd.f32 %v2492, 0.03089188
    %v2494 = vmul.f32 %v2493, %v2487
    %v2495 = vadd.f32 %v2494, -0.050174303
    %v2496 = vmul.f32 %v2495, %v2487
    %v2497 = vadd.f32 %v2496, 0.08897899
    %v2498 = vmul.f32 %v2497, %v2487
    %v2499 = vadd.f32 %v2498, -0.2145988
    %v2500 = vmul.f32 %v2499, %v2487
    %v2501 = vadd.f32 %v2500, 1.5707963
    %v2502 = vsub.f32 1.0, %v2487
    %v2503 = vmax.f32 %v2502, 0.0
    %v2504 = vrsqrt.pop %v2503
    %v2505 = vmul.f32 %v2504, %v2503
    %v2506 = vmul.f32 %v2505, %v2504
    %v2507 = vmul.f32 0.5, %v2506
    %v2508 = vsub.f32 1.5, %v2507
    %v2509 = vmul.f32 %v2504, %v2508
    %v2510 = vmul.f32 %v2503, %v2509
    %vm2511 = vcmp.eq.f32.partialorder %v2503, inf
    %v2512 = vsel %vm2511, %v2503, %v2510
    %vm2513 = vcmp.eq.f32.partialorder %v2503, 0.0
    %v2514 = vand.u32 %v2503, 2147483648
    %v2515 = vsel %vm2513, %v2514, %v2512
    %v2516 = vmul.f32 %v2515, %v2501
    %vm2517 = vcmp.lt.f32.partialorder %v2486, 0.0
    %v2518 = vsub.f32 3.1415927, %v2516
    %v2519 = vsel %vm2517, %v2518, %v2516
    %v2520 = vadd.f32 %v2190, %v2519
    %v2521 = vsub.f32 %v2354, %v2424
    %2523 = vrot.lane.b32.xlu0 %v2521, 1
    %v2524 = vpop.permute.xlu0 %2523
    %v2526 = vsub.f32 %v2521, %v2524
    %v2527 = vand.u32 2147483647, %v2526
    %v2528 = vadd.f32 %v2318, %v2527
    %2530 = vrot.lane.b32.xlu0 %v2526, 1
    %v2531 = vpop.permute.xlu0 %2530
    %v2533 = vsub.f32 %v2526, %v2531
    %v2534 = vand.u32 2147483647, %v2533
    %v2535 = vadd.f32 %v2325, %v2534
    %v2536 = vsub.f32 %v2355, %v2425
    %2538 = vrot.lane.b32.xlu0 %v2536, 1
    %v2539 = vpop.permute.xlu0 %2538
    %v2541 = vsub.f32 %v2536, %v2539
    %v2542 = vand.u32 2147483647, %v2541
    %v2543 = vadd.f32 %v2528, %v2542
    %2545 = vrot.lane.b32.xlu0 %v2541, 1
    %v2546 = vpop.permute.xlu0 %2545
    %v2548 = vsub.f32 %v2541, %v2546
    %v2549 = vand.u32 2147483647, %v2548
    %v2550 = vadd.f32 %v2535, %v2549
    %v2551 = vsub.f32 %v2356, %v2426
    %2553 = vrot.lane.b32.xlu0 %v2551, 1
    %v2554 = vpop.permute.xlu0 %2553
    %v2556 = vsub.f32 %v2551, %v2554
    %v2557 = vand.u32 2147483647, %v2556
    %v2558 = vadd.f32 %v2543, %v2557
    %2560 = vrot.lane.b32.xlu0 %v2556, 1
    %v2561 = vpop.permute.xlu0 %2560
    %v2563 = vsub.f32 %v2556, %v2561
    %v2564 = vand.u32 2147483647, %v2563
    %v2565 = vadd.f32 %v2550, %v2564
    %v2566 = vsub.f32 %v2384, %v2454
    %2568 = vrot.lane.b32.xlu0 %v2566, 1
    %v2569 = vpop.permute.xlu0 %2568
    %v2571 = vsub.f32 %v2566, %v2569
    %v2572 = vand.u32 2147483647, %v2571
    %v2573 = vadd.f32 %v2558, %v2572
    %2575 = vrot.lane.b32.xlu0 %v2571, 1
    %v2576 = vpop.permute.xlu0 %2575
    %v2578 = vsub.f32 %v2571, %v2576
    %v2579 = vand.u32 2147483647, %v2578
    %v2580 = vadd.f32 %v2565, %v2579
    %v2581 = vsub.f32 %v2385, %v2455
    %2583 = vrot.lane.b32.xlu0 %v2581, 1
    %v2584 = vpop.permute.xlu0 %2583
    %v2586 = vsub.f32 %v2581, %v2584
    %v2587 = vand.u32 2147483647, %v2586
    %v2588 = vadd.f32 %v2573, %v2587
    %2590 = vrot.lane.b32.xlu0 %v2586, 1
    %v2591 = vpop.permute.xlu0 %2590
    %v2593 = vsub.f32 %v2586, %v2591
    %v2594 = vand.u32 2147483647, %v2593
    %v2595 = vadd.f32 %v2580, %v2594
    %v2596 = vsub.f32 %v2386, %v2456
    %2598 = vrot.lane.b32.xlu0 %v2596, 1
    %v2599 = vpop.permute.xlu0 %2598
    %v2601 = vsub.f32 %v2596, %v2599
    %v2602 = vand.u32 2147483647, %v2601
    %v2603 = vadd.f32 %v2588, %v2602
    %2605 = vrot.lane.b32.xlu0 %v2601, 1
    %v2606 = vpop.permute.xlu0 %2605
    %v2608 = vsub.f32 %v2601, %v2606
    %v2609 = vand.u32 2147483647, %v2608
    %v2610 = vadd.f32 %v2595, %v2609
    %v2611 = vsub.f32 %v2389, %v2459
    %2613 = vrot.lane.b32.xlu0 %v2611, 1
    %v2614 = vpop.permute.xlu0 %2613
    %v2616 = vsub.f32 %v2611, %v2614
    %v2617 = vand.u32 2147483647, %v2616
    %v2618 = vadd.f32 %v2603, %v2617
    %2620 = vrot.lane.b32.xlu0 %v2616, 1
    %v2621 = vpop.permute.xlu0 %2620
    %v2623 = vsub.f32 %v2616, %v2621
    %v2624 = vand.u32 2147483647, %v2623
    %v2625 = vadd.f32 %v2610, %v2624
    %v2626 = vsub.f32 %v2392, %v2462
    %2628 = vrot.lane.b32.xlu0 %v2626, 1
    %v2629 = vpop.permute.xlu0 %2628
    %v2631 = vsub.f32 %v2626, %v2629
    %v2632 = vand.u32 2147483647, %v2631
    %v2633 = vadd.f32 %v2618, %v2632
    %2635 = vrot.lane.b32.xlu0 %v2631, 1
    %v2636 = vpop.permute.xlu0 %2635
    %v2638 = vsub.f32 %v2631, %v2636
    %v2639 = vand.u32 2147483647, %v2638
    %v2640 = vadd.f32 %v2625, %v2639
    %v2641 = vsub.f32 %v2395, %v2465
    %2643 = vrot.lane.b32.xlu0 %v2641, 1
    %v2644 = vpop.permute.xlu0 %2643
    %v2646 = vsub.f32 %v2641, %v2644
    %v2647 = vand.u32 2147483647, %v2646
    %v2648 = vadd.f32 %v2633, %v2647
    %2650 = vrot.lane.b32.xlu0 %v2646, 1
    %v2651 = vpop.permute.xlu0 %2650
    %v2653 = vsub.f32 %v2646, %v2651
    %v2654 = vand.u32 2147483647, %v2653
    %v2655 = vadd.f32 %v2640, %v2654
    %s2656 = scalar_lea.vmem %s0, 96
    %v2657 = vld [vmem:[%s2656] sm:$0x3]
    %s2658 = scalar_lea.vmem %s0, 98
    %v2659 = vld [vmem:[%s2658] sm:$0x3]
    %s2660 = scalar_lea.vmem %s0, 100
    %v2661 = vld [vmem:[%s2660] sm:$0x3]
    %s2662 = scalar_lea.vmem %s0, 102
    %v2663 = vld [vmem:[%s2662] sm:$0x3]
    %s2664 = scalar_lea.vmem %s0, 104
    %v2665 = vld [vmem:[%s2664] sm:$0x3]
    %s2666 = scalar_lea.vmem %s0, 106
    %v2667 = vld [vmem:[%s2666] sm:$0x3]
    %v2668 = vmul.f32 %v2657, %v2657
    %v2669 = vmul.f32 %v2659, %v2659
    %v2670 = vadd.f32 %v2668, %v2669
    %v2671 = vmul.f32 %v2661, %v2661
    %v2672 = vadd.f32 %v2670, %v2671
    %v2673 = vmax.f32 %v2672, 1e-24
    %v2674 = vrsqrt.pop %v2673
    %v2675 = vmul.f32 %v2674, %v2673
    %v2676 = vmul.f32 %v2675, %v2674
    %v2677 = vmul.f32 0.5, %v2676
    %v2678 = vsub.f32 1.5, %v2677
    %v2679 = vmul.f32 %v2674, %v2678
    %vm2680 = vweird.f32 %v2673
    %vm2681 = vweird.f32 %v2674
    %vm2682 = vmor %vm2680, %vm2681
    %v2683 = vsel %vm2682, %v2674, %v2679
    %v2684 = vmul.f32 %v2657, %v2683
    %v2685 = vmul.f32 %v2659, %v2683
    %v2686 = vmul.f32 %v2661, %v2683
    %v2687 = vmul.f32 %v2684, %v2663
    %v2688 = vmul.f32 %v2685, %v2665
    %v2689 = vadd.f32 %v2687, %v2688
    %v2690 = vmul.f32 %v2686, %v2667
    %v2691 = vadd.f32 %v2689, %v2690
    %v2692 = vmul.f32 %v2691, %v2684
    %v2693 = vsub.f32 %v2663, %v2692
    %v2694 = vmul.f32 %v2691, %v2685
    %v2695 = vsub.f32 %v2665, %v2694
    %v2696 = vmul.f32 %v2691, %v2686
    %v2697 = vsub.f32 %v2667, %v2696
    %v2698 = vmul.f32 %v2693, %v2693
    %v2699 = vmul.f32 %v2695, %v2695
    %v2700 = vadd.f32 %v2698, %v2699
    %v2701 = vmul.f32 %v2697, %v2697
    %v2702 = vadd.f32 %v2700, %v2701
    %v2703 = vmax.f32 %v2702, 1e-24
    %v2704 = vrsqrt.pop %v2703
    %v2705 = vmul.f32 %v2704, %v2703
    %v2706 = vmul.f32 %v2705, %v2704
    %v2707 = vmul.f32 0.5, %v2706
    %v2708 = vsub.f32 1.5, %v2707
    %v2709 = vmul.f32 %v2704, %v2708
    %vm2710 = vweird.f32 %v2703
    %vm2711 = vweird.f32 %v2704
    %vm2712 = vmor %vm2710, %vm2711
    %v2713 = vsel %vm2712, %v2704, %v2709
    %v2714 = vmul.f32 %v2693, %v2713
    %v2715 = vmul.f32 %v2695, %v2713
    %v2716 = vmul.f32 %v2697, %v2713
    %v2717 = vmul.f32 %v2685, %v2716
    %v2718 = vmul.f32 %v2686, %v2715
    %v2719 = vsub.f32 %v2717, %v2718
    %v2720 = vmul.f32 %v2686, %v2714
    %v2721 = vmul.f32 %v2684, %v2716
    %v2722 = vsub.f32 %v2720, %v2721
    %v2723 = vmul.f32 %v2684, %v2715
    %v2724 = vmul.f32 %v2685, %v2714
    %v2725 = vsub.f32 %v2723, %v2724
    %s2726 = scalar_lea.vmem %s1, 96
    %v2727 = vld [vmem:[%s2726] sm:$0x3]
    %s2728 = scalar_lea.vmem %s1, 98
    %v2729 = vld [vmem:[%s2728] sm:$0x3]
    %s2730 = scalar_lea.vmem %s1, 100
    %v2731 = vld [vmem:[%s2730] sm:$0x3]
    %s2732 = scalar_lea.vmem %s1, 102
    %v2733 = vld [vmem:[%s2732] sm:$0x3]
    %s2734 = scalar_lea.vmem %s1, 104
    %v2735 = vld [vmem:[%s2734] sm:$0x3]
    %s2736 = scalar_lea.vmem %s1, 106
    %v2737 = vld [vmem:[%s2736] sm:$0x3]
    %v2738 = vmul.f32 %v2727, %v2727
    %v2739 = vmul.f32 %v2729, %v2729
    %v2740 = vadd.f32 %v2738, %v2739
    %v2741 = vmul.f32 %v2731, %v2731
    %v2742 = vadd.f32 %v2740, %v2741
    %v2743 = vmax.f32 %v2742, 1e-24
    %v2744 = vrsqrt.pop %v2743
    %v2745 = vmul.f32 %v2744, %v2743
    %v2746 = vmul.f32 %v2745, %v2744
    %v2747 = vmul.f32 0.5, %v2746
    %v2748 = vsub.f32 1.5, %v2747
    %v2749 = vmul.f32 %v2744, %v2748
    %vm2750 = vweird.f32 %v2743
    %vm2751 = vweird.f32 %v2744
    %vm2752 = vmor %vm2750, %vm2751
    %v2753 = vsel %vm2752, %v2744, %v2749
    %v2754 = vmul.f32 %v2727, %v2753
    %v2755 = vmul.f32 %v2729, %v2753
    %v2756 = vmul.f32 %v2731, %v2753
    %v2757 = vmul.f32 %v2754, %v2733
    %v2758 = vmul.f32 %v2755, %v2735
    %v2759 = vadd.f32 %v2757, %v2758
    %v2760 = vmul.f32 %v2756, %v2737
    %v2761 = vadd.f32 %v2759, %v2760
    %v2762 = vmul.f32 %v2761, %v2754
    %v2763 = vsub.f32 %v2733, %v2762
    %v2764 = vmul.f32 %v2761, %v2755
    %v2765 = vsub.f32 %v2735, %v2764
    %v2766 = vmul.f32 %v2761, %v2756
    %v2767 = vsub.f32 %v2737, %v2766
    %v2768 = vmul.f32 %v2763, %v2763
    %v2769 = vmul.f32 %v2765, %v2765
    %v2770 = vadd.f32 %v2768, %v2769
    %v2771 = vmul.f32 %v2767, %v2767
    %v2772 = vadd.f32 %v2770, %v2771
    %v2773 = vmax.f32 %v2772, 1e-24
    %v2774 = vrsqrt.pop %v2773
    %v2775 = vmul.f32 %v2774, %v2773
    %v2776 = vmul.f32 %v2775, %v2774
    %v2777 = vmul.f32 0.5, %v2776
    %v2778 = vsub.f32 1.5, %v2777
    %v2779 = vmul.f32 %v2774, %v2778
    %vm2780 = vweird.f32 %v2773
    %vm2781 = vweird.f32 %v2774
    %vm2782 = vmor %vm2780, %vm2781
    %v2783 = vsel %vm2782, %v2774, %v2779
    %v2784 = vmul.f32 %v2763, %v2783
    %v2785 = vmul.f32 %v2765, %v2783
    %v2786 = vmul.f32 %v2767, %v2783
    %v2787 = vmul.f32 %v2755, %v2786
    %v2788 = vmul.f32 %v2756, %v2785
    %v2789 = vsub.f32 %v2787, %v2788
    %v2790 = vmul.f32 %v2756, %v2784
    %v2791 = vmul.f32 %v2754, %v2786
    %v2792 = vsub.f32 %v2790, %v2791
    %v2793 = vmul.f32 %v2754, %v2785
    %v2794 = vmul.f32 %v2755, %v2784
    %v2795 = vsub.f32 %v2793, %v2794
    %v2796 = vmul.f32 %v2684, %v2754
    %v2797 = vmul.f32 %v2685, %v2755
    %v2798 = vadd.f32 %v2796, %v2797
    %v2799 = vmul.f32 %v2686, %v2756
    %v2800 = vadd.f32 %v2798, %v2799
    %v2801 = vmul.f32 %v2714, %v2784
    %v2802 = vadd.f32 %v2800, %v2801
    %v2803 = vmul.f32 %v2715, %v2785
    %v2804 = vadd.f32 %v2802, %v2803
    %v2805 = vmul.f32 %v2716, %v2786
    %v2806 = vadd.f32 %v2804, %v2805
    %v2807 = vmul.f32 %v2719, %v2789
    %v2808 = vadd.f32 %v2806, %v2807
    %v2809 = vmul.f32 %v2722, %v2792
    %v2810 = vadd.f32 %v2808, %v2809
    %v2811 = vmul.f32 %v2725, %v2795
    %v2812 = vadd.f32 %v2810, %v2811
    %v2813 = vsub.f32 %v2812, 1.0
    %v2814 = vmul.f32 %v2813, 0.5
    %v2815 = vmax.f32 %v2814, -0.999999
    %v2816 = vmin.f32 %v2815, 0.999999
    %v2817 = vand.u32 2147483647, %v2816
    %v2818 = vmul.f32 %v2817, -0.0012624911
    %v2819 = vadd.f32 %v2818, 0.00667009
    %v2820 = vmul.f32 %v2819, %v2817
    %v2821 = vadd.f32 %v2820, -0.017088126
    %v2822 = vmul.f32 %v2821, %v2817
    %v2823 = vadd.f32 %v2822, 0.03089188
    %v2824 = vmul.f32 %v2823, %v2817
    %v2825 = vadd.f32 %v2824, -0.050174303
    %v2826 = vmul.f32 %v2825, %v2817
    %v2827 = vadd.f32 %v2826, 0.08897899
    %v2828 = vmul.f32 %v2827, %v2817
    %v2829 = vadd.f32 %v2828, -0.2145988
    %v2830 = vmul.f32 %v2829, %v2817
    %v2831 = vadd.f32 %v2830, 1.5707963
    %v2832 = vsub.f32 1.0, %v2817
    %v2833 = vmax.f32 %v2832, 0.0
    %v2834 = vrsqrt.pop %v2833
    %v2835 = vmul.f32 %v2834, %v2833
    %v2836 = vmul.f32 %v2835, %v2834
    %v2837 = vmul.f32 0.5, %v2836
    %v2838 = vsub.f32 1.5, %v2837
    %v2839 = vmul.f32 %v2834, %v2838
    %v2840 = vmul.f32 %v2833, %v2839
    %vm2841 = vcmp.eq.f32.partialorder %v2833, inf
    %v2842 = vsel %vm2841, %v2833, %v2840
    %vm2843 = vcmp.eq.f32.partialorder %v2833, 0.0
    %v2844 = vand.u32 %v2833, 2147483648
    %v2845 = vsel %vm2843, %v2844, %v2842
    %v2846 = vmul.f32 %v2845, %v2831
    %vm2847 = vcmp.lt.f32.partialorder %v2816, 0.0
    %v2848 = vsub.f32 3.1415927, %v2846
    %v2849 = vsel %vm2847, %v2848, %v2846
    %v2850 = vadd.f32 %v2520, %v2849
    %v2851 = vsub.f32 %v2684, %v2754
    %2853 = vrot.lane.b32.xlu0 %v2851, 1
    %v2854 = vpop.permute.xlu0 %2853
    %v2856 = vsub.f32 %v2851, %v2854
    %v2857 = vand.u32 2147483647, %v2856
    %v2858 = vadd.f32 %v2648, %v2857
    %2860 = vrot.lane.b32.xlu0 %v2856, 1
    %v2861 = vpop.permute.xlu0 %2860
    %v2863 = vsub.f32 %v2856, %v2861
    %v2864 = vand.u32 2147483647, %v2863
    %v2865 = vadd.f32 %v2655, %v2864
    %v2866 = vsub.f32 %v2685, %v2755
    %2868 = vrot.lane.b32.xlu0 %v2866, 1
    %v2869 = vpop.permute.xlu0 %2868
    %v2871 = vsub.f32 %v2866, %v2869
    %v2872 = vand.u32 2147483647, %v2871
    %v2873 = vadd.f32 %v2858, %v2872
    %2875 = vrot.lane.b32.xlu0 %v2871, 1
    %v2876 = vpop.permute.xlu0 %2875
    %v2878 = vsub.f32 %v2871, %v2876
    %v2879 = vand.u32 2147483647, %v2878
    %v2880 = vadd.f32 %v2865, %v2879
    %v2881 = vsub.f32 %v2686, %v2756
    %2883 = vrot.lane.b32.xlu0 %v2881, 1
    %v2884 = vpop.permute.xlu0 %2883
    %v2886 = vsub.f32 %v2881, %v2884
    %v2887 = vand.u32 2147483647, %v2886
    %v2888 = vadd.f32 %v2873, %v2887
    %2890 = vrot.lane.b32.xlu0 %v2886, 1
    %v2891 = vpop.permute.xlu0 %2890
    %v2893 = vsub.f32 %v2886, %v2891
    %v2894 = vand.u32 2147483647, %v2893
    %v2895 = vadd.f32 %v2880, %v2894
    %v2896 = vsub.f32 %v2714, %v2784
    %2898 = vrot.lane.b32.xlu0 %v2896, 1
    %v2899 = vpop.permute.xlu0 %2898
    %v2901 = vsub.f32 %v2896, %v2899
    %v2902 = vand.u32 2147483647, %v2901
    %v2903 = vadd.f32 %v2888, %v2902
    %2905 = vrot.lane.b32.xlu0 %v2901, 1
    %v2906 = vpop.permute.xlu0 %2905
    %v2908 = vsub.f32 %v2901, %v2906
    %v2909 = vand.u32 2147483647, %v2908
    %v2910 = vadd.f32 %v2895, %v2909
    %v2911 = vsub.f32 %v2715, %v2785
    %2913 = vrot.lane.b32.xlu0 %v2911, 1
    %v2914 = vpop.permute.xlu0 %2913
    %v2916 = vsub.f32 %v2911, %v2914
    %v2917 = vand.u32 2147483647, %v2916
    %v2918 = vadd.f32 %v2903, %v2917
    %2920 = vrot.lane.b32.xlu0 %v2916, 1
    %v2921 = vpop.permute.xlu0 %2920
    %v2923 = vsub.f32 %v2916, %v2921
    %v2924 = vand.u32 2147483647, %v2923
    %v2925 = vadd.f32 %v2910, %v2924
    %v2926 = vsub.f32 %v2716, %v2786
    %2928 = vrot.lane.b32.xlu0 %v2926, 1
    %v2929 = vpop.permute.xlu0 %2928
    %v2931 = vsub.f32 %v2926, %v2929
    %v2932 = vand.u32 2147483647, %v2931
    %v2933 = vadd.f32 %v2918, %v2932
    %2935 = vrot.lane.b32.xlu0 %v2931, 1
    %v2936 = vpop.permute.xlu0 %2935
    %v2938 = vsub.f32 %v2931, %v2936
    %v2939 = vand.u32 2147483647, %v2938
    %v2940 = vadd.f32 %v2925, %v2939
    %v2941 = vsub.f32 %v2719, %v2789
    %2943 = vrot.lane.b32.xlu0 %v2941, 1
    %v2944 = vpop.permute.xlu0 %2943
    %v2946 = vsub.f32 %v2941, %v2944
    %v2947 = vand.u32 2147483647, %v2946
    %v2948 = vadd.f32 %v2933, %v2947
    %2950 = vrot.lane.b32.xlu0 %v2946, 1
    %v2951 = vpop.permute.xlu0 %2950
    %v2953 = vsub.f32 %v2946, %v2951
    %v2954 = vand.u32 2147483647, %v2953
    %v2955 = vadd.f32 %v2940, %v2954
    %v2956 = vsub.f32 %v2722, %v2792
    %2958 = vrot.lane.b32.xlu0 %v2956, 1
    %v2959 = vpop.permute.xlu0 %2958
    %v2961 = vsub.f32 %v2956, %v2959
    %v2962 = vand.u32 2147483647, %v2961
    %v2963 = vadd.f32 %v2948, %v2962
    %2965 = vrot.lane.b32.xlu0 %v2961, 1
    %v2966 = vpop.permute.xlu0 %2965
    %v2968 = vsub.f32 %v2961, %v2966
    %v2969 = vand.u32 2147483647, %v2968
    %v2970 = vadd.f32 %v2955, %v2969
    %v2971 = vsub.f32 %v2725, %v2795
    %2973 = vrot.lane.b32.xlu0 %v2971, 1
    %v2974 = vpop.permute.xlu0 %2973
    %v2976 = vsub.f32 %v2971, %v2974
    %v2977 = vand.u32 2147483647, %v2976
    %v2978 = vadd.f32 %v2963, %v2977
    %2980 = vrot.lane.b32.xlu0 %v2976, 1
    %v2981 = vpop.permute.xlu0 %2980
    %v2983 = vsub.f32 %v2976, %v2981
    %v2984 = vand.u32 2147483647, %v2983
    %v2985 = vadd.f32 %v2970, %v2984
    %s2986 = scalar_lea.vmem %s0, 114
    %v2987 = vld [vmem:[%s2986] sm:$0x3]
    %s2988 = scalar_lea.vmem %s1, 114
    %v2989 = vld [vmem:[%s2988] sm:$0x3]
    %v2990 = vsub.f32 %v2987, %v2989
    %v2991 = vmul.f32 %v2990, %v2990
    %v2992 = vadd.f32 %v2991, 0.0
    %vm2993 = vcmp.gt.f32.partialorder %v2987, 0.95
    %v2994 = vsel %vm2993, 1, 0
    %v2995 = vcvt.s32.f32 %v2994
    %s2996 = scalar_lea.vmem %s0, 116
    %v2997 = vld [vmem:[%s2996] sm:$0x3]
    %s2998 = scalar_lea.vmem %s1, 116
    %v2999 = vld [vmem:[%s2998] sm:$0x3]
    %v3000 = vsub.f32 %v2997, %v2999
    %v3001 = vmul.f32 %v3000, %v3000
    %v3002 = vadd.f32 %v2992, %v3001
    %vm3003 = vcmp.gt.f32.partialorder %v2997, 0.95
    %v3004 = vsel %vm3003, 1, 0
    %v3005 = vcvt.s32.f32 %v3004
    %s3006 = scalar_lea.vmem %s0, 118
    %v3007 = vld [vmem:[%s3006] sm:$0x3]
    %s3008 = scalar_lea.vmem %s1, 118
    %v3009 = vld [vmem:[%s3008] sm:$0x3]
    %v3010 = vsub.f32 %v3007, %v3009
    %v3011 = vmul.f32 %v3010, %v3010
    %v3012 = vadd.f32 %v3002, %v3011
    %vm3013 = vcmp.gt.f32.partialorder %v3007, 0.95
    %v3014 = vsel %vm3013, 1, 0
    %v3015 = vcvt.s32.f32 %v3014
    %s3016 = scalar_lea.vmem %s0, 120
    %v3017 = vld [vmem:[%s3016] sm:$0x3]
    %s3018 = scalar_lea.vmem %s1, 120
    %v3019 = vld [vmem:[%s3018] sm:$0x3]
    %v3020 = vsub.f32 %v3017, %v3019
    %v3021 = vmul.f32 %v3020, %v3020
    %v3022 = vadd.f32 %v3012, %v3021
    %vm3023 = vcmp.gt.f32.partialorder %v3017, 0.95
    %v3024 = vsel %vm3023, 1, 0
    %v3025 = vcvt.s32.f32 %v3024
    %v3026 = vld [vmem:[%s2] sm:$0x3]
    %v3027 = vld [vmem:[%s2 + $0x2] sm:$0x3]
    %v3028 = vld [vmem:[%s2 + $0x4] sm:$0x3]
    %v3029 = vld [vmem:[%s2 + $0x6] sm:$0x3]
    %v3030 = vld [vmem:[%s2 + $0x8] sm:$0x3]
    %v3031 = vld [vmem:[%s2 + $0xa] sm:$0x3]
    %v3032 = vld [vmem:[%s2 + $0xc] sm:$0x3]
    %v3033 = vld [vmem:[%s2 + $0xe] sm:$0x3]
    %v3034 = vld [vmem:[%s2 + $0x10] sm:$0x3]
    %v3035 = vld [vmem:[%s2 + $0x12] sm:$0x3]
    %v3036 = vld [vmem:[%s2 + $0x14] sm:$0x3]
    %v3037 = vld [vmem:[%s2 + $0x16] sm:$0x3]
    %v3038 = vld [vmem:[%s2 + $0x18] sm:$0x3]
    %v3039 = vld [vmem:[%s2 + $0x1a] sm:$0x3]
    %v3040 = vld [vmem:[%s2 + $0x1c] sm:$0x3]
    %v3041 = vld [vmem:[%s2 + $0x1e] sm:$0x3]
    %v3042 = vld [vmem:[%s2 + $0x20] sm:$0x3]
    %v3043 = vld [vmem:[%s2 + $0x22] sm:$0x3]
    %v3044 = vld [vmem:[%s2 + $0x24] sm:$0x3]
    %v3045 = vld [vmem:[%s2 + $0x26] sm:$0x3]
    %v3046 = vld [vmem:[%s2 + $0x28] sm:$0x3]
    %v3047 = vld [vmem:[%s2 + $0x2a] sm:$0x3]
    %v3048 = vld [vmem:[%s2 + $0x2c] sm:$0x3]
    %v3049 = vld [vmem:[%s2 + $0x2e] sm:$0x3]
    %v3050 = vld [vmem:[%s2 + $0x30] sm:$0x3]
    %v3051 = vld [vmem:[%s2 + $0x32] sm:$0x3]
    %v3052 = vld [vmem:[%s2 + $0x34] sm:$0x3]
    %v3053 = vld [vmem:[%s2 + $0x36] sm:$0x3]
    %v3054 = vld [vmem:[%s2 + $0x38] sm:$0x3]
    %v3055 = vld [vmem:[%s2 + $0x3a] sm:$0x3]
    %v3056 = vld [vmem:[%s2 + $0x3c] sm:$0x3]
    %v3057 = vld [vmem:[%s2 + $0x3e] sm:$0x3]
    %v3058 = vld [vmem:[%s2 + $0x40] sm:$0x3]
    %v3059 = vld [vmem:[%s2 + $0x42] sm:$0x3]
    %v3060 = vld [vmem:[%s2 + $0x44] sm:$0x3]
    %v3061 = vld [vmem:[%s2 + $0x46] sm:$0x3]
    %v3062 = vld [vmem:[%s3] sm:$0x3]
    %v3063 = vld [vmem:[%s3 + $0x2] sm:$0x3]
    %v3064 = vld [vmem:[%s3 + $0x4] sm:$0x3]
    %v3065 = vld [vmem:[%s3 + $0x6] sm:$0x3]
    %v3066 = vld [vmem:[%s3 + $0x8] sm:$0x3]
    %v3067 = vld [vmem:[%s3 + $0xa] sm:$0x3]
    %v3068 = vld [vmem:[%s3 + $0xc] sm:$0x3]
    %v3069 = vld [vmem:[%s3 + $0xe] sm:$0x3]
    %v3070 = vld [vmem:[%s3 + $0x10] sm:$0x3]
    %v3071 = vld [vmem:[%s3 + $0x12] sm:$0x3]
    %v3072 = vld [vmem:[%s3 + $0x14] sm:$0x3]
    %v3073 = vld [vmem:[%s3 + $0x16] sm:$0x3]
    %v3074 = vld [vmem:[%s3 + $0x18] sm:$0x3]
    %v3075 = vld [vmem:[%s3 + $0x1a] sm:$0x3]
    %v3076 = vld [vmem:[%s3 + $0x1c] sm:$0x3]
    %v3077 = vld [vmem:[%s3 + $0x1e] sm:$0x3]
    %v3078 = vld [vmem:[%s3 + $0x20] sm:$0x3]
    %v3079 = vld [vmem:[%s3 + $0x22] sm:$0x3]
    %v3080 = vld [vmem:[%s3 + $0x24] sm:$0x3]
    %v3081 = vld [vmem:[%s3 + $0x26] sm:$0x3]
    %v3082 = vld [vmem:[%s3 + $0x28] sm:$0x3]
    %v3083 = vld [vmem:[%s3 + $0x2a] sm:$0x3]
    %v3084 = vld [vmem:[%s3 + $0x2c] sm:$0x3]
    %v3085 = vld [vmem:[%s3 + $0x2e] sm:$0x3]
    %v3086 = vld [vmem:[%s3 + $0x30] sm:$0x3]
    %v3087 = vld [vmem:[%s3 + $0x32] sm:$0x3]
    %v3088 = vld [vmem:[%s3 + $0x34] sm:$0x3]
    %v3089 = vld [vmem:[%s3 + $0x36] sm:$0x3]
    %v3090 = vld [vmem:[%s3 + $0x38] sm:$0x3]
    %v3091 = vld [vmem:[%s3 + $0x3a] sm:$0x3]
    %v3092 = vld [vmem:[%s3 + $0x3c] sm:$0x3]
    %v3093 = vld [vmem:[%s3 + $0x3e] sm:$0x3]
    %v3094 = vld [vmem:[%s3 + $0x40] sm:$0x3]
    %v3095 = vld [vmem:[%s3 + $0x42] sm:$0x3]
    %v3096 = vld [vmem:[%s3 + $0x44] sm:$0x3]
    %v3097 = vld [vmem:[%s3 + $0x46] sm:$0x3]
    %v3098 = vsub.f32 %v3026, %v3062
    %v3099 = vsub.f32 %v3027, %v3063
    %v3100 = vsub.f32 %v3028, %v3064
    %v3101 = vsub.f32 %v3029, %v3065
    %v3102 = vsub.f32 %v3030, %v3066
    %v3103 = vsub.f32 %v3031, %v3067
    %v3104 = vsub.f32 %v3032, %v3068
    %v3105 = vsub.f32 %v3033, %v3069
    %v3106 = vsub.f32 %v3034, %v3070
    %v3107 = vsub.f32 %v3035, %v3071
    %v3108 = vsub.f32 %v3036, %v3072
    %v3109 = vsub.f32 %v3037, %v3073
    %v3110 = vsub.f32 %v3038, %v3074
    %v3111 = vsub.f32 %v3039, %v3075
    %v3112 = vsub.f32 %v3040, %v3076
    %v3113 = vsub.f32 %v3041, %v3077
    %v3114 = vsub.f32 %v3042, %v3078
    %v3115 = vsub.f32 %v3043, %v3079
    %v3116 = vsub.f32 %v3044, %v3080
    %v3117 = vsub.f32 %v3045, %v3081
    %v3118 = vsub.f32 %v3046, %v3082
    %v3119 = vsub.f32 %v3047, %v3083
    %v3120 = vsub.f32 %v3048, %v3084
    %v3121 = vsub.f32 %v3049, %v3085
    %v3122 = vsub.f32 %v3050, %v3086
    %v3123 = vsub.f32 %v3051, %v3087
    %v3124 = vsub.f32 %v3052, %v3088
    %v3125 = vsub.f32 %v3053, %v3089
    %v3126 = vsub.f32 %v3054, %v3090
    %v3127 = vsub.f32 %v3055, %v3091
    %v3128 = vsub.f32 %v3056, %v3092
    %v3129 = vsub.f32 %v3057, %v3093
    %v3130 = vsub.f32 %v3058, %v3094
    %v3131 = vsub.f32 %v3059, %v3095
    %v3132 = vsub.f32 %v3060, %v3096
    %v3133 = vsub.f32 %v3061, %v3097
    %v3134 = vmul.f32 %v3098, %v3098
    %v3135 = vmul.f32 %v3099, %v3099
    %v3136 = vmul.f32 %v3100, %v3100
    %v3137 = vmul.f32 %v3101, %v3101
    %v3138 = vmul.f32 %v3102, %v3102
    %v3139 = vmul.f32 %v3103, %v3103
    %v3140 = vmul.f32 %v3104, %v3104
    %v3141 = vmul.f32 %v3105, %v3105
    %v3142 = vmul.f32 %v3106, %v3106
    %v3143 = vmul.f32 %v3107, %v3107
    %v3144 = vmul.f32 %v3108, %v3108
    %v3145 = vmul.f32 %v3109, %v3109
    %v3146 = vmul.f32 %v3110, %v3110
    %v3147 = vmul.f32 %v3111, %v3111
    %v3148 = vmul.f32 %v3112, %v3112
    %v3149 = vmul.f32 %v3113, %v3113
    %v3150 = vmul.f32 %v3114, %v3114
    %v3151 = vmul.f32 %v3115, %v3115
    %v3152 = vmul.f32 %v3116, %v3116
    %v3153 = vmul.f32 %v3117, %v3117
    %v3154 = vmul.f32 %v3118, %v3118
    %v3155 = vmul.f32 %v3119, %v3119
    %v3156 = vmul.f32 %v3120, %v3120
    %v3157 = vmul.f32 %v3121, %v3121
    %v3158 = vmul.f32 %v3122, %v3122
    %v3159 = vmul.f32 %v3123, %v3123
    %v3160 = vmul.f32 %v3124, %v3124
    %v3161 = vmul.f32 %v3125, %v3125
    %v3162 = vmul.f32 %v3126, %v3126
    %v3163 = vmul.f32 %v3127, %v3127
    %v3164 = vmul.f32 %v3128, %v3128
    %v3165 = vmul.f32 %v3129, %v3129
    %v3166 = vmul.f32 %v3130, %v3130
    %v3167 = vmul.f32 %v3131, %v3131
    %v3168 = vmul.f32 %v3132, %v3132
    %v3169 = vmul.f32 %v3133, %v3133
    %vm3170 = vcmask 123904
    %v3171 = vsel %vm3170, %v3134, 0.0
    %v3172 = vsel %vm3170, %v3135, 0.0
    %v3173 = vadd.f32 %v3171, %v3172
    %v3174 = vsel %vm3170, %v3136, 0.0
    %v3175 = vadd.f32 %v3173, %v3174
    %v3176 = vsel %vm3170, %v3137, 0.0
    %v3177 = vadd.f32 %v3175, %v3176
    %v3178 = vsel %vm3170, %v3138, 0.0
    %v3179 = vadd.f32 %v3177, %v3178
    %v3180 = vsel %vm3170, %v3139, 0.0
    %v3181 = vadd.f32 %v3179, %v3180
    %v3182 = vsel %vm3170, %v3140, 0.0
    %v3183 = vadd.f32 %v3181, %v3182
    %v3184 = vsel %vm3170, %v3141, 0.0
    %v3185 = vadd.f32 %v3183, %v3184
    %v3186 = vsel %vm3170, %v3142, 0.0
    %v3187 = vadd.f32 %v3185, %v3186
    %v3188 = vsel %vm3170, %v3143, 0.0
    %v3189 = vadd.f32 %v3187, %v3188
    %v3190 = vsel %vm3170, %v3144, 0.0
    %v3191 = vadd.f32 %v3189, %v3190
    %v3192 = vsel %vm3170, %v3145, 0.0
    %v3193 = vadd.f32 %v3191, %v3192
    %v3194 = vsel %vm3170, %v3146, 0.0
    %v3195 = vadd.f32 %v3193, %v3194
    %v3196 = vsel %vm3170, %v3147, 0.0
    %v3197 = vadd.f32 %v3195, %v3196
    %v3198 = vsel %vm3170, %v3148, 0.0
    %v3199 = vadd.f32 %v3197, %v3198
    %v3200 = vsel %vm3170, %v3149, 0.0
    %v3201 = vadd.f32 %v3199, %v3200
    %v3202 = vsel %vm3170, %v3150, 0.0
    %v3203 = vadd.f32 %v3201, %v3202
    %v3204 = vsel %vm3170, %v3151, 0.0
    %v3205 = vadd.f32 %v3203, %v3204
    %v3206 = vsel %vm3170, %v3152, 0.0
    %v3207 = vadd.f32 %v3205, %v3206
    %v3208 = vsel %vm3170, %v3153, 0.0
    %v3209 = vadd.f32 %v3207, %v3208
    %v3210 = vsel %vm3170, %v3154, 0.0
    %v3211 = vadd.f32 %v3209, %v3210
    %v3212 = vsel %vm3170, %v3155, 0.0
    %v3213 = vadd.f32 %v3211, %v3212
    %v3214 = vsel %vm3170, %v3156, 0.0
    %v3215 = vadd.f32 %v3213, %v3214
    %v3216 = vsel %vm3170, %v3157, 0.0
    %v3217 = vadd.f32 %v3215, %v3216
    %v3218 = vsel %vm3170, %v3158, 0.0
    %v3219 = vadd.f32 %v3217, %v3218
    %v3220 = vsel %vm3170, %v3159, 0.0
    %v3221 = vadd.f32 %v3219, %v3220
    %v3222 = vsel %vm3170, %v3160, 0.0
    %v3223 = vadd.f32 %v3221, %v3222
    %v3224 = vsel %vm3170, %v3161, 0.0
    %v3225 = vadd.f32 %v3223, %v3224
    %v3226 = vsel %vm3170, %v3162, 0.0
    %v3227 = vadd.f32 %v3225, %v3226
    %v3228 = vsel %vm3170, %v3163, 0.0
    %v3229 = vadd.f32 %v3227, %v3228
    %v3230 = vsel %vm3170, %v3164, 0.0
    %v3231 = vadd.f32 %v3229, %v3230
    %v3232 = vsel %vm3170, %v3165, 0.0
    %v3233 = vadd.f32 %v3231, %v3232
    %v3234 = vsel %vm3170, %v3166, 0.0
    %v3235 = vadd.f32 %v3233, %v3234
    %v3236 = vsel %vm3170, %v3167, 0.0
    %v3237 = vadd.f32 %v3235, %v3236
    %v3238 = vsel %vm3170, %v3168, 0.0
    %v3239 = vadd.f32 %v3237, %v3238
    %v3240 = vsel %vm3170, %v3169, 0.0
    %v3241 = vadd.f32 %v3239, %v3240
    %s3242 = scalar_lea.vmem %s2, 42
    %v3243 = vld [vmem:[%s3242] sm:$0x3]
    %3245 = vrot.lane.b32.xlu0 %v3243, 1
    %v3246 = vpop.permute.xlu0 %3245
    %v3248 = vsub.f32 %v3243, %v3246
    %v3249 = vand.u32 2147483647, %v3248
    %3251 = vrot.lane.b32.xlu0 %v2995, 1
    %v3252 = vpop.permute.xlu0 %3251
    %v3254 = vmul.f32 %v3249, %v3252
    %v3255 = vadd.f32 %v3254, 0.0
    %s3256 = scalar_lea.vmem %s2, 44
    %v3257 = vld [vmem:[%s3256] sm:$0x3]
    %3259 = vrot.lane.b32.xlu0 %v3257, 1
    %v3260 = vpop.permute.xlu0 %3259
    %v3262 = vsub.f32 %v3257, %v3260
    %v3263 = vand.u32 2147483647, %v3262
    %v3264 = vmul.f32 %v3263, %v3252
    %v3265 = vadd.f32 %v3255, %v3264
    %s3266 = scalar_lea.vmem %s2, 46
    %v3267 = vld [vmem:[%s3266] sm:$0x3]
    %3269 = vrot.lane.b32.xlu0 %v3267, 1
    %v3270 = vpop.permute.xlu0 %3269
    %v3272 = vsub.f32 %v3267, %v3270
    %v3273 = vand.u32 2147483647, %v3272
    %v3274 = vmul.f32 %v3273, %v3252
    %v3275 = vadd.f32 %v3265, %v3274
    %s3276 = scalar_lea.vmem %s2, 48
    %v3277 = vld [vmem:[%s3276] sm:$0x3]
    %3279 = vrot.lane.b32.xlu0 %v3277, 1
    %v3280 = vpop.permute.xlu0 %3279
    %v3282 = vsub.f32 %v3277, %v3280
    %v3283 = vand.u32 2147483647, %v3282
    %3285 = vrot.lane.b32.xlu0 %v3005, 1
    %v3286 = vpop.permute.xlu0 %3285
    %v3288 = vmul.f32 %v3283, %v3286
    %v3289 = vadd.f32 %v3275, %v3288
    %s3290 = scalar_lea.vmem %s2, 50
    %v3291 = vld [vmem:[%s3290] sm:$0x3]
    %3293 = vrot.lane.b32.xlu0 %v3291, 1
    %v3294 = vpop.permute.xlu0 %3293
    %v3296 = vsub.f32 %v3291, %v3294
    %v3297 = vand.u32 2147483647, %v3296
    %v3298 = vmul.f32 %v3297, %v3286
    %v3299 = vadd.f32 %v3289, %v3298
    %s3300 = scalar_lea.vmem %s2, 52
    %v3301 = vld [vmem:[%s3300] sm:$0x3]
    %3303 = vrot.lane.b32.xlu0 %v3301, 1
    %v3304 = vpop.permute.xlu0 %3303
    %v3306 = vsub.f32 %v3301, %v3304
    %v3307 = vand.u32 2147483647, %v3306
    %v3308 = vmul.f32 %v3307, %v3286
    %v3309 = vadd.f32 %v3299, %v3308
    %s3310 = scalar_lea.vmem %s2, 60
    %v3311 = vld [vmem:[%s3310] sm:$0x3]
    %3313 = vrot.lane.b32.xlu0 %v3311, 1
    %v3314 = vpop.permute.xlu0 %3313
    %v3316 = vsub.f32 %v3311, %v3314
    %v3317 = vand.u32 2147483647, %v3316
    %3319 = vrot.lane.b32.xlu0 %v3015, 1
    %v3320 = vpop.permute.xlu0 %3319
    %v3322 = vmul.f32 %v3317, %v3320
    %v3323 = vadd.f32 %v3309, %v3322
    %s3324 = scalar_lea.vmem %s2, 62
    %v3325 = vld [vmem:[%s3324] sm:$0x3]
    %3327 = vrot.lane.b32.xlu0 %v3325, 1
    %v3328 = vpop.permute.xlu0 %3327
    %v3330 = vsub.f32 %v3325, %v3328
    %v3331 = vand.u32 2147483647, %v3330
    %v3332 = vmul.f32 %v3331, %v3320
    %v3333 = vadd.f32 %v3323, %v3332
    %s3334 = scalar_lea.vmem %s2, 64
    %v3335 = vld [vmem:[%s3334] sm:$0x3]
    %3337 = vrot.lane.b32.xlu0 %v3335, 1
    %v3338 = vpop.permute.xlu0 %3337
    %v3340 = vsub.f32 %v3335, %v3338
    %v3341 = vand.u32 2147483647, %v3340
    %v3342 = vmul.f32 %v3341, %v3320
    %v3343 = vadd.f32 %v3333, %v3342
    %s3344 = scalar_lea.vmem %s2, 66
    %v3345 = vld [vmem:[%s3344] sm:$0x3]
    %3347 = vrot.lane.b32.xlu0 %v3345, 1
    %v3348 = vpop.permute.xlu0 %3347
    %v3350 = vsub.f32 %v3345, %v3348
    %v3351 = vand.u32 2147483647, %v3350
    %3353 = vrot.lane.b32.xlu0 %v3025, 1
    %v3354 = vpop.permute.xlu0 %3353
    %v3356 = vmul.f32 %v3351, %v3354
    %v3357 = vadd.f32 %v3343, %v3356
    %s3358 = scalar_lea.vmem %s2, 68
    %v3359 = vld [vmem:[%s3358] sm:$0x3]
    %3361 = vrot.lane.b32.xlu0 %v3359, 1
    %v3362 = vpop.permute.xlu0 %3361
    %v3364 = vsub.f32 %v3359, %v3362
    %v3365 = vand.u32 2147483647, %v3364
    %v3366 = vmul.f32 %v3365, %v3354
    %v3367 = vadd.f32 %v3357, %v3366
    %s3368 = scalar_lea.vmem %s2, 70
    %v3369 = vld [vmem:[%s3368] sm:$0x3]
    %3371 = vrot.lane.b32.xlu0 %v3369, 1
    %v3372 = vpop.permute.xlu0 %3371
    %v3374 = vsub.f32 %v3369, %v3372
    %v3375 = vand.u32 2147483647, %v3374
    %v3376 = vmul.f32 %v3375, %v3354
    %v3377 = vadd.f32 %v3367, %v3376
    %v3378 = vsel %vm3170, %v2850, 0.0
    %3379 = vadd.xlane.f32.xlu0 %v3378
    %v3380 = vpop.xlane.xlu0 %3379
    %v3381 = vrot.slane %v3380, 4
    %v3382 = vadd.f32 %v3380, %v3381
    %v3383 = vrot.slane %v3382, 2
    %v3384 = vadd.f32 %v3382, %v3383
    %v3385 = vrot.slane %v3384, 1
    %v3386 = vadd.f32 %v3384, %v3385
    %s3387 = vtos %v3386
    %v3388 = vsel %vm3170, %v3022, 0.0
    %3389 = vadd.xlane.f32.xlu0 %v3388
    %v3390 = vpop.xlane.xlu0 %3389
    %v3391 = vrot.slane %v3390, 4
    %v3392 = vadd.f32 %v3390, %v3391
    %v3393 = vrot.slane %v3392, 2
    %v3394 = vadd.f32 %v3392, %v3393
    %v3395 = vrot.slane %v3394, 1
    %v3396 = vadd.f32 %v3394, %v3395
    %s3397 = vtos %v3396
    %3399 = vrot.lane.b32.xlu0 %v2978, 127
    %v3400 = vpop.permute.xlu0 %3399
    %vm3402 = vcmask 115712
    %v3403 = vsel %vm3402, %v3400, 0.0
    %3404 = vadd.xlane.f32.xlu0 %v3403
    %v3405 = vpop.xlane.xlu0 %3404
    %v3406 = vrot.slane %v3405, 4
    %v3407 = vadd.f32 %v3405, %v3406
    %v3408 = vrot.slane %v3407, 2
    %v3409 = vadd.f32 %v3407, %v3408
    %v3410 = vrot.slane %v3409, 1
    %v3411 = vadd.f32 %v3409, %v3410
    %s3412 = vtos %v3411
    %3414 = vrot.lane.b32.xlu0 %v2985, 126
    %v3415 = vpop.permute.xlu0 %3414
    %vm3417 = vcmask 107520
    %v3418 = vsel %vm3417, %v3415, 0.0
    %3419 = vadd.xlane.f32.xlu0 %v3418
    %v3420 = vpop.xlane.xlu0 %3419
    %v3421 = vrot.slane %v3420, 4
    %v3422 = vadd.f32 %v3420, %v3421
    %v3423 = vrot.slane %v3422, 2
    %v3424 = vadd.f32 %v3422, %v3423
    %v3425 = vrot.slane %v3424, 1
    %v3426 = vadd.f32 %v3424, %v3425
    %s3427 = vtos %v3426
    %v3428 = vsel %vm3170, %v3241, 0.0
    %3429 = vadd.xlane.f32.xlu0 %v3428
    %v3430 = vpop.xlane.xlu0 %3429
    %v3431 = vrot.slane %v3430, 4
    %v3432 = vadd.f32 %v3430, %v3431
    %v3433 = vrot.slane %v3432, 2
    %v3434 = vadd.f32 %v3432, %v3433
    %v3435 = vrot.slane %v3434, 1
    %v3436 = vadd.f32 %v3434, %v3435
    %s3437 = vtos %v3436
    %3439 = vrot.lane.b32.xlu0 %v3377, 127
    %v3440 = vpop.permute.xlu0 %3439
    %v3442 = vsel %vm3402, %v3440, 0.0
    %3443 = vadd.xlane.f32.xlu0 %v3442
    %v3444 = vpop.xlane.xlu0 %3443
    %v3445 = vrot.slane %v3444, 4
    %v3446 = vadd.f32 %v3444, %v3445
    %v3447 = vrot.slane %v3446, 2
    %v3448 = vadd.f32 %v3446, %v3447
    %v3449 = vrot.slane %v3448, 1
    %v3450 = vadd.f32 %v3448, %v3449
    %s3451 = vtos %v3450
    %v3452 = vlaneseq
    %v3453 = vshrl.u32 %v3452, 7
    %vm3454 = vcmp.eq.s32.totalorder %v3453, 0
    %v3455 = vstv %s3387
    %v3456 = vsel %vm3454, %v3455, 0.0
    %vm3457 = vcmp.eq.s32.totalorder %v3453, 1
    %v3458 = vstv %s3397
    %v3459 = vsel %vm3457, %v3458, 0.0
    %v3460 = vadd.f32 %v3456, %v3459
    %vm3461 = vcmp.eq.s32.totalorder %v3453, 2
    %v3462 = vstv %s3412
    %v3463 = vsel %vm3461, %v3462, 0.0
    %v3464 = vadd.f32 %v3460, %v3463
    %vm3465 = vcmp.eq.s32.totalorder %v3453, 3
    %v3466 = vstv %s3427
    %v3467 = vsel %vm3465, %v3466, 0.0
    %v3468 = vadd.f32 %v3464, %v3467
    %vm3469 = vcmp.eq.s32.totalorder %v3453, 4
    %v3470 = vstv %s3437
    %v3471 = vsel %vm3469, %v3470, 0.0
    %v3472 = vadd.f32 %v3468, %v3471
    %vm3473 = vcmp.eq.s32.totalorder %v3453, 5
    %v3474 = vstv %s3451
    %v3475 = vsel %vm3473, %v3474, 0.0
    %v3476 = vadd.f32 %v3472, %v3475
    %3477 = vst [vmem:[#allocation2] sm:$0xff] %v3476
    // Predicated region
    $region18: #{tpu_custom_call.1} parent=1 // pred_check
      _
    $region19: #{tpu_custom_call.1} parent=1 // pred_check_branch
      %3479 = sbr.rel (0) target = $region21
    $region20: #{tpu_custom_call.1} parent=1 // pred_region
      %3481 = vsyncadd [#allocation3], 0
      %s3483 = sshll.u32 [#allocation2], 4
      %s3484 = int_to_ptr.vmem [resolvable:$true] %s3483
      %s3485 = sshll.u32 %s4, 4
      %s3486 = int_to_ptr.hbm [resolvable:$true] %s3485
      %3488 = dma.vmem_to_hbm [thread:$0]  %s3484, 128, %s3486, [#allocation3]
    $region21: #{tpu_custom_call.1} parent=1 // pred_fallthru
      _
    // Predicated region
    $region22: #{tpu_custom_call.1} parent=1 // pred_check
      _
    $region23: #{tpu_custom_call.1} parent=1 // pred_check_branch
      %3490 = sbr.rel (0) target = $region25
    $region24: #{tpu_custom_call.1} parent=1 // pred_region
      %3492 = dma.done [#allocation3], 128
    $region25: #{tpu_custom_call.1} parent=1 // pred_fallthru
      _
    %3493 = vsyncpa [#allocation3], 1

</llo_original>
